<compile_context>
chip_gen: v7x
topology: tpu7x:2x2x1
jax: 0.10.0
libtpu: 0.0.40
codegen_flags: <defaults>
</compile_context>

<pallas_src>
import numpy as np
import jax
import jax.numpy as jnp
from jax import lax
from jax.experimental import pallas as pl
from jax.experimental.pallas import tpu as pltpu

# ----------------- synthetic config (small but TPU-tile friendly) -----------------
N_USERS, N_ITEMS = 64, 64
N_NODES = N_USERS + N_ITEMS
EMBED_DIM = 128          # embedding_dim
EXTRA_DIM = 256          # extra_dim (scaled-down stand-in for 768)
NUM_HEADS = 4
NUM_LAYERS = 3
EDGE_DIM = 2
N_CLUSTERS = 8
GN_EPS = 1e-5            # GraphNorm eps
NEG_MASK = -1e30         # additive mask for non-edges


# ================================ fused Pallas kernel ================================

def fused_forward_kernel(
        uemb_ref, iemb_ref, extra_ref,                              # embeddings / extra features
        fw1a_ref, fw1b_ref, fb1_ref, fw2_ref, fb2_ref,              # fusion MLP
        p_ref, gcnw_ref, gcnb_ref, updmask_ref,                     # ClusterGCN
        pool_ref, scatter_ref,                                      # cluster mean-pool / broadcast
        cwstack_ref, cusrc_ref, cudstT_ref, cbias_ref, cgatb_ref,   # cluster-level GAT (f32)
        nwstack_hbm, nbias_hbm,                                     # node GAT big tensors (ANY, manual DMA)
        nusrc_ref, nudstT_ref, ngatb_ref,                           # node GAT small params
        nw_ref, nb_ref, nms_ref,                                    # GraphNorm params
        out_ref,                                                    # output [N, D]
        x_scr, wstack_scr, nbias_scr, dma_sem):                     # scratch
    f32, bf16 = jnp.float32, jnp.bfloat16
    H, D = NUM_HEADS, EMBED_DIM
    inv_heads = 1.0 / H

    # -- kick off DMA of the two largest inputs; hidden behind fusion MLP / GCN / cluster GAT --
    w_cp = pltpu.make_async_copy(nwstack_hbm, wstack_scr, dma_sem.at[0])
    b_cp = pltpu.make_async_copy(nbias_hbm, nbias_scr, dma_sem.at[1])
    w_cp.start()
    b_cp.start()

    def dense_gat(x, wstack, usrc, udstT, bias_ref, out_bias, mm_dtype):
        # Dense PyG GATConv (concat=False, edge_dim; self-loops & adjacency mask folded into
        # the precomputed per-head bias maps host-side).
        xm = x.astype(mm_dtype)
        a_dst = jnp.dot(xm, udstT, preferred_element_type=f32)             # [n, H] target coeffs
        a_src = lax.dot_general(usrc, xm, (((1,), (1,)), ((), ())),        # [H, n] source coeffs
                                preferred_element_type=f32)                # (NT matmul: no x.T copy)
        zs = []
        for h in range(H):
            logits = a_dst[:, h:h + 1] + a_src[h:h + 1, :] + bias_ref[h].astype(f32)
            logits = jnp.maximum(logits, 0.2 * logits)                     # LeakyReLU(0.2)
            m = jnp.max(logits, axis=-1, keepdims=True)
            p = jnp.exp(logits - m)
            inv = pl.reciprocal(jnp.sum(p, axis=-1, keepdims=True), approx=True)
            zs.append(jnp.dot((p * inv).astype(mm_dtype), xm,              # softmax(in-edges) @ x
                              preferred_element_type=f32))                 # [n, D]
        z_cat = jnp.concatenate(zs, axis=1).astype(mm_dtype)               # [n, H*D] lane concat
        acc = jnp.dot(z_cat, wstack, preferred_element_type=f32)           # = sum_h (alpha_h @ x) W_h
        # TODO(synk): on v7x prefer per-head accumulating matmuls (MRB in-place accumulate).
        return acc * inv_heads + out_bias                                  # mean over heads + bias

    # ---- fusion MLP: Linear(D+extra -> 2D) -> ReLU -> Dropout(identity) -> Linear(2D -> D) ----
    h1 = (jnp.dot(iemb_ref[...].astype(bf16), fw1a_ref[...], preferred_element_type=f32)
          + jnp.dot(extra_ref[...].astype(bf16), fw1b_ref[...], preferred_element_type=f32)
          + fb1_ref[...])
    h1 = jnp.maximum(h1, 0.0)   # TODO(synk): nn.Dropout inside fusion treated as identity (inference).
    enriched = jnp.dot(h1.astype(bf16), fw2_ref[...], preferred_element_type=f32) + fb2_ref[...]

    # ---- X = [user_emb ; enriched_item_emb], assembled in a persistent VMEM scratch ----
    x_scr[0:N_USERS, :] = uemb_ref[...]
    x_scr[N_USERS:N_NODES, :] = enriched
    x = x_scr[...]

    # ---- ClusterGCN: P @ (X W) + b ; clusters without intra edges keep original rows ----
    xw = jnp.dot(x.astype(bf16), gcnw_ref[...], preferred_element_type=f32)
    x_gcn = jnp.dot(p_ref[...], xw.astype(bf16), preferred_element_type=f32) + gcnb_ref[...]
    x = x + updmask_ref[...] * (x_gcn - x)

    # ---- ClusterPooling (mean) + GlobalGATOverClusters (f32, 8-row path) + broadcast ----
    pooled = jnp.dot(pool_ref[...], x.astype(bf16), preferred_element_type=f32)      # [C, D]
    upd_c = dense_gat(pooled, cwstack_ref[...], cusrc_ref[...], cudstT_ref[...],
                      cbias_ref, cgatb_ref[...], f32)
    x = x + jnp.dot(scatter_ref[...], upd_c.astype(bf16), preferred_element_type=f32)

    # ---- node-GAT weights / bias maps are needed from here on ----
    w_cp.wait()
    b_cp.wait()

    # ---- 3 x [GAT + GraphNorm + residual ELU]; X stays resident in VMEM/vregs ----
    for l in range(NUM_LAYERS):
        x_in = x
        x_gat = dense_gat(x, wstack_scr[l], nusrc_ref[l], nudstT_ref[l],
                          nbias_scr.at[l], ngatb_ref[l], bf16)
        mean = jnp.mean(x_gat, axis=0, keepdims=True)                      # GraphNorm (single graph)
        cen = x_gat - nms_ref[l] * mean
        var = jnp.mean(cen * cen, axis=0, keepdims=True)
        normed = nw_ref[l] * cen * lax.rsqrt(var + GN_EPS) + nb_ref[l]
        z = normed + x_in
        x = jnp.where(z > 0.0, z, jnp.exp(z) - 1.0)                        # ELU(alpha=1)
        # TODO(synk): per-layer nn.Dropout treated as identity (inference mode).

    out_ref[...] = x


_VMEM = pl.BlockSpec(memory_space=pltpu.MemorySpace.VMEM)
_ANY = pl.BlockSpec(memory_space=pl.ANY)

fused_call = pl.pallas_call(
    fused_forward_kernel,
    out_shape=jax.ShapeDtypeStruct((N_NODES, EMBED_DIM), jnp.float32),
    in_specs=[_VMEM] * 19 + [_ANY] * 2 + [_VMEM] * 6,
    out_specs=_VMEM,
    scratch_shapes=[
        pltpu.VMEM((N_NODES, EMBED_DIM), jnp.float32),                                # resident X
        pltpu.VMEM((NUM_LAYERS, NUM_HEADS * EMBED_DIM, EMBED_DIM), jnp.bfloat16),     # node W_stacks
        pltpu.VMEM((NUM_LAYERS, NUM_HEADS, N_NODES, N_NODES), jnp.bfloat16),          # node edge bias
        pltpu.SemaphoreType.DMA((2,)),
    ],
    compiler_params=pltpu.CompilerParams(vmem_limit_bytes=16 * 1024 * 1024),
    cost_estimate=pl.CostEstimate(flops=135_000_000, transcendentals=260_000,
                                  bytes_accessed=2_300_000),
)


# =========================== host-side graph preprocessing ===========================

def build_graph():
    src, dst, attrs = [], [], []
    for u in range(N_USERS):
        for k in range(3):
            it = N_USERS + (3 * u + k) % N_ITEMS
            a = np.array([((u + it) % 5) / 5.0 + 0.5, ((u * (k + 1)) % 7) / 7.0], np.float32)
            src += [u, it]; dst += [it, u]; attrs += [a, a]
    src = np.array(src); dst = np.array(dst); attrs = np.stack(attrs).astype(np.float32)
    cluster = (np.arange(N_NODES) % N_CLUSTERS).astype(np.int64)

    # ClusterGCNLayer: block-diagonal symmetric-normalized propagation with self loops.
    intra = cluster[src] == cluster[dst]
    A = np.zeros((N_NODES, N_NODES), np.float32)
    A[dst[intra], src[intra]] = 1.0
    A_hat = A + np.eye(N_NODES, dtype=np.float32)
    dinv = 1.0 / np.sqrt(A_hat.sum(axis=1))
    P = A_hat * dinv[:, None] * dinv[None, :]
    clusters_with_edges = np.unique(cluster[src[intra]])
    update_mask = np.isin(cluster, clusters_with_edges).astype(np.float32)[:, None]

    def dense_with_self_loops(n, s, d, a):
        mask = np.zeros((n, n), np.float32)
        attr = np.zeros((n, n, EDGE_DIM), np.float32)
        if len(s):
            mask[d, s] = 1.0
            attr[d, s] = a
        cnt = np.zeros(n, np.float32); asum = np.zeros((n, EDGE_DIM), np.float32)
        if len(s):
            np.add.at(cnt, d, 1.0); np.add.at(asum, d, a)
        self_attr = np.where(cnt[:, None] > 0, asum / np.maximum(cnt, 1.0)[:, None], 0.0)
        idx = np.arange(n)
        mask[idx, idx] = 1.0            # add_self_loops
        attr[idx, idx] = self_attr      # fill_value='mean'
        addmask = np.where(mask > 0, 0.0, NEG_MASK).astype(np.float32)
        return attr, addmask

    attr_full, amask_full = dense_with_self_loops(N_NODES, src, dst, attrs)

    # build_cluster_graph: directed inter-cluster edges with averaged attrs.
    cdict = {}
    for e in range(len(src)):
        cu, cv = int(cluster[src[e]]), int(cluster[dst[e]])
        if cu != cv:
            cdict.setdefault((cu, cv), []).append(attrs[e])
    c_src = np.array([k[0] for k in cdict], np.int64)
    c_dst = np.array([k[1] for k in cdict], np.int64)
    c_attr = (np.stack([np.mean(v, axis=0) for v in cdict.values()]).astype(np.float32)
              if len(cdict) else np.zeros((0, EDGE_DIM), np.float32))
    attr_c, amask_c = dense_with_self_loops(N_CLUSTERS, c_src, c_dst, c_attr)

    # global_mean_pool and cluster->node scatter as matrices.
    pool = np.zeros((N_CLUSTERS, N_NODES), np.float32)
    scat = np.zeros((N_NODES, N_CLUSTERS), np.float32)
    for c in range(N_CLUSTERS):
        m = cluster == c
        pool[c, m] = 1.0 / m.sum()
        scat[m, c] = 1.0

    return dict(
        P=jnp.asarray(P),
        update_mask=jnp.asarray(update_mask),
        attr0=jnp.asarray(np.ascontiguousarray(attr_full[:, :, 0])),
        attr1=jnp.asarray(np.ascontiguousarray(attr_full[:, :, 1])),
        addmask=jnp.asarray(amask_full),
        cattr0=jnp.asarray(np.ascontiguousarray(attr_c[:, :, 0])),
        cattr1=jnp.asarray(np.ascontiguousarray(attr_c[:, :, 1])),
        caddmask=jnp.asarray(amask_c),
        pool_mat=jnp.asarray(pool),
        scatter_mat=jnp.asarray(scat),
    )


# ================================ parameters ================================

def init_params():
    keys = iter(jax.random.split(jax.random.PRNGKey(0), 64))

    def rnd(shape, scale):
        return scale * jax.random.normal(next(keys), shape, dtype=jnp.float32)

    def init_gat():
        return dict(
            w=rnd((EMBED_DIM, NUM_HEADS * EMBED_DIM), 1.0 / np.sqrt(EMBED_DIM)),
            att_src=rnd((NUM_HEADS, EMBED_DIM), 0.1),
            att_dst=rnd((NUM_HEADS, EMBED_DIM), 0.1),
            w_edge=rnd((EDGE_DIM, NUM_HEADS * EMBED_DIM), 0.5),
            att_edge=rnd((NUM_HEADS, EMBED_DIM), 0.1),
            bias=rnd((1, EMBED_DIM), 0.1),
        )

    return dict(
        user_emb=rnd((N_USERS, EMBED_DIM), 0.1),
        item_emb=rnd((N_ITEMS, EMBED_DIM), 0.1),
        fusion_w1=rnd((EMBED_DIM + EXTRA_DIM, 2 * EMBED_DIM), 1.0 / np.sqrt(EMBED_DIM + EXTRA_DIM)),
        fusion_b1=rnd((1, 2 * EMBED_DIM), 0.05),
        fusion_w2=rnd((2 * EMBED_DIM, EMBED_DIM), 1.0 / np.sqrt(2 * EMBED_DIM)),
        fusion_b2=rnd((1, EMBED_DIM), 0.05),
        gcn_w=rnd((EMBED_DIM, EMBED_DIM), 1.0 / np.sqrt(EMBED_DIM)),
        gcn_b=rnd((1, EMBED_DIM), 0.05),
        global_gat=init_gat(),
        gat_layers=[init_gat() for _ in range(NUM_LAYERS)],
        norms=[dict(weight=jnp.ones((1, EMBED_DIM), jnp.float32),
                    bias=jnp.zeros((1, EMBED_DIM), jnp.float32),
                    mean_scale=jnp.ones((1, EMBED_DIM), jnp.float32))
               for _ in range(NUM_LAYERS)],
    )


def prepare_inputs(params, graph):
    # One-time host-side rearrangement into the kernel-friendly layout:
    #  * W_stack[g]       = vstack_h(W_h)      [H*D, D]  (lane-concat aggregation reorder)
    #  * u_src[g][h, :]   = W_h @ att_src_h    [H, D]    (source coeffs via one NT dot vs x)
    #  * u_dst_T[g][:, h] = W_h @ att_dst_h    [D, H]    (target coeffs via x @ u_dst_T)
    #  * bias[g][h]       = attr0*v0 + attr1*v1 + addmask  (per-head edge bias, adjacency mask folded)
    #    with v_e[h] = w_edge[e, h*D:(h+1)*D] . att_edge[h]
    # TODO(synk): PyG lin_edge bias (if enabled) not modeled; edge attention uses w_edge only.
    D, H, E = EMBED_DIM, NUM_HEADS, EDGE_DIM
    bf16 = jnp.bfloat16

    def gat_derived(g):
        w3 = g['w'].reshape(D, H, D)
        wstack = jnp.transpose(w3, (1, 0, 2)).reshape(H * D, D)
        usrc = jnp.einsum('khd,hd->hk', w3, g['att_src'])
        udstT = jnp.einsum('khd,hd->kh', w3, g['att_dst'])
        ea = jnp.einsum('ehc,hc->eh', g['w_edge'].reshape(E, H, D), g['att_edge'])   # [E, H]
        return wstack, usrc, udstT, ea

    def edge_bias(ea, a0, a1, addmask):
        return (ea[0][:, None, None] * a0[None] + ea[1][:, None, None] * a1[None] + addmask[None])

    cw, cus, cud, cea = gat_derived(params['global_gat'])
    cbias = edge_bias(cea, graph['cattr0'], graph['cattr1'], graph['caddmask'])     # [H, C, C] f32

    nw, nus, nud, nbias = [], [], [], []
    for g in params['gat_layers']:
        w, us, ud, ea = gat_derived(g)
        nw.append(w); nus.append(us); nud.append(ud)
        nbias.append(edge_bias(ea, graph['attr0'], graph['attr1'], graph['addmask']))

    norm_w = jnp.stack([n['weight'] for n in params['norms']])
    norm_b = jnp.stack([n['bias'] for n in params['norms']])
    norm_ms = jnp.stack([n['mean_scale'] for n in params['norms']])

    return dict(
        user_emb=params['user_emb'], item_emb=params['item_emb'],
        fusion_w1a=params['fusion_w1'][:D].astype(bf16),
        fusion_w1b=params['fusion_w1'][D:].astype(bf16),
        fusion_b1=params['fusion_b1'],
        fusion_w2=params['fusion_w2'].astype(bf16),
        fusion_b2=params['fusion_b2'],
        P=graph['P'].astype(bf16),
        gcn_w=params['gcn_w'].astype(bf16), gcn_b=params['gcn_b'],
        update_mask=graph['update_mask'],
        pool_mat=graph['pool_mat'].astype(bf16), scatter_mat=graph['scatter_mat'].astype(bf16),
        cwstack=cw, cusrc=cus, cudstT=cud, cbias=cbias,                      # cluster GAT kept f32
        cgat_bias=params['global_gat']['bias'],
        nwstack=jnp.stack(nw).astype(bf16),                                  # [L, H*D, D] -> manual DMA
        nbias=jnp.stack(nbias).astype(bf16),                                 # [L, H, N, N] -> manual DMA
        nusrc=jnp.stack(nus).astype(bf16),                                   # [L, H, D]
        nudstT=jnp.stack(nud).astype(bf16),                                  # [L, D, H]
        ngat_bias=jnp.stack([g['bias'] for g in params['gat_layers']]),      # [L, 1, D]
        norm_w=norm_w, norm_b=norm_b, norm_ms=norm_ms,
    )


# ================================ forward ================================

@jax.jit
def enriched_gat_forward(prep, extra_feats):
    x = fused_call(
        prep['user_emb'], prep['item_emb'], extra_feats,
        prep['fusion_w1a'], prep['fusion_w1b'], prep['fusion_b1'],
        prep['fusion_w2'], prep['fusion_b2'],
        prep['P'], prep['gcn_w'], prep['gcn_b'], prep['update_mask'],
        prep['pool_mat'], prep['scatter_mat'],
        prep['cwstack'], prep['cusrc'], prep['cudstT'], prep['cbias'], prep['cgat_bias'],
        prep['nwstack'], prep['nbias'],
        prep['nusrc'], prep['nudstT'], prep['ngat_bias'],
        prep['norm_w'], prep['norm_b'], prep['norm_ms'])
    return x[:N_USERS], x[N_USERS:]


if __name__ == "__main__":
    params = init_params()
    graph = build_graph()
    prep = prepare_inputs(params, graph)
    product_extra_features = 0.1 * jax.random.normal(
        jax.random.PRNGKey(0), (N_ITEMS, EXTRA_DIM), dtype=jnp.float32)

    user_out, item_out = enriched_gat_forward(prep, product_extra_features)
    jax.block_until_ready((user_out, item_out))

    assert user_out.shape == (N_USERS, EMBED_DIM)
    assert item_out.shape == (N_ITEMS, EMBED_DIM)
    assert bool(jnp.all(jnp.isfinite(user_out))) and bool(jnp.all(jnp.isfinite(item_out)))
    print("KERNEL_OK")
</pallas_src>

<mosaic_0001>
module attributes {stable_mosaic.version = 11 : i64} {
  func.func @fused_forward_kernel(%arg0: memref<64x128xf32, #tpu.memory_space<vmem>>, %arg1: memref<64x128xf32, #tpu.memory_space<vmem>>, %arg2: memref<64x256xf32, #tpu.memory_space<vmem>>, %arg3: memref<128x256xbf16, #tpu.memory_space<vmem>>, %arg4: memref<256x256xbf16, #tpu.memory_space<vmem>>, %arg5: memref<1x256xf32, #tpu.memory_space<vmem>>, %arg6: memref<256x128xbf16, #tpu.memory_space<vmem>>, %arg7: memref<1x128xf32, #tpu.memory_space<vmem>>, %arg8: memref<128x128xbf16, #tpu.memory_space<vmem>>, %arg9: memref<128x128xbf16, #tpu.memory_space<vmem>>, %arg10: memref<1x128xf32, #tpu.memory_space<vmem>>, %arg11: memref<128x1xf32, #tpu.memory_space<vmem>>, %arg12: memref<8x128xbf16, #tpu.memory_space<vmem>>, %arg13: memref<128x8xbf16, #tpu.memory_space<vmem>>, %arg14: memref<512x128xf32, #tpu.memory_space<vmem>>, %arg15: memref<4x128xf32, #tpu.memory_space<vmem>>, %arg16: memref<128x4xf32, #tpu.memory_space<vmem>>, %arg17: memref<4x8x8xf32, #tpu.memory_space<vmem>>, %arg18: memref<1x128xf32, #tpu.memory_space<vmem>>, %arg19: memref<3x512x128xbf16, #tpu.memory_space<any>>, %arg20: memref<3x4x128x128xbf16, #tpu.memory_space<any>>, %arg21: memref<3x4x128xbf16, #tpu.memory_space<vmem>>, %arg22: memref<3x128x4xbf16, #tpu.memory_space<vmem>>, %arg23: memref<3x1x128xf32, #tpu.memory_space<vmem>>, %arg24: memref<3x1x128xf32, #tpu.memory_space<vmem>>, %arg25: memref<3x1x128xf32, #tpu.memory_space<vmem>>, %arg26: memref<3x1x128xf32, #tpu.memory_space<vmem>>, %arg27: memref<128x128xf32, #tpu.memory_space<vmem>>, %arg28: memref<128x128xf32, #tpu.memory_space<vmem>>, %arg29: memref<3x512x128xbf16, #tpu.memory_space<vmem>>, %arg30: memref<3x4x128x128xbf16, #tpu.memory_space<vmem>>, %arg31: memref<2x!tpu.dma_semaphore, #tpu.memory_space<semaphore_mem>>) attributes {dimension_semantics = [], scalar_prefetch = 0 : i64, scratch_operands = 4 : i64, tpu.core_type = #tpu.core_type<tc>} {
    %c0_i32 = arith.constant 0 : i32
    %0 = tpu.memref_slice %arg31[%c0_i32] : memref<2x!tpu.dma_semaphore, #tpu.memory_space<semaphore_mem>> -> memref<1x!tpu.dma_semaphore, #tpu.memory_space<semaphore_mem>>
    %1 = tpu.memref_squeeze %0 : memref<1x!tpu.dma_semaphore, #tpu.memory_space<semaphore_mem>> -> memref<!tpu.dma_semaphore, #tpu.memory_space<semaphore_mem>>
    tpu.enqueue_dma source(%arg19 : memref<3x512x128xbf16, #tpu.memory_space<any>>) target(%arg29 : memref<3x512x128xbf16, #tpu.memory_space<vmem>>) target_semaphore(%1 : memref<!tpu.dma_semaphore, #tpu.memory_space<semaphore_mem>>)
    %c1_i32 = arith.constant 1 : i32
    %2 = tpu.memref_slice %arg31[%c1_i32] : memref<2x!tpu.dma_semaphore, #tpu.memory_space<semaphore_mem>> -> memref<1x!tpu.dma_semaphore, #tpu.memory_space<semaphore_mem>>
    %3 = tpu.memref_squeeze %2 : memref<1x!tpu.dma_semaphore, #tpu.memory_space<semaphore_mem>> -> memref<!tpu.dma_semaphore, #tpu.memory_space<semaphore_mem>>
    tpu.enqueue_dma source(%arg20 : memref<3x4x128x128xbf16, #tpu.memory_space<any>>) target(%arg30 : memref<3x4x128x128xbf16, #tpu.memory_space<vmem>>) target_semaphore(%3 : memref<!tpu.dma_semaphore, #tpu.memory_space<semaphore_mem>>)
    %c0 = arith.constant 0 : index
    %c0_0 = arith.constant 0 : index
    %4 = vector.load %arg1[%c0, %c0_0] : memref<64x128xf32, #tpu.memory_space<vmem>>, vector<64x128xf32>
    %5 = arith.truncf %4 : vector<64x128xf32> to vector<64x128xbf16>
    %c0_1 = arith.constant 0 : index
    %c0_2 = arith.constant 0 : index
    %6 = vector.load %arg3[%c0_1, %c0_2] : memref<128x256xbf16, #tpu.memory_space<vmem>>, vector<128x256xbf16>
    %cst = arith.constant dense<0.000000e+00> : vector<64x256xf32>
    %7 = tpu.matmul %5, %6, %cst {dimension_numbers = #tpu.dot_dimension_numbers<[1], [0], [0], [1], [0, 0, 1, 1], [], []>} : vector<64x128xbf16>, vector<128x256xbf16>, vector<64x256xf32> -> vector<64x256xf32>
    %c0_3 = arith.constant 0 : index
    %c0_4 = arith.constant 0 : index
    %8 = vector.load %arg2[%c0_3, %c0_4] : memref<64x256xf32, #tpu.memory_space<vmem>>, vector<64x256xf32>
    %9 = arith.truncf %8 : vector<64x256xf32> to vector<64x256xbf16>
    %c0_5 = arith.constant 0 : index
    %c0_6 = arith.constant 0 : index
    %10 = vector.load %arg4[%c0_5, %c0_6] : memref<256x256xbf16, #tpu.memory_space<vmem>>, vector<256x256xbf16>
    %cst_7 = arith.constant dense<0.000000e+00> : vector<64x256xf32>
    %11 = tpu.matmul %9, %10, %cst_7 {dimension_numbers = #tpu.dot_dimension_numbers<[1], [0], [0], [1], [0, 0, 1, 1], [], []>} : vector<64x256xbf16>, vector<256x256xbf16>, vector<64x256xf32> -> vector<64x256xf32>
    %12 = arith.addf %7, %11 : vector<64x256xf32>
    %c0_8 = arith.constant 0 : index
    %c0_9 = arith.constant 0 : index
    %13 = vector.load %arg5[%c0_8, %c0_9] : memref<1x256xf32, #tpu.memory_space<vmem>>, vector<1x256xf32>
    %14 = vector.broadcast %13 : vector<1x256xf32> to vector<64x256xf32>
    %15 = arith.addf %12, %14 : vector<64x256xf32>
    %cst_10 = arith.constant 0.000000e+00 : f32
    %16 = vector.broadcast %cst_10 : f32 to vector<64x256xf32>
    %17 = arith.maximumf %15, %16 : vector<64x256xf32>
    %18 = arith.truncf %17 : vector<64x256xf32> to vector<64x256xbf16>
    %c0_11 = arith.constant 0 : index
    %c0_12 = arith.constant 0 : index
    %19 = vector.load %arg6[%c0_11, %c0_12] : memref<256x128xbf16, #tpu.memory_space<vmem>>, vector<256x128xbf16>
    %cst_13 = arith.constant dense<0.000000e+00> : vector<64x128xf32>
    %20 = tpu.matmul %18, %19, %cst_13 {dimension_numbers = #tpu.dot_dimension_numbers<[1], [0], [0], [1], [0, 0, 1, 1], [], []>} : vector<64x256xbf16>, vector<256x128xbf16>, vector<64x128xf32> -> vector<64x128xf32>
    %c0_14 = arith.constant 0 : index
    %c0_15 = arith.constant 0 : index
    %21 = vector.load %arg7[%c0_14, %c0_15] : memref<1x128xf32, #tpu.memory_space<vmem>>, vector<1x128xf32>
    %22 = vector.broadcast %21 : vector<1x128xf32> to vector<64x128xf32>
    %23 = arith.addf %20, %22 : vector<64x128xf32>
    %c0_16 = arith.constant 0 : index
    %c0_17 = arith.constant 0 : index
    %24 = vector.load %arg0[%c0_16, %c0_17] : memref<64x128xf32, #tpu.memory_space<vmem>>, vector<64x128xf32>
    %c0_18 = arith.constant 0 : index
    %c0_19 = arith.constant 0 : index
    %25 = vector.load %arg28[%c0_18, %c0_19] : memref<128x128xf32, #tpu.memory_space<vmem>>, vector<64x128xf32>
    tpu.vector_store %arg28[%c0_18, %c0_19], %24 {strides = array<i32>} : memref<128x128xf32, #tpu.memory_space<vmem>>, vector<64x128xf32>,
    %c64 = arith.constant 64 : index
    %c0_20 = arith.constant 0 : index
    %26 = vector.load %arg28[%c64, %c0_20] : memref<128x128xf32, #tpu.memory_space<vmem>>, vector<64x128xf32>
    tpu.vector_store %arg28[%c64, %c0_20], %23 {strides = array<i32>} : memref<128x128xf32, #tpu.memory_space<vmem>>, vector<64x128xf32>,
    %c0_21 = arith.constant 0 : index
    %c0_22 = arith.constant 0 : index
    %27 = vector.load %arg28[%c0_21, %c0_22] : memref<128x128xf32, #tpu.memory_space<vmem>>, vector<128x128xf32>
    %28 = arith.truncf %27 : vector<128x128xf32> to vector<128x128xbf16>
    %c0_23 = arith.constant 0 : index
    %c0_24 = arith.constant 0 : index
    %29 = vector.load %arg9[%c0_23, %c0_24] : memref<128x128xbf16, #tpu.memory_space<vmem>>, vector<128x128xbf16>
    %cst_25 = arith.constant dense<0.000000e+00> : vector<128x128xf32>
    %30 = tpu.matmul %28, %29, %cst_25 {dimension_numbers = #tpu.dot_dimension_numbers<[1], [0], [0], [1], [0, 0, 1, 1], [], []>} : vector<128x128xbf16>, vector<128x128xbf16>, vector<128x128xf32> -> vector<128x128xf32>
    %c0_26 = arith.constant 0 : index
    %c0_27 = arith.constant 0 : index
    %31 = vector.load %arg8[%c0_26, %c0_27] : memref<128x128xbf16, #tpu.memory_space<vmem>>, vector<128x128xbf16>
    %32 = arith.truncf %30 : vector<128x128xf32> to vector<128x128xbf16>
    %cst_28 = arith.constant dense<0.000000e+00> : vector<128x128xf32>
    %33 = tpu.matmul %31, %32, %cst_28 {dimension_numbers = #tpu.dot_dimension_numbers<[1], [0], [0], [1], [0, 0, 1, 1], [], []>} : vector<128x128xbf16>, vector<128x128xbf16>, vector<128x128xf32> -> vector<128x128xf32>
    %c0_29 = arith.constant 0 : index
    %c0_30 = arith.constant 0 : index
    %34 = vector.load %arg10[%c0_29, %c0_30] : memref<1x128xf32, #tpu.memory_space<vmem>>, vector<1x128xf32>
    %35 = vector.broadcast %34 : vector<1x128xf32> to vector<128x128xf32>
    %36 = arith.addf %33, %35 : vector<128x128xf32>
    %c0_31 = arith.constant 0 : index
    %c0_32 = arith.constant 0 : index
    %37 = vector.load %arg11[%c0_31, %c0_32] : memref<128x1xf32, #tpu.memory_space<vmem>>, vector<128x1xf32>
    %38 = arith.subf %36, %27 : vector<128x128xf32>
    %39 = vector.broadcast %37 : vector<128x1xf32> to vector<128x128xf32>
    %40 = arith.mulf %39, %38 : vector<128x128xf32>
    %41 = arith.addf %27, %40 : vector<128x128xf32>
    %c0_33 = arith.constant 0 : index
    %c0_34 = arith.constant 0 : index
    %42 = vector.load %arg12[%c0_33, %c0_34] : memref<8x128xbf16, #tpu.memory_space<vmem>>, vector<8x128xbf16>
    %43 = arith.truncf %41 : vector<128x128xf32> to vector<128x128xbf16>
    %cst_35 = arith.constant dense<0.000000e+00> : vector<8x128xf32>
    %44 = tpu.matmul %42, %43, %cst_35 {dimension_numbers = #tpu.dot_dimension_numbers<[1], [0], [0], [1], [0, 0, 1, 1], [], []>} : vector<8x128xbf16>, vector<128x128xbf16>, vector<8x128xf32> -> vector<8x128xf32>
    %c0_36 = arith.constant 0 : index
    %c0_37 = arith.constant 0 : index
    %45 = vector.load %arg14[%c0_36, %c0_37] : memref<512x128xf32, #tpu.memory_space<vmem>>, vector<512x128xf32>
    %c0_38 = arith.constant 0 : index
    %c0_39 = arith.constant 0 : index
    %46 = vector.load %arg15[%c0_38, %c0_39] : memref<4x128xf32, #tpu.memory_space<vmem>>, vector<4x128xf32>
    %c0_40 = arith.constant 0 : index
    %c0_41 = arith.constant 0 : index
    %47 = vector.load %arg16[%c0_40, %c0_41] : memref<128x4xf32, #tpu.memory_space<vmem>>, vector<128x4xf32>
    %c0_42 = arith.constant 0 : index
    %c0_43 = arith.constant 0 : index
    %48 = vector.load %arg18[%c0_42, %c0_43] : memref<1x128xf32, #tpu.memory_space<vmem>>, vector<1x128xf32>
    %cst_44 = arith.constant dense<0.000000e+00> : vector<8x4xf32>
    %49 = tpu.matmul %44, %47, %cst_44 {dimension_numbers = #tpu.dot_dimension_numbers<[1], [0], [0], [1], [0, 0, 1, 1], [], []>} : vector<8x128xf32>, vector<128x4xf32>, vector<8x4xf32> -> vector<8x4xf32>
    %cst_45 = arith.constant dense<0.000000e+00> : vector<4x8xf32>
    %50 = tpu.matmul %46, %44, %cst_45 {dimension_numbers = #tpu.dot_dimension_numbers<[1], [1], [0], [0], [0, 0, 1, 0], [], []>} : vector<4x128xf32>, vector<8x128xf32>, vector<4x8xf32> -> vector<4x8xf32>
    %51 = vector.extract_strided_slice %49 {offsets = [0, 0], sizes = [8, 1], strides = [1, 1]} : vector<8x4xf32> to vector<8x1xf32>
    %52 = vector.extract_strided_slice %50 {offsets = [0, 0], sizes = [1, 8], strides = [1, 1]} : vector<4x8xf32> to vector<1x8xf32>
    %53 = vector.broadcast %51 : vector<8x1xf32> to vector<8x8xf32>
    %54 = vector.broadcast %52 : vector<1x8xf32> to vector<8x8xf32>
    %55 = arith.addf %53, %54 : vector<8x8xf32>
    %c0_46 = arith.constant 0 : index
    %c0_47 = arith.constant 0 : index
    %c0_48 = arith.constant 0 : index
    %56 = vector.load %arg17[%c0_46, %c0_47, %c0_48] : memref<4x8x8xf32, #tpu.memory_space<vmem>>, vector<1x8x8xf32>
    %57 = vector.shape_cast %56 : vector<1x8x8xf32> to vector<8x8xf32>
    %58 = arith.addf %55, %57 : vector<8x8xf32>
    %cst_49 = arith.constant 2.000000e-01 : f32
    %59 = vector.broadcast %cst_49 : f32 to vector<8x8xf32>
    %60 = arith.mulf %59, %58 : vector<8x8xf32>
    %61 = arith.maximumf %58, %60 : vector<8x8xf32>
    %cst_50 = arith.constant dense<0xFF800000> : vector<8xf32>
    %62 = vector.multi_reduction <maximumf>, %61, %cst_50 [1] : vector<8x8xf32> to vector<8xf32>
    %63 = vector.shape_cast %62 : vector<8xf32> to vector<8x1xf32>
    %64 = vector.broadcast %63 : vector<8x1xf32> to vector<8x8xf32>
    %65 = arith.subf %61, %64 : vector<8x8xf32>
    %66 = math.exp %65 : vector<8x8xf32>
    %cst_51 = arith.constant dense<0.000000e+00> : vector<8xf32>
    %67 = vector.multi_reduction <add>, %66, %cst_51 [1] : vector<8x8xf32> to vector<8xf32>
    %68 = vector.shape_cast %67 : vector<8xf32> to vector<8x1xf32>
    %69 = tpu.reciprocal %68 {approx = true} : vector<8x1xf32> -> vector<8x1xf32>
    %70 = vector.broadcast %69 : vector<8x1xf32> to vector<8x8xf32>
    %71 = arith.mulf %66, %70 : vector<8x8xf32>
    %cst_52 = arith.constant dense<0.000000e+00> : vector<8x128xf32>
    %72 = tpu.matmul %71, %44, %cst_52 {dimension_numbers = #tpu.dot_dimension_numbers<[1], [0], [0], [1], [0, 0, 1, 1], [], []>} : vector<8x8xf32>, vector<8x128xf32>, vector<8x128xf32> -> vector<8x128xf32>
    %73 = vector.extract_strided_slice %49 {offsets = [0, 1], sizes = [8, 1], strides = [1, 1]} : vector<8x4xf32> to vector<8x1xf32>
    %74 = vector.extract_strided_slice %50 {offsets = [1, 0], sizes = [1, 8], strides = [1, 1]} : vector<4x8xf32> to vector<1x8xf32>
    %75 = vector.broadcast %73 : vector<8x1xf32> to vector<8x8xf32>
    %76 = vector.broadcast %74 : vector<1x8xf32> to vector<8x8xf32>
    %77 = arith.addf %75, %76 : vector<8x8xf32>
    %c1 = arith.constant 1 : index
    %c0_53 = arith.constant 0 : index
    %c0_54 = arith.constant 0 : index
    %78 = vector.load %arg17[%c1, %c0_53, %c0_54] : memref<4x8x8xf32, #tpu.memory_space<vmem>>, vector<1x8x8xf32>
    %79 = vector.shape_cast %78 : vector<1x8x8xf32> to vector<8x8xf32>
    %80 = arith.addf %77, %79 : vector<8x8xf32>
    %cst_55 = arith.constant 2.000000e-01 : f32
    %81 = vector.broadcast %cst_55 : f32 to vector<8x8xf32>
    %82 = arith.mulf %81, %80 : vector<8x8xf32>
    %83 = arith.maximumf %80, %82 : vector<8x8xf32>
    %cst_56 = arith.constant dense<0xFF800000> : vector<8xf32>
    %84 = vector.multi_reduction <maximumf>, %83, %cst_56 [1] : vector<8x8xf32> to vector<8xf32>
    %85 = vector.shape_cast %84 : vector<8xf32> to vector<8x1xf32>
    %86 = vector.broadcast %85 : vector<8x1xf32> to vector<8x8xf32>
    %87 = arith.subf %83, %86 : vector<8x8xf32>
    %88 = math.exp %87 : vector<8x8xf32>
    %cst_57 = arith.constant dense<0.000000e+00> : vector<8xf32>
    %89 = vector.multi_reduction <add>, %88, %cst_57 [1] : vector<8x8xf32> to vector<8xf32>
    %90 = vector.shape_cast %89 : vector<8xf32> to vector<8x1xf32>
    %91 = tpu.reciprocal %90 {approx = true} : vector<8x1xf32> -> vector<8x1xf32>
    %92 = vector.broadcast %91 : vector<8x1xf32> to vector<8x8xf32>
    %93 = arith.mulf %88, %92 : vector<8x8xf32>
    %cst_58 = arith.constant dense<0.000000e+00> : vector<8x128xf32>
    %94 = tpu.matmul %93, %44, %cst_58 {dimension_numbers = #tpu.dot_dimension_numbers<[1], [0], [0], [1], [0, 0, 1, 1], [], []>} : vector<8x8xf32>, vector<8x128xf32>, vector<8x128xf32> -> vector<8x128xf32>
    %95 = vector.extract_strided_slice %49 {offsets = [0, 2], sizes = [8, 1], strides = [1, 1]} : vector<8x4xf32> to vector<8x1xf32>
    %96 = vector.extract_strided_slice %50 {offsets = [2, 0], sizes = [1, 8], strides = [1, 1]} : vector<4x8xf32> to vector<1x8xf32>
    %97 = vector.broadcast %95 : vector<8x1xf32> to vector<8x8xf32>
    %98 = vector.broadcast %96 : vector<1x8xf32> to vector<8x8xf32>
    %99 = arith.addf %97, %98 : vector<8x8xf32>
    %c2 = arith.constant 2 : index
    %c0_59 = arith.constant 0 : index
    %c0_60 = arith.constant 0 : index
    %100 = vector.load %arg17[%c2, %c0_59, %c0_60] : memref<4x8x8xf32, #tpu.memory_space<vmem>>, vector<1x8x8xf32>
    %101 = vector.shape_cast %100 : vector<1x8x8xf32> to vector<8x8xf32>
    %102 = arith.addf %99, %101 : vector<8x8xf32>
    %cst_61 = arith.constant 2.000000e-01 : f32
    %103 = vector.broadcast %cst_61 : f32 to vector<8x8xf32>
    %104 = arith.mulf %103, %102 : vector<8x8xf32>
    %105 = arith.maximumf %102, %104 : vector<8x8xf32>
    %cst_62 = arith.constant dense<0xFF800000> : vector<8xf32>
    %106 = vector.multi_reduction <maximumf>, %105, %cst_62 [1] : vector<8x8xf32> to vector<8xf32>
    %107 = vector.shape_cast %106 : vector<8xf32> to vector<8x1xf32>
    %108 = vector.broadcast %107 : vector<8x1xf32> to vector<8x8xf32>
    %109 = arith.subf %105, %108 : vector<8x8xf32>
    %110 = math.exp %109 : vector<8x8xf32>
    %cst_63 = arith.constant dense<0.000000e+00> : vector<8xf32>
    %111 = vector.multi_reduction <add>, %110, %cst_63 [1] : vector<8x8xf32> to vector<8xf32>
    %112 = vector.shape_cast %111 : vector<8xf32> to vector<8x1xf32>
    %113 = tpu.reciprocal %112 {approx = true} : vector<8x1xf32> -> vector<8x1xf32>
    %114 = vector.broadcast %113 : vector<8x1xf32> to vector<8x8xf32>
    %115 = arith.mulf %110, %114 : vector<8x8xf32>
    %cst_64 = arith.constant dense<0.000000e+00> : vector<8x128xf32>
    %116 = tpu.matmul %115, %44, %cst_64 {dimension_numbers = #tpu.dot_dimension_numbers<[1], [0], [0], [1], [0, 0, 1, 1], [], []>} : vector<8x8xf32>, vector<8x128xf32>, vector<8x128xf32> -> vector<8x128xf32>
    %117 = vector.extract_strided_slice %49 {offsets = [0, 3], sizes = [8, 1], strides = [1, 1]} : vector<8x4xf32> to vector<8x1xf32>
    %118 = vector.extract_strided_slice %50 {offsets = [3, 0], sizes = [1, 8], strides = [1, 1]} : vector<4x8xf32> to vector<1x8xf32>
    %119 = vector.broadcast %117 : vector<8x1xf32> to vector<8x8xf32>
    %120 = vector.broadcast %118 : vector<1x8xf32> to vector<8x8xf32>
    %121 = arith.addf %119, %120 : vector<8x8xf32>
    %c3 = arith.constant 3 : index
    %c0_65 = arith.constant 0 : index
    %c0_66 = arith.constant 0 : index
    %122 = vector.load %arg17[%c3, %c0_65, %c0_66] : memref<4x8x8xf32, #tpu.memory_space<vmem>>, vector<1x8x8xf32>
    %123 = vector.shape_cast %122 : vector<1x8x8xf32> to vector<8x8xf32>
    %124 = arith.addf %121, %123 : vector<8x8xf32>
    %cst_67 = arith.constant 2.000000e-01 : f32
    %125 = vector.broadcast %cst_67 : f32 to vector<8x8xf32>
    %126 = arith.mulf %125, %124 : vector<8x8xf32>
    %127 = arith.maximumf %124, %126 : vector<8x8xf32>
    %cst_68 = arith.constant dense<0xFF800000> : vector<8xf32>
    %128 = vector.multi_reduction <maximumf>, %127, %cst_68 [1] : vector<8x8xf32> to vector<8xf32>
    %129 = vector.shape_cast %128 : vector<8xf32> to vector<8x1xf32>
    %130 = vector.broadcast %129 : vector<8x1xf32> to vector<8x8xf32>
    %131 = arith.subf %127, %130 : vector<8x8xf32>
    %132 = math.exp %131 : vector<8x8xf32>
    %cst_69 = arith.constant dense<0.000000e+00> : vector<8xf32>
    %133 = vector.multi_reduction <add>, %132, %cst_69 [1] : vector<8x8xf32> to vector<8xf32>
    %134 = vector.shape_cast %133 : vector<8xf32> to vector<8x1xf32>
    %135 = tpu.reciprocal %134 {approx = true} : vector<8x1xf32> -> vector<8x1xf32>
    %136 = vector.broadcast %135 : vector<8x1xf32> to vector<8x8xf32>
    %137 = arith.mulf %132, %136 : vector<8x8xf32>
    %cst_70 = arith.constant dense<0.000000e+00> : vector<8x128xf32>
    %138 = tpu.matmul %137, %44, %cst_70 {dimension_numbers = #tpu.dot_dimension_numbers<[1], [0], [0], [1], [0, 0, 1, 1], [], []>} : vector<8x8xf32>, vector<8x128xf32>, vector<8x128xf32> -> vector<8x128xf32>
    %139 = tpu.concatenate %72, %94, %116, %138 in 1 : vector<8x128xf32>, vector<8x128xf32>, vector<8x128xf32>, vector<8x128xf32> -> vector<8x512xf32>
    %cst_71 = arith.constant dense<0.000000e+00> : vector<8x128xf32>
    %140 = tpu.matmul %139, %45, %cst_71 {dimension_numbers = #tpu.dot_dimension_numbers<[1], [0], [0], [1], [0, 0, 1, 1], [], []>} : vector<8x512xf32>, vector<512x128xf32>, vector<8x128xf32> -> vector<8x128xf32>
    %cst_72 = arith.constant 2.500000e-01 : f32
    %141 = vector.broadcast %cst_72 : f32 to vector<8x128xf32>
    %142 = arith.mulf %140, %141 : vector<8x128xf32>
    %143 = vector.broadcast %48 : vector<1x128xf32> to vector<8x128xf32>
    %144 = arith.addf %142, %143 : vector<8x128xf32>
    %c0_73 = arith.constant 0 : index
    %c0_74 = arith.constant 0 : index
    %145 = vector.load %arg13[%c0_73, %c0_74] : memref<128x8xbf16, #tpu.memory_space<vmem>>, vector<128x8xbf16>
    %146 = arith.truncf %144 : vector<8x128xf32> to vector<8x128xbf16>
    %cst_75 = arith.constant dense<0.000000e+00> : vector<128x128xf32>
    %147 = tpu.matmul %145, %146, %cst_75 {dimension_numbers = #tpu.dot_dimension_numbers<[1], [0], [0], [1], [0, 0, 1, 1], [], []>} : vector<128x8xbf16>, vector<8x128xbf16>, vector<128x128xf32> -> vector<128x128xf32>
    %148 = arith.addf %41, %147 : vector<128x128xf32>
    %c0_i32_76 = arith.constant 0 : i32
    %149 = tpu.memref_slice %arg31[%c0_i32_76] : memref<2x!tpu.dma_semaphore, #tpu.memory_space<semaphore_mem>> -> memref<1x!tpu.dma_semaphore, #tpu.memory_space<semaphore_mem>>
    %150 = tpu.memref_squeeze %149 : memref<1x!tpu.dma_semaphore, #tpu.memory_space<semaphore_mem>> -> memref<!tpu.dma_semaphore, #tpu.memory_space<semaphore_mem>>
    tpu.wait_dma2 semaphore(%150 : memref<!tpu.dma_semaphore, #tpu.memory_space<semaphore_mem>>) src(%arg19 : memref<3x512x128xbf16, #tpu.memory_space<any>>) dst(%arg29 : memref<3x512x128xbf16, #tpu.memory_space<vmem>>)
    %c1_i32_77 = arith.constant 1 : i32
    %151 = tpu.memref_slice %arg31[%c1_i32_77] : memref<2x!tpu.dma_semaphore, #tpu.memory_space<semaphore_mem>> -> memref<1x!tpu.dma_semaphore, #tpu.memory_space<semaphore_mem>>
    %152 = tpu.memref_squeeze %151 : memref<1x!tpu.dma_semaphore, #tpu.memory_space<semaphore_mem>> -> memref<!tpu.dma_semaphore, #tpu.memory_space<semaphore_mem>>
    tpu.wait_dma2 semaphore(%152 : memref<!tpu.dma_semaphore, #tpu.memory_space<semaphore_mem>>) src(%arg20 : memref<3x4x128x128xbf16, #tpu.memory_space<any>>) dst(%arg30 : memref<3x4x128x128xbf16, #tpu.memory_space<vmem>>)
    %c0_78 = arith.constant 0 : index
    %c0_79 = arith.constant 0 : index
    %c0_80 = arith.constant 0 : index
    %153 = vector.load %arg29[%c0_78, %c0_79, %c0_80] : memref<3x512x128xbf16, #tpu.memory_space<vmem>>, vector<1x512x128xbf16>
    %154 = vector.shape_cast %153 : vector<1x512x128xbf16> to vector<512x128xbf16>
    %c0_81 = arith.constant 0 : index
    %c0_82 = arith.constant 0 : index
    %c0_83 = arith.constant 0 : index
    %155 = vector.load %arg21[%c0_81, %c0_82, %c0_83] : memref<3x4x128xbf16, #tpu.memory_space<vmem>>, vector<1x4x128xbf16>
    %156 = vector.shape_cast %155 : vector<1x4x128xbf16> to vector<4x128xbf16>
    %c0_84 = arith.constant 0 : index
    %c0_85 = arith.constant 0 : index
    %c0_86 = arith.constant 0 : index
    %157 = vector.load %arg22[%c0_84, %c0_85, %c0_86] : memref<3x128x4xbf16, #tpu.memory_space<vmem>>, vector<1x128x4xbf16>
    %158 = vector.shape_cast %157 : vector<1x128x4xbf16> to vector<128x4xbf16>
    %c0_87 = arith.constant 0 : index
    %c0_88 = arith.constant 0 : index
    %c0_89 = arith.constant 0 : index
    %159 = vector.load %arg23[%c0_87, %c0_88, %c0_89] : memref<3x1x128xf32, #tpu.memory_space<vmem>>, vector<1x1x128xf32>
    %160 = vector.shape_cast %159 : vector<1x1x128xf32> to vector<1x128xf32>
    %161 = arith.truncf %148 : vector<128x128xf32> to vector<128x128xbf16>
    %cst_90 = arith.constant dense<0.000000e+00> : vector<128x4xf32>
    %162 = tpu.matmul %161, %158, %cst_90 {dimension_numbers = #tpu.dot_dimension_numbers<[1], [0], [0], [1], [0, 0, 1, 1], [], []>} : vector<128x128xbf16>, vector<128x4xbf16>, vector<128x4xf32> -> vector<128x4xf32>
    %cst_91 = arith.constant dense<0.000000e+00> : vector<4x128xf32>
    %163 = tpu.matmul %156, %161, %cst_91 {dimension_numbers = #tpu.dot_dimension_numbers<[1], [1], [0], [0], [0, 0, 1, 0], [], []>} : vector<4x128xbf16>, vector<128x128xbf16>, vector<4x128xf32> -> vector<4x128xf32>
    %164 = vector.extract_strided_slice %162 {offsets = [0, 0], sizes = [128, 1], strides = [1, 1]} : vector<128x4xf32> to vector<128x1xf32>
    %165 = vector.extract_strided_slice %163 {offsets = [0, 0], sizes = [1, 128], strides = [1, 1]} : vector<4x128xf32> to vector<1x128xf32>
    %166 = vector.broadcast %164 : vector<128x1xf32> to vector<128x128xf32>
    %167 = vector.broadcast %165 : vector<1x128xf32> to vector<128x128xf32>
    %168 = arith.addf %166, %167 : vector<128x128xf32>
    %c0_i32_92 = arith.constant 0 : i32
    %c0_i32_93 = arith.constant 0 : i32
    %c0_i32_94 = arith.constant 0 : i32
    %c0_i32_95 = arith.constant 0 : i32
    %169 = tpu.memref_slice %arg30[%c0_i32_92, %c0_i32_93, %c0_i32_94, %c0_i32_95] : memref<3x4x128x128xbf16, #tpu.memory_space<vmem>> -> memref<1x4x128x128xbf16, #tpu.memory_space<vmem>>
    %170 = tpu.memref_squeeze %169 : memref<1x4x128x128xbf16, #tpu.memory_space<vmem>> -> memref<4x128x128xbf16, #tpu.memory_space<vmem>>
    %c0_96 = arith.constant 0 : index
    %c0_97 = arith.constant 0 : index
    %c0_98 = arith.constant 0 : index
    %171 = vector.load %170[%c0_96, %c0_97, %c0_98] : memref<4x128x128xbf16, #tpu.memory_space<vmem>>, vector<1x128x128xbf16>
    %172 = vector.shape_cast %171 : vector<1x128x128xbf16> to vector<128x128xbf16>
    %173 = arith.extf %172 : vector<128x128xbf16> to vector<128x128xf32>
    %174 = arith.addf %168, %173 : vector<128x128xf32>
    %cst_99 = arith.constant 2.000000e-01 : f32
    %175 = vector.broadcast %cst_99 : f32 to vector<128x128xf32>
    %176 = arith.mulf %175, %174 : vector<128x128xf32>
    %177 = arith.maximumf %174, %176 : vector<128x128xf32>
    %cst_100 = arith.constant dense<0xFF800000> : vector<128xf32>
    %178 = vector.multi_reduction <maximumf>, %177, %cst_100 [1] : vector<128x128xf32> to vector<128xf32>
    %179 = vector.shape_cast %178 : vector<128xf32> to vector<128x1xf32>
    %180 = vector.broadcast %179 : vector<128x1xf32> to vector<128x128xf32>
    %181 = arith.subf %177, %180 : vector<128x128xf32>
    %182 = math.exp %181 : vector<128x128xf32>
    %cst_101 = arith.constant dense<0.000000e+00> : vector<128xf32>
    %183 = vector.multi_reduction <add>, %182, %cst_101 [1] : vector<128x128xf32> to vector<128xf32>
    %184 = vector.shape_cast %183 : vector<128xf32> to vector<128x1xf32>
    %185 = tpu.reciprocal %184 {approx = true} : vector<128x1xf32> -> vector<128x1xf32>
    %186 = vector.broadcast %185 : vector<128x1xf32> to vector<128x128xf32>
    %187 = arith.mulf %182, %186 : vector<128x128xf32>
    %188 = arith.truncf %187 : vector<128x128xf32> to vector<128x128xbf16>
    %cst_102 = arith.constant dense<0.000000e+00> : vector<128x128xf32>
    %189 = tpu.matmul %188, %161, %cst_102 {dimension_numbers = #tpu.dot_dimension_numbers<[1], [0], [0], [1], [0, 0, 1, 1], [], []>} : vector<128x128xbf16>, vector<128x128xbf16>, vector<128x128xf32> -> vector<128x128xf32>
    %190 = vector.extract_strided_slice %162 {offsets = [0, 1], sizes = [128, 1], strides = [1, 1]} : vector<128x4xf32> to vector<128x1xf32>
    %191 = vector.extract_strided_slice %163 {offsets = [1, 0], sizes = [1, 128], strides = [1, 1]} : vector<4x128xf32> to vector<1x128xf32>
    %192 = vector.broadcast %190 : vector<128x1xf32> to vector<128x128xf32>
    %193 = vector.broadcast %191 : vector<1x128xf32> to vector<128x128xf32>
    %194 = arith.addf %192, %193 : vector<128x128xf32>
    %c0_i32_103 = arith.constant 0 : i32
    %c0_i32_104 = arith.constant 0 : i32
    %c0_i32_105 = arith.constant 0 : i32
    %c0_i32_106 = arith.constant 0 : i32
    %195 = tpu.memref_slice %arg30[%c0_i32_103, %c0_i32_104, %c0_i32_105, %c0_i32_106] : memref<3x4x128x128xbf16, #tpu.memory_space<vmem>> -> memref<1x4x128x128xbf16, #tpu.memory_space<vmem>>
    %196 = tpu.memref_squeeze %195 : memref<1x4x128x128xbf16, #tpu.memory_space<vmem>> -> memref<4x128x128xbf16, #tpu.memory_space<vmem>>
    %c1_107 = arith.constant 1 : index
    %c0_108 = arith.constant 0 : index
    %c0_109 = arith.constant 0 : index
    %197 = vector.load %196[%c1_107, %c0_108, %c0_109] : memref<4x128x128xbf16, #tpu.memory_space<vmem>>, vector<1x128x128xbf16>
    %198 = vector.shape_cast %197 : vector<1x128x128xbf16> to vector<128x128xbf16>
    %199 = arith.extf %198 : vector<128x128xbf16> to vector<128x128xf32>
    %200 = arith.addf %194, %199 : vector<128x128xf32>
    %cst_110 = arith.constant 2.000000e-01 : f32
    %201 = vector.broadcast %cst_110 : f32 to vector<128x128xf32>
    %202 = arith.mulf %201, %200 : vector<128x128xf32>
    %203 = arith.maximumf %200, %202 : vector<128x128xf32>
    %cst_111 = arith.constant dense<0xFF800000> : vector<128xf32>
    %204 = vector.multi_reduction <maximumf>, %203, %cst_111 [1] : vector<128x128xf32> to vector<128xf32>
    %205 = vector.shape_cast %204 : vector<128xf32> to vector<128x1xf32>
    %206 = vector.broadcast %205 : vector<128x1xf32> to vector<128x128xf32>
    %207 = arith.subf %203, %206 : vector<128x128xf32>
    %208 = math.exp %207 : vector<128x128xf32>
    %cst_112 = arith.constant dense<0.000000e+00> : vector<128xf32>
    %209 = vector.multi_reduction <add>, %208, %cst_112 [1] : vector<128x128xf32> to vector<128xf32>
    %210 = vector.shape_cast %209 : vector<128xf32> to vector<128x1xf32>
    %211 = tpu.reciprocal %210 {approx = true} : vector<128x1xf32> -> vector<128x1xf32>
    %212 = vector.broadcast %211 : vector<128x1xf32> to vector<128x128xf32>
    %213 = arith.mulf %208, %212 : vector<128x128xf32>
    %214 = arith.truncf %213 : vector<128x128xf32> to vector<128x128xbf16>
    %cst_113 = arith.constant dense<0.000000e+00> : vector<128x128xf32>
    %215 = tpu.matmul %214, %161, %cst_113 {dimension_numbers = #tpu.dot_dimension_numbers<[1], [0], [0], [1], [0, 0, 1, 1], [], []>} : vector<128x128xbf16>, vector<128x128xbf16>, vector<128x128xf32> -> vector<128x128xf32>
    %216 = vector.extract_strided_slice %162 {offsets = [0, 2], sizes = [128, 1], strides = [1, 1]} : vector<128x4xf32> to vector<128x1xf32>
    %217 = vector.extract_strided_slice %163 {offsets = [2, 0], sizes = [1, 128], strides = [1, 1]} : vector<4x128xf32> to vector<1x128xf32>
    %218 = vector.broadcast %216 : vector<128x1xf32> to vector<128x128xf32>
    %219 = vector.broadcast %217 : vector<1x128xf32> to vector<128x128xf32>
    %220 = arith.addf %218, %219 : vector<128x128xf32>
    %c0_i32_114 = arith.constant 0 : i32
    %c0_i32_115 = arith.constant 0 : i32
    %c0_i32_116 = arith.constant 0 : i32
    %c0_i32_117 = arith.constant 0 : i32
    %221 = tpu.memref_slice %arg30[%c0_i32_114, %c0_i32_115, %c0_i32_116, %c0_i32_117] : memref<3x4x128x128xbf16, #tpu.memory_space<vmem>> -> memref<1x4x128x128xbf16, #tpu.memory_space<vmem>>
    %222 = tpu.memref_squeeze %221 : memref<1x4x128x128xbf16, #tpu.memory_space<vmem>> -> memref<4x128x128xbf16, #tpu.memory_space<vmem>>
    %c2_118 = arith.constant 2 : index
    %c0_119 = arith.constant 0 : index
    %c0_120 = arith.constant 0 : index
    %223 = vector.load %222[%c2_118, %c0_119, %c0_120] : memref<4x128x128xbf16, #tpu.memory_space<vmem>>, vector<1x128x128xbf16>
    %224 = vector.shape_cast %223 : vector<1x128x128xbf16> to vector<128x128xbf16>
    %225 = arith.extf %224 : vector<128x128xbf16> to vector<128x128xf32>
    %226 = arith.addf %220, %225 : vector<128x128xf32>
    %cst_121 = arith.constant 2.000000e-01 : f32
    %227 = vector.broadcast %cst_121 : f32 to vector<128x128xf32>
    %228 = arith.mulf %227, %226 : vector<128x128xf32>
    %229 = arith.maximumf %226, %228 : vector<128x128xf32>
    %cst_122 = arith.constant dense<0xFF800000> : vector<128xf32>
    %230 = vector.multi_reduction <maximumf>, %229, %cst_122 [1] : vector<128x128xf32> to vector<128xf32>
    %231 = vector.shape_cast %230 : vector<128xf32> to vector<128x1xf32>
    %232 = vector.broadcast %231 : vector<128x1xf32> to vector<128x128xf32>
    %233 = arith.subf %229, %232 : vector<128x128xf32>
    %234 = math.exp %233 : vector<128x128xf32>
    %cst_123 = arith.constant dense<0.000000e+00> : vector<128xf32>
    %235 = vector.multi_reduction <add>, %234, %cst_123 [1] : vector<128x128xf32> to vector<128xf32>
    %236 = vector.shape_cast %235 : vector<128xf32> to vector<128x1xf32>
    %237 = tpu.reciprocal %236 {approx = true} : vector<128x1xf32> -> vector<128x1xf32>
    %238 = vector.broadcast %237 : vector<128x1xf32> to vector<128x128xf32>
    %239 = arith.mulf %234, %238 : vector<128x128xf32>
    %240 = arith.truncf %239 : vector<128x128xf32> to vector<128x128xbf16>
    %cst_124 = arith.constant dense<0.000000e+00> : vector<128x128xf32>
    %241 = tpu.matmul %240, %161, %cst_124 {dimension_numbers = #tpu.dot_dimension_numbers<[1], [0], [0], [1], [0, 0, 1, 1], [], []>} : vector<128x128xbf16>, vector<128x128xbf16>, vector<128x128xf32> -> vector<128x128xf32>
    %242 = vector.extract_strided_slice %162 {offsets = [0, 3], sizes = [128, 1], strides = [1, 1]} : vector<128x4xf32> to vector<128x1xf32>
    %243 = vector.extract_strided_slice %163 {offsets = [3, 0], sizes = [1, 128], strides = [1, 1]} : vector<4x128xf32> to vector<1x128xf32>
    %244 = vector.broadcast %242 : vector<128x1xf32> to vector<128x128xf32>
    %245 = vector.broadcast %243 : vector<1x128xf32> to vector<128x128xf32>
    %246 = arith.addf %244, %245 : vector<128x128xf32>
    %c0_i32_125 = arith.constant 0 : i32
    %c0_i32_126 = arith.constant 0 : i32
    %c0_i32_127 = arith.constant 0 : i32
    %c0_i32_128 = arith.constant 0 : i32
    %247 = tpu.memref_slice %arg30[%c0_i32_125, %c0_i32_126, %c0_i32_127, %c0_i32_128] : memref<3x4x128x128xbf16, #tpu.memory_space<vmem>> -> memref<1x4x128x128xbf16, #tpu.memory_space<vmem>>
    %248 = tpu.memref_squeeze %247 : memref<1x4x128x128xbf16, #tpu.memory_space<vmem>> -> memref<4x128x128xbf16, #tpu.memory_space<vmem>>
    %c3_129 = arith.constant 3 : index
    %c0_130 = arith.constant 0 : index
    %c0_131 = arith.constant 0 : index
    %249 = vector.load %248[%c3_129, %c0_130, %c0_131] : memref<4x128x128xbf16, #tpu.memory_space<vmem>>, vector<1x128x128xbf16>
    %250 = vector.shape_cast %249 : vector<1x128x128xbf16> to vector<128x128xbf16>
    %251 = arith.extf %250 : vector<128x128xbf16> to vector<128x128xf32>
    %252 = arith.addf %246, %251 : vector<128x128xf32>
    %cst_132 = arith.constant 2.000000e-01 : f32
    %253 = vector.broadcast %cst_132 : f32 to vector<128x128xf32>
    %254 = arith.mulf %253, %252 : vector<128x128xf32>
    %255 = arith.maximumf %252, %254 : vector<128x128xf32>
    %cst_133 = arith.constant dense<0xFF800000> : vector<128xf32>
    %256 = vector.multi_reduction <maximumf>, %255, %cst_133 [1] : vector<128x128xf32> to vector<128xf32>
    %257 = vector.shape_cast %256 : vector<128xf32> to vector<128x1xf32>
    %258 = vector.broadcast %257 : vector<128x1xf32> to vector<128x128xf32>
    %259 = arith.subf %255, %258 : vector<128x128xf32>
    %260 = math.exp %259 : vector<128x128xf32>
    %cst_134 = arith.constant dense<0.000000e+00> : vector<128xf32>
    %261 = vector.multi_reduction <add>, %260, %cst_134 [1] : vector<128x128xf32> to vector<128xf32>
    %262 = vector.shape_cast %261 : vector<128xf32> to vector<128x1xf32>
    %263 = tpu.reciprocal %262 {approx = true} : vector<128x1xf32> -> vector<128x1xf32>
    %264 = vector.broadcast %263 : vector<128x1xf32> to vector<128x128xf32>
    %265 = arith.mulf %260, %264 : vector<128x128xf32>
    %266 = arith.truncf %265 : vector<128x128xf32> to vector<128x128xbf16>
    %cst_135 = arith.constant dense<0.000000e+00> : vector<128x128xf32>
    %267 = tpu.matmul %266, %161, %cst_135 {dimension_numbers = #tpu.dot_dimension_numbers<[1], [0], [0], [1], [0, 0, 1, 1], [], []>} : vector<128x128xbf16>, vector<128x128xbf16>, vector<128x128xf32> -> vector<128x128xf32>
    %268 = tpu.concatenate %189, %215, %241, %267 in 1 : vector<128x128xf32>, vector<128x128xf32>, vector<128x128xf32>, vector<128x128xf32> -> vector<128x512xf32>
    %269 = arith.truncf %268 : vector<128x512xf32> to vector<128x512xbf16>
    %cst_136 = arith.constant dense<0.000000e+00> : vector<128x128xf32>
    %270 = tpu.matmul %269, %154, %cst_136 {dimension_numbers = #tpu.dot_dimension_numbers<[1], [0], [0], [1], [0, 0, 1, 1], [], []>} : vector<128x512xbf16>, vector<512x128xbf16>, vector<128x128xf32> -> vector<128x128xf32>
    %cst_137 = arith.constant 2.500000e-01 : f32
    %271 = vector.broadcast %cst_137 : f32 to vector<128x128xf32>
    %272 = arith.mulf %270, %271 : vector<128x128xf32>
    %273 = vector.broadcast %160 : vector<1x128xf32> to vector<128x128xf32>
    %274 = arith.addf %272, %273 : vector<128x128xf32>
    %cst_138 = arith.constant dense<0.000000e+00> : vector<128xf32>
    %275 = vector.multi_reduction <add>, %274, %cst_138 [0] : vector<128x128xf32> to vector<128xf32>
    %276 = vector.shape_cast %275 : vector<128xf32> to vector<1x128xf32>
    %cst_139 = arith.constant 1.280000e+02 : f32
    %277 = vector.broadcast %cst_139 : f32 to vector<1x128xf32>
    %278 = arith.divf %276, %277 : vector<1x128xf32>
    %c0_140 = arith.constant 0 : index
    %c0_141 = arith.constant 0 : index
    %c0_142 = arith.constant 0 : index
    %279 = vector.load %arg26[%c0_140, %c0_141, %c0_142] : memref<3x1x128xf32, #tpu.memory_space<vmem>>, vector<1x1x128xf32>
    %280 = vector.shape_cast %279 : vector<1x1x128xf32> to vector<1x128xf32>
    %281 = arith.mulf %280, %278 : vector<1x128xf32>
    %282 = vector.broadcast %281 : vector<1x128xf32> to vector<128x128xf32>
    %283 = arith.subf %274, %282 : vector<128x128xf32>
    %284 = arith.mulf %283, %283 : vector<128x128xf32>
    %cst_143 = arith.constant dense<0.000000e+00> : vector<128xf32>
    %285 = vector.multi_reduction <add>, %284, %cst_143 [0] : vector<128x128xf32> to vector<128xf32>
    %286 = vector.shape_cast %285 : vector<128xf32> to vector<1x128xf32>
    %cst_144 = arith.constant 1.280000e+02 : f32
    %287 = vector.broadcast %cst_144 : f32 to vector<1x128xf32>
    %288 = arith.divf %286, %287 : vector<1x128xf32>
    %c0_145 = arith.constant 0 : index
    %c0_146 = arith.constant 0 : index
    %c0_147 = arith.constant 0 : index
    %289 = vector.load %arg24[%c0_145, %c0_146, %c0_147] : memref<3x1x128xf32, #tpu.memory_space<vmem>>, vector<1x1x128xf32>
    %290 = vector.shape_cast %289 : vector<1x1x128xf32> to vector<1x128xf32>
    %291 = vector.broadcast %290 : vector<1x128xf32> to vector<128x128xf32>
    %292 = arith.mulf %291, %283 : vector<128x128xf32>
    %cst_148 = arith.constant 9.99999974E-6 : f32
    %293 = vector.broadcast %cst_148 : f32 to vector<1x128xf32>
    %294 = arith.addf %288, %293 : vector<1x128xf32>
    %295 = math.rsqrt %294 : vector<1x128xf32>
    %296 = vector.broadcast %295 : vector<1x128xf32> to vector<128x128xf32>
    %297 = arith.mulf %292, %296 : vector<128x128xf32>
    %c0_149 = arith.constant 0 : index
    %c0_150 = arith.constant 0 : index
    %c0_151 = arith.constant 0 : index
    %298 = vector.load %arg25[%c0_149, %c0_150, %c0_151] : memref<3x1x128xf32, #tpu.memory_space<vmem>>, vector<1x1x128xf32>
    %299 = vector.shape_cast %298 : vector<1x1x128xf32> to vector<1x128xf32>
    %300 = vector.broadcast %299 : vector<1x128xf32> to vector<128x128xf32>
    %301 = arith.addf %297, %300 : vector<128x128xf32>
    %302 = arith.addf %301, %148 : vector<128x128xf32>
    %cst_152 = arith.constant 0.000000e+00 : f32
    %303 = vector.broadcast %cst_152 : f32 to vector<128x128xf32>
    %304 = arith.cmpf ogt, %302, %303 : vector<128x128xf32>
    %305 = math.exp %302 : vector<128x128xf32>
    %cst_153 = arith.constant 1.000000e+00 : f32
    %306 = vector.broadcast %cst_153 : f32 to vector<128x128xf32>
    %307 = arith.subf %305, %306 : vector<128x128xf32>
    %308 = arith.select %304, %302, %307 : vector<128x128xi1>, vector<128x128xf32>
    %c1_154 = arith.constant 1 : index
    %c0_155 = arith.constant 0 : index
    %c0_156 = arith.constant 0 : index
    %309 = vector.load %arg29[%c1_154, %c0_155, %c0_156] : memref<3x512x128xbf16, #tpu.memory_space<vmem>>, vector<1x512x128xbf16>
    %310 = vector.shape_cast %309 : vector<1x512x128xbf16> to vector<512x128xbf16>
    %c1_157 = arith.constant 1 : index
    %c0_158 = arith.constant 0 : index
    %c0_159 = arith.constant 0 : index
    %311 = vector.load %arg21[%c1_157, %c0_158, %c0_159] : memref<3x4x128xbf16, #tpu.memory_space<vmem>>, vector<1x4x128xbf16>
    %312 = vector.shape_cast %311 : vector<1x4x128xbf16> to vector<4x128xbf16>
    %c1_160 = arith.constant 1 : index
    %c0_161 = arith.constant 0 : index
    %c0_162 = arith.constant 0 : index
    %313 = vector.load %arg22[%c1_160, %c0_161, %c0_162] : memref<3x128x4xbf16, #tpu.memory_space<vmem>>, vector<1x128x4xbf16>
    %314 = vector.shape_cast %313 : vector<1x128x4xbf16> to vector<128x4xbf16>
    %c1_163 = arith.constant 1 : index
    %c0_164 = arith.constant 0 : index
    %c0_165 = arith.constant 0 : index
    %315 = vector.load %arg23[%c1_163, %c0_164, %c0_165] : memref<3x1x128xf32, #tpu.memory_space<vmem>>, vector<1x1x128xf32>
    %316 = vector.shape_cast %315 : vector<1x1x128xf32> to vector<1x128xf32>
    %317 = arith.truncf %308 : vector<128x128xf32> to vector<128x128xbf16>
    %cst_166 = arith.constant dense<0.000000e+00> : vector<128x4xf32>
    %318 = tpu.matmul %317, %314, %cst_166 {dimension_numbers = #tpu.dot_dimension_numbers<[1], [0], [0], [1], [0, 0, 1, 1], [], []>} : vector<128x128xbf16>, vector<128x4xbf16>, vector<128x4xf32> -> vector<128x4xf32>
    %cst_167 = arith.constant dense<0.000000e+00> : vector<4x128xf32>
    %319 = tpu.matmul %312, %317, %cst_167 {dimension_numbers = #tpu.dot_dimension_numbers<[1], [1], [0], [0], [0, 0, 1, 0], [], []>} : vector<4x128xbf16>, vector<128x128xbf16>, vector<4x128xf32> -> vector<4x128xf32>
    %320 = vector.extract_strided_slice %318 {offsets = [0, 0], sizes = [128, 1], strides = [1, 1]} : vector<128x4xf32> to vector<128x1xf32>
    %321 = vector.extract_strided_slice %319 {offsets = [0, 0], sizes = [1, 128], strides = [1, 1]} : vector<4x128xf32> to vector<1x128xf32>
    %322 = vector.broadcast %320 : vector<128x1xf32> to vector<128x128xf32>
    %323 = vector.broadcast %321 : vector<1x128xf32> to vector<128x128xf32>
    %324 = arith.addf %322, %323 : vector<128x128xf32>
    %c1_i32_168 = arith.constant 1 : i32
    %c0_i32_169 = arith.constant 0 : i32
    %c0_i32_170 = arith.constant 0 : i32
    %c0_i32_171 = arith.constant 0 : i32
    %325 = tpu.memref_slice %arg30[%c1_i32_168, %c0_i32_169, %c0_i32_170, %c0_i32_171] : memref<3x4x128x128xbf16, #tpu.memory_space<vmem>> -> memref<1x4x128x128xbf16, #tpu.memory_space<vmem>>
    %326 = tpu.memref_squeeze %325 : memref<1x4x128x128xbf16, #tpu.memory_space<vmem>> -> memref<4x128x128xbf16, #tpu.memory_space<vmem>>
    %c0_172 = arith.constant 0 : index
    %c0_173 = arith.constant 0 : index
    %c0_174 = arith.constant 0 : index
    %327 = vector.load %326[%c0_172, %c0_173, %c0_174] : memref<4x128x128xbf16, #tpu.memory_space<vmem>>, vector<1x128x128xbf16>
    %328 = vector.shape_cast %327 : vector<1x128x128xbf16> to vector<128x128xbf16>
    %329 = arith.extf %328 : vector<128x128xbf16> to vector<128x128xf32>
    %330 = arith.addf %324, %329 : vector<128x128xf32>
    %cst_175 = arith.constant 2.000000e-01 : f32
    %331 = vector.broadcast %cst_175 : f32 to vector<128x128xf32>
    %332 = arith.mulf %331, %330 : vector<128x128xf32>
    %333 = arith.maximumf %330, %332 : vector<128x128xf32>
    %cst_176 = arith.constant dense<0xFF800000> : vector<128xf32>
    %334 = vector.multi_reduction <maximumf>, %333, %cst_176 [1] : vector<128x128xf32> to vector<128xf32>
    %335 = vector.shape_cast %334 : vector<128xf32> to vector<128x1xf32>
    %336 = vector.broadcast %335 : vector<128x1xf32> to vector<128x128xf32>
    %337 = arith.subf %333, %336 : vector<128x128xf32>
    %338 = math.exp %337 : vector<128x128xf32>
    %cst_177 = arith.constant dense<0.000000e+00> : vector<128xf32>
    %339 = vector.multi_reduction <add>, %338, %cst_177 [1] : vector<128x128xf32> to vector<128xf32>
    %340 = vector.shape_cast %339 : vector<128xf32> to vector<128x1xf32>
    %341 = tpu.reciprocal %340 {approx = true} : vector<128x1xf32> -> vector<128x1xf32>
    %342 = vector.broadcast %341 : vector<128x1xf32> to vector<128x128xf32>
    %343 = arith.mulf %338, %342 : vector<128x128xf32>
    %344 = arith.truncf %343 : vector<128x128xf32> to vector<128x128xbf16>
    %cst_178 = arith.constant dense<0.000000e+00> : vector<128x128xf32>
    %345 = tpu.matmul %344, %317, %cst_178 {dimension_numbers = #tpu.dot_dimension_numbers<[1], [0], [0], [1], [0, 0, 1, 1], [], []>} : vector<128x128xbf16>, vector<128x128xbf16>, vector<128x128xf32> -> vector<128x128xf32>
    %346 = vector.extract_strided_slice %318 {offsets = [0, 1], sizes = [128, 1], strides = [1, 1]} : vector<128x4xf32> to vector<128x1xf32>
    %347 = vector.extract_strided_slice %319 {offsets = [1, 0], sizes = [1, 128], strides = [1, 1]} : vector<4x128xf32> to vector<1x128xf32>
    %348 = vector.broadcast %346 : vector<128x1xf32> to vector<128x128xf32>
    %349 = vector.broadcast %347 : vector<1x128xf32> to vector<128x128xf32>
    %350 = arith.addf %348, %349 : vector<128x128xf32>
    %c1_i32_179 = arith.constant 1 : i32
    %c0_i32_180 = arith.constant 0 : i32
    %c0_i32_181 = arith.constant 0 : i32
    %c0_i32_182 = arith.constant 0 : i32
    %351 = tpu.memref_slice %arg30[%c1_i32_179, %c0_i32_180, %c0_i32_181, %c0_i32_182] : memref<3x4x128x128xbf16, #tpu.memory_space<vmem>> -> memref<1x4x128x128xbf16, #tpu.memory_space<vmem>>
    %352 = tpu.memref_squeeze %351 : memref<1x4x128x128xbf16, #tpu.memory_space<vmem>> -> memref<4x128x128xbf16, #tpu.memory_space<vmem>>
    %c1_183 = arith.constant 1 : index
    %c0_184 = arith.constant 0 : index
    %c0_185 = arith.constant 0 : index
    %353 = vector.load %352[%c1_183, %c0_184, %c0_185] : memref<4x128x128xbf16, #tpu.memory_space<vmem>>, vector<1x128x128xbf16>
    %354 = vector.shape_cast %353 : vector<1x128x128xbf16> to vector<128x128xbf16>
    %355 = arith.extf %354 : vector<128x128xbf16> to vector<128x128xf32>
    %356 = arith.addf %350, %355 : vector<128x128xf32>
    %cst_186 = arith.constant 2.000000e-01 : f32
    %357 = vector.broadcast %cst_186 : f32 to vector<128x128xf32>
    %358 = arith.mulf %357, %356 : vector<128x128xf32>
    %359 = arith.maximumf %356, %358 : vector<128x128xf32>
    %cst_187 = arith.constant dense<0xFF800000> : vector<128xf32>
    %360 = vector.multi_reduction <maximumf>, %359, %cst_187 [1] : vector<128x128xf32> to vector<128xf32>
    %361 = vector.shape_cast %360 : vector<128xf32> to vector<128x1xf32>
    %362 = vector.broadcast %361 : vector<128x1xf32> to vector<128x128xf32>
    %363 = arith.subf %359, %362 : vector<128x128xf32>
    %364 = math.exp %363 : vector<128x128xf32>
    %cst_188 = arith.constant dense<0.000000e+00> : vector<128xf32>
    %365 = vector.multi_reduction <add>, %364, %cst_188 [1] : vector<128x128xf32> to vector<128xf32>
    %366 = vector.shape_cast %365 : vector<128xf32> to vector<128x1xf32>
    %367 = tpu.reciprocal %366 {approx = true} : vector<128x1xf32> -> vector<128x1xf32>
    %368 = vector.broadcast %367 : vector<128x1xf32> to vector<128x128xf32>
    %369 = arith.mulf %364, %368 : vector<128x128xf32>
    %370 = arith.truncf %369 : vector<128x128xf32> to vector<128x128xbf16>
    %cst_189 = arith.constant dense<0.000000e+00> : vector<128x128xf32>
    %371 = tpu.matmul %370, %317, %cst_189 {dimension_numbers = #tpu.dot_dimension_numbers<[1], [0], [0], [1], [0, 0, 1, 1], [], []>} : vector<128x128xbf16>, vector<128x128xbf16>, vector<128x128xf32> -> vector<128x128xf32>
    %372 = vector.extract_strided_slice %318 {offsets = [0, 2], sizes = [128, 1], strides = [1, 1]} : vector<128x4xf32> to vector<128x1xf32>
    %373 = vector.extract_strided_slice %319 {offsets = [2, 0], sizes = [1, 128], strides = [1, 1]} : vector<4x128xf32> to vector<1x128xf32>
    %374 = vector.broadcast %372 : vector<128x1xf32> to vector<128x128xf32>
    %375 = vector.broadcast %373 : vector<1x128xf32> to vector<128x128xf32>
    %376 = arith.addf %374, %375 : vector<128x128xf32>
    %c1_i32_190 = arith.constant 1 : i32
    %c0_i32_191 = arith.constant 0 : i32
    %c0_i32_192 = arith.constant 0 : i32
    %c0_i32_193 = arith.constant 0 : i32
    %377 = tpu.memref_slice %arg30[%c1_i32_190, %c0_i32_191, %c0_i32_192, %c0_i32_193] : memref<3x4x128x128xbf16, #tpu.memory_space<vmem>> -> memref<1x4x128x128xbf16, #tpu.memory_space<vmem>>
    %378 = tpu.memref_squeeze %377 : memref<1x4x128x128xbf16, #tpu.memory_space<vmem>> -> memref<4x128x128xbf16, #tpu.memory_space<vmem>>
    %c2_194 = arith.constant 2 : index
    %c0_195 = arith.constant 0 : index
    %c0_196 = arith.constant 0 : index
    %379 = vector.load %378[%c2_194, %c0_195, %c0_196] : memref<4x128x128xbf16, #tpu.memory_space<vmem>>, vector<1x128x128xbf16>
    %380 = vector.shape_cast %379 : vector<1x128x128xbf16> to vector<128x128xbf16>
    %381 = arith.extf %380 : vector<128x128xbf16> to vector<128x128xf32>
    %382 = arith.addf %376, %381 : vector<128x128xf32>
    %cst_197 = arith.constant 2.000000e-01 : f32
    %383 = vector.broadcast %cst_197 : f32 to vector<128x128xf32>
    %384 = arith.mulf %383, %382 : vector<128x128xf32>
    %385 = arith.maximumf %382, %384 : vector<128x128xf32>
    %cst_198 = arith.constant dense<0xFF800000> : vector<128xf32>
    %386 = vector.multi_reduction <maximumf>, %385, %cst_198 [1] : vector<128x128xf32> to vector<128xf32>
    %387 = vector.shape_cast %386 : vector<128xf32> to vector<128x1xf32>
    %388 = vector.broadcast %387 : vector<128x1xf32> to vector<128x128xf32>
    %389 = arith.subf %385, %388 : vector<128x128xf32>
    %390 = math.exp %389 : vector<128x128xf32>
    %cst_199 = arith.constant dense<0.000000e+00> : vector<128xf32>
    %391 = vector.multi_reduction <add>, %390, %cst_199 [1] : vector<128x128xf32> to vector<128xf32>
    %392 = vector.shape_cast %391 : vector<128xf32> to vector<128x1xf32>
    %393 = tpu.reciprocal %392 {approx = true} : vector<128x1xf32> -> vector<128x1xf32>
    %394 = vector.broadcast %393 : vector<128x1xf32> to vector<128x128xf32>
    %395 = arith.mulf %390, %394 : vector<128x128xf32>
    %396 = arith.truncf %395 : vector<128x128xf32> to vector<128x128xbf16>
    %cst_200 = arith.constant dense<0.000000e+00> : vector<128x128xf32>
    %397 = tpu.matmul %396, %317, %cst_200 {dimension_numbers = #tpu.dot_dimension_numbers<[1], [0], [0], [1], [0, 0, 1, 1], [], []>} : vector<128x128xbf16>, vector<128x128xbf16>, vector<128x128xf32> -> vector<128x128xf32>
    %398 = vector.extract_strided_slice %318 {offsets = [0, 3], sizes = [128, 1], strides = [1, 1]} : vector<128x4xf32> to vector<128x1xf32>
    %399 = vector.extract_strided_slice %319 {offsets = [3, 0], sizes = [1, 128], strides = [1, 1]} : vector<4x128xf32> to vector<1x128xf32>
    %400 = vector.broadcast %398 : vector<128x1xf32> to vector<128x128xf32>
    %401 = vector.broadcast %399 : vector<1x128xf32> to vector<128x128xf32>
    %402 = arith.addf %400, %401 : vector<128x128xf32>
    %c1_i32_201 = arith.constant 1 : i32
    %c0_i32_202 = arith.constant 0 : i32
    %c0_i32_203 = arith.constant 0 : i32
    %c0_i32_204 = arith.constant 0 : i32
    %403 = tpu.memref_slice %arg30[%c1_i32_201, %c0_i32_202, %c0_i32_203, %c0_i32_204] : memref<3x4x128x128xbf16, #tpu.memory_space<vmem>> -> memref<1x4x128x128xbf16, #tpu.memory_space<vmem>>
    %404 = tpu.memref_squeeze %403 : memref<1x4x128x128xbf16, #tpu.memory_space<vmem>> -> memref<4x128x128xbf16, #tpu.memory_space<vmem>>
    %c3_205 = arith.constant 3 : index
    %c0_206 = arith.constant 0 : index
    %c0_207 = arith.constant 0 : index
    %405 = vector.load %404[%c3_205, %c0_206, %c0_207] : memref<4x128x128xbf16, #tpu.memory_space<vmem>>, vector<1x128x128xbf16>
    %406 = vector.shape_cast %405 : vector<1x128x128xbf16> to vector<128x128xbf16>
    %407 = arith.extf %406 : vector<128x128xbf16> to vector<128x128xf32>
    %408 = arith.addf %402, %407 : vector<128x128xf32>
    %cst_208 = arith.constant 2.000000e-01 : f32
    %409 = vector.broadcast %cst_208 : f32 to vector<128x128xf32>
    %410 = arith.mulf %409, %408 : vector<128x128xf32>
    %411 = arith.maximumf %408, %410 : vector<128x128xf32>
    %cst_209 = arith.constant dense<0xFF800000> : vector<128xf32>
    %412 = vector.multi_reduction <maximumf>, %411, %cst_209 [1] : vector<128x128xf32> to vector<128xf32>
    %413 = vector.shape_cast %412 : vector<128xf32> to vector<128x1xf32>
    %414 = vector.broadcast %413 : vector<128x1xf32> to vector<128x128xf32>
    %415 = arith.subf %411, %414 : vector<128x128xf32>
    %416 = math.exp %415 : vector<128x128xf32>
    %cst_210 = arith.constant dense<0.000000e+00> : vector<128xf32>
    %417 = vector.multi_reduction <add>, %416, %cst_210 [1] : vector<128x128xf32> to vector<128xf32>
    %418 = vector.shape_cast %417 : vector<128xf32> to vector<128x1xf32>
    %419 = tpu.reciprocal %418 {approx = true} : vector<128x1xf32> -> vector<128x1xf32>
    %420 = vector.broadcast %419 : vector<128x1xf32> to vector<128x128xf32>
    %421 = arith.mulf %416, %420 : vector<128x128xf32>
    %422 = arith.truncf %421 : vector<128x128xf32> to vector<128x128xbf16>
    %cst_211 = arith.constant dense<0.000000e+00> : vector<128x128xf32>
    %423 = tpu.matmul %422, %317, %cst_211 {dimension_numbers = #tpu.dot_dimension_numbers<[1], [0], [0], [1], [0, 0, 1, 1], [], []>} : vector<128x128xbf16>, vector<128x128xbf16>, vector<128x128xf32> -> vector<128x128xf32>
    %424 = tpu.concatenate %345, %371, %397, %423 in 1 : vector<128x128xf32>, vector<128x128xf32>, vector<128x128xf32>, vector<128x128xf32> -> vector<128x512xf32>
    %425 = arith.truncf %424 : vector<128x512xf32> to vector<128x512xbf16>
    %cst_212 = arith.constant dense<0.000000e+00> : vector<128x128xf32>
    %426 = tpu.matmul %425, %310, %cst_212 {dimension_numbers = #tpu.dot_dimension_numbers<[1], [0], [0], [1], [0, 0, 1, 1], [], []>} : vector<128x512xbf16>, vector<512x128xbf16>, vector<128x128xf32> -> vector<128x128xf32>
    %cst_213 = arith.constant 2.500000e-01 : f32
    %427 = vector.broadcast %cst_213 : f32 to vector<128x128xf32>
    %428 = arith.mulf %426, %427 : vector<128x128xf32>
    %429 = vector.broadcast %316 : vector<1x128xf32> to vector<128x128xf32>
    %430 = arith.addf %428, %429 : vector<128x128xf32>
    %cst_214 = arith.constant dense<0.000000e+00> : vector<128xf32>
    %431 = vector.multi_reduction <add>, %430, %cst_214 [0] : vector<128x128xf32> to vector<128xf32>
    %432 = vector.shape_cast %431 : vector<128xf32> to vector<1x128xf32>
    %cst_215 = arith.constant 1.280000e+02 : f32
    %433 = vector.broadcast %cst_215 : f32 to vector<1x128xf32>
    %434 = arith.divf %432, %433 : vector<1x128xf32>
    %c1_216 = arith.constant 1 : index
    %c0_217 = arith.constant 0 : index
    %c0_218 = arith.constant 0 : index
    %435 = vector.load %arg26[%c1_216, %c0_217, %c0_218] : memref<3x1x128xf32, #tpu.memory_space<vmem>>, vector<1x1x128xf32>
    %436 = vector.shape_cast %435 : vector<1x1x128xf32> to vector<1x128xf32>
    %437 = arith.mulf %436, %434 : vector<1x128xf32>
    %438 = vector.broadcast %437 : vector<1x128xf32> to vector<128x128xf32>
    %439 = arith.subf %430, %438 : vector<128x128xf32>
    %440 = arith.mulf %439, %439 : vector<128x128xf32>
    %cst_219 = arith.constant dense<0.000000e+00> : vector<128xf32>
    %441 = vector.multi_reduction <add>, %440, %cst_219 [0] : vector<128x128xf32> to vector<128xf32>
    %442 = vector.shape_cast %441 : vector<128xf32> to vector<1x128xf32>
    %cst_220 = arith.constant 1.280000e+02 : f32
    %443 = vector.broadcast %cst_220 : f32 to vector<1x128xf32>
    %444 = arith.divf %442, %443 : vector<1x128xf32>
    %c1_221 = arith.constant 1 : index
    %c0_222 = arith.constant 0 : index
    %c0_223 = arith.constant 0 : index
    %445 = vector.load %arg24[%c1_221, %c0_222, %c0_223] : memref<3x1x128xf32, #tpu.memory_space<vmem>>, vector<1x1x128xf32>
    %446 = vector.shape_cast %445 : vector<1x1x128xf32> to vector<1x128xf32>
    %447 = vector.broadcast %446 : vector<1x128xf32> to vector<128x128xf32>
    %448 = arith.mulf %447, %439 : vector<128x128xf32>
    %cst_224 = arith.constant 9.99999974E-6 : f32
    %449 = vector.broadcast %cst_224 : f32 to vector<1x128xf32>
    %450 = arith.addf %444, %449 : vector<1x128xf32>
    %451 = math.rsqrt %450 : vector<1x128xf32>
    %452 = vector.broadcast %451 : vector<1x128xf32> to vector<128x128xf32>
    %453 = arith.mulf %448, %452 : vector<128x128xf32>
    %c1_225 = arith.constant 1 : index
    %c0_226 = arith.constant 0 : index
    %c0_227 = arith.constant 0 : index
    %454 = vector.load %arg25[%c1_225, %c0_226, %c0_227] : memref<3x1x128xf32, #tpu.memory_space<vmem>>, vector<1x1x128xf32>
    %455 = vector.shape_cast %454 : vector<1x1x128xf32> to vector<1x128xf32>
    %456 = vector.broadcast %455 : vector<1x128xf32> to vector<128x128xf32>
    %457 = arith.addf %453, %456 : vector<128x128xf32>
    %458 = arith.addf %457, %308 : vector<128x128xf32>
    %cst_228 = arith.constant 0.000000e+00 : f32
    %459 = vector.broadcast %cst_228 : f32 to vector<128x128xf32>
    %460 = arith.cmpf ogt, %458, %459 : vector<128x128xf32>
    %461 = math.exp %458 : vector<128x128xf32>
    %cst_229 = arith.constant 1.000000e+00 : f32
    %462 = vector.broadcast %cst_229 : f32 to vector<128x128xf32>
    %463 = arith.subf %461, %462 : vector<128x128xf32>
    %464 = arith.select %460, %458, %463 : vector<128x128xi1>, vector<128x128xf32>
    %c2_230 = arith.constant 2 : index
    %c0_231 = arith.constant 0 : index
    %c0_232 = arith.constant 0 : index
    %465 = vector.load %arg29[%c2_230, %c0_231, %c0_232] : memref<3x512x128xbf16, #tpu.memory_space<vmem>>, vector<1x512x128xbf16>
    %466 = vector.shape_cast %465 : vector<1x512x128xbf16> to vector<512x128xbf16>
    %c2_233 = arith.constant 2 : index
    %c0_234 = arith.constant 0 : index
    %c0_235 = arith.constant 0 : index
    %467 = vector.load %arg21[%c2_233, %c0_234, %c0_235] : memref<3x4x128xbf16, #tpu.memory_space<vmem>>, vector<1x4x128xbf16>
    %468 = vector.shape_cast %467 : vector<1x4x128xbf16> to vector<4x128xbf16>
    %c2_236 = arith.constant 2 : index
    %c0_237 = arith.constant 0 : index
    %c0_238 = arith.constant 0 : index
    %469 = vector.load %arg22[%c2_236, %c0_237, %c0_238] : memref<3x128x4xbf16, #tpu.memory_space<vmem>>, vector<1x128x4xbf16>
    %470 = vector.shape_cast %469 : vector<1x128x4xbf16> to vector<128x4xbf16>
    %c2_239 = arith.constant 2 : index
    %c0_240 = arith.constant 0 : index
    %c0_241 = arith.constant 0 : index
    %471 = vector.load %arg23[%c2_239, %c0_240, %c0_241] : memref<3x1x128xf32, #tpu.memory_space<vmem>>, vector<1x1x128xf32>
    %472 = vector.shape_cast %471 : vector<1x1x128xf32> to vector<1x128xf32>
    %473 = arith.truncf %464 : vector<128x128xf32> to vector<128x128xbf16>
    %cst_242 = arith.constant dense<0.000000e+00> : vector<128x4xf32>
    %474 = tpu.matmul %473, %470, %cst_242 {dimension_numbers = #tpu.dot_dimension_numbers<[1], [0], [0], [1], [0, 0, 1, 1], [], []>} : vector<128x128xbf16>, vector<128x4xbf16>, vector<128x4xf32> -> vector<128x4xf32>
    %cst_243 = arith.constant dense<0.000000e+00> : vector<4x128xf32>
    %475 = tpu.matmul %468, %473, %cst_243 {dimension_numbers = #tpu.dot_dimension_numbers<[1], [1], [0], [0], [0, 0, 1, 0], [], []>} : vector<4x128xbf16>, vector<128x128xbf16>, vector<4x128xf32> -> vector<4x128xf32>
    %476 = vector.extract_strided_slice %474 {offsets = [0, 0], sizes = [128, 1], strides = [1, 1]} : vector<128x4xf32> to vector<128x1xf32>
    %477 = vector.extract_strided_slice %475 {offsets = [0, 0], sizes = [1, 128], strides = [1, 1]} : vector<4x128xf32> to vector<1x128xf32>
    %478 = vector.broadcast %476 : vector<128x1xf32> to vector<128x128xf32>
    %479 = vector.broadcast %477 : vector<1x128xf32> to vector<128x128xf32>
    %480 = arith.addf %478, %479 : vector<128x128xf32>
    %c2_i32 = arith.constant 2 : i32
    %c0_i32_244 = arith.constant 0 : i32
    %c0_i32_245 = arith.constant 0 : i32
    %c0_i32_246 = arith.constant 0 : i32
    %481 = tpu.memref_slice %arg30[%c2_i32, %c0_i32_244, %c0_i32_245, %c0_i32_246] : memref<3x4x128x128xbf16, #tpu.memory_space<vmem>> -> memref<1x4x128x128xbf16, #tpu.memory_space<vmem>>
    %482 = tpu.memref_squeeze %481 : memref<1x4x128x128xbf16, #tpu.memory_space<vmem>> -> memref<4x128x128xbf16, #tpu.memory_space<vmem>>
    %c0_247 = arith.constant 0 : index
    %c0_248 = arith.constant 0 : index
    %c0_249 = arith.constant 0 : index
    %483 = vector.load %482[%c0_247, %c0_248, %c0_249] : memref<4x128x128xbf16, #tpu.memory_space<vmem>>, vector<1x128x128xbf16>
    %484 = vector.shape_cast %483 : vector<1x128x128xbf16> to vector<128x128xbf16>
    %485 = arith.extf %484 : vector<128x128xbf16> to vector<128x128xf32>
    %486 = arith.addf %480, %485 : vector<128x128xf32>
    %cst_250 = arith.constant 2.000000e-01 : f32
    %487 = vector.broadcast %cst_250 : f32 to vector<128x128xf32>
    %488 = arith.mulf %487, %486 : vector<128x128xf32>
    %489 = arith.maximumf %486, %488 : vector<128x128xf32>
    %cst_251 = arith.constant dense<0xFF800000> : vector<128xf32>
    %490 = vector.multi_reduction <maximumf>, %489, %cst_251 [1] : vector<128x128xf32> to vector<128xf32>
    %491 = vector.shape_cast %490 : vector<128xf32> to vector<128x1xf32>
    %492 = vector.broadcast %491 : vector<128x1xf32> to vector<128x128xf32>
    %493 = arith.subf %489, %492 : vector<128x128xf32>
    %494 = math.exp %493 : vector<128x128xf32>
    %cst_252 = arith.constant dense<0.000000e+00> : vector<128xf32>
    %495 = vector.multi_reduction <add>, %494, %cst_252 [1] : vector<128x128xf32> to vector<128xf32>
    %496 = vector.shape_cast %495 : vector<128xf32> to vector<128x1xf32>
    %497 = tpu.reciprocal %496 {approx = true} : vector<128x1xf32> -> vector<128x1xf32>
    %498 = vector.broadcast %497 : vector<128x1xf32> to vector<128x128xf32>
    %499 = arith.mulf %494, %498 : vector<128x128xf32>
    %500 = arith.truncf %499 : vector<128x128xf32> to vector<128x128xbf16>
    %cst_253 = arith.constant dense<0.000000e+00> : vector<128x128xf32>
    %501 = tpu.matmul %500, %473, %cst_253 {dimension_numbers = #tpu.dot_dimension_numbers<[1], [0], [0], [1], [0, 0, 1, 1], [], []>} : vector<128x128xbf16>, vector<128x128xbf16>, vector<128x128xf32> -> vector<128x128xf32>
    %502 = vector.extract_strided_slice %474 {offsets = [0, 1], sizes = [128, 1], strides = [1, 1]} : vector<128x4xf32> to vector<128x1xf32>
    %503 = vector.extract_strided_slice %475 {offsets = [1, 0], sizes = [1, 128], strides = [1, 1]} : vector<4x128xf32> to vector<1x128xf32>
    %504 = vector.broadcast %502 : vector<128x1xf32> to vector<128x128xf32>
    %505 = vector.broadcast %503 : vector<1x128xf32> to vector<128x128xf32>
    %506 = arith.addf %504, %505 : vector<128x128xf32>
    %c2_i32_254 = arith.constant 2 : i32
    %c0_i32_255 = arith.constant 0 : i32
    %c0_i32_256 = arith.constant 0 : i32
    %c0_i32_257 = arith.constant 0 : i32
    %507 = tpu.memref_slice %arg30[%c2_i32_254, %c0_i32_255, %c0_i32_256, %c0_i32_257] : memref<3x4x128x128xbf16, #tpu.memory_space<vmem>> -> memref<1x4x128x128xbf16, #tpu.memory_space<vmem>>
    %508 = tpu.memref_squeeze %507 : memref<1x4x128x128xbf16, #tpu.memory_space<vmem>> -> memref<4x128x128xbf16, #tpu.memory_space<vmem>>
    %c1_258 = arith.constant 1 : index
    %c0_259 = arith.constant 0 : index
    %c0_260 = arith.constant 0 : index
    %509 = vector.load %508[%c1_258, %c0_259, %c0_260] : memref<4x128x128xbf16, #tpu.memory_space<vmem>>, vector<1x128x128xbf16>
    %510 = vector.shape_cast %509 : vector<1x128x128xbf16> to vector<128x128xbf16>
    %511 = arith.extf %510 : vector<128x128xbf16> to vector<128x128xf32>
    %512 = arith.addf %506, %511 : vector<128x128xf32>
    %cst_261 = arith.constant 2.000000e-01 : f32
    %513 = vector.broadcast %cst_261 : f32 to vector<128x128xf32>
    %514 = arith.mulf %513, %512 : vector<128x128xf32>
    %515 = arith.maximumf %512, %514 : vector<128x128xf32>
    %cst_262 = arith.constant dense<0xFF800000> : vector<128xf32>
    %516 = vector.multi_reduction <maximumf>, %515, %cst_262 [1] : vector<128x128xf32> to vector<128xf32>
    %517 = vector.shape_cast %516 : vector<128xf32> to vector<128x1xf32>
    %518 = vector.broadcast %517 : vector<128x1xf32> to vector<128x128xf32>
    %519 = arith.subf %515, %518 : vector<128x128xf32>
    %520 = math.exp %519 : vector<128x128xf32>
    %cst_263 = arith.constant dense<0.000000e+00> : vector<128xf32>
    %521 = vector.multi_reduction <add>, %520, %cst_263 [1] : vector<128x128xf32> to vector<128xf32>
    %522 = vector.shape_cast %521 : vector<128xf32> to vector<128x1xf32>
    %523 = tpu.reciprocal %522 {approx = true} : vector<128x1xf32> -> vector<128x1xf32>
    %524 = vector.broadcast %523 : vector<128x1xf32> to vector<128x128xf32>
    %525 = arith.mulf %520, %524 : vector<128x128xf32>
    %526 = arith.truncf %525 : vector<128x128xf32> to vector<128x128xbf16>
    %cst_264 = arith.constant dense<0.000000e+00> : vector<128x128xf32>
    %527 = tpu.matmul %526, %473, %cst_264 {dimension_numbers = #tpu.dot_dimension_numbers<[1], [0], [0], [1], [0, 0, 1, 1], [], []>} : vector<128x128xbf16>, vector<128x128xbf16>, vector<128x128xf32> -> vector<128x128xf32>
    %528 = vector.extract_strided_slice %474 {offsets = [0, 2], sizes = [128, 1], strides = [1, 1]} : vector<128x4xf32> to vector<128x1xf32>
    %529 = vector.extract_strided_slice %475 {offsets = [2, 0], sizes = [1, 128], strides = [1, 1]} : vector<4x128xf32> to vector<1x128xf32>
    %530 = vector.broadcast %528 : vector<128x1xf32> to vector<128x128xf32>
    %531 = vector.broadcast %529 : vector<1x128xf32> to vector<128x128xf32>
    %532 = arith.addf %530, %531 : vector<128x128xf32>
    %c2_i32_265 = arith.constant 2 : i32
    %c0_i32_266 = arith.constant 0 : i32
    %c0_i32_267 = arith.constant 0 : i32
    %c0_i32_268 = arith.constant 0 : i32
    %533 = tpu.memref_slice %arg30[%c2_i32_265, %c0_i32_266, %c0_i32_267, %c0_i32_268] : memref<3x4x128x128xbf16, #tpu.memory_space<vmem>> -> memref<1x4x128x128xbf16, #tpu.memory_space<vmem>>
    %534 = tpu.memref_squeeze %533 : memref<1x4x128x128xbf16, #tpu.memory_space<vmem>> -> memref<4x128x128xbf16, #tpu.memory_space<vmem>>
    %c2_269 = arith.constant 2 : index
    %c0_270 = arith.constant 0 : index
    %c0_271 = arith.constant 0 : index
    %535 = vector.load %534[%c2_269, %c0_270, %c0_271] : memref<4x128x128xbf16, #tpu.memory_space<vmem>>, vector<1x128x128xbf16>
    %536 = vector.shape_cast %535 : vector<1x128x128xbf16> to vector<128x128xbf16>
    %537 = arith.extf %536 : vector<128x128xbf16> to vector<128x128xf32>
    %538 = arith.addf %532, %537 : vector<128x128xf32>
    %cst_272 = arith.constant 2.000000e-01 : f32
    %539 = vector.broadcast %cst_272 : f32 to vector<128x128xf32>
    %540 = arith.mulf %539, %538 : vector<128x128xf32>
    %541 = arith.maximumf %538, %540 : vector<128x128xf32>
    %cst_273 = arith.constant dense<0xFF800000> : vector<128xf32>
    %542 = vector.multi_reduction <maximumf>, %541, %cst_273 [1] : vector<128x128xf32> to vector<128xf32>
    %543 = vector.shape_cast %542 : vector<128xf32> to vector<128x1xf32>
    %544 = vector.broadcast %543 : vector<128x1xf32> to vector<128x128xf32>
    %545 = arith.subf %541, %544 : vector<128x128xf32>
    %546 = math.exp %545 : vector<128x128xf32>
    %cst_274 = arith.constant dense<0.000000e+00> : vector<128xf32>
    %547 = vector.multi_reduction <add>, %546, %cst_274 [1] : vector<128x128xf32> to vector<128xf32>
    %548 = vector.shape_cast %547 : vector<128xf32> to vector<128x1xf32>
    %549 = tpu.reciprocal %548 {approx = true} : vector<128x1xf32> -> vector<128x1xf32>
    %550 = vector.broadcast %549 : vector<128x1xf32> to vector<128x128xf32>
    %551 = arith.mulf %546, %550 : vector<128x128xf32>
    %552 = arith.truncf %551 : vector<128x128xf32> to vector<128x128xbf16>
    %cst_275 = arith.constant dense<0.000000e+00> : vector<128x128xf32>
    %553 = tpu.matmul %552, %473, %cst_275 {dimension_numbers = #tpu.dot_dimension_numbers<[1], [0], [0], [1], [0, 0, 1, 1], [], []>} : vector<128x128xbf16>, vector<128x128xbf16>, vector<128x128xf32> -> vector<128x128xf32>
    %554 = vector.extract_strided_slice %474 {offsets = [0, 3], sizes = [128, 1], strides = [1, 1]} : vector<128x4xf32> to vector<128x1xf32>
    %555 = vector.extract_strided_slice %475 {offsets = [3, 0], sizes = [1, 128], strides = [1, 1]} : vector<4x128xf32> to vector<1x128xf32>
    %556 = vector.broadcast %554 : vector<128x1xf32> to vector<128x128xf32>
    %557 = vector.broadcast %555 : vector<1x128xf32> to vector<128x128xf32>
    %558 = arith.addf %556, %557 : vector<128x128xf32>
    %c2_i32_276 = arith.constant 2 : i32
    %c0_i32_277 = arith.constant 0 : i32
    %c0_i32_278 = arith.constant 0 : i32
    %c0_i32_279 = arith.constant 0 : i32
    %559 = tpu.memref_slice %arg30[%c2_i32_276, %c0_i32_277, %c0_i32_278, %c0_i32_279] : memref<3x4x128x128xbf16, #tpu.memory_space<vmem>> -> memref<1x4x128x128xbf16, #tpu.memory_space<vmem>>
    %560 = tpu.memref_squeeze %559 : memref<1x4x128x128xbf16, #tpu.memory_space<vmem>> -> memref<4x128x128xbf16, #tpu.memory_space<vmem>>
    %c3_280 = arith.constant 3 : index
    %c0_281 = arith.constant 0 : index
    %c0_282 = arith.constant 0 : index
    %561 = vector.load %560[%c3_280, %c0_281, %c0_282] : memref<4x128x128xbf16, #tpu.memory_space<vmem>>, vector<1x128x128xbf16>
    %562 = vector.shape_cast %561 : vector<1x128x128xbf16> to vector<128x128xbf16>
    %563 = arith.extf %562 : vector<128x128xbf16> to vector<128x128xf32>
    %564 = arith.addf %558, %563 : vector<128x128xf32>
    %cst_283 = arith.constant 2.000000e-01 : f32
    %565 = vector.broadcast %cst_283 : f32 to vector<128x128xf32>
    %566 = arith.mulf %565, %564 : vector<128x128xf32>
    %567 = arith.maximumf %564, %566 : vector<128x128xf32>
    %cst_284 = arith.constant dense<0xFF800000> : vector<128xf32>
    %568 = vector.multi_reduction <maximumf>, %567, %cst_284 [1] : vector<128x128xf32> to vector<128xf32>
    %569 = vector.shape_cast %568 : vector<128xf32> to vector<128x1xf32>
    %570 = vector.broadcast %569 : vector<128x1xf32> to vector<128x128xf32>
    %571 = arith.subf %567, %570 : vector<128x128xf32>
    %572 = math.exp %571 : vector<128x128xf32>
    %cst_285 = arith.constant dense<0.000000e+00> : vector<128xf32>
    %573 = vector.multi_reduction <add>, %572, %cst_285 [1] : vector<128x128xf32> to vector<128xf32>
    %574 = vector.shape_cast %573 : vector<128xf32> to vector<128x1xf32>
    %575 = tpu.reciprocal %574 {approx = true} : vector<128x1xf32> -> vector<128x1xf32>
    %576 = vector.broadcast %575 : vector<128x1xf32> to vector<128x128xf32>
    %577 = arith.mulf %572, %576 : vector<128x128xf32>
    %578 = arith.truncf %577 : vector<128x128xf32> to vector<128x128xbf16>
    %cst_286 = arith.constant dense<0.000000e+00> : vector<128x128xf32>
    %579 = tpu.matmul %578, %473, %cst_286 {dimension_numbers = #tpu.dot_dimension_numbers<[1], [0], [0], [1], [0, 0, 1, 1], [], []>} : vector<128x128xbf16>, vector<128x128xbf16>, vector<128x128xf32> -> vector<128x128xf32>
    %580 = tpu.concatenate %501, %527, %553, %579 in 1 : vector<128x128xf32>, vector<128x128xf32>, vector<128x128xf32>, vector<128x128xf32> -> vector<128x512xf32>
    %581 = arith.truncf %580 : vector<128x512xf32> to vector<128x512xbf16>
    %cst_287 = arith.constant dense<0.000000e+00> : vector<128x128xf32>
    %582 = tpu.matmul %581, %466, %cst_287 {dimension_numbers = #tpu.dot_dimension_numbers<[1], [0], [0], [1], [0, 0, 1, 1], [], []>} : vector<128x512xbf16>, vector<512x128xbf16>, vector<128x128xf32> -> vector<128x128xf32>
    %cst_288 = arith.constant 2.500000e-01 : f32
    %583 = vector.broadcast %cst_288 : f32 to vector<128x128xf32>
    %584 = arith.mulf %582, %583 : vector<128x128xf32>
    %585 = vector.broadcast %472 : vector<1x128xf32> to vector<128x128xf32>
    %586 = arith.addf %584, %585 : vector<128x128xf32>
    %cst_289 = arith.constant dense<0.000000e+00> : vector<128xf32>
    %587 = vector.multi_reduction <add>, %586, %cst_289 [0] : vector<128x128xf32> to vector<128xf32>
    %588 = vector.shape_cast %587 : vector<128xf32> to vector<1x128xf32>
    %cst_290 = arith.constant 1.280000e+02 : f32
    %589 = vector.broadcast %cst_290 : f32 to vector<1x128xf32>
    %590 = arith.divf %588, %589 : vector<1x128xf32>
    %c2_291 = arith.constant 2 : index
    %c0_292 = arith.constant 0 : index
    %c0_293 = arith.constant 0 : index
    %591 = vector.load %arg26[%c2_291, %c0_292, %c0_293] : memref<3x1x128xf32, #tpu.memory_space<vmem>>, vector<1x1x128xf32>
    %592 = vector.shape_cast %591 : vector<1x1x128xf32> to vector<1x128xf32>
    %593 = arith.mulf %592, %590 : vector<1x128xf32>
    %594 = vector.broadcast %593 : vector<1x128xf32> to vector<128x128xf32>
    %595 = arith.subf %586, %594 : vector<128x128xf32>
    %596 = arith.mulf %595, %595 : vector<128x128xf32>
    %cst_294 = arith.constant dense<0.000000e+00> : vector<128xf32>
    %597 = vector.multi_reduction <add>, %596, %cst_294 [0] : vector<128x128xf32> to vector<128xf32>
    %598 = vector.shape_cast %597 : vector<128xf32> to vector<1x128xf32>
    %cst_295 = arith.constant 1.280000e+02 : f32
    %599 = vector.broadcast %cst_295 : f32 to vector<1x128xf32>
    %600 = arith.divf %598, %599 : vector<1x128xf32>
    %c2_296 = arith.constant 2 : index
    %c0_297 = arith.constant 0 : index
    %c0_298 = arith.constant 0 : index
    %601 = vector.load %arg24[%c2_296, %c0_297, %c0_298] : memref<3x1x128xf32, #tpu.memory_space<vmem>>, vector<1x1x128xf32>
    %602 = vector.shape_cast %601 : vector<1x1x128xf32> to vector<1x128xf32>
    %603 = vector.broadcast %602 : vector<1x128xf32> to vector<128x128xf32>
    %604 = arith.mulf %603, %595 : vector<128x128xf32>
    %cst_299 = arith.constant 9.99999974E-6 : f32
    %605 = vector.broadcast %cst_299 : f32 to vector<1x128xf32>
    %606 = arith.addf %600, %605 : vector<1x128xf32>
    %607 = math.rsqrt %606 : vector<1x128xf32>
    %608 = vector.broadcast %607 : vector<1x128xf32> to vector<128x128xf32>
    %609 = arith.mulf %604, %608 : vector<128x128xf32>
    %c2_300 = arith.constant 2 : index
    %c0_301 = arith.constant 0 : index
    %c0_302 = arith.constant 0 : index
    %610 = vector.load %arg25[%c2_300, %c0_301, %c0_302] : memref<3x1x128xf32, #tpu.memory_space<vmem>>, vector<1x1x128xf32>
    %611 = vector.shape_cast %610 : vector<1x1x128xf32> to vector<1x128xf32>
    %612 = vector.broadcast %611 : vector<1x128xf32> to vector<128x128xf32>
    %613 = arith.addf %609, %612 : vector<128x128xf32>
    %614 = arith.addf %613, %464 : vector<128x128xf32>
    %cst_303 = arith.constant 0.000000e+00 : f32
    %615 = vector.broadcast %cst_303 : f32 to vector<128x128xf32>
    %616 = arith.cmpf ogt, %614, %615 : vector<128x128xf32>
    %617 = math.exp %614 : vector<128x128xf32>
    %cst_304 = arith.constant 1.000000e+00 : f32
    %618 = vector.broadcast %cst_304 : f32 to vector<128x128xf32>
    %619 = arith.subf %617, %618 : vector<128x128xf32>
    %620 = arith.select %616, %614, %619 : vector<128x128xi1>, vector<128x128xf32>
    %c0_305 = arith.constant 0 : index
    %c0_306 = arith.constant 0 : index
    %621 = vector.load %arg27[%c0_305, %c0_306] : memref<128x128xf32, #tpu.memory_space<vmem>>, vector<128x128xf32>
    tpu.vector_store %arg27[%c0_305, %c0_306], %620 {strides = array<i32>} : memref<128x128xf32, #tpu.memory_space<vmem>>, vector<128x128xf32>,
    return
  }
}

</mosaic_0001>

<llo_original>
// kernel: enriched_gat_forward.1
$region0: #{enriched_gat_forward.1}
  #allocation0 [shape = 'u32[]', space=smem, size = 0x4, offset = 0x4, fixed_abs, tag = 'smem constant byte address 0x4 - core index']
  #allocation1 [shape = 'u32[144,128]{1,0:T(1,128)}', space=vmem, size = 0x12000, scoped, tag = 'internal scratch']
  #allocation2 [shape = 'f32[128,128]{1,0:T(8,128)}', space=vmem, size = 0x10000, scoped, tag = 'scratch operand']
  #allocation3 [shape = 'bf16[3,512,128]{2,1,0:T(16,128)(2,1)}', space=vmem, size = 0x60000, scoped, tag = 'scratch operand']
  #allocation4 [shape = 'bf16[3,4,128,128]{3,2,1,0:T(16,128)(2,1)}', space=vmem, size = 0x60000, scoped, tag = 'scratch operand']
  #allocation5 [shape = 's32[2]{0}', space=sflag, size = 0x8, scoped, tag = 'scratch operand']
  #allocation32 [shape = 's32[]', space=sflag, size = 0x4, offset = 0, fixed_abs, tag = 'sflag constant byte address 0x0 - dummy sync flag']
  #allocation33 [shape = 's32[]', space=sflag, size = 0x4, offset = 0, fixed_abs, tag = 'sflag constant byte address 0x0 - dummy sync flag']
  #allocation34 [shape = 'u32[]', space=smem, size = 0x4, offset = 0x44, fixed_abs, tag = 'smem constant byte address 0x44 - assertion arg 0']
  #allocation35 [shape = 'u32[]', space=smem, size = 0x4, offset = 0x48, fixed_abs, tag = 'smem constant byte address 0x48 - assertion arg 1']
  #allocation36 [shape = 's32[]', space=sflag, size = 0x4, offset = 0, fixed_abs, tag = 'sflag constant byte address 0x0 - dummy sync flag']
  #allocation37 [shape = 's32[]', space=sflag, size = 0x4, offset = 0, fixed_abs, tag = 'sflag constant byte address 0x0 - dummy sync flag']
  %s0 = inlined_call_operand.vmem [shape: f32[64,128], index: 0, kind: input, shape index: {}]
  %s1 = inlined_call_operand.hbm [shape: f32[64,128], index: 1, kind: input, shape index: {}]
  %s2 = inlined_call_operand.hbm [shape: f32[64,256], index: 2, kind: input, shape index: {}]
  %s3 = inlined_call_operand.hbm [shape: bf16[128,256], index: 3, kind: input, shape index: {}]
  %s4 = inlined_call_operand.hbm [shape: bf16[256,256], index: 4, kind: input, shape index: {}]
  %s5 = inlined_call_operand.hbm [shape: f32[1,256], index: 5, kind: input, shape index: {}]
  %s6 = inlined_call_operand.hbm [shape: bf16[256,128], index: 6, kind: input, shape index: {}]
  %s7 = inlined_call_operand.hbm [shape: f32[1,128], index: 7, kind: input, shape index: {}]
  %s8 = inlined_call_operand.hbm [shape: bf16[128,128], index: 8, kind: input, shape index: {}]
  %s9 = inlined_call_operand.hbm [shape: bf16[128,128], index: 9, kind: input, shape index: {}]
  %s10 = inlined_call_operand.hbm [shape: f32[1,128], index: 10, kind: input, shape index: {}]
  %s11 = inlined_call_operand.vmem [shape: f32[128,1], index: 11, kind: input, shape index: {}]
  %s12 = inlined_call_operand.vmem [shape: bf16[8,128], index: 12, kind: input, shape index: {}]
  %s13 = inlined_call_operand.vmem [shape: bf16[128,8], index: 13, kind: input, shape index: {}]
  %s14 = inlined_call_operand.vmem [shape: f32[512,128], index: 14, kind: input, shape index: {}]
  %s15 = inlined_call_operand.hbm [shape: f32[4,128], index: 15, kind: input, shape index: {}]
  %s16 = inlined_call_operand.vmem [shape: f32[128,4], index: 16, kind: input, shape index: {}]
  %s17 = inlined_call_operand.hbm [shape: f32[4,8,8], index: 17, kind: input, shape index: {}]
  %s18 = inlined_call_operand.hbm [shape: f32[1,128], index: 18, kind: input, shape index: {}]
  %s19 = inlined_call_operand.hbm [shape: bf16[3,512,128], index: 19, kind: input, shape index: {}]
  %s20 = inlined_call_operand.hbm [shape: bf16[3,4,128,128], index: 20, kind: input, shape index: {}]
  %s21 = inlined_call_operand.vmem [shape: bf16[3,4,128], index: 21, kind: input, shape index: {}]
  %s22 = inlined_call_operand.vmem [shape: bf16[3,128,4], index: 22, kind: input, shape index: {}]
  %s23 = inlined_call_operand.hbm [shape: f32[3,1,128], index: 23, kind: input, shape index: {}]
  %s24 = inlined_call_operand.hbm [shape: f32[3,1,128], index: 24, kind: input, shape index: {}]
  %s25 = inlined_call_operand.hbm [shape: f32[3,1,128], index: 25, kind: input, shape index: {}]
  %s26 = inlined_call_operand.hbm [shape: f32[3,1,128], index: 26, kind: input, shape index: {}]
  %s27 = inlined_call_operand.vmem [shape: f32[128,128], index: 27, kind: output, shape index: {}]
  %s28 = sld [smem:[#allocation0]]
  $region186: #{enriched_gat_forward.1} parent=0
    _
  %s30 = ssub.s32 1, %s28
  %s31 = scalar_select 0, %s30, %s28
  $region1: #{enriched_gat_forward.1} parent=0
    #allocation6 [shape = 'u8[32768]{0}', space=vmem, size = 0x8000, scoped, tag = 'input window, operand 1, single buffered']
    #allocation7 [shape = 's32[1]{0}', space=sflag, size = 0x4, scoped, tag = 'scoped memory for enriched_gat_forward.1']
    #allocation8 [shape = 'u8[65536]{0}', space=vmem, size = 0x10000, scoped, tag = 'input window, operand 2, single buffered']
    #allocation9 [shape = 's32[1]{0}', space=sflag, size = 0x4, scoped, tag = 'scoped memory for enriched_gat_forward.1']
    #allocation10 [shape = 'u8[65536]{0}', space=vmem, size = 0x10000, scoped, tag = 'input window, operand 3, single buffered']
    #allocation11 [shape = 'u8[131072]{0}', space=vmem, size = 0x20000, scoped, tag = 'input window, operand 4, single buffered']
    #allocation12 [shape = 's32[1]{0}', space=sflag, size = 0x4, scoped, tag = 'scoped memory for enriched_gat_forward.1']
    #allocation13 [shape = 'u8[1024]{0}', space=vmem, size = 0x400, scoped, tag = 'input window, operand 5, single buffered']
    #allocation14 [shape = 'u8[65536]{0}', space=vmem, size = 0x10000, scoped, tag = 'input window, operand 6, single buffered']
    #allocation15 [shape = 's32[1]{0}', space=sflag, size = 0x4, scoped, tag = 'scoped memory for enriched_gat_forward.1']
    #allocation16 [shape = 'u8[512]{0}', space=vmem, size = 0x400, scoped, tag = 'input window, operand 7, single buffered']
    #allocation17 [shape = 'u8[32768]{0}', space=vmem, size = 0x8000, scoped, tag = 'input window, operand 8, single buffered']
    #allocation18 [shape = 's32[1]{0}', space=sflag, size = 0x4, scoped, tag = 'scoped memory for enriched_gat_forward.1']
    #allocation19 [shape = 'u8[32768]{0}', space=vmem, size = 0x8000, scoped, tag = 'input window, operand 9, single buffered']
    #allocation20 [shape = 'u8[512]{0}', space=vmem, size = 0x400, scoped, tag = 'input window, operand 10, single buffered']
    #allocation21 [shape = 's32[1]{0}', space=sflag, size = 0x4, scoped, tag = 'scoped memory for enriched_gat_forward.1']
    #allocation22 [shape = 'u8[2048]{0}', space=vmem, size = 0x800, scoped, tag = 'input window, operand 15, single buffered']
    #allocation23 [shape = 'u8[16384]{0}', space=vmem, size = 0x4000, scoped, tag = 'input window, operand 17, single buffered']
    #allocation24 [shape = 's32[1]{0}', space=sflag, size = 0x4, scoped, tag = 'scoped memory for enriched_gat_forward.1']
    #allocation25 [shape = 'u8[512]{0}', space=vmem, size = 0x400, scoped, tag = 'input window, operand 18, single buffered']
    #allocation26 [shape = 'u8[1536]{0}', space=vmem, size = 0x800, scoped, tag = 'input window, operand 23, single buffered']
    #allocation27 [shape = 's32[1]{0}', space=sflag, size = 0x4, scoped, tag = 'scoped memory for enriched_gat_forward.1']
    #allocation28 [shape = 'u8[1536]{0}', space=vmem, size = 0x800, scoped, tag = 'input window, operand 24, single buffered']
    #allocation29 [shape = 'u8[1536]{0}', space=vmem, size = 0x800, scoped, tag = 'input window, operand 25, single buffered']
    #allocation30 [shape = 's32[1]{0}', space=sflag, size = 0x4, scoped, tag = 'scoped memory for enriched_gat_forward.1']
    #allocation31 [shape = 'u8[1536]{0}', space=vmem, size = 0x800, scoped, tag = 'input window, operand 26, single buffered']
    %32 = vsyncpa [#allocation7], 0
    %33 = vsyncpa [#allocation9], 0
    %34 = vsyncpa [#allocation12], 0
    %35 = vsyncpa [#allocation15], 0
    %36 = vsyncpa [#allocation18], 0
    %37 = vsyncpa [#allocation21], 0
    %38 = vsyncpa [#allocation24], 0
    %39 = vsyncpa [#allocation27], 0
    %40 = vsyncpa [#allocation30], 0
    // Predicated region
    $region2: #{enriched_gat_forward.1} parent=1 // pred_check
      _
    $region3: #{enriched_gat_forward.1} parent=1 // pred_check_branch
      %42 = sbr.rel (0) target = $region5
    $region4: #{enriched_gat_forward.1} parent=1 // pred_region
      _
    $region5: #{enriched_gat_forward.1} parent=1 // pred_fallthru
      _
    // Predicated region
    $region6: #{enriched_gat_forward.1} parent=1 // pred_check
      _
    $region7: #{enriched_gat_forward.1} parent=1 // pred_check_branch
      %44 = sbr.rel (0) target = $region9
    $region8: #{enriched_gat_forward.1} parent=1 // pred_region
      %s46 = ssub.s32 1024, 1024
      %47 = vsyncadd [#allocation7], %s46
      %s48 = sshll.u32 [#allocation6], 4
      %s49 = int_to_ptr.vmem [resolvable:$true] %s48
      %54 = dma.hbm_to_vmem [thread:$0]  %s1, 1024, %s49, [#allocation7], 128, 128, 8
    $region9: #{enriched_gat_forward.1} parent=1 // pred_fallthru
      _
    // Predicated region
    $region10: #{enriched_gat_forward.1} parent=1 // pred_check
      _
    $region11: #{enriched_gat_forward.1} parent=1 // pred_check_branch
      %56 = sbr.rel (0) target = $region13
    $region12: #{enriched_gat_forward.1} parent=1 // pred_region
      %s58 = ssub.s32 2048, 2048
      %59 = vsyncadd [#allocation9], %s58
      %s60 = sshll.u32 [#allocation8], 4
      %s61 = int_to_ptr.vmem [resolvable:$true] %s60
      %66 = dma.hbm_to_vmem [thread:$0]  %s2, 2048, %s61, [#allocation9], 256, 256, 16
    $region13: #{enriched_gat_forward.1} parent=1 // pred_fallthru
      _
    // Predicated region
    $region14: #{enriched_gat_forward.1} parent=1 // pred_check
      _
    $region15: #{enriched_gat_forward.1} parent=1 // pred_check_branch
      %68 = sbr.rel (0) target = $region17
    $region16: #{enriched_gat_forward.1} parent=1 // pred_region
      %s70 = ssub.s32 2048, 2048
      %71 = vsyncadd [#allocation9], %s70
      %s72 = sshll.u32 [#allocation10], 4
      %s73 = int_to_ptr.vmem [resolvable:$true] %s72
      %78 = dma.hbm_to_vmem [thread:$0]  %s3, 2048, %s73, [#allocation9], 128, 128, 8
    $region17: #{enriched_gat_forward.1} parent=1 // pred_fallthru
      _
    // Predicated region
    $region18: #{enriched_gat_forward.1} parent=1 // pred_check
      _
    $region19: #{enriched_gat_forward.1} parent=1 // pred_check_branch
      %80 = sbr.rel (0) target = $region21
    $region20: #{enriched_gat_forward.1} parent=1 // pred_region
      %s82 = ssub.s32 4096, 4096
      %83 = vsyncadd [#allocation12], %s82
      %s84 = sshll.u32 [#allocation11], 4
      %s85 = int_to_ptr.vmem [resolvable:$true] %s84
      %90 = dma.hbm_to_vmem [thread:$0]  %s4, 4096, %s85, [#allocation12], 128, 128, 8
    $region21: #{enriched_gat_forward.1} parent=1 // pred_fallthru
      _
    // Predicated region
    $region22: #{enriched_gat_forward.1} parent=1 // pred_check
      _
    $region23: #{enriched_gat_forward.1} parent=1 // pred_check_branch
      %92 = sbr.rel (0) target = $region25
    $region24: #{enriched_gat_forward.1} parent=1 // pred_region
      %s94 = ssub.s32 32, 32
      %95 = vsyncadd [#allocation12], %s94
      %s97 = sshll.u32 [#allocation13], 4
      %s98 = int_to_ptr.vmem [resolvable:$true] %s97
      %100 = dma.hbm_to_vmem [thread:$0]  %s5, 32, %s98, [#allocation12]
    $region25: #{enriched_gat_forward.1} parent=1 // pred_fallthru
      _
    // Predicated region
    $region26: #{enriched_gat_forward.1} parent=1 // pred_check
      _
    $region27: #{enriched_gat_forward.1} parent=1 // pred_check_branch
      %102 = sbr.rel (0) target = $region29
    $region28: #{enriched_gat_forward.1} parent=1 // pred_region
      %s104 = ssub.s32 2048, 2048
      %105 = vsyncadd [#allocation15], %s104
      %s106 = sshll.u32 [#allocation14], 4
      %s107 = int_to_ptr.vmem [resolvable:$true] %s106
      %112 = dma.hbm_to_vmem [thread:$0]  %s6, 2048, %s107, [#allocation15], 64, 64, 4
    $region29: #{enriched_gat_forward.1} parent=1 // pred_fallthru
      _
    // Predicated region
    $region30: #{enriched_gat_forward.1} parent=1 // pred_check
      _
    $region31: #{enriched_gat_forward.1} parent=1 // pred_check_branch
      %114 = sbr.rel (0) target = $region33
    $region32: #{enriched_gat_forward.1} parent=1 // pred_region
      %s116 = ssub.s32 16, 16
      %117 = vsyncadd [#allocation15], %s116
      %s119 = sshll.u32 [#allocation16], 4
      %s120 = int_to_ptr.vmem [resolvable:$true] %s119
      %122 = dma.hbm_to_vmem [thread:$0]  %s7, 16, %s120, [#allocation15]
    $region33: #{enriched_gat_forward.1} parent=1 // pred_fallthru
      _
    // Predicated region
    $region34: #{enriched_gat_forward.1} parent=1 // pred_check
      _
    $region35: #{enriched_gat_forward.1} parent=1 // pred_check_branch
      %124 = sbr.rel (0) target = $region37
    $region36: #{enriched_gat_forward.1} parent=1 // pred_region
      %s126 = ssub.s32 1024, 1024
      %127 = vsyncadd [#allocation18], %s126
      %s128 = sshll.u32 [#allocation17], 4
      %s129 = int_to_ptr.vmem [resolvable:$true] %s128
      %134 = dma.hbm_to_vmem [thread:$0]  %s8, 1024, %s129, [#allocation18], 64, 64, 4
    $region37: #{enriched_gat_forward.1} parent=1 // pred_fallthru
      _
    // Predicated region
    $region38: #{enriched_gat_forward.1} parent=1 // pred_check
      _
    $region39: #{enriched_gat_forward.1} parent=1 // pred_check_branch
      %136 = sbr.rel (0) target = $region41
    $region40: #{enriched_gat_forward.1} parent=1 // pred_region
      %s138 = ssub.s32 1024, 1024
      %139 = vsyncadd [#allocation18], %s138
      %s140 = sshll.u32 [#allocation19], 4
      %s141 = int_to_ptr.vmem [resolvable:$true] %s140
      %146 = dma.hbm_to_vmem [thread:$0]  %s9, 1024, %s141, [#allocation18], 64, 64, 4
    $region41: #{enriched_gat_forward.1} parent=1 // pred_fallthru
      _
    // Predicated region
    $region42: #{enriched_gat_forward.1} parent=1 // pred_check
      _
    $region43: #{enriched_gat_forward.1} parent=1 // pred_check_branch
      %148 = sbr.rel (0) target = $region45
    $region44: #{enriched_gat_forward.1} parent=1 // pred_region
      %s150 = ssub.s32 16, 16
      %151 = vsyncadd [#allocation21], %s150
      %s153 = sshll.u32 [#allocation20], 4
      %s154 = int_to_ptr.vmem [resolvable:$true] %s153
      %156 = dma.hbm_to_vmem [thread:$0]  %s10, 16, %s154, [#allocation21]
    $region45: #{enriched_gat_forward.1} parent=1 // pred_fallthru
      _
    // Predicated region
    $region46: #{enriched_gat_forward.1} parent=1 // pred_check
      _
    $region47: #{enriched_gat_forward.1} parent=1 // pred_check_branch
      %158 = sbr.rel (0) target = $region49
    $region48: #{enriched_gat_forward.1} parent=1 // pred_region
      _
    $region49: #{enriched_gat_forward.1} parent=1 // pred_fallthru
      _
    // Predicated region
    $region50: #{enriched_gat_forward.1} parent=1 // pred_check
      _
    $region51: #{enriched_gat_forward.1} parent=1 // pred_check_branch
      %160 = sbr.rel (0) target = $region53
    $region52: #{enriched_gat_forward.1} parent=1 // pred_region
      _
    $region53: #{enriched_gat_forward.1} parent=1 // pred_fallthru
      _
    // Predicated region
    $region54: #{enriched_gat_forward.1} parent=1 // pred_check
      _
    $region55: #{enriched_gat_forward.1} parent=1 // pred_check_branch
      %162 = sbr.rel (0) target = $region57
    $region56: #{enriched_gat_forward.1} parent=1 // pred_region
      _
    $region57: #{enriched_gat_forward.1} parent=1 // pred_fallthru
      _
    // Predicated region
    $region58: #{enriched_gat_forward.1} parent=1 // pred_check
      _
    $region59: #{enriched_gat_forward.1} parent=1 // pred_check_branch
      %164 = sbr.rel (0) target = $region61
    $region60: #{enriched_gat_forward.1} parent=1 // pred_region
      _
    $region61: #{enriched_gat_forward.1} parent=1 // pred_fallthru
      _
    // Predicated region
    $region62: #{enriched_gat_forward.1} parent=1 // pred_check
      _
    $region63: #{enriched_gat_forward.1} parent=1 // pred_check_branch
      %166 = sbr.rel (0) target = $region65
    $region64: #{enriched_gat_forward.1} parent=1 // pred_region
      %s168 = ssub.s32 64, 64
      %169 = vsyncadd [#allocation21], %s168
      %s171 = sshll.u32 [#allocation22], 4
      %s172 = int_to_ptr.vmem [resolvable:$true] %s171
      %174 = dma.hbm_to_vmem [thread:$0]  %s15, 64, %s172, [#allocation21]
    $region65: #{enriched_gat_forward.1} parent=1 // pred_fallthru
      _
    // Predicated region
    $region66: #{enriched_gat_forward.1} parent=1 // pred_check
      _
    $region67: #{enriched_gat_forward.1} parent=1 // pred_check_branch
      %176 = sbr.rel (0) target = $region69
    $region68: #{enriched_gat_forward.1} parent=1 // pred_region
      _
    $region69: #{enriched_gat_forward.1} parent=1 // pred_fallthru
      _
    // Predicated region
    $region70: #{enriched_gat_forward.1} parent=1 // pred_check
      _
    $region71: #{enriched_gat_forward.1} parent=1 // pred_check_branch
      %178 = sbr.rel (0) target = $region73
    $region72: #{enriched_gat_forward.1} parent=1 // pred_region
      %s180 = ssub.s32 512, 512
      %181 = vsyncadd [#allocation24], %s180
      %s182 = sshll.u32 [#allocation23], 4
      %s183 = int_to_ptr.vmem [resolvable:$true] %s182
      %188 = dma.hbm_to_vmem [thread:$0]  %s17, 512, %s183, [#allocation24], 128, 128, 8
    $region73: #{enriched_gat_forward.1} parent=1 // pred_fallthru
      _
    // Predicated region
    $region74: #{enriched_gat_forward.1} parent=1 // pred_check
      _
    $region75: #{enriched_gat_forward.1} parent=1 // pred_check_branch
      %190 = sbr.rel (0) target = $region77
    $region76: #{enriched_gat_forward.1} parent=1 // pred_region
      %s192 = ssub.s32 16, 16
      %193 = vsyncadd [#allocation24], %s192
      %s195 = sshll.u32 [#allocation25], 4
      %s196 = int_to_ptr.vmem [resolvable:$true] %s195
      %198 = dma.hbm_to_vmem [thread:$0]  %s18, 16, %s196, [#allocation24]
    $region77: #{enriched_gat_forward.1} parent=1 // pred_fallthru
      _
    // Predicated region
    $region78: #{enriched_gat_forward.1} parent=1 // pred_check
      _
    $region79: #{enriched_gat_forward.1} parent=1 // pred_check_branch
      %200 = sbr.rel (0) target = $region81
    $region80: #{enriched_gat_forward.1} parent=1 // pred_region
      _
    $region81: #{enriched_gat_forward.1} parent=1 // pred_fallthru
      _
    // Predicated region
    $region82: #{enriched_gat_forward.1} parent=1 // pred_check
      _
    $region83: #{enriched_gat_forward.1} parent=1 // pred_check_branch
      %202 = sbr.rel (0) target = $region85
    $region84: #{enriched_gat_forward.1} parent=1 // pred_region
      _
    $region85: #{enriched_gat_forward.1} parent=1 // pred_fallthru
      _
    // Predicated region
    $region86: #{enriched_gat_forward.1} parent=1 // pred_check
      _
    $region87: #{enriched_gat_forward.1} parent=1 // pred_check_branch
      %204 = sbr.rel (0) target = $region89
    $region88: #{enriched_gat_forward.1} parent=1 // pred_region
      %s206 = ssub.s32 48, 48
      %207 = vsyncadd [#allocation27], %s206
      %s208 = sshll.u32 [#allocation26], 4
      %s209 = int_to_ptr.vmem [resolvable:$true] %s208
      %214 = dma.hbm_to_vmem [thread:$0]  %s23, 48, %s209, [#allocation27], 16, 16, 1
    $region89: #{enriched_gat_forward.1} parent=1 // pred_fallthru
      _
    // Predicated region
    $region90: #{enriched_gat_forward.1} parent=1 // pred_check
      _
    $region91: #{enriched_gat_forward.1} parent=1 // pred_check_branch
      %216 = sbr.rel (0) target = $region93
    $region92: #{enriched_gat_forward.1} parent=1 // pred_region
      %s218 = ssub.s32 48, 48
      %219 = vsyncadd [#allocation27], %s218
      %s220 = sshll.u32 [#allocation28], 4
      %s221 = int_to_ptr.vmem [resolvable:$true] %s220
      %226 = dma.hbm_to_vmem [thread:$0]  %s24, 48, %s221, [#allocation27], 16, 16, 1
    $region93: #{enriched_gat_forward.1} parent=1 // pred_fallthru
      _
    // Predicated region
    $region94: #{enriched_gat_forward.1} parent=1 // pred_check
      _
    $region95: #{enriched_gat_forward.1} parent=1 // pred_check_branch
      %228 = sbr.rel (0) target = $region97
    $region96: #{enriched_gat_forward.1} parent=1 // pred_region
      %s230 = ssub.s32 48, 48
      %231 = vsyncadd [#allocation30], %s230
      %s232 = sshll.u32 [#allocation29], 4
      %s233 = int_to_ptr.vmem [resolvable:$true] %s232
      %238 = dma.hbm_to_vmem [thread:$0]  %s25, 48, %s233, [#allocation30], 16, 16, 1
    $region97: #{enriched_gat_forward.1} parent=1 // pred_fallthru
      _
    // Predicated region
    $region98: #{enriched_gat_forward.1} parent=1 // pred_check
      _
    $region99: #{enriched_gat_forward.1} parent=1 // pred_check_branch
      %240 = sbr.rel (0) target = $region101
    $region100: #{enriched_gat_forward.1} parent=1 // pred_region
      %s242 = ssub.s32 48, 48
      %243 = vsyncadd [#allocation30], %s242
      %s244 = sshll.u32 [#allocation31], 4
      %s245 = int_to_ptr.vmem [resolvable:$true] %s244
      %250 = dma.hbm_to_vmem [thread:$0]  %s26, 48, %s245, [#allocation30], 16, 16, 1
    $region101: #{enriched_gat_forward.1} parent=1 // pred_fallthru
      _
    // Predicated region
    $region102: #{enriched_gat_forward.1} parent=1 // pred_check
      _
    $region103: #{enriched_gat_forward.1} parent=1 // pred_check_branch
      %252 = sbr.rel (0) target = $region105
    $region104: #{enriched_gat_forward.1} parent=1 // pred_region
      %253 = dma.done [#allocation7], 1024
    $region105: #{enriched_gat_forward.1} parent=1 // pred_fallthru
      _
    // Predicated region
    $region106: #{enriched_gat_forward.1} parent=1 // pred_check
      _
    $region107: #{enriched_gat_forward.1} parent=1 // pred_check_branch
      %255 = sbr.rel (0) target = $region109
    $region108: #{enriched_gat_forward.1} parent=1 // pred_region
      %256 = dma.done [#allocation9], 2048
    $region109: #{enriched_gat_forward.1} parent=1 // pred_fallthru
      _
    // Predicated region
    $region110: #{enriched_gat_forward.1} parent=1 // pred_check
      _
    $region111: #{enriched_gat_forward.1} parent=1 // pred_check_branch
      %258 = sbr.rel (0) target = $region113
    $region112: #{enriched_gat_forward.1} parent=1 // pred_region
      %259 = dma.done [#allocation9], 2048
    $region113: #{enriched_gat_forward.1} parent=1 // pred_fallthru
      _
    // Predicated region
    $region114: #{enriched_gat_forward.1} parent=1 // pred_check
      _
    $region115: #{enriched_gat_forward.1} parent=1 // pred_check_branch
      %261 = sbr.rel (0) target = $region117
    $region116: #{enriched_gat_forward.1} parent=1 // pred_region
      %262 = dma.done [#allocation12], 4096
    $region117: #{enriched_gat_forward.1} parent=1 // pred_fallthru
      _
    // Predicated region
    $region118: #{enriched_gat_forward.1} parent=1 // pred_check
      _
    $region119: #{enriched_gat_forward.1} parent=1 // pred_check_branch
      %264 = sbr.rel (0) target = $region121
    $region120: #{enriched_gat_forward.1} parent=1 // pred_region
      %265 = dma.done [#allocation12], 32
    $region121: #{enriched_gat_forward.1} parent=1 // pred_fallthru
      _
    // Predicated region
    $region122: #{enriched_gat_forward.1} parent=1 // pred_check
      _
    $region123: #{enriched_gat_forward.1} parent=1 // pred_check_branch
      %267 = sbr.rel (0) target = $region125
    $region124: #{enriched_gat_forward.1} parent=1 // pred_region
      %268 = dma.done [#allocation15], 2048
    $region125: #{enriched_gat_forward.1} parent=1 // pred_fallthru
      _
    // Predicated region
    $region126: #{enriched_gat_forward.1} parent=1 // pred_check
      _
    $region127: #{enriched_gat_forward.1} parent=1 // pred_check_branch
      %270 = sbr.rel (0) target = $region129
    $region128: #{enriched_gat_forward.1} parent=1 // pred_region
      %271 = dma.done [#allocation15], 16
    $region129: #{enriched_gat_forward.1} parent=1 // pred_fallthru
      _
    // Predicated region
    $region130: #{enriched_gat_forward.1} parent=1 // pred_check
      _
    $region131: #{enriched_gat_forward.1} parent=1 // pred_check_branch
      %273 = sbr.rel (0) target = $region133
    $region132: #{enriched_gat_forward.1} parent=1 // pred_region
      %274 = dma.done [#allocation18], 1024
    $region133: #{enriched_gat_forward.1} parent=1 // pred_fallthru
      _
    // Predicated region
    $region134: #{enriched_gat_forward.1} parent=1 // pred_check
      _
    $region135: #{enriched_gat_forward.1} parent=1 // pred_check_branch
      %276 = sbr.rel (0) target = $region137
    $region136: #{enriched_gat_forward.1} parent=1 // pred_region
      %277 = dma.done [#allocation18], 1024
    $region137: #{enriched_gat_forward.1} parent=1 // pred_fallthru
      _
    // Predicated region
    $region138: #{enriched_gat_forward.1} parent=1 // pred_check
      _
    $region139: #{enriched_gat_forward.1} parent=1 // pred_check_branch
      %279 = sbr.rel (0) target = $region141
    $region140: #{enriched_gat_forward.1} parent=1 // pred_region
      %280 = dma.done [#allocation21], 16
    $region141: #{enriched_gat_forward.1} parent=1 // pred_fallthru
      _
    // Predicated region
    $region142: #{enriched_gat_forward.1} parent=1 // pred_check
      _
    $region143: #{enriched_gat_forward.1} parent=1 // pred_check_branch
      %282 = sbr.rel (0) target = $region145
    $region144: #{enriched_gat_forward.1} parent=1 // pred_region
      %283 = dma.done [#allocation21], 64
    $region145: #{enriched_gat_forward.1} parent=1 // pred_fallthru
      _
    // Predicated region
    $region146: #{enriched_gat_forward.1} parent=1 // pred_check
      _
    $region147: #{enriched_gat_forward.1} parent=1 // pred_check_branch
      %285 = sbr.rel (0) target = $region149
    $region148: #{enriched_gat_forward.1} parent=1 // pred_region
      %286 = dma.done [#allocation24], 512
    $region149: #{enriched_gat_forward.1} parent=1 // pred_fallthru
      _
    // Predicated region
    $region150: #{enriched_gat_forward.1} parent=1 // pred_check
      _
    $region151: #{enriched_gat_forward.1} parent=1 // pred_check_branch
      %288 = sbr.rel (0) target = $region153
    $region152: #{enriched_gat_forward.1} parent=1 // pred_region
      %289 = dma.done [#allocation24], 16
    $region153: #{enriched_gat_forward.1} parent=1 // pred_fallthru
      _
    // Predicated region
    $region154: #{enriched_gat_forward.1} parent=1 // pred_check
      _
    $region155: #{enriched_gat_forward.1} parent=1 // pred_check_branch
      %291 = sbr.rel (0) target = $region157
    $region156: #{enriched_gat_forward.1} parent=1 // pred_region
      %292 = dma.done [#allocation27], 48
    $region157: #{enriched_gat_forward.1} parent=1 // pred_fallthru
      _
    // Predicated region
    $region158: #{enriched_gat_forward.1} parent=1 // pred_check
      _
    $region159: #{enriched_gat_forward.1} parent=1 // pred_check_branch
      %294 = sbr.rel (0) target = $region161
    $region160: #{enriched_gat_forward.1} parent=1 // pred_region
      %295 = dma.done [#allocation27], 48
    $region161: #{enriched_gat_forward.1} parent=1 // pred_fallthru
      _
    // Predicated region
    $region162: #{enriched_gat_forward.1} parent=1 // pred_check
      _
    $region163: #{enriched_gat_forward.1} parent=1 // pred_check_branch
      %297 = sbr.rel (0) target = $region165
    $region164: #{enriched_gat_forward.1} parent=1 // pred_region
      %298 = dma.done [#allocation30], 48
    $region165: #{enriched_gat_forward.1} parent=1 // pred_fallthru
      _
    // Predicated region
    $region166: #{enriched_gat_forward.1} parent=1 // pred_check
      _
    $region167: #{enriched_gat_forward.1} parent=1 // pred_check_branch
      %300 = sbr.rel (0) target = $region169
    $region168: #{enriched_gat_forward.1} parent=1 // pred_region
      %301 = dma.done [#allocation30], 48
    $region169: #{enriched_gat_forward.1} parent=1 // pred_fallthru
      _
    // Predicated region
    $region170: #{enriched_gat_forward.1} parent=1 // pred_check
      _
    $region171: #{enriched_gat_forward.1} parent=1 // pred_check_branch
      %304 = sbr.rel target = $region173
    $region172: #{enriched_gat_forward.1} parent=1 // pred_region
      %305 = sst [smem:[#allocation34]] [#allocation33]
      %306 = sst [smem:[#allocation35]] [#allocation32]
    $region173: #{enriched_gat_forward.1} parent=1 // pred_fallthru
      _
    %308 = shalt.err (0)
    %s310 = sshll.u32 [#allocation3], 4
    %s311 = int_to_ptr.vmem [resolvable:$true] %s310
    %313 = dma.hbm_to_vmem [thread:$0]  %s19, 12288, %s311, [#allocation5]
    %s314 = scalar_lea.sflag [#allocation5], 1
    // Predicated region
    $region174: #{enriched_gat_forward.1} parent=1 // pred_check
      _
    $region175: #{enriched_gat_forward.1} parent=1 // pred_check_branch
      %316 = sbr.rel target = $region177
    $region176: #{enriched_gat_forward.1} parent=1 // pred_region
      %317 = sst [smem:[#allocation34]] [#allocation37]
      %318 = sst [smem:[#allocation35]] [#allocation36]
    $region177: #{enriched_gat_forward.1} parent=1 // pred_fallthru
      _
    %320 = shalt.err (0)
    %s322 = sshll.u32 [#allocation4], 4
    %s323 = int_to_ptr.vmem [resolvable:$true] %s322
    %325 = dma.hbm_to_vmem [thread:$0]  %s20, 12288, %s323, %s314
    %v326 = vld [vmem:[#allocation6] sm:$0xff]
    %v327 = vld [vmem:[#allocation6 + $0x8] sm:$0xff]
    %v328 = vld [vmem:[#allocation6 + $0x10] sm:$0xff]
    %v329 = vld [vmem:[#allocation6 + $0x18] sm:$0xff]
    %v330 = vld [vmem:[#allocation6 + $0x20] sm:$0xff]
    %v331 = vld [vmem:[#allocation6 + $0x28] sm:$0xff]
    %v332 = vld [vmem:[#allocation6 + $0x30] sm:$0xff]
    %v333 = vld [vmem:[#allocation6 + $0x38] sm:$0xff]
    %v334 = vpack.c.bf16 %v327, %v326
    %v335 = vpack.c.bf16 %v329, %v328
    %v336 = vpack.c.bf16 %v331, %v330
    %v337 = vpack.c.bf16 %v333, %v332
    %v338 = vld [vmem:[#allocation10] sm:$0xff]
    %v339 = vld [vmem:[#allocation10 + $0x8] sm:$0xff]
    %v340 = vld [vmem:[#allocation10 + $0x10] sm:$0xff]
    %v341 = vld [vmem:[#allocation10 + $0x18] sm:$0xff]
    %v342 = vld [vmem:[#allocation10 + $0x20] sm:$0xff]
    %v343 = vld [vmem:[#allocation10 + $0x28] sm:$0xff]
    %v344 = vld [vmem:[#allocation10 + $0x30] sm:$0xff]
    %v345 = vld [vmem:[#allocation10 + $0x38] sm:$0xff]
    %v346 = vld [vmem:[#allocation10 + $0x40] sm:$0xff]
    %v347 = vld [vmem:[#allocation10 + $0x48] sm:$0xff]
    %v348 = vld [vmem:[#allocation10 + $0x50] sm:$0xff]
    %v349 = vld [vmem:[#allocation10 + $0x58] sm:$0xff]
    %v350 = vld [vmem:[#allocation10 + $0x60] sm:$0xff]
    %v351 = vld [vmem:[#allocation10 + $0x68] sm:$0xff]
    %v352 = vld [vmem:[#allocation10 + $0x70] sm:$0xff]
    %v353 = vld [vmem:[#allocation10 + $0x78] sm:$0xff]
    %v354 = vld [vmem:[#allocation8] sm:$0xff]
    %v355 = vld [vmem:[#allocation8 + $0x8] sm:$0xff]
    %v356 = vld [vmem:[#allocation8 + $0x10] sm:$0xff]
    %v357 = vld [vmem:[#allocation8 + $0x18] sm:$0xff]
    %v358 = vld [vmem:[#allocation8 + $0x20] sm:$0xff]
    %v359 = vld [vmem:[#allocation8 + $0x28] sm:$0xff]
    %v360 = vld [vmem:[#allocation8 + $0x30] sm:$0xff]
    %v361 = vld [vmem:[#allocation8 + $0x38] sm:$0xff]
    %v362 = vld [vmem:[#allocation8 + $0x40] sm:$0xff]
    %v363 = vld [vmem:[#allocation8 + $0x48] sm:$0xff]
    %v364 = vld [vmem:[#allocation8 + $0x50] sm:$0xff]
    %v365 = vld [vmem:[#allocation8 + $0x58] sm:$0xff]
    %v366 = vld [vmem:[#allocation8 + $0x60] sm:$0xff]
    %v367 = vld [vmem:[#allocation8 + $0x68] sm:$0xff]
    %v368 = vld [vmem:[#allocation8 + $0x70] sm:$0xff]
    %v369 = vld [vmem:[#allocation8 + $0x78] sm:$0xff]
    %v370 = vpack.c.bf16 %v356, %v354
    %v371 = vpack.c.bf16 %v357, %v355
    %v372 = vpack.c.bf16 %v360, %v358
    %v373 = vpack.c.bf16 %v361, %v359
    %v374 = vpack.c.bf16 %v364, %v362
    %v375 = vpack.c.bf16 %v365, %v363
    %v376 = vpack.c.bf16 %v368, %v366
    %v377 = vpack.c.bf16 %v369, %v367
    %v378 = vld [vmem:[#allocation11] sm:$0xff]
    %v379 = vld [vmem:[#allocation11 + $0x8] sm:$0xff]
    %v380 = vld [vmem:[#allocation11 + $0x10] sm:$0xff]
    %v381 = vld [vmem:[#allocation11 + $0x18] sm:$0xff]
    %v382 = vld [vmem:[#allocation11 + $0x20] sm:$0xff]
    %v383 = vld [vmem:[#allocation11 + $0x28] sm:$0xff]
    %v384 = vld [vmem:[#allocation11 + $0x30] sm:$0xff]
    %v385 = vld [vmem:[#allocation11 + $0x38] sm:$0xff]
    %v386 = vld [vmem:[#allocation11 + $0x40] sm:$0xff]
    %v387 = vld [vmem:[#allocation11 + $0x48] sm:$0xff]
    %v388 = vld [vmem:[#allocation11 + $0x50] sm:$0xff]
    %v389 = vld [vmem:[#allocation11 + $0x58] sm:$0xff]
    %v390 = vld [vmem:[#allocation11 + $0x60] sm:$0xff]
    %v391 = vld [vmem:[#allocation11 + $0x68] sm:$0xff]
    %v392 = vld [vmem:[#allocation11 + $0x70] sm:$0xff]
    %v393 = vld [vmem:[#allocation11 + $0x78] sm:$0xff]
    %v394 = vld [vmem:[#allocation11 + $0x80] sm:$0xff]
    %v395 = vld [vmem:[#allocation11 + $0x88] sm:$0xff]
    %v396 = vld [vmem:[#allocation11 + $0x90] sm:$0xff]
    %v397 = vld [vmem:[#allocation11 + $0x98] sm:$0xff]
    %v398 = vld [vmem:[#allocation11 + $0xa0] sm:$0xff]
    %v399 = vld [vmem:[#allocation11 + $0xa8] sm:$0xff]
    %v400 = vld [vmem:[#allocation11 + $0xb0] sm:$0xff]
    %v401 = vld [vmem:[#allocation11 + $0xb8] sm:$0xff]
    %v402 = vld [vmem:[#allocation11 + $0xc0] sm:$0xff]
    %v403 = vld [vmem:[#allocation11 + $0xc8] sm:$0xff]
    %v404 = vld [vmem:[#allocation11 + $0xd0] sm:$0xff]
    %v405 = vld [vmem:[#allocation11 + $0xd8] sm:$0xff]
    %v406 = vld [vmem:[#allocation11 + $0xe0] sm:$0xff]
    %v407 = vld [vmem:[#allocation11 + $0xe8] sm:$0xff]
    %v408 = vld [vmem:[#allocation11 + $0xf0] sm:$0xff]
    %v409 = vld [vmem:[#allocation11 + $0xf8] sm:$0xff]
    %v442 = vunpack.c.l.b16 %v378
    %v443 = vunpack.c.h.b16 %v378
    %v444 = vunpack.c.l.b16 %v379
    %v445 = vunpack.c.h.b16 %v379
    %v446 = vunpack.c.l.b16 %v380
    %v447 = vunpack.c.h.b16 %v380
    %v448 = vunpack.c.l.b16 %v381
    %v449 = vunpack.c.h.b16 %v381
    %v450 = vunpack.c.l.b16 %v382
    %v451 = vunpack.c.h.b16 %v382
    %v452 = vunpack.c.l.b16 %v383
    %v453 = vunpack.c.h.b16 %v383
    %v454 = vunpack.c.l.b16 %v384
    %v455 = vunpack.c.h.b16 %v384
    %v456 = vunpack.c.l.b16 %v385
    %v457 = vunpack.c.h.b16 %v385
    %v458 = vunpack.c.l.b16 %v386
    %v459 = vunpack.c.h.b16 %v386
    %v460 = vunpack.c.l.b16 %v387
    %v461 = vunpack.c.h.b16 %v387
    %v462 = vunpack.c.l.b16 %v388
    %v463 = vunpack.c.h.b16 %v388
    %v464 = vunpack.c.l.b16 %v389
    %v465 = vunpack.c.h.b16 %v389
    %v466 = vunpack.c.l.b16 %v390
    %v467 = vunpack.c.h.b16 %v390
    %v468 = vunpack.c.l.b16 %v391
    %v469 = vunpack.c.h.b16 %v391
    %v470 = vunpack.c.l.b16 %v392
    %v471 = vunpack.c.h.b16 %v392
    %v472 = vunpack.c.l.b16 %v393
    %v473 = vunpack.c.h.b16 %v393
    %v474 = vunpack.c.l.b16 %v394
    %v475 = vunpack.c.h.b16 %v394
    %v476 = vunpack.c.l.b16 %v395
    %v477 = vunpack.c.h.b16 %v395
    %v478 = vunpack.c.l.b16 %v396
    %v479 = vunpack.c.h.b16 %v396
    %v480 = vunpack.c.l.b16 %v397
    %v481 = vunpack.c.h.b16 %v397
    %v482 = vunpack.c.l.b16 %v398
    %v483 = vunpack.c.h.b16 %v398
    %v484 = vunpack.c.l.b16 %v399
    %v485 = vunpack.c.h.b16 %v399
    %v486 = vunpack.c.l.b16 %v400
    %v487 = vunpack.c.h.b16 %v400
    %v488 = vunpack.c.l.b16 %v401
    %v489 = vunpack.c.h.b16 %v401
    %v490 = vunpack.c.l.b16 %v402
    %v491 = vunpack.c.h.b16 %v402
    %v492 = vunpack.c.l.b16 %v403
    %v493 = vunpack.c.h.b16 %v403
    %v494 = vunpack.c.l.b16 %v404
    %v495 = vunpack.c.h.b16 %v404
    %v496 = vunpack.c.l.b16 %v405
    %v497 = vunpack.c.h.b16 %v405
    %v498 = vunpack.c.l.b16 %v406
    %v499 = vunpack.c.h.b16 %v406
    %v500 = vunpack.c.l.b16 %v407
    %v501 = vunpack.c.h.b16 %v407
    %v502 = vunpack.c.l.b16 %v408
    %v503 = vunpack.c.h.b16 %v408
    %v504 = vunpack.c.l.b16 %v409
    %v505 = vunpack.c.h.b16 %v409
    %v506 = vpack.c.b16 %v444, %v442
    %v507 = vpack.c.b16 %v445, %v443
    %v508 = vpack.c.b16 %v448, %v446
    %v509 = vpack.c.b16 %v449, %v447
    %v510 = vpack.c.b16 %v452, %v450
    %v511 = vpack.c.b16 %v453, %v451
    %v512 = vpack.c.b16 %v456, %v454
    %v513 = vpack.c.b16 %v457, %v455
    %v514 = vpack.c.b16 %v460, %v458
    %v515 = vpack.c.b16 %v461, %v459
    %v516 = vpack.c.b16 %v464, %v462
    %v517 = vpack.c.b16 %v465, %v463
    %v518 = vpack.c.b16 %v468, %v466
    %v519 = vpack.c.b16 %v469, %v467
    %v520 = vpack.c.b16 %v472, %v470
    %v521 = vpack.c.b16 %v473, %v471
    %v522 = vpack.c.b16 %v476, %v474
    %v523 = vpack.c.b16 %v477, %v475
    %v524 = vpack.c.b16 %v480, %v478
    %v525 = vpack.c.b16 %v481, %v479
    %v526 = vpack.c.b16 %v484, %v482
    %v527 = vpack.c.b16 %v485, %v483
    %v528 = vpack.c.b16 %v488, %v486
    %v529 = vpack.c.b16 %v489, %v487
    %v530 = vpack.c.b16 %v492, %v490
    %v531 = vpack.c.b16 %v493, %v491
    %v532 = vpack.c.b16 %v496, %v494
    %v533 = vpack.c.b16 %v497, %v495
    %v534 = vpack.c.b16 %v500, %v498
    %v535 = vpack.c.b16 %v501, %v499
    %v536 = vpack.c.b16 %v504, %v502
    %v537 = vpack.c.b16 %v505, %v503
    %570 = vmatprep.subr.bf16.mxu0 %v507
    %571 = vmatpush1.bf16.msra.mxu0 %v506
    %572 = vmatprep.subr.bf16.mxu0 %v509
    %573 = vmatpush1.bf16.msra.mxu0 %v508
    %574 = vmatprep.subr.bf16.mxu0 %v511
    %575 = vmatpush1.bf16.msra.mxu0 %v510
    %576 = vmatprep.subr.bf16.mxu0 %v513
    %577 = vmatpush1.bf16.msra.mxu0 %v512
    %578 = vmatprep.subr.bf16.mxu0 %v515
    %579 = vmatpush1.bf16.msra.mxu0 %v514
    %580 = vmatprep.subr.bf16.mxu0 %v517
    %581 = vmatpush1.bf16.msra.mxu0 %v516
    %582 = vmatprep.subr.bf16.mxu0 %v519
    %583 = vmatpush1.bf16.msra.mxu0 %v518
    %584 = vmatprep.subr.bf16.mxu0 %v521
    %585 = vmatpush1.bf16.msra.mxu0 %v520
    %586 = vmatprep.subr.bf16.mxu0 %v523
    %587 = vmatpush1.bf16.msra.mxu0 %v522
    %588 = vmatprep.subr.bf16.mxu0 %v525
    %589 = vmatpush1.bf16.msra.mxu0 %v524
    %590 = vmatprep.subr.bf16.mxu0 %v527
    %591 = vmatpush1.bf16.msra.mxu0 %v526
    %592 = vmatprep.subr.bf16.mxu0 %v529
    %593 = vmatpush1.bf16.msra.mxu0 %v528
    %594 = vmatprep.subr.bf16.mxu0 %v531
    %595 = vmatpush1.bf16.msra.mxu0 %v530
    %596 = vmatprep.subr.bf16.mxu0 %v533
    %597 = vmatpush1.bf16.msra.mxu0 %v532
    %598 = vmatprep.subr.bf16.mxu0 %v535
    %599 = vmatpush1.bf16.msra.mxu0 %v534
    %600 = vmatprep.subr.bf16.mxu0 %v537
    %601 = vmatpush1.bf16.msra.mxu0 %v536
    %602 = vmatprep.mubr.bf16.mxu0 %v371
    %603 = vmatmul.mubr.bf16.gmra.mrb[0].mxu0 %v370
    %v604 = vpop.f32.mrb[0].mxu0
    %v605 = vadd.f32 0.0, %v604
    %v606 = vpop.f32.mrb[0].mxu0
    %v607 = vadd.f32 0.0, %v606
    %v608 = vpop.f32.mrb[0].mxu0
    %v609 = vadd.f32 0.0, %v608
    %v610 = vpop.f32.mrb[0].mxu0
    %v611 = vadd.f32 0.0, %v610
    %612 = vmatprep.mubr.bf16.mxu0 %v373
    %613 = vmatmul.mubr.bf16.gmra.mrb[0].mxu0 %v372
    %v614 = vpop.f32.mrb[0].mxu0
    %v615 = vadd.f32 0.0, %v614
    %v616 = vpop.f32.mrb[0].mxu0
    %v617 = vadd.f32 0.0, %v616
    %v618 = vpop.f32.mrb[0].mxu0
    %v619 = vadd.f32 0.0, %v618
    %v620 = vpop.f32.mrb[0].mxu0
    %v621 = vadd.f32 0.0, %v620
    %622 = vmatprep.mubr.bf16.mxu0 %v375
    %623 = vmatmul.mubr.bf16.gmra.mrb[0].mxu0 %v374
    %v624 = vpop.f32.mrb[0].mxu0
    %v625 = vadd.f32 0.0, %v624
    %v626 = vpop.f32.mrb[0].mxu0
    %v627 = vadd.f32 0.0, %v626
    %v628 = vpop.f32.mrb[0].mxu0
    %v629 = vadd.f32 0.0, %v628
    %v630 = vpop.f32.mrb[0].mxu0
    %v631 = vadd.f32 0.0, %v630
    %632 = vmatprep.mubr.bf16.mxu0 %v377
    %633 = vmatmul.mubr.bf16.gmra.mrb[0].mxu0 %v376
    %v634 = vpop.f32.mrb[0].mxu0
    %v635 = vadd.f32 0.0, %v634
    %v636 = vpop.f32.mrb[0].mxu0
    %v637 = vadd.f32 0.0, %v636
    %v638 = vpop.f32.mrb[0].mxu0
    %v639 = vadd.f32 0.0, %v638
    %v640 = vpop.f32.mrb[0].mxu0
    %v641 = vadd.f32 0.0, %v640
    %642 = vdwg.mxu0
    %v659 = vunpack.c.l.b16 %v338
    %v660 = vunpack.c.h.b16 %v338
    %v661 = vunpack.c.l.b16 %v339
    %v662 = vunpack.c.h.b16 %v339
    %v663 = vunpack.c.l.b16 %v340
    %v664 = vunpack.c.h.b16 %v340
    %v665 = vunpack.c.l.b16 %v341
    %v666 = vunpack.c.h.b16 %v341
    %v667 = vunpack.c.l.b16 %v342
    %v668 = vunpack.c.h.b16 %v342
    %v669 = vunpack.c.l.b16 %v343
    %v670 = vunpack.c.h.b16 %v343
    %v671 = vunpack.c.l.b16 %v344
    %v672 = vunpack.c.h.b16 %v344
    %v673 = vunpack.c.l.b16 %v345
    %v674 = vunpack.c.h.b16 %v345
    %v675 = vunpack.c.l.b16 %v346
    %v676 = vunpack.c.h.b16 %v346
    %v677 = vunpack.c.l.b16 %v347
    %v678 = vunpack.c.h.b16 %v347
    %v679 = vunpack.c.l.b16 %v348
    %v680 = vunpack.c.h.b16 %v348
    %v681 = vunpack.c.l.b16 %v349
    %v682 = vunpack.c.h.b16 %v349
    %v683 = vunpack.c.l.b16 %v350
    %v684 = vunpack.c.h.b16 %v350
    %v685 = vunpack.c.l.b16 %v351
    %v686 = vunpack.c.h.b16 %v351
    %v687 = vunpack.c.l.b16 %v352
    %v688 = vunpack.c.h.b16 %v352
    %v689 = vunpack.c.l.b16 %v353
    %v690 = vunpack.c.h.b16 %v353
    %v691 = vpack.c.b16 %v661, %v659
    %v692 = vpack.c.b16 %v662, %v660
    %v693 = vpack.c.b16 %v665, %v663
    %v694 = vpack.c.b16 %v666, %v664
    %v695 = vpack.c.b16 %v669, %v667
    %v696 = vpack.c.b16 %v670, %v668
    %v697 = vpack.c.b16 %v673, %v671
    %v698 = vpack.c.b16 %v674, %v672
    %v699 = vpack.c.b16 %v677, %v675
    %v700 = vpack.c.b16 %v678, %v676
    %v701 = vpack.c.b16 %v681, %v679
    %v702 = vpack.c.b16 %v682, %v680
    %v703 = vpack.c.b16 %v685, %v683
    %v704 = vpack.c.b16 %v686, %v684
    %v705 = vpack.c.b16 %v689, %v687
    %v706 = vpack.c.b16 %v690, %v688
    %723 = vmatprep.subr.bf16.mxu0 %v692
    %724 = vmatpush1.bf16.msra.mxu0 %v691
    %725 = vmatprep.subr.bf16.mxu0 %v694
    %726 = vmatpush1.bf16.msra.mxu0 %v693
    %727 = vmatprep.subr.bf16.mxu0 %v696
    %728 = vmatpush1.bf16.msra.mxu0 %v695
    %729 = vmatprep.subr.bf16.mxu0 %v698
    %730 = vmatpush1.bf16.msra.mxu0 %v697
    %731 = vmatprep.subr.bf16.mxu0 %v700
    %732 = vmatpush1.bf16.msra.mxu0 %v699
    %733 = vmatprep.subr.bf16.mxu0 %v702
    %734 = vmatpush1.bf16.msra.mxu0 %v701
    %735 = vmatprep.subr.bf16.mxu0 %v704
    %736 = vmatpush1.bf16.msra.mxu0 %v703
    %737 = vmatprep.subr.bf16.mxu0 %v706
    %738 = vmatpush1.bf16.msra.mxu0 %v705
    %739 = vmatprep.subr.bf16.mxu0 0
    %740 = vmatpush1.bf16.msra.mxu0 0
    %741 = vmatprep.subr.bf16.mxu0 0
    %742 = vmatpush1.bf16.msra.mxu0 0
    %743 = vmatprep.subr.bf16.mxu0 0
    %744 = vmatpush1.bf16.msra.mxu0 0
    %745 = vmatprep.subr.bf16.mxu0 0
    %746 = vmatpush1.bf16.msra.mxu0 0
    %747 = vmatprep.subr.bf16.mxu0 0
    %748 = vmatpush1.bf16.msra.mxu0 0
    %749 = vmatprep.subr.bf16.mxu0 0
    %750 = vmatpush1.bf16.msra.mxu0 0
    %751 = vmatprep.subr.bf16.mxu0 0
    %752 = vmatpush1.bf16.msra.mxu0 0
    %753 = vmatprep.subr.bf16.mxu0 0
    %754 = vmatpush1.bf16.msra.mxu0 0
    %755 = vmatprep.mubr.bf16.mxu0 0
    %756 = vmatmul.mubr.bf16.gmra.mrb[0].mxu0 %v334
    %v757 = vpop.f32.mrb[0].mxu0
    %v758 = vadd.f32 %v605, %v757
    %v759 = vpop.f32.mrb[0].mxu0
    %v760 = vadd.f32 %v607, %v759
    %v761 = vpop.f32.mrb[0].mxu0
    %v762 = vadd.f32 %v609, %v761
    %v763 = vpop.f32.mrb[0].mxu0
    %v764 = vadd.f32 %v611, %v763
    %765 = vmatprep.mubr.bf16.mxu0 0
    %766 = vmatmul.mubr.bf16.gmra.mrb[0].mxu0 %v335
    %v767 = vpop.f32.mrb[0].mxu0
    %v768 = vadd.f32 %v615, %v767
    %v769 = vpop.f32.mrb[0].mxu0
    %v770 = vadd.f32 %v617, %v769
    %v771 = vpop.f32.mrb[0].mxu0
    %v772 = vadd.f32 %v619, %v771
    %v773 = vpop.f32.mrb[0].mxu0
    %v774 = vadd.f32 %v621, %v773
    %775 = vmatprep.mubr.bf16.mxu0 0
    %776 = vmatmul.mubr.bf16.gmra.mrb[0].mxu0 %v336
    %v777 = vpop.f32.mrb[0].mxu0
    %v778 = vadd.f32 %v625, %v777
    %v779 = vpop.f32.mrb[0].mxu0
    %v780 = vadd.f32 %v627, %v779
    %v781 = vpop.f32.mrb[0].mxu0
    %v782 = vadd.f32 %v629, %v781
    %v783 = vpop.f32.mrb[0].mxu0
    %v784 = vadd.f32 %v631, %v783
    %785 = vmatprep.mubr.bf16.mxu0 0
    %786 = vmatmul.mubr.bf16.gmra.mrb[0].mxu0 %v337
    %v787 = vpop.f32.mrb[0].mxu0
    %v788 = vadd.f32 %v635, %v787
    %v789 = vpop.f32.mrb[0].mxu0
    %v790 = vadd.f32 %v637, %v789
    %v791 = vpop.f32.mrb[0].mxu0
    %v792 = vadd.f32 %v639, %v791
    %v793 = vpop.f32.mrb[0].mxu0
    %v794 = vadd.f32 %v641, %v793
    %795 = vdwg.mxu0
    %v796 = vld [vmem:[#allocation13] sm:$0x3]
    %v798 = vlaneseq
    %v799 = vshrl.u32 %v798, 7
    %v800 = vsub.s32 0, %v799
    %v801 = vrot.slane %v796, %v800
    %v802 = vlaneseq
    %v803 = vshrl.u32 %v802, 7
    %v804 = vsub.s32 1, %v803
    %v805 = vrot.slane %v796, %v804
    %v808 = vadd.f32 %v758, %v801
    %v809 = vadd.f32 %v760, %v805
    %v810 = vadd.f32 %v762, %v801
    %v811 = vadd.f32 %v764, %v805
    %v812 = vadd.f32 %v768, %v801
    %v813 = vadd.f32 %v770, %v805
    %v814 = vadd.f32 %v772, %v801
    %v815 = vadd.f32 %v774, %v805
    %v816 = vadd.f32 %v778, %v801
    %v817 = vadd.f32 %v780, %v805
    %v818 = vadd.f32 %v782, %v801
    %v819 = vadd.f32 %v784, %v805
    %v820 = vadd.f32 %v788, %v801
    %v821 = vadd.f32 %v790, %v805
    %v822 = vadd.f32 %v792, %v801
    %v823 = vadd.f32 %v794, %v805
    %v824 = vmax.f32 %v808, 0.0
    %v825 = vmax.f32 %v809, 0.0
    %v826 = vmax.f32 %v810, 0.0
    %v827 = vmax.f32 %v811, 0.0
    %v828 = vmax.f32 %v812, 0.0
    %v829 = vmax.f32 %v813, 0.0
    %v830 = vmax.f32 %v814, 0.0
    %v831 = vmax.f32 %v815, 0.0
    %v832 = vmax.f32 %v816, 0.0
    %v833 = vmax.f32 %v817, 0.0
    %v834 = vmax.f32 %v818, 0.0
    %v835 = vmax.f32 %v819, 0.0
    %v836 = vmax.f32 %v820, 0.0
    %v837 = vmax.f32 %v821, 0.0
    %v838 = vmax.f32 %v822, 0.0
    %v839 = vmax.f32 %v823, 0.0
    %v840 = vpack.c.bf16 %v826, %v824
    %v841 = vpack.c.bf16 %v827, %v825
    %v842 = vpack.c.bf16 %v830, %v828
    %v843 = vpack.c.bf16 %v831, %v829
    %v844 = vpack.c.bf16 %v834, %v832
    %v845 = vpack.c.bf16 %v835, %v833
    %v846 = vpack.c.bf16 %v838, %v836
    %v847 = vpack.c.bf16 %v839, %v837
    %v848 = vld [vmem:[#allocation14] sm:$0xf]
    %v849 = vld [vmem:[#allocation14 + $0x4] sm:$0xf]
    %v850 = vld [vmem:[#allocation14 + $0x8] sm:$0xf]
    %v851 = vld [vmem:[#allocation14 + $0xc] sm:$0xf]
    %v852 = vld [vmem:[#allocation14 + $0x10] sm:$0xf]
    %v853 = vld [vmem:[#allocation14 + $0x14] sm:$0xf]
    %v854 = vld [vmem:[#allocation14 + $0x18] sm:$0xf]
    %v855 = vld [vmem:[#allocation14 + $0x1c] sm:$0xf]
    %v856 = vld [vmem:[#allocation14 + $0x20] sm:$0xf]
    %v857 = vld [vmem:[#allocation14 + $0x24] sm:$0xf]
    %v858 = vld [vmem:[#allocation14 + $0x28] sm:$0xf]
    %v859 = vld [vmem:[#allocation14 + $0x2c] sm:$0xf]
    %v860 = vld [vmem:[#allocation14 + $0x30] sm:$0xf]
    %v861 = vld [vmem:[#allocation14 + $0x34] sm:$0xf]
    %v862 = vld [vmem:[#allocation14 + $0x38] sm:$0xf]
    %v863 = vld [vmem:[#allocation14 + $0x3c] sm:$0xf]
    %v864 = vld [vmem:[#allocation14 + $0x40] sm:$0xf]
    %v865 = vld [vmem:[#allocation14 + $0x44] sm:$0xf]
    %v866 = vld [vmem:[#allocation14 + $0x48] sm:$0xf]
    %v867 = vld [vmem:[#allocation14 + $0x4c] sm:$0xf]
    %v868 = vld [vmem:[#allocation14 + $0x50] sm:$0xf]
    %v869 = vld [vmem:[#allocation14 + $0x54] sm:$0xf]
    %v870 = vld [vmem:[#allocation14 + $0x58] sm:$0xf]
    %v871 = vld [vmem:[#allocation14 + $0x5c] sm:$0xf]
    %v872 = vld [vmem:[#allocation14 + $0x60] sm:$0xf]
    %v873 = vld [vmem:[#allocation14 + $0x64] sm:$0xf]
    %v874 = vld [vmem:[#allocation14 + $0x68] sm:$0xf]
    %v875 = vld [vmem:[#allocation14 + $0x6c] sm:$0xf]
    %v876 = vld [vmem:[#allocation14 + $0x70] sm:$0xf]
    %v877 = vld [vmem:[#allocation14 + $0x74] sm:$0xf]
    %v878 = vld [vmem:[#allocation14 + $0x78] sm:$0xf]
    %v879 = vld [vmem:[#allocation14 + $0x7c] sm:$0xf]
    %v880 = vld [vmem:[#allocation16] sm:$0x1]
    %v882 = vlaneseq
    %v883 = vshrl.u32 %v882, 7
    %v884 = vsub.s32 0, %v883
    %v885 = vrot.slane %v880, %v884
    %v919 = vunpack.c.l.b16 %v848
    %v920 = vunpack.c.l.b16 %v849
    %v921 = vunpack.c.l.b16 %v850
    %v922 = vunpack.c.l.b16 %v851
    %v923 = vunpack.c.l.b16 %v852
    %v924 = vunpack.c.l.b16 %v853
    %v925 = vunpack.c.l.b16 %v854
    %v926 = vunpack.c.l.b16 %v855
    %v927 = vunpack.c.l.b16 %v856
    %v928 = vunpack.c.l.b16 %v857
    %v929 = vunpack.c.l.b16 %v858
    %v930 = vunpack.c.l.b16 %v859
    %v931 = vunpack.c.l.b16 %v860
    %v932 = vunpack.c.l.b16 %v861
    %v933 = vunpack.c.l.b16 %v862
    %v934 = vunpack.c.l.b16 %v863
    %v935 = vunpack.c.l.b16 %v864
    %v936 = vunpack.c.l.b16 %v865
    %v937 = vunpack.c.l.b16 %v866
    %v938 = vunpack.c.l.b16 %v867
    %v939 = vunpack.c.l.b16 %v868
    %v940 = vunpack.c.l.b16 %v869
    %v941 = vunpack.c.l.b16 %v870
    %v942 = vunpack.c.l.b16 %v871
    %v943 = vunpack.c.l.b16 %v872
    %v944 = vunpack.c.l.b16 %v873
    %v945 = vunpack.c.l.b16 %v874
    %v946 = vunpack.c.l.b16 %v875
    %v947 = vunpack.c.l.b16 %v876
    %v948 = vunpack.c.l.b16 %v877
    %v949 = vunpack.c.l.b16 %v878
    %v950 = vunpack.c.l.b16 %v879
    %v951 = vpack.c.b16 %v920, %v919
    %v952 = vpack.c.b16 %v922, %v921
    %v953 = vpack.c.b16 %v924, %v923
    %v954 = vpack.c.b16 %v926, %v925
    %v955 = vpack.c.b16 %v928, %v927
    %v956 = vpack.c.b16 %v930, %v929
    %v957 = vpack.c.b16 %v932, %v931
    %v958 = vpack.c.b16 %v934, %v933
    %v959 = vpack.c.b16 %v936, %v935
    %v960 = vpack.c.b16 %v938, %v937
    %v961 = vpack.c.b16 %v940, %v939
    %v962 = vpack.c.b16 %v942, %v941
    %v963 = vpack.c.b16 %v944, %v943
    %v964 = vpack.c.b16 %v946, %v945
    %v965 = vpack.c.b16 %v948, %v947
    %v966 = vpack.c.b16 %v950, %v949
    %983 = vmatprep.subr.bf16.mxu0 0
    %984 = vmatpush1.bf16.msra.mxu0 %v951
    %985 = vmatprep.subr.bf16.mxu0 0
    %986 = vmatpush1.bf16.msra.mxu0 %v952
    %987 = vmatprep.subr.bf16.mxu0 0
    %988 = vmatpush1.bf16.msra.mxu0 %v953
    %989 = vmatprep.subr.bf16.mxu0 0
    %990 = vmatpush1.bf16.msra.mxu0 %v954
    %991 = vmatprep.subr.bf16.mxu0 0
    %992 = vmatpush1.bf16.msra.mxu0 %v955
    %993 = vmatprep.subr.bf16.mxu0 0
    %994 = vmatpush1.bf16.msra.mxu0 %v956
    %995 = vmatprep.subr.bf16.mxu0 0
    %996 = vmatpush1.bf16.msra.mxu0 %v957
    %997 = vmatprep.subr.bf16.mxu0 0
    %998 = vmatpush1.bf16.msra.mxu0 %v958
    %999 = vmatprep.subr.bf16.mxu0 0
    %1000 = vmatpush1.bf16.msra.mxu0 %v959
    %1001 = vmatprep.subr.bf16.mxu0 0
    %1002 = vmatpush1.bf16.msra.mxu0 %v960
    %1003 = vmatprep.subr.bf16.mxu0 0
    %1004 = vmatpush1.bf16.msra.mxu0 %v961
    %1005 = vmatprep.subr.bf16.mxu0 0
    %1006 = vmatpush1.bf16.msra.mxu0 %v962
    %1007 = vmatprep.subr.bf16.mxu0 0
    %1008 = vmatpush1.bf16.msra.mxu0 %v963
    %1009 = vmatprep.subr.bf16.mxu0 0
    %1010 = vmatpush1.bf16.msra.mxu0 %v964
    %1011 = vmatprep.subr.bf16.mxu0 0
    %1012 = vmatpush1.bf16.msra.mxu0 %v965
    %1013 = vmatprep.subr.bf16.mxu0 0
    %1014 = vmatpush1.bf16.msra.mxu0 %v966
    %1015 = vmatprep.mubr.bf16.mxu0 %v841
    %1016 = vmatmul.mubr.bf16.gmra.mrb[0].mxu0 %v840
    %v1017 = vpop.f32.mrb[0].mxu0
    %v1018 = vadd.f32 %v885, %v1017
    %v1019 = vpop.f32.mrb[0].mxu0
    %v1020 = vpop.f32.mrb[0].mxu0
    %v1021 = vadd.f32 %v885, %v1020
    %v1022 = vpop.f32.mrb[0].mxu0
    %1023 = vmatprep.mubr.bf16.mxu0 %v843
    %1024 = vmatmul.mubr.bf16.gmra.mrb[0].mxu0 %v842
    %v1025 = vpop.f32.mrb[0].mxu0
    %v1026 = vadd.f32 %v885, %v1025
    %v1027 = vpop.f32.mrb[0].mxu0
    %v1028 = vpop.f32.mrb[0].mxu0
    %v1029 = vadd.f32 %v885, %v1028
    %v1030 = vpop.f32.mrb[0].mxu0
    %1031 = vmatprep.mubr.bf16.mxu0 %v845
    %1032 = vmatmul.mubr.bf16.gmra.mrb[0].mxu0 %v844
    %v1033 = vpop.f32.mrb[0].mxu0
    %v1034 = vadd.f32 %v885, %v1033
    %v1035 = vpop.f32.mrb[0].mxu0
    %v1036 = vpop.f32.mrb[0].mxu0
    %v1037 = vadd.f32 %v885, %v1036
    %v1038 = vpop.f32.mrb[0].mxu0
    %1039 = vmatprep.mubr.bf16.mxu0 %v847
    %1040 = vmatmul.mubr.bf16.gmra.mrb[0].mxu0 %v846
    %v1041 = vpop.f32.mrb[0].mxu0
    %v1042 = vadd.f32 %v885, %v1041
    %v1043 = vpop.f32.mrb[0].mxu0
    %v1044 = vpop.f32.mrb[0].mxu0
    %v1045 = vadd.f32 %v885, %v1044
    %v1046 = vpop.f32.mrb[0].mxu0
    %1047 = vdwg.mxu0
    %v1048 = vld [vmem:[%s0] sm:$0xff]
    %v1049 = vld [vmem:[%s0 + $0x8] sm:$0xff]
    %v1050 = vld [vmem:[%s0 + $0x10] sm:$0xff]
    %v1051 = vld [vmem:[%s0 + $0x18] sm:$0xff]
    %v1052 = vld [vmem:[%s0 + $0x20] sm:$0xff]
    %v1053 = vld [vmem:[%s0 + $0x28] sm:$0xff]
    %v1054 = vld [vmem:[%s0 + $0x30] sm:$0xff]
    %v1055 = vld [vmem:[%s0 + $0x38] sm:$0xff]
    %1056 = vst [vmem:[#allocation2] sm:$0xff] %v1048
    %1057 = vst [vmem:[#allocation2 + $0x8] sm:$0xff] %v1049
    %1058 = vst [vmem:[#allocation2 + $0x10] sm:$0xff] %v1050
    %1059 = vst [vmem:[#allocation2 + $0x18] sm:$0xff] %v1051
    %1060 = vst [vmem:[#allocation2 + $0x20] sm:$0xff] %v1052
    %1061 = vst [vmem:[#allocation2 + $0x28] sm:$0xff] %v1053
    %1062 = vst [vmem:[#allocation2 + $0x30] sm:$0xff] %v1054
    %1063 = vst [vmem:[#allocation2 + $0x38] sm:$0xff] %v1055
    %1064 = vst [vmem:[#allocation2 + $0x40] sm:$0xff] %v1018
    %1065 = vst [vmem:[#allocation2 + $0x48] sm:$0xff] %v1021
    %1066 = vst [vmem:[#allocation2 + $0x50] sm:$0xff] %v1026
    %1067 = vst [vmem:[#allocation2 + $0x58] sm:$0xff] %v1029
    %1068 = vst [vmem:[#allocation2 + $0x60] sm:$0xff] %v1034
    %1069 = vst [vmem:[#allocation2 + $0x68] sm:$0xff] %v1037
    %1070 = vst [vmem:[#allocation2 + $0x70] sm:$0xff] %v1042
    %1071 = vst [vmem:[#allocation2 + $0x78] sm:$0xff] %v1045
    %v1072 = vld [vmem:[#allocation2] sm:$0xff]
    %v1073 = vld [vmem:[#allocation2 + $0x8] sm:$0xff]
    %v1074 = vld [vmem:[#allocation2 + $0x10] sm:$0xff]
    %v1075 = vld [vmem:[#allocation2 + $0x18] sm:$0xff]
    %v1076 = vld [vmem:[#allocation2 + $0x20] sm:$0xff]
    %v1077 = vld [vmem:[#allocation2 + $0x28] sm:$0xff]
    %v1078 = vld [vmem:[#allocation2 + $0x30] sm:$0xff]
    %v1079 = vld [vmem:[#allocation2 + $0x38] sm:$0xff]
    %v1080 = vld [vmem:[#allocation2 + $0x40] sm:$0xff]
    %v1081 = vld [vmem:[#allocation2 + $0x48] sm:$0xff]
    %v1082 = vld [vmem:[#allocation2 + $0x50] sm:$0xff]
    %v1083 = vld [vmem:[#allocation2 + $0x58] sm:$0xff]
    %v1084 = vld [vmem:[#allocation2 + $0x60] sm:$0xff]
    %v1085 = vld [vmem:[#allocation2 + $0x68] sm:$0xff]
    %v1086 = vld [vmem:[#allocation2 + $0x70] sm:$0xff]
    %v1087 = vld [vmem:[#allocation2 + $0x78] sm:$0xff]
    %v1088 = vpack.c.bf16 %v1073, %v1072
    %v1089 = vpack.c.bf16 %v1075, %v1074
    %v1090 = vpack.c.bf16 %v1077, %v1076
    %v1091 = vpack.c.bf16 %v1079, %v1078
    %v1092 = vpack.c.bf16 %v1081, %v1080
    %v1093 = vpack.c.bf16 %v1083, %v1082
    %v1094 = vpack.c.bf16 %v1085, %v1084
    %v1095 = vpack.c.bf16 %v1087, %v1086
    %v1096 = vld [vmem:[#allocation19] sm:$0xf]
    %v1097 = vld [vmem:[#allocation19 + $0x4] sm:$0xf]
    %v1098 = vld [vmem:[#allocation19 + $0x8] sm:$0xf]
    %v1099 = vld [vmem:[#allocation19 + $0xc] sm:$0xf]
    %v1100 = vld [vmem:[#allocation19 + $0x10] sm:$0xf]
    %v1101 = vld [vmem:[#allocation19 + $0x14] sm:$0xf]
    %v1102 = vld [vmem:[#allocation19 + $0x18] sm:$0xf]
    %v1103 = vld [vmem:[#allocation19 + $0x1c] sm:$0xf]
    %v1104 = vld [vmem:[#allocation19 + $0x20] sm:$0xf]
    %v1105 = vld [vmem:[#allocation19 + $0x24] sm:$0xf]
    %v1106 = vld [vmem:[#allocation19 + $0x28] sm:$0xf]
    %v1107 = vld [vmem:[#allocation19 + $0x2c] sm:$0xf]
    %v1108 = vld [vmem:[#allocation19 + $0x30] sm:$0xf]
    %v1109 = vld [vmem:[#allocation19 + $0x34] sm:$0xf]
    %v1110 = vld [vmem:[#allocation19 + $0x38] sm:$0xf]
    %v1111 = vld [vmem:[#allocation19 + $0x3c] sm:$0xf]
    %v1128 = vunpack.c.l.b16 %v1096
    %v1129 = vunpack.c.l.b16 %v1097
    %v1130 = vunpack.c.l.b16 %v1098
    %v1131 = vunpack.c.l.b16 %v1099
    %v1132 = vunpack.c.l.b16 %v1100
    %v1133 = vunpack.c.l.b16 %v1101
    %v1134 = vunpack.c.l.b16 %v1102
    %v1135 = vunpack.c.l.b16 %v1103
    %v1136 = vunpack.c.l.b16 %v1104
    %v1137 = vunpack.c.l.b16 %v1105
    %v1138 = vunpack.c.l.b16 %v1106
    %v1139 = vunpack.c.l.b16 %v1107
    %v1140 = vunpack.c.l.b16 %v1108
    %v1141 = vunpack.c.l.b16 %v1109
    %v1142 = vunpack.c.l.b16 %v1110
    %v1143 = vunpack.c.l.b16 %v1111
    %v1144 = vpack.c.b16 %v1129, %v1128
    %v1145 = vpack.c.b16 %v1131, %v1130
    %v1146 = vpack.c.b16 %v1133, %v1132
    %v1147 = vpack.c.b16 %v1135, %v1134
    %v1148 = vpack.c.b16 %v1137, %v1136
    %v1149 = vpack.c.b16 %v1139, %v1138
    %v1150 = vpack.c.b16 %v1141, %v1140
    %v1151 = vpack.c.b16 %v1143, %v1142
    %1160 = vmatprep.subr.bf16.mxu0 0
    %1161 = vmatpush1.bf16.msra.mxu0 %v1144
    %1162 = vmatprep.subr.bf16.mxu0 0
    %1163 = vmatpush1.bf16.msra.mxu0 %v1145
    %1164 = vmatprep.subr.bf16.mxu0 0
    %1165 = vmatpush1.bf16.msra.mxu0 %v1146
    %1166 = vmatprep.subr.bf16.mxu0 0
    %1167 = vmatpush1.bf16.msra.mxu0 %v1147
    %1168 = vmatprep.subr.bf16.mxu0 0
    %1169 = vmatpush1.bf16.msra.mxu0 %v1148
    %1170 = vmatprep.subr.bf16.mxu0 0
    %1171 = vmatpush1.bf16.msra.mxu0 %v1149
    %1172 = vmatprep.subr.bf16.mxu0 0
    %1173 = vmatpush1.bf16.msra.mxu0 %v1150
    %1174 = vmatprep.subr.bf16.mxu0 0
    %1175 = vmatpush1.bf16.msra.mxu0 %v1151
    %1176 = vmatprep.subr.bf16.mxu0 0
    %1177 = vmatpush1.bf16.msra.mxu0 0
    %1178 = vmatprep.subr.bf16.mxu0 0
    %1179 = vmatpush1.bf16.msra.mxu0 0
    %1180 = vmatprep.subr.bf16.mxu0 0
    %1181 = vmatpush1.bf16.msra.mxu0 0
    %1182 = vmatprep.subr.bf16.mxu0 0
    %1183 = vmatpush1.bf16.msra.mxu0 0
    %1184 = vmatprep.subr.bf16.mxu0 0
    %1185 = vmatpush1.bf16.msra.mxu0 0
    %1186 = vmatprep.subr.bf16.mxu0 0
    %1187 = vmatpush1.bf16.msra.mxu0 0
    %1188 = vmatprep.subr.bf16.mxu0 0
    %1189 = vmatpush1.bf16.msra.mxu0 0
    %1190 = vmatprep.subr.bf16.mxu0 0
    %1191 = vmatpush1.bf16.msra.mxu0 0
    %1192 = vmatprep.mubr.bf16.mxu0 0
    %1193 = vmatmul.mubr.bf16.gmra.mrb[0].mxu0 %v1088
    %v1194 = vpop.f32.mrb[0].mxu0
    %v1195 = vadd.f32 0.0, %v1194
    %v1196 = vpop.f32.mrb[0].mxu0
    %v1197 = vpop.f32.mrb[0].mxu0
    %v1198 = vadd.f32 0.0, %v1197
    %v1199 = vpop.f32.mrb[0].mxu0
    %1200 = vmatprep.mubr.bf16.mxu0 0
    %1201 = vmatmul.mubr.bf16.gmra.mrb[0].mxu0 %v1089
    %v1202 = vpop.f32.mrb[0].mxu0
    %v1203 = vadd.f32 0.0, %v1202
    %v1204 = vpop.f32.mrb[0].mxu0
    %v1205 = vpop.f32.mrb[0].mxu0
    %v1206 = vadd.f32 0.0, %v1205
    %v1207 = vpop.f32.mrb[0].mxu0
    %1208 = vmatprep.mubr.bf16.mxu0 0
    %1209 = vmatmul.mubr.bf16.gmra.mrb[0].mxu0 %v1090
    %v1210 = vpop.f32.mrb[0].mxu0
    %v1211 = vadd.f32 0.0, %v1210
    %v1212 = vpop.f32.mrb[0].mxu0
    %v1213 = vpop.f32.mrb[0].mxu0
    %v1214 = vadd.f32 0.0, %v1213
    %v1215 = vpop.f32.mrb[0].mxu0
    %1216 = vmatprep.mubr.bf16.mxu0 0
    %1217 = vmatmul.mubr.bf16.gmra.mrb[0].mxu0 %v1091
    %v1218 = vpop.f32.mrb[0].mxu0
    %v1219 = vadd.f32 0.0, %v1218
    %v1220 = vpop.f32.mrb[0].mxu0
    %v1221 = vpop.f32.mrb[0].mxu0
    %v1222 = vadd.f32 0.0, %v1221
    %v1223 = vpop.f32.mrb[0].mxu0
    %1224 = vmatprep.mubr.bf16.mxu0 0
    %1225 = vmatmul.mubr.bf16.gmra.mrb[0].mxu0 %v1092
    %v1226 = vpop.f32.mrb[0].mxu0
    %v1227 = vadd.f32 0.0, %v1226
    %v1228 = vpop.f32.mrb[0].mxu0
    %v1229 = vpop.f32.mrb[0].mxu0
    %v1230 = vadd.f32 0.0, %v1229
    %v1231 = vpop.f32.mrb[0].mxu0
    %1232 = vmatprep.mubr.bf16.mxu0 0
    %1233 = vmatmul.mubr.bf16.gmra.mrb[0].mxu0 %v1093
    %v1234 = vpop.f32.mrb[0].mxu0
    %v1235 = vadd.f32 0.0, %v1234
    %v1236 = vpop.f32.mrb[0].mxu0
    %v1237 = vpop.f32.mrb[0].mxu0
    %v1238 = vadd.f32 0.0, %v1237
    %v1239 = vpop.f32.mrb[0].mxu0
    %1240 = vmatprep.mubr.bf16.mxu0 0
    %1241 = vmatmul.mubr.bf16.gmra.mrb[0].mxu0 %v1094
    %v1242 = vpop.f32.mrb[0].mxu0
    %v1243 = vadd.f32 0.0, %v1242
    %v1244 = vpop.f32.mrb[0].mxu0
    %v1245 = vpop.f32.mrb[0].mxu0
    %v1246 = vadd.f32 0.0, %v1245
    %v1247 = vpop.f32.mrb[0].mxu0
    %1248 = vmatprep.mubr.bf16.mxu0 0
    %1249 = vmatmul.mubr.bf16.gmra.mrb[0].mxu0 %v1095
    %v1250 = vpop.f32.mrb[0].mxu0
    %v1251 = vadd.f32 0.0, %v1250
    %v1252 = vpop.f32.mrb[0].mxu0
    %v1253 = vpop.f32.mrb[0].mxu0
    %v1254 = vadd.f32 0.0, %v1253
    %v1255 = vpop.f32.mrb[0].mxu0
    %1256 = vdwg.mxu0
    %v1257 = vld [vmem:[#allocation17] sm:$0xf]
    %v1258 = vld [vmem:[#allocation17 + $0x4] sm:$0xf]
    %v1259 = vld [vmem:[#allocation17 + $0x8] sm:$0xf]
    %v1260 = vld [vmem:[#allocation17 + $0xc] sm:$0xf]
    %v1261 = vld [vmem:[#allocation17 + $0x10] sm:$0xf]
    %v1262 = vld [vmem:[#allocation17 + $0x14] sm:$0xf]
    %v1263 = vld [vmem:[#allocation17 + $0x18] sm:$0xf]
    %v1264 = vld [vmem:[#allocation17 + $0x1c] sm:$0xf]
    %v1265 = vld [vmem:[#allocation17 + $0x20] sm:$0xf]
    %v1266 = vld [vmem:[#allocation17 + $0x24] sm:$0xf]
    %v1267 = vld [vmem:[#allocation17 + $0x28] sm:$0xf]
    %v1268 = vld [vmem:[#allocation17 + $0x2c] sm:$0xf]
    %v1269 = vld [vmem:[#allocation17 + $0x30] sm:$0xf]
    %v1270 = vld [vmem:[#allocation17 + $0x34] sm:$0xf]
    %v1271 = vld [vmem:[#allocation17 + $0x38] sm:$0xf]
    %v1272 = vld [vmem:[#allocation17 + $0x3c] sm:$0xf]
    %v1273 = vpack.c.bf16 %v1198, %v1195
    %v1274 = vpack.c.bf16 %v1206, %v1203
    %v1275 = vpack.c.bf16 %v1214, %v1211
    %v1276 = vpack.c.bf16 %v1222, %v1219
    %v1277 = vpack.c.bf16 %v1230, %v1227
    %v1278 = vpack.c.bf16 %v1238, %v1235
    %v1279 = vpack.c.bf16 %v1246, %v1243
    %v1280 = vpack.c.bf16 %v1254, %v1251
    %v1281 = vld [vmem:[#allocation20] sm:$0x1]
    %v1283 = vlaneseq
    %v1284 = vshrl.u32 %v1283, 7
    %v1285 = vsub.s32 0, %v1284
    %v1286 = vrot.slane %v1281, %v1285
    %v1304 = vunpack.c.l.b16 %v1257
    %v1305 = vunpack.c.l.b16 %v1258
    %v1306 = vunpack.c.l.b16 %v1259
    %v1307 = vunpack.c.l.b16 %v1260
    %v1308 = vunpack.c.l.b16 %v1261
    %v1309 = vunpack.c.l.b16 %v1262
    %v1310 = vunpack.c.l.b16 %v1263
    %v1311 = vunpack.c.l.b16 %v1264
    %v1312 = vunpack.c.l.b16 %v1265
    %v1313 = vunpack.c.l.b16 %v1266
    %v1314 = vunpack.c.l.b16 %v1267
    %v1315 = vunpack.c.l.b16 %v1268
    %v1316 = vunpack.c.l.b16 %v1269
    %v1317 = vunpack.c.l.b16 %v1270
    %v1318 = vunpack.c.l.b16 %v1271
    %v1319 = vunpack.c.l.b16 %v1272
    %v1320 = vpack.c.b16 %v1305, %v1304
    %v1321 = vpack.c.b16 %v1307, %v1306
    %v1322 = vpack.c.b16 %v1309, %v1308
    %v1323 = vpack.c.b16 %v1311, %v1310
    %v1324 = vpack.c.b16 %v1313, %v1312
    %v1325 = vpack.c.b16 %v1315, %v1314
    %v1326 = vpack.c.b16 %v1317, %v1316
    %v1327 = vpack.c.b16 %v1319, %v1318
    %1336 = vmatprep.subr.bf16.mxu0 0
    %1337 = vmatpush1.bf16.msra.mxu0 %v1273
    %1338 = vmatprep.subr.bf16.mxu0 0
    %1339 = vmatpush1.bf16.msra.mxu0 %v1274
    %1340 = vmatprep.subr.bf16.mxu0 0
    %1341 = vmatpush1.bf16.msra.mxu0 %v1275
    %1342 = vmatprep.subr.bf16.mxu0 0
    %1343 = vmatpush1.bf16.msra.mxu0 %v1276
    %1344 = vmatprep.subr.bf16.mxu0 0
    %1345 = vmatpush1.bf16.msra.mxu0 %v1277
    %1346 = vmatprep.subr.bf16.mxu0 0
    %1347 = vmatpush1.bf16.msra.mxu0 %v1278
    %1348 = vmatprep.subr.bf16.mxu0 0
    %1349 = vmatpush1.bf16.msra.mxu0 %v1279
    %1350 = vmatprep.subr.bf16.mxu0 0
    %1351 = vmatpush1.bf16.msra.mxu0 %v1280
    %1352 = vmatprep.subr.bf16.mxu0 0
    %1353 = vmatpush1.bf16.msra.mxu0 0
    %1354 = vmatprep.subr.bf16.mxu0 0
    %1355 = vmatpush1.bf16.msra.mxu0 0
    %1356 = vmatprep.subr.bf16.mxu0 0
    %1357 = vmatpush1.bf16.msra.mxu0 0
    %1358 = vmatprep.subr.bf16.mxu0 0
    %1359 = vmatpush1.bf16.msra.mxu0 0
    %1360 = vmatprep.subr.bf16.mxu0 0
    %1361 = vmatpush1.bf16.msra.mxu0 0
    %1362 = vmatprep.subr.bf16.mxu0 0
    %1363 = vmatpush1.bf16.msra.mxu0 0
    %1364 = vmatprep.subr.bf16.mxu0 0
    %1365 = vmatpush1.bf16.msra.mxu0 0
    %1366 = vmatprep.subr.bf16.mxu0 0
    %1367 = vmatpush1.bf16.msra.mxu0 0
    %1368 = vmatprep.mubr.bf16.mxu0 0
    %1369 = vmatmul.mubr.bf16.gmra.mrb[0].mxu0 %v1320
    %v1370 = vpop.f32.mrb[0].mxu0
    %v1371 = vadd.f32 %v1286, %v1370
    %v1372 = vpop.f32.mrb[0].mxu0
    %v1373 = vpop.f32.mrb[0].mxu0
    %v1374 = vadd.f32 %v1286, %v1373
    %v1375 = vpop.f32.mrb[0].mxu0
    %1376 = vmatprep.mubr.bf16.mxu0 0
    %1377 = vmatmul.mubr.bf16.gmra.mrb[0].mxu0 %v1321
    %v1378 = vpop.f32.mrb[0].mxu0
    %v1379 = vadd.f32 %v1286, %v1378
    %v1380 = vpop.f32.mrb[0].mxu0
    %v1381 = vpop.f32.mrb[0].mxu0
    %v1382 = vadd.f32 %v1286, %v1381
    %v1383 = vpop.f32.mrb[0].mxu0
    %1384 = vmatprep.mubr.bf16.mxu0 0
    %1385 = vmatmul.mubr.bf16.gmra.mrb[0].mxu0 %v1322
    %v1386 = vpop.f32.mrb[0].mxu0
    %v1387 = vadd.f32 %v1286, %v1386
    %v1388 = vpop.f32.mrb[0].mxu0
    %v1389 = vpop.f32.mrb[0].mxu0
    %v1390 = vadd.f32 %v1286, %v1389
    %v1391 = vpop.f32.mrb[0].mxu0
    %1392 = vmatprep.mubr.bf16.mxu0 0
    %1393 = vmatmul.mubr.bf16.gmra.mrb[0].mxu0 %v1323
    %v1394 = vpop.f32.mrb[0].mxu0
    %v1395 = vadd.f32 %v1286, %v1394
    %v1396 = vpop.f32.mrb[0].mxu0
    %v1397 = vpop.f32.mrb[0].mxu0
    %v1398 = vadd.f32 %v1286, %v1397
    %v1399 = vpop.f32.mrb[0].mxu0
    %1400 = vmatprep.mubr.bf16.mxu0 0
    %1401 = vmatmul.mubr.bf16.gmra.mrb[0].mxu0 %v1324
    %v1402 = vpop.f32.mrb[0].mxu0
    %v1403 = vadd.f32 %v1286, %v1402
    %v1404 = vpop.f32.mrb[0].mxu0
    %v1405 = vpop.f32.mrb[0].mxu0
    %v1406 = vadd.f32 %v1286, %v1405
    %v1407 = vpop.f32.mrb[0].mxu0
    %1408 = vmatprep.mubr.bf16.mxu0 0
    %1409 = vmatmul.mubr.bf16.gmra.mrb[0].mxu0 %v1325
    %v1410 = vpop.f32.mrb[0].mxu0
    %v1411 = vadd.f32 %v1286, %v1410
    %v1412 = vpop.f32.mrb[0].mxu0
    %v1413 = vpop.f32.mrb[0].mxu0
    %v1414 = vadd.f32 %v1286, %v1413
    %v1415 = vpop.f32.mrb[0].mxu0
    %1416 = vmatprep.mubr.bf16.mxu0 0
    %1417 = vmatmul.mubr.bf16.gmra.mrb[0].mxu0 %v1326
    %v1418 = vpop.f32.mrb[0].mxu0
    %v1419 = vadd.f32 %v1286, %v1418
    %v1420 = vpop.f32.mrb[0].mxu0
    %v1421 = vpop.f32.mrb[0].mxu0
    %v1422 = vadd.f32 %v1286, %v1421
    %v1423 = vpop.f32.mrb[0].mxu0
    %1424 = vmatprep.mubr.bf16.mxu0 0
    %1425 = vmatmul.mubr.bf16.gmra.mrb[0].mxu0 %v1327
    %v1426 = vpop.f32.mrb[0].mxu0
    %v1427 = vadd.f32 %v1286, %v1426
    %v1428 = vpop.f32.mrb[0].mxu0
    %v1429 = vpop.f32.mrb[0].mxu0
    %v1430 = vadd.f32 %v1286, %v1429
    %v1431 = vpop.f32.mrb[0].mxu0
    %1432 = vdwg.mxu0
    %v1433 = vld [vmem:[%s11] sm:$0xff]
    %v1434 = vld [vmem:[%s11 + $0x8] sm:$0xff]
    %v1435 = vld [vmem:[%s11 + $0x10] sm:$0xff]
    %v1436 = vld [vmem:[%s11 + $0x18] sm:$0xff]
    %v1437 = vld [vmem:[%s11 + $0x20] sm:$0xff]
    %v1438 = vld [vmem:[%s11 + $0x28] sm:$0xff]
    %v1439 = vld [vmem:[%s11 + $0x30] sm:$0xff]
    %v1440 = vld [vmem:[%s11 + $0x38] sm:$0xff]
    %v1441 = vld [vmem:[%s11 + $0x40] sm:$0xff]
    %v1442 = vld [vmem:[%s11 + $0x48] sm:$0xff]
    %v1443 = vld [vmem:[%s11 + $0x50] sm:$0xff]
    %v1444 = vld [vmem:[%s11 + $0x58] sm:$0xff]
    %v1445 = vld [vmem:[%s11 + $0x60] sm:$0xff]
    %v1446 = vld [vmem:[%s11 + $0x68] sm:$0xff]
    %v1447 = vld [vmem:[%s11 + $0x70] sm:$0xff]
    %v1448 = vld [vmem:[%s11 + $0x78] sm:$0xff]
    %v1449 = vsub.f32 %v1371, %v1072
    %v1450 = vsub.f32 %v1374, %v1073
    %v1451 = vsub.f32 %v1379, %v1074
    %v1452 = vsub.f32 %v1382, %v1075
    %v1453 = vsub.f32 %v1387, %v1076
    %v1454 = vsub.f32 %v1390, %v1077
    %v1455 = vsub.f32 %v1395, %v1078
    %v1456 = vsub.f32 %v1398, %v1079
    %v1457 = vsub.f32 %v1403, %v1080
    %v1458 = vsub.f32 %v1406, %v1081
    %v1459 = vsub.f32 %v1411, %v1082
    %v1460 = vsub.f32 %v1414, %v1083
    %v1461 = vsub.f32 %v1419, %v1084
    %v1462 = vsub.f32 %v1422, %v1085
    %v1463 = vsub.f32 %v1427, %v1086
    %v1464 = vsub.f32 %v1430, %v1087
    %1466 = vset.pattern.permute.xlu0 0
    %1467 = vperm.xlu0 %1466, %v1433
    %v1468 = vpop.permute.xlu0 %1467
    %1471 = vset.pattern.permute.xlu0 0
    %1472 = vperm.xlu0 %1471, %v1434
    %v1473 = vpop.permute.xlu0 %1472
    %1476 = vset.pattern.permute.xlu0 0
    %1477 = vperm.xlu0 %1476, %v1435
    %v1478 = vpop.permute.xlu0 %1477
    %1481 = vset.pattern.permute.xlu0 0
    %1482 = vperm.xlu0 %1481, %v1436
    %v1483 = vpop.permute.xlu0 %1482
    %1486 = vset.pattern.permute.xlu0 0
    %1487 = vperm.xlu0 %1486, %v1437
    %v1488 = vpop.permute.xlu0 %1487
    %1491 = vset.pattern.permute.xlu0 0
    %1492 = vperm.xlu0 %1491, %v1438
    %v1493 = vpop.permute.xlu0 %1492
    %1496 = vset.pattern.permute.xlu0 0
    %1497 = vperm.xlu0 %1496, %v1439
    %v1498 = vpop.permute.xlu0 %1497
    %1501 = vset.pattern.permute.xlu0 0
    %1502 = vperm.xlu0 %1501, %v1440
    %v1503 = vpop.permute.xlu0 %1502
    %1506 = vset.pattern.permute.xlu0 0
    %1507 = vperm.xlu0 %1506, %v1441
    %v1508 = vpop.permute.xlu0 %1507
    %1511 = vset.pattern.permute.xlu0 0
    %1512 = vperm.xlu0 %1511, %v1442
    %v1513 = vpop.permute.xlu0 %1512
    %1516 = vset.pattern.permute.xlu0 0
    %1517 = vperm.xlu0 %1516, %v1443
    %v1518 = vpop.permute.xlu0 %1517
    %1521 = vset.pattern.permute.xlu0 0
    %1522 = vperm.xlu0 %1521, %v1444
    %v1523 = vpop.permute.xlu0 %1522
    %1526 = vset.pattern.permute.xlu0 0
    %1527 = vperm.xlu0 %1526, %v1445
    %v1528 = vpop.permute.xlu0 %1527
    %1531 = vset.pattern.permute.xlu0 0
    %1532 = vperm.xlu0 %1531, %v1446
    %v1533 = vpop.permute.xlu0 %1532
    %1536 = vset.pattern.permute.xlu0 0
    %1537 = vperm.xlu0 %1536, %v1447
    %v1538 = vpop.permute.xlu0 %1537
    %1541 = vset.pattern.permute.xlu0 0
    %1542 = vperm.xlu0 %1541, %v1448
    %v1543 = vpop.permute.xlu0 %1542
    %v1545 = vmul.f32 %v1468, %v1449
    %v1546 = vmul.f32 %v1473, %v1450
    %v1547 = vmul.f32 %v1478, %v1451
    %v1548 = vmul.f32 %v1483, %v1452
    %v1549 = vmul.f32 %v1488, %v1453
    %v1550 = vmul.f32 %v1493, %v1454
    %v1551 = vmul.f32 %v1498, %v1455
    %v1552 = vmul.f32 %v1503, %v1456
    %v1553 = vmul.f32 %v1508, %v1457
    %v1554 = vmul.f32 %v1513, %v1458
    %v1555 = vmul.f32 %v1518, %v1459
    %v1556 = vmul.f32 %v1523, %v1460
    %v1557 = vmul.f32 %v1528, %v1461
    %v1558 = vmul.f32 %v1533, %v1462
    %v1559 = vmul.f32 %v1538, %v1463
    %v1560 = vmul.f32 %v1543, %v1464
    %v1561 = vadd.f32 %v1072, %v1545
    %v1562 = vadd.f32 %v1073, %v1546
    %v1563 = vadd.f32 %v1074, %v1547
    %v1564 = vadd.f32 %v1075, %v1548
    %v1565 = vadd.f32 %v1076, %v1549
    %v1566 = vadd.f32 %v1077, %v1550
    %v1567 = vadd.f32 %v1078, %v1551
    %v1568 = vadd.f32 %v1079, %v1552
    %v1569 = vadd.f32 %v1080, %v1553
    %v1570 = vadd.f32 %v1081, %v1554
    %v1571 = vadd.f32 %v1082, %v1555
    %v1572 = vadd.f32 %v1083, %v1556
    %v1573 = vadd.f32 %v1084, %v1557
    %v1574 = vadd.f32 %v1085, %v1558
    %v1575 = vadd.f32 %v1086, %v1559
    %v1576 = vadd.f32 %v1087, %v1560
    %v1577 = vld [vmem:[%s12] sm:$0xf]
    %v1578 = vpack.c.bf16 %v1562, %v1561
    %v1579 = vpack.c.bf16 %v1564, %v1563
    %v1580 = vpack.c.bf16 %v1566, %v1565
    %v1581 = vpack.c.bf16 %v1568, %v1567
    %v1582 = vpack.c.bf16 %v1570, %v1569
    %v1583 = vpack.c.bf16 %v1572, %v1571
    %v1584 = vpack.c.bf16 %v1574, %v1573
    %v1585 = vpack.c.bf16 %v1576, %v1575
    %1586 = vmatprep.subr.bf16.mxu0 0
    %1587 = vmatpush1.bf16.msra.mxu0 %v1578
    %1588 = vmatprep.subr.bf16.mxu0 0
    %1589 = vmatpush1.bf16.msra.mxu0 %v1579
    %1590 = vmatprep.subr.bf16.mxu0 0
    %1591 = vmatpush1.bf16.msra.mxu0 %v1580
    %1592 = vmatprep.subr.bf16.mxu0 0
    %1593 = vmatpush1.bf16.msra.mxu0 %v1581
    %1594 = vmatprep.subr.bf16.mxu0 0
    %1595 = vmatpush1.bf16.msra.mxu0 %v1582
    %1596 = vmatprep.subr.bf16.mxu0 0
    %1597 = vmatpush1.bf16.msra.mxu0 %v1583
    %1598 = vmatprep.subr.bf16.mxu0 0
    %1599 = vmatpush1.bf16.msra.mxu0 %v1584
    %1600 = vmatprep.subr.bf16.mxu0 0
    %1601 = vmatpush1.bf16.msra.mxu0 %v1585
    %1602 = vmatprep.subr.bf16.mxu0 0
    %1603 = vmatpush1.bf16.msra.mxu0 0
    %1604 = vmatprep.subr.bf16.mxu0 0
    %1605 = vmatpush1.bf16.msra.mxu0 0
    %1606 = vmatprep.subr.bf16.mxu0 0
    %1607 = vmatpush1.bf16.msra.mxu0 0
    %1608 = vmatprep.subr.bf16.mxu0 0
    %1609 = vmatpush1.bf16.msra.mxu0 0
    %1610 = vmatprep.subr.bf16.mxu0 0
    %1611 = vmatpush1.bf16.msra.mxu0 0
    %1612 = vmatprep.subr.bf16.mxu0 0
    %1613 = vmatpush1.bf16.msra.mxu0 0
    %1614 = vmatprep.subr.bf16.mxu0 0
    %1615 = vmatpush1.bf16.msra.mxu0 0
    %1616 = vmatprep.subr.bf16.mxu0 0
    %1617 = vmatpush1.bf16.msra.mxu0 0
    %1618 = vmatprep.mubr.bf16.mxu0 0
    %1619 = vmatmul.mubr.bf16.gmra.mrb[0].mxu0 %v1577
    %v1620 = vpop.f32.mrb[0].mxu0
    %v1621 = vadd.f32 0.0, %v1620
    %v1622 = vpop.f32.mrb[0].mxu0
    %v1623 = vpop.f32.mrb[0].mxu0
    %v1624 = vpop.f32.mrb[0].mxu0
    %1625 = vdwg.mxu0
    %v1626 = vld [vmem:[%s14] sm:$0xff]
    %v1627 = vld [vmem:[%s14 + $0x8] sm:$0xff]
    %v1628 = vld [vmem:[%s14 + $0x10] sm:$0xff]
    %v1629 = vld [vmem:[%s14 + $0x18] sm:$0xff]
    %v1630 = vld [vmem:[%s14 + $0x20] sm:$0xff]
    %v1631 = vld [vmem:[%s14 + $0x28] sm:$0xff]
    %v1632 = vld [vmem:[%s14 + $0x30] sm:$0xff]
    %v1633 = vld [vmem:[%s14 + $0x38] sm:$0xff]
    %v1634 = vld [vmem:[%s14 + $0x40] sm:$0xff]
    %v1635 = vld [vmem:[%s14 + $0x48] sm:$0xff]
    %v1636 = vld [vmem:[%s14 + $0x50] sm:$0xff]
    %v1637 = vld [vmem:[%s14 + $0x58] sm:$0xff]
    %v1638 = vld [vmem:[%s14 + $0x60] sm:$0xff]
    %v1639 = vld [vmem:[%s14 + $0x68] sm:$0xff]
    %v1640 = vld [vmem:[%s14 + $0x70] sm:$0xff]
    %v1641 = vld [vmem:[%s14 + $0x78] sm:$0xff]
    %v1642 = vld [vmem:[%s14 + $0x80] sm:$0xff]
    %v1643 = vld [vmem:[%s14 + $0x88] sm:$0xff]
    %v1644 = vld [vmem:[%s14 + $0x90] sm:$0xff]
    %v1645 = vld [vmem:[%s14 + $0x98] sm:$0xff]
    %v1646 = vld [vmem:[%s14 + $0xa0] sm:$0xff]
    %v1647 = vld [vmem:[%s14 + $0xa8] sm:$0xff]
    %v1648 = vld [vmem:[%s14 + $0xb0] sm:$0xff]
    %v1649 = vld [vmem:[%s14 + $0xb8] sm:$0xff]
    %v1650 = vld [vmem:[%s14 + $0xc0] sm:$0xff]
    %v1651 = vld [vmem:[%s14 + $0xc8] sm:$0xff]
    %v1652 = vld [vmem:[%s14 + $0xd0] sm:$0xff]
    %v1653 = vld [vmem:[%s14 + $0xd8] sm:$0xff]
    %v1654 = vld [vmem:[%s14 + $0xe0] sm:$0xff]
    %v1655 = vld [vmem:[%s14 + $0xe8] sm:$0xff]
    %v1656 = vld [vmem:[%s14 + $0xf0] sm:$0xff]
    %v1657 = vld [vmem:[%s14 + $0xf8] sm:$0xff]
    %v1658 = vld [vmem:[%s14 + $0x100] sm:$0xff]
    %v1659 = vld [vmem:[%s14 + $0x108] sm:$0xff]
    %v1660 = vld [vmem:[%s14 + $0x110] sm:$0xff]
    %v1661 = vld [vmem:[%s14 + $0x118] sm:$0xff]
    %v1662 = vld [vmem:[%s14 + $0x120] sm:$0xff]
    %v1663 = vld [vmem:[%s14 + $0x128] sm:$0xff]
    %v1664 = vld [vmem:[%s14 + $0x130] sm:$0xff]
    %v1665 = vld [vmem:[%s14 + $0x138] sm:$0xff]
    %v1666 = vld [vmem:[%s14 + $0x140] sm:$0xff]
    %v1667 = vld [vmem:[%s14 + $0x148] sm:$0xff]
    %v1668 = vld [vmem:[%s14 + $0x150] sm:$0xff]
    %v1669 = vld [vmem:[%s14 + $0x158] sm:$0xff]
    %v1670 = vld [vmem:[%s14 + $0x160] sm:$0xff]
    %v1671 = vld [vmem:[%s14 + $0x168] sm:$0xff]
    %v1672 = vld [vmem:[%s14 + $0x170] sm:$0xff]
    %v1673 = vld [vmem:[%s14 + $0x178] sm:$0xff]
    %v1674 = vld [vmem:[%s14 + $0x180] sm:$0xff]
    %v1675 = vld [vmem:[%s14 + $0x188] sm:$0xff]
    %v1676 = vld [vmem:[%s14 + $0x190] sm:$0xff]
    %v1677 = vld [vmem:[%s14 + $0x198] sm:$0xff]
    %v1678 = vld [vmem:[%s14 + $0x1a0] sm:$0xff]
    %v1679 = vld [vmem:[%s14 + $0x1a8] sm:$0xff]
    %v1680 = vld [vmem:[%s14 + $0x1b0] sm:$0xff]
    %v1681 = vld [vmem:[%s14 + $0x1b8] sm:$0xff]
    %v1682 = vld [vmem:[%s14 + $0x1c0] sm:$0xff]
    %v1683 = vld [vmem:[%s14 + $0x1c8] sm:$0xff]
    %v1684 = vld [vmem:[%s14 + $0x1d0] sm:$0xff]
    %v1685 = vld [vmem:[%s14 + $0x1d8] sm:$0xff]
    %v1686 = vld [vmem:[%s14 + $0x1e0] sm:$0xff]
    %v1687 = vld [vmem:[%s14 + $0x1e8] sm:$0xff]
    %v1688 = vld [vmem:[%s14 + $0x1f0] sm:$0xff]
    %v1689 = vld [vmem:[%s14 + $0x1f8] sm:$0xff]
    %v1690 = vld [vmem:[#allocation22] sm:$0xf]
    %v1691 = vld [vmem:[%s16] sm:$0xff]
    %v1692 = vld [vmem:[%s16 + $0x8] sm:$0xff]
    %v1693 = vld [vmem:[%s16 + $0x10] sm:$0xff]
    %v1694 = vld [vmem:[%s16 + $0x18] sm:$0xff]
    %v1695 = vld [vmem:[%s16 + $0x20] sm:$0xff]
    %v1696 = vld [vmem:[%s16 + $0x28] sm:$0xff]
    %v1697 = vld [vmem:[%s16 + $0x30] sm:$0xff]
    %v1698 = vld [vmem:[%s16 + $0x38] sm:$0xff]
    %v1699 = vld [vmem:[%s16 + $0x40] sm:$0xff]
    %v1700 = vld [vmem:[%s16 + $0x48] sm:$0xff]
    %v1701 = vld [vmem:[%s16 + $0x50] sm:$0xff]
    %v1702 = vld [vmem:[%s16 + $0x58] sm:$0xff]
    %v1703 = vld [vmem:[%s16 + $0x60] sm:$0xff]
    %v1704 = vld [vmem:[%s16 + $0x68] sm:$0xff]
    %v1705 = vld [vmem:[%s16 + $0x70] sm:$0xff]
    %v1706 = vld [vmem:[%s16 + $0x78] sm:$0xff]
    %v1707 = vld [vmem:[#allocation25] sm:$0x1]
    %1708 = vmatprep.subr.mxu0 0.0
    %1709 = vmatpush1.msra.mxu0 %v1691
    %1710 = vmatprep.subr.mxu0 0.0
    %1711 = vmatpush1.msra.mxu0 %v1692
    %1712 = vmatprep.subr.mxu0 0.0
    %1713 = vmatpush1.msra.mxu0 %v1693
    %1714 = vmatprep.subr.mxu0 0.0
    %1715 = vmatpush1.msra.mxu0 %v1694
    %1716 = vmatprep.subr.mxu0 0.0
    %1717 = vmatpush1.msra.mxu0 %v1695
    %1718 = vmatprep.subr.mxu0 0.0
    %1719 = vmatpush1.msra.mxu0 %v1696
    %1720 = vmatprep.subr.mxu0 0.0
    %1721 = vmatpush1.msra.mxu0 %v1697
    %1722 = vmatprep.subr.mxu0 0.0
    %1723 = vmatpush1.msra.mxu0 %v1698
    %1724 = vmatprep.subr.mxu0 0.0
    %1725 = vmatpush1.msra.mxu0 %v1699
    %1726 = vmatprep.subr.mxu0 0.0
    %1727 = vmatpush1.msra.mxu0 %v1700
    %1728 = vmatprep.subr.mxu0 0.0
    %1729 = vmatpush1.msra.mxu0 %v1701
    %1730 = vmatprep.subr.mxu0 0.0
    %1731 = vmatpush1.msra.mxu0 %v1702
    %1732 = vmatprep.subr.mxu0 0.0
    %1733 = vmatpush1.msra.mxu0 %v1703
    %1734 = vmatprep.subr.mxu0 0.0
    %1735 = vmatpush1.msra.mxu0 %v1704
    %1736 = vmatprep.subr.mxu0 0.0
    %1737 = vmatpush1.msra.mxu0 %v1705
    %1738 = vmatprep.subr.mxu0 0.0
    %1739 = vmatpush1.msra.mxu0 %v1706
    %1740 = vmatprep.subr.mxu0 0.0
    %1741 = vmatpush1.msra.mxu0 0.0
    %1742 = vmatprep.subr.mxu0 0.0
    %1743 = vmatpush1.msra.mxu0 0.0
    %1744 = vmatprep.subr.mxu0 0.0
    %1745 = vmatpush1.msra.mxu0 0.0
    %1746 = vmatprep.subr.mxu0 0.0
    %1747 = vmatpush1.msra.mxu0 0.0
    %1748 = vmatprep.subr.mxu0 0.0
    %1749 = vmatpush1.msra.mxu0 0.0
    %1750 = vmatprep.subr.mxu0 0.0
    %1751 = vmatpush1.msra.mxu0 0.0
    %1752 = vmatprep.subr.mxu0 0.0
    %1753 = vmatpush1.msra.mxu0 0.0
    %1754 = vmatprep.subr.mxu0 0.0
    %1755 = vmatpush1.msra.mxu0 0.0
    %1756 = vmatprep.subr.mxu0 0.0
    %1757 = vmatpush1.msra.mxu0 0.0
    %1758 = vmatprep.subr.mxu0 0.0
    %1759 = vmatpush1.msra.mxu0 0.0
    %1760 = vmatprep.subr.mxu0 0.0
    %1761 = vmatpush1.msra.mxu0 0.0
    %1762 = vmatprep.subr.mxu0 0.0
    %1763 = vmatpush1.msra.mxu0 0.0
    %1764 = vmatprep.subr.mxu0 0.0
    %1765 = vmatpush1.msra.mxu0 0.0
    %1766 = vmatprep.subr.mxu0 0.0
    %1767 = vmatpush1.msra.mxu0 0.0
    %1768 = vmatprep.subr.mxu0 0.0
    %1769 = vmatpush1.msra.mxu0 0.0
    %1770 = vmatprep.subr.mxu0 0.0
    %1771 = vmatpush1.msra.mxu0 0.0
    %1772 = vmatprep.mubr.f32.mxu0 0.0
    %1773 = vmatmul.mubr.f32.gmra.mrb[0].mxu0 %v1621
    %v1774 = vpop.f32.mrb[0].mxu0
    %v1775 = vadd.f32 0.0, %v1774
    %v1776 = vpop.f32.mrb[0].mxu0
    %1777 = vdwg.mxu0
    %1778 = vmatprep.subr.mxu0 0.0
    %1779 = vmatpush1.xpose.msra.mxu0 %v1621
    %1780 = vmatprep.subr.mxu0 0.0
    %1781 = vmatpush1.xpose.msra.mxu0 0.0
    %1782 = vmatprep.subr.mxu0 0.0
    %1783 = vmatpush1.xpose.msra.mxu0 0.0
    %1784 = vmatprep.subr.mxu0 0.0
    %1785 = vmatpush1.xpose.msra.mxu0 0.0
    %1786 = vmatprep.subr.mxu0 0.0
    %1787 = vmatpush1.xpose.msra.mxu0 0.0
    %1788 = vmatprep.subr.mxu0 0.0
    %1789 = vmatpush1.xpose.msra.mxu0 0.0
    %1790 = vmatprep.subr.mxu0 0.0
    %1791 = vmatpush1.xpose.msra.mxu0 0.0
    %1792 = vmatprep.subr.mxu0 0.0
    %1793 = vmatpush1.xpose.msra.mxu0 0.0
    %1794 = vmatprep.subr.mxu0 0.0
    %1795 = vmatpush1.xpose.msra.mxu0 0.0
    %1796 = vmatprep.subr.mxu0 0.0
    %1797 = vmatpush1.xpose.msra.mxu0 0.0
    %1798 = vmatprep.subr.mxu0 0.0
    %1799 = vmatpush1.xpose.msra.mxu0 0.0
    %1800 = vmatprep.subr.mxu0 0.0
    %1801 = vmatpush1.xpose.msra.mxu0 0.0
    %1802 = vmatprep.subr.mxu0 0.0
    %1803 = vmatpush1.xpose.msra.mxu0 0.0
    %1804 = vmatprep.subr.mxu0 0.0
    %1805 = vmatpush1.xpose.msra.mxu0 0.0
    %1806 = vmatprep.subr.mxu0 0.0
    %1807 = vmatpush1.xpose.msra.mxu0 0.0
    %1808 = vmatprep.subr.mxu0 0.0
    %1809 = vmatpush1.xpose.msra.mxu0 0.0
    %1810 = vmatprep.subr.mxu0 0.0
    %1811 = vmatpush1.xpose.msra.mxu0 0.0
    %1812 = vmatprep.subr.mxu0 0.0
    %1813 = vmatpush1.xpose.msra.mxu0 0.0
    %1814 = vmatprep.subr.mxu0 0.0
    %1815 = vmatpush1.xpose.msra.mxu0 0.0
    %1816 = vmatprep.subr.mxu0 0.0
    %1817 = vmatpush1.xpose.msra.mxu0 0.0
    %1818 = vmatprep.subr.mxu0 0.0
    %1819 = vmatpush1.xpose.msra.mxu0 0.0
    %1820 = vmatprep.subr.mxu0 0.0
    %1821 = vmatpush1.xpose.msra.mxu0 0.0
    %1822 = vmatprep.subr.mxu0 0.0
    %1823 = vmatpush1.xpose.msra.mxu0 0.0
    %1824 = vmatprep.subr.mxu0 0.0
    %1825 = vmatpush1.xpose.msra.mxu0 0.0
    %1826 = vmatprep.subr.mxu0 0.0
    %1827 = vmatpush1.xpose.msra.mxu0 0.0
    %1828 = vmatprep.subr.mxu0 0.0
    %1829 = vmatpush1.xpose.msra.mxu0 0.0
    %1830 = vmatprep.subr.mxu0 0.0
    %1831 = vmatpush1.xpose.msra.mxu0 0.0
    %1832 = vmatprep.subr.mxu0 0.0
    %1833 = vmatpush1.xpose.msra.mxu0 0.0
    %1834 = vmatprep.subr.mxu0 0.0
    %1835 = vmatpush1.xpose.msra.mxu0 0.0
    %1836 = vmatprep.subr.mxu0 0.0
    %1837 = vmatpush1.xpose.msra.mxu0 0.0
    %1838 = vmatprep.subr.mxu0 0.0
    %1839 = vmatpush1.xpose.msra.mxu0 0.0
    %1840 = vmatprep.subr.mxu0 0.0
    %1841 = vmatpush1.xpose.msra.mxu0 0.0
    %1842 = vmatprep.mubr.f32.mxu0 0.0
    %1843 = vmatmul.mubr.f32.gmra.mrb[0].mxu0 %v1690
    %v1844 = vpop.f32.mrb[0].mxu0
    %v1845 = vadd.f32 0.0, %v1844
    %v1846 = vpop.f32.mrb[0].mxu0
    %1847 = vdwg.mxu0
    %1849 = vset.pattern.permute.xlu0 0
    %1850 = vperm.xlu0 %1849, %v1775
    %v1851 = vpop.permute.xlu0 %1850
    %v1853 = vlaneseq
    %v1854 = vshrl.u32 %v1853, 7
    %v1855 = vsub.s32 0, %v1854
    %v1856 = vrot.slane %v1845, %v1855
    %v1857 = vadd.f32 %v1851, %v1856
    %v1858 = vld [vmem:[#allocation23] sm:$0xff]
    %v1859 = vadd.f32 %v1857, %v1858
    %v1860 = vmul.f32 %v1859, 0.2
    %v1861 = vmax.f32 %v1859, %v1860
    %vm1862 = vcmask 64512
    %v1863 = vsel %vm1862, %v1861, -inf
    %1864 = vmax.xlane.f32.xlu0 %v1863
    %v1865 = vpop.xlane.xlu0 %1864
    %v1866 = vsub.f32 %v1861, %v1865
    %v1867 = vmul.f32 %v1866, 1.442695
    %v1868 = vpow.pop %v1867
    %v1869 = vsel %vm1862, %v1868, 0.0
    %1870 = vadd.xlane.f32.xlu0 %v1869
    %v1871 = vpop.xlane.xlu0 %1870
    %v1872 = vrcp.pop %v1871
    %v1873 = vmul.f32 %v1868, %v1872
    %v1875 = vsel %vm1862, %v1873, 0
    %1877 = vmatprep.subr.mxu0 0.0
    %1878 = vmatpush1.msra.mxu0 %v1621
    %1879 = vmatprep.subr.mxu0 0.0
    %1880 = vmatpush1.msra.mxu0 0.0
    %1881 = vmatprep.subr.mxu0 0.0
    %1882 = vmatpush1.msra.mxu0 0.0
    %1883 = vmatprep.subr.mxu0 0.0
    %1884 = vmatpush1.msra.mxu0 0.0
    %1885 = vmatprep.subr.mxu0 0.0
    %1886 = vmatpush1.msra.mxu0 0.0
    %1887 = vmatprep.subr.mxu0 0.0
    %1888 = vmatpush1.msra.mxu0 0.0
    %1889 = vmatprep.subr.mxu0 0.0
    %1890 = vmatpush1.msra.mxu0 0.0
    %1891 = vmatprep.subr.mxu0 0.0
    %1892 = vmatpush1.msra.mxu0 0.0
    %1893 = vmatprep.subr.mxu0 0.0
    %1894 = vmatpush1.msra.mxu0 0.0
    %1895 = vmatprep.subr.mxu0 0.0
    %1896 = vmatpush1.msra.mxu0 0.0
    %1897 = vmatprep.subr.mxu0 0.0
    %1898 = vmatpush1.msra.mxu0 0.0
    %1899 = vmatprep.subr.mxu0 0.0
    %1900 = vmatpush1.msra.mxu0 0.0
    %1901 = vmatprep.subr.mxu0 0.0
    %1902 = vmatpush1.msra.mxu0 0.0
    %1903 = vmatprep.subr.mxu0 0.0
    %1904 = vmatpush1.msra.mxu0 0.0
    %1905 = vmatprep.subr.mxu0 0.0
    %1906 = vmatpush1.msra.mxu0 0.0
    %1907 = vmatprep.subr.mxu0 0.0
    %1908 = vmatpush1.msra.mxu0 0.0
    %1909 = vmatprep.subr.mxu0 0.0
    %1910 = vmatpush1.msra.mxu0 0.0
    %1911 = vmatprep.subr.mxu0 0.0
    %1912 = vmatpush1.msra.mxu0 0.0
    %1913 = vmatprep.subr.mxu0 0.0
    %1914 = vmatpush1.msra.mxu0 0.0
    %1915 = vmatprep.subr.mxu0 0.0
    %1916 = vmatpush1.msra.mxu0 0.0
    %1917 = vmatprep.subr.mxu0 0.0
    %1918 = vmatpush1.msra.mxu0 0.0
    %1919 = vmatprep.subr.mxu0 0.0
    %1920 = vmatpush1.msra.mxu0 0.0
    %1921 = vmatprep.subr.mxu0 0.0
    %1922 = vmatpush1.msra.mxu0 0.0
    %1923 = vmatprep.subr.mxu0 0.0
    %1924 = vmatpush1.msra.mxu0 0.0
    %1925 = vmatprep.subr.mxu0 0.0
    %1926 = vmatpush1.msra.mxu0 0.0
    %1927 = vmatprep.subr.mxu0 0.0
    %1928 = vmatpush1.msra.mxu0 0.0
    %1929 = vmatprep.subr.mxu0 0.0
    %1930 = vmatpush1.msra.mxu0 0.0
    %1931 = vmatprep.subr.mxu0 0.0
    %1932 = vmatpush1.msra.mxu0 0.0
    %1933 = vmatprep.subr.mxu0 0.0
    %1934 = vmatpush1.msra.mxu0 0.0
    %1935 = vmatprep.subr.mxu0 0.0
    %1936 = vmatpush1.msra.mxu0 0.0
    %1937 = vmatprep.subr.mxu0 0.0
    %1938 = vmatpush1.msra.mxu0 0.0
    %1939 = vmatprep.subr.mxu0 0.0
    %1940 = vmatpush1.msra.mxu0 0.0
    %1941 = vmatprep.mubr.f32.mxu0 0.0
    %1942 = vmatmul.mubr.f32.gmra.mrb[0].mxu0 %v1875
    %v1943 = vpop.f32.mrb[0].mxu0
    %v1944 = vadd.f32 0.0, %v1943
    %v1945 = vpop.f32.mrb[0].mxu0
    %1946 = vdwg.mxu0
    %1947 = vset.pattern.permute.xlu0 1
    %1948 = vperm.xlu0 %1947, %v1775
    %v1949 = vpop.permute.xlu0 %1948
    %v1951 = vlaneseq
    %v1952 = vshrl.u32 %v1951, 7
    %v1953 = vsub.s32 1, %v1952
    %v1954 = vrot.slane %v1845, %v1953
    %v1955 = vadd.f32 %v1949, %v1954
    %s1956 = scalar_lea.vmem [#allocation23], 8
    %v1957 = vld [vmem:[%s1956] sm:$0xff]
    %v1958 = vadd.f32 %v1955, %v1957
    %v1959 = vmul.f32 %v1958, 0.2
    %v1960 = vmax.f32 %v1958, %v1959
    %v1961 = vsel %vm1862, %v1960, -inf
    %1962 = vmax.xlane.f32.xlu0 %v1961
    %v1963 = vpop.xlane.xlu0 %1962
    %v1964 = vsub.f32 %v1960, %v1963
    %v1965 = vmul.f32 %v1964, 1.442695
    %v1966 = vpow.pop %v1965
    %v1967 = vsel %vm1862, %v1966, 0.0
    %1968 = vadd.xlane.f32.xlu0 %v1967
    %v1969 = vpop.xlane.xlu0 %1968
    %v1970 = vrcp.pop %v1969
    %v1971 = vmul.f32 %v1966, %v1970
    %v1973 = vsel %vm1862, %v1971, 0
    %1975 = vmatprep.subr.mxu0 0.0
    %1976 = vmatpush1.msra.mxu0 %v1621
    %1977 = vmatprep.subr.mxu0 0.0
    %1978 = vmatpush1.msra.mxu0 0.0
    %1979 = vmatprep.subr.mxu0 0.0
    %1980 = vmatpush1.msra.mxu0 0.0
    %1981 = vmatprep.subr.mxu0 0.0
    %1982 = vmatpush1.msra.mxu0 0.0
    %1983 = vmatprep.subr.mxu0 0.0
    %1984 = vmatpush1.msra.mxu0 0.0
    %1985 = vmatprep.subr.mxu0 0.0
    %1986 = vmatpush1.msra.mxu0 0.0
    %1987 = vmatprep.subr.mxu0 0.0
    %1988 = vmatpush1.msra.mxu0 0.0
    %1989 = vmatprep.subr.mxu0 0.0
    %1990 = vmatpush1.msra.mxu0 0.0
    %1991 = vmatprep.subr.mxu0 0.0
    %1992 = vmatpush1.msra.mxu0 0.0
    %1993 = vmatprep.subr.mxu0 0.0
    %1994 = vmatpush1.msra.mxu0 0.0
    %1995 = vmatprep.subr.mxu0 0.0
    %1996 = vmatpush1.msra.mxu0 0.0
    %1997 = vmatprep.subr.mxu0 0.0
    %1998 = vmatpush1.msra.mxu0 0.0
    %1999 = vmatprep.subr.mxu0 0.0
    %2000 = vmatpush1.msra.mxu0 0.0
    %2001 = vmatprep.subr.mxu0 0.0
    %2002 = vmatpush1.msra.mxu0 0.0
    %2003 = vmatprep.subr.mxu0 0.0
    %2004 = vmatpush1.msra.mxu0 0.0
    %2005 = vmatprep.subr.mxu0 0.0
    %2006 = vmatpush1.msra.mxu0 0.0
    %2007 = vmatprep.subr.mxu0 0.0
    %2008 = vmatpush1.msra.mxu0 0.0
    %2009 = vmatprep.subr.mxu0 0.0
    %2010 = vmatpush1.msra.mxu0 0.0
    %2011 = vmatprep.subr.mxu0 0.0
    %2012 = vmatpush1.msra.mxu0 0.0
    %2013 = vmatprep.subr.mxu0 0.0
    %2014 = vmatpush1.msra.mxu0 0.0
    %2015 = vmatprep.subr.mxu0 0.0
    %2016 = vmatpush1.msra.mxu0 0.0
    %2017 = vmatprep.subr.mxu0 0.0
    %2018 = vmatpush1.msra.mxu0 0.0
    %2019 = vmatprep.subr.mxu0 0.0
    %2020 = vmatpush1.msra.mxu0 0.0
    %2021 = vmatprep.subr.mxu0 0.0
    %2022 = vmatpush1.msra.mxu0 0.0
    %2023 = vmatprep.subr.mxu0 0.0
    %2024 = vmatpush1.msra.mxu0 0.0
    %2025 = vmatprep.subr.mxu0 0.0
    %2026 = vmatpush1.msra.mxu0 0.0
    %2027 = vmatprep.subr.mxu0 0.0
    %2028 = vmatpush1.msra.mxu0 0.0
    %2029 = vmatprep.subr.mxu0 0.0
    %2030 = vmatpush1.msra.mxu0 0.0
    %2031 = vmatprep.subr.mxu0 0.0
    %2032 = vmatpush1.msra.mxu0 0.0
    %2033 = vmatprep.subr.mxu0 0.0
    %2034 = vmatpush1.msra.mxu0 0.0
    %2035 = vmatprep.subr.mxu0 0.0
    %2036 = vmatpush1.msra.mxu0 0.0
    %2037 = vmatprep.subr.mxu0 0.0
    %2038 = vmatpush1.msra.mxu0 0.0
    %2039 = vmatprep.mubr.f32.mxu0 0.0
    %2040 = vmatmul.mubr.f32.gmra.mrb[0].mxu0 %v1973
    %v2041 = vpop.f32.mrb[0].mxu0
    %v2042 = vadd.f32 0.0, %v2041
    %v2043 = vpop.f32.mrb[0].mxu0
    %2044 = vdwg.mxu0
    %2045 = vset.pattern.permute.xlu0 2
    %2046 = vperm.xlu0 %2045, %v1775
    %v2047 = vpop.permute.xlu0 %2046
    %v2049 = vlaneseq
    %v2050 = vshrl.u32 %v2049, 7
    %v2051 = vsub.s32 2, %v2050
    %v2052 = vrot.slane %v1845, %v2051
    %v2053 = vadd.f32 %v2047, %v2052
    %s2054 = scalar_lea.vmem [#allocation23], 16
    %v2055 = vld [vmem:[%s2054] sm:$0xff]
    %v2056 = vadd.f32 %v2053, %v2055
    %v2057 = vmul.f32 %v2056, 0.2
    %v2058 = vmax.f32 %v2056, %v2057
    %v2059 = vsel %vm1862, %v2058, -inf
    %2060 = vmax.xlane.f32.xlu0 %v2059
    %v2061 = vpop.xlane.xlu0 %2060
    %v2062 = vsub.f32 %v2058, %v2061
    %v2063 = vmul.f32 %v2062, 1.442695
    %v2064 = vpow.pop %v2063
    %v2065 = vsel %vm1862, %v2064, 0.0
    %2066 = vadd.xlane.f32.xlu0 %v2065
    %v2067 = vpop.xlane.xlu0 %2066
    %v2068 = vrcp.pop %v2067
    %v2069 = vmul.f32 %v2064, %v2068
    %v2071 = vsel %vm1862, %v2069, 0
    %2073 = vmatprep.subr.mxu0 0.0
    %2074 = vmatpush1.msra.mxu0 %v1621
    %2075 = vmatprep.subr.mxu0 0.0
    %2076 = vmatpush1.msra.mxu0 0.0
    %2077 = vmatprep.subr.mxu0 0.0
    %2078 = vmatpush1.msra.mxu0 0.0
    %2079 = vmatprep.subr.mxu0 0.0
    %2080 = vmatpush1.msra.mxu0 0.0
    %2081 = vmatprep.subr.mxu0 0.0
    %2082 = vmatpush1.msra.mxu0 0.0
    %2083 = vmatprep.subr.mxu0 0.0
    %2084 = vmatpush1.msra.mxu0 0.0
    %2085 = vmatprep.subr.mxu0 0.0
    %2086 = vmatpush1.msra.mxu0 0.0
    %2087 = vmatprep.subr.mxu0 0.0
    %2088 = vmatpush1.msra.mxu0 0.0
    %2089 = vmatprep.subr.mxu0 0.0
    %2090 = vmatpush1.msra.mxu0 0.0
    %2091 = vmatprep.subr.mxu0 0.0
    %2092 = vmatpush1.msra.mxu0 0.0
    %2093 = vmatprep.subr.mxu0 0.0
    %2094 = vmatpush1.msra.mxu0 0.0
    %2095 = vmatprep.subr.mxu0 0.0
    %2096 = vmatpush1.msra.mxu0 0.0
    %2097 = vmatprep.subr.mxu0 0.0
    %2098 = vmatpush1.msra.mxu0 0.0
    %2099 = vmatprep.subr.mxu0 0.0
    %2100 = vmatpush1.msra.mxu0 0.0
    %2101 = vmatprep.subr.mxu0 0.0
    %2102 = vmatpush1.msra.mxu0 0.0
    %2103 = vmatprep.subr.mxu0 0.0
    %2104 = vmatpush1.msra.mxu0 0.0
    %2105 = vmatprep.subr.mxu0 0.0
    %2106 = vmatpush1.msra.mxu0 0.0
    %2107 = vmatprep.subr.mxu0 0.0
    %2108 = vmatpush1.msra.mxu0 0.0
    %2109 = vmatprep.subr.mxu0 0.0
    %2110 = vmatpush1.msra.mxu0 0.0
    %2111 = vmatprep.subr.mxu0 0.0
    %2112 = vmatpush1.msra.mxu0 0.0
    %2113 = vmatprep.subr.mxu0 0.0
    %2114 = vmatpush1.msra.mxu0 0.0
    %2115 = vmatprep.subr.mxu0 0.0
    %2116 = vmatpush1.msra.mxu0 0.0
    %2117 = vmatprep.subr.mxu0 0.0
    %2118 = vmatpush1.msra.mxu0 0.0
    %2119 = vmatprep.subr.mxu0 0.0
    %2120 = vmatpush1.msra.mxu0 0.0
    %2121 = vmatprep.subr.mxu0 0.0
    %2122 = vmatpush1.msra.mxu0 0.0
    %2123 = vmatprep.subr.mxu0 0.0
    %2124 = vmatpush1.msra.mxu0 0.0
    %2125 = vmatprep.subr.mxu0 0.0
    %2126 = vmatpush1.msra.mxu0 0.0
    %2127 = vmatprep.subr.mxu0 0.0
    %2128 = vmatpush1.msra.mxu0 0.0
    %2129 = vmatprep.subr.mxu0 0.0
    %2130 = vmatpush1.msra.mxu0 0.0
    %2131 = vmatprep.subr.mxu0 0.0
    %2132 = vmatpush1.msra.mxu0 0.0
    %2133 = vmatprep.subr.mxu0 0.0
    %2134 = vmatpush1.msra.mxu0 0.0
    %2135 = vmatprep.subr.mxu0 0.0
    %2136 = vmatpush1.msra.mxu0 0.0
    %2137 = vmatprep.mubr.f32.mxu0 0.0
    %2138 = vmatmul.mubr.f32.gmra.mrb[0].mxu0 %v2071
    %v2139 = vpop.f32.mrb[0].mxu0
    %v2140 = vadd.f32 0.0, %v2139
    %v2141 = vpop.f32.mrb[0].mxu0
    %2142 = vdwg.mxu0
    %2143 = vset.pattern.permute.xlu0 3
    %2144 = vperm.xlu0 %2143, %v1775
    %v2145 = vpop.permute.xlu0 %2144
    %v2147 = vlaneseq
    %v2148 = vshrl.u32 %v2147, 7
    %v2149 = vsub.s32 3, %v2148
    %v2150 = vrot.slane %v1845, %v2149
    %v2151 = vadd.f32 %v2145, %v2150
    %s2152 = scalar_lea.vmem [#allocation23], 24
    %v2153 = vld [vmem:[%s2152] sm:$0xff]
    %v2154 = vadd.f32 %v2151, %v2153
    %v2155 = vmul.f32 %v2154, 0.2
    %v2156 = vmax.f32 %v2154, %v2155
    %v2157 = vsel %vm1862, %v2156, -inf
    %2158 = vmax.xlane.f32.xlu0 %v2157
    %v2159 = vpop.xlane.xlu0 %2158
    %v2160 = vsub.f32 %v2156, %v2159
    %v2161 = vmul.f32 %v2160, 1.442695
    %v2162 = vpow.pop %v2161
    %v2163 = vsel %vm1862, %v2162, 0.0
    %2164 = vadd.xlane.f32.xlu0 %v2163
    %v2165 = vpop.xlane.xlu0 %2164
    %v2166 = vrcp.pop %v2165
    %v2167 = vmul.f32 %v2162, %v2166
    %v2169 = vsel %vm1862, %v2167, 0
    %2171 = vmatprep.subr.mxu0 0.0
    %2172 = vmatpush1.msra.mxu0 %v1621
    %2173 = vmatprep.subr.mxu0 0.0
    %2174 = vmatpush1.msra.mxu0 0.0
    %2175 = vmatprep.subr.mxu0 0.0
    %2176 = vmatpush1.msra.mxu0 0.0
    %2177 = vmatprep.subr.mxu0 0.0
    %2178 = vmatpush1.msra.mxu0 0.0
    %2179 = vmatprep.subr.mxu0 0.0
    %2180 = vmatpush1.msra.mxu0 0.0
    %2181 = vmatprep.subr.mxu0 0.0
    %2182 = vmatpush1.msra.mxu0 0.0
    %2183 = vmatprep.subr.mxu0 0.0
    %2184 = vmatpush1.msra.mxu0 0.0
    %2185 = vmatprep.subr.mxu0 0.0
    %2186 = vmatpush1.msra.mxu0 0.0
    %2187 = vmatprep.subr.mxu0 0.0
    %2188 = vmatpush1.msra.mxu0 0.0
    %2189 = vmatprep.subr.mxu0 0.0
    %2190 = vmatpush1.msra.mxu0 0.0
    %2191 = vmatprep.subr.mxu0 0.0
    %2192 = vmatpush1.msra.mxu0 0.0
    %2193 = vmatprep.subr.mxu0 0.0
    %2194 = vmatpush1.msra.mxu0 0.0
    %2195 = vmatprep.subr.mxu0 0.0
    %2196 = vmatpush1.msra.mxu0 0.0
    %2197 = vmatprep.subr.mxu0 0.0
    %2198 = vmatpush1.msra.mxu0 0.0
    %2199 = vmatprep.subr.mxu0 0.0
    %2200 = vmatpush1.msra.mxu0 0.0
    %2201 = vmatprep.subr.mxu0 0.0
    %2202 = vmatpush1.msra.mxu0 0.0
    %2203 = vmatprep.subr.mxu0 0.0
    %2204 = vmatpush1.msra.mxu0 0.0
    %2205 = vmatprep.subr.mxu0 0.0
    %2206 = vmatpush1.msra.mxu0 0.0
    %2207 = vmatprep.subr.mxu0 0.0
    %2208 = vmatpush1.msra.mxu0 0.0
    %2209 = vmatprep.subr.mxu0 0.0
    %2210 = vmatpush1.msra.mxu0 0.0
    %2211 = vmatprep.subr.mxu0 0.0
    %2212 = vmatpush1.msra.mxu0 0.0
    %2213 = vmatprep.subr.mxu0 0.0
    %2214 = vmatpush1.msra.mxu0 0.0
    %2215 = vmatprep.subr.mxu0 0.0
    %2216 = vmatpush1.msra.mxu0 0.0
    %2217 = vmatprep.subr.mxu0 0.0
    %2218 = vmatpush1.msra.mxu0 0.0
    %2219 = vmatprep.subr.mxu0 0.0
    %2220 = vmatpush1.msra.mxu0 0.0
    %2221 = vmatprep.subr.mxu0 0.0
    %2222 = vmatpush1.msra.mxu0 0.0
    %2223 = vmatprep.subr.mxu0 0.0
    %2224 = vmatpush1.msra.mxu0 0.0
    %2225 = vmatprep.subr.mxu0 0.0
    %2226 = vmatpush1.msra.mxu0 0.0
    %2227 = vmatprep.subr.mxu0 0.0
    %2228 = vmatpush1.msra.mxu0 0.0
    %2229 = vmatprep.subr.mxu0 0.0
    %2230 = vmatpush1.msra.mxu0 0.0
    %2231 = vmatprep.subr.mxu0 0.0
    %2232 = vmatpush1.msra.mxu0 0.0
    %2233 = vmatprep.subr.mxu0 0.0
    %2234 = vmatpush1.msra.mxu0 0.0
    %2235 = vmatprep.mubr.f32.mxu0 0.0
    %2236 = vmatmul.mubr.f32.gmra.mrb[0].mxu0 %v2169
    %v2237 = vpop.f32.mrb[0].mxu0
    %v2238 = vadd.f32 0.0, %v2237
    %v2239 = vpop.f32.mrb[0].mxu0
    %2240 = vdwg.mxu0
    %2241 = vmatprep.subr.mxu0 0.0
    %2242 = vmatpush1.msra.mxu0 %v1626
    %2243 = vmatprep.subr.mxu0 0.0
    %2244 = vmatpush1.msra.mxu0 %v1627
    %2245 = vmatprep.subr.mxu0 0.0
    %2246 = vmatpush1.msra.mxu0 %v1628
    %2247 = vmatprep.subr.mxu0 0.0
    %2248 = vmatpush1.msra.mxu0 %v1629
    %2249 = vmatprep.subr.mxu0 0.0
    %2250 = vmatpush1.msra.mxu0 %v1630
    %2251 = vmatprep.subr.mxu0 0.0
    %2252 = vmatpush1.msra.mxu0 %v1631
    %2253 = vmatprep.subr.mxu0 0.0
    %2254 = vmatpush1.msra.mxu0 %v1632
    %2255 = vmatprep.subr.mxu0 0.0
    %2256 = vmatpush1.msra.mxu0 %v1633
    %2257 = vmatprep.subr.mxu0 0.0
    %2258 = vmatpush1.msra.mxu0 %v1634
    %2259 = vmatprep.subr.mxu0 0.0
    %2260 = vmatpush1.msra.mxu0 %v1635
    %2261 = vmatprep.subr.mxu0 0.0
    %2262 = vmatpush1.msra.mxu0 %v1636
    %2263 = vmatprep.subr.mxu0 0.0
    %2264 = vmatpush1.msra.mxu0 %v1637
    %2265 = vmatprep.subr.mxu0 0.0
    %2266 = vmatpush1.msra.mxu0 %v1638
    %2267 = vmatprep.subr.mxu0 0.0
    %2268 = vmatpush1.msra.mxu0 %v1639
    %2269 = vmatprep.subr.mxu0 0.0
    %2270 = vmatpush1.msra.mxu0 %v1640
    %2271 = vmatprep.subr.mxu0 0.0
    %2272 = vmatpush1.msra.mxu0 %v1641
    %2273 = vmatprep.subr.mxu0 0.0
    %2274 = vmatpush1.msra.mxu0 %v1642
    %2275 = vmatprep.subr.mxu0 0.0
    %2276 = vmatpush1.msra.mxu0 %v1643
    %2277 = vmatprep.subr.mxu0 0.0
    %2278 = vmatpush1.msra.mxu0 %v1644
    %2279 = vmatprep.subr.mxu0 0.0
    %2280 = vmatpush1.msra.mxu0 %v1645
    %2281 = vmatprep.subr.mxu0 0.0
    %2282 = vmatpush1.msra.mxu0 %v1646
    %2283 = vmatprep.subr.mxu0 0.0
    %2284 = vmatpush1.msra.mxu0 %v1647
    %2285 = vmatprep.subr.mxu0 0.0
    %2286 = vmatpush1.msra.mxu0 %v1648
    %2287 = vmatprep.subr.mxu0 0.0
    %2288 = vmatpush1.msra.mxu0 %v1649
    %2289 = vmatprep.subr.mxu0 0.0
    %2290 = vmatpush1.msra.mxu0 %v1650
    %2291 = vmatprep.subr.mxu0 0.0
    %2292 = vmatpush1.msra.mxu0 %v1651
    %2293 = vmatprep.subr.mxu0 0.0
    %2294 = vmatpush1.msra.mxu0 %v1652
    %2295 = vmatprep.subr.mxu0 0.0
    %2296 = vmatpush1.msra.mxu0 %v1653
    %2297 = vmatprep.subr.mxu0 0.0
    %2298 = vmatpush1.msra.mxu0 %v1654
    %2299 = vmatprep.subr.mxu0 0.0
    %2300 = vmatpush1.msra.mxu0 %v1655
    %2301 = vmatprep.subr.mxu0 0.0
    %2302 = vmatpush1.msra.mxu0 %v1656
    %2303 = vmatprep.subr.mxu0 0.0
    %2304 = vmatpush1.msra.mxu0 %v1657
    %2305 = vmatprep.mubr.f32.mxu0 %v2042
    %2306 = vmatmul.mubr.f32.gmra.mrb[0].mxu0 %v1944
    %v2307 = vpop.f32.mrb[0].mxu0
    %v2308 = vadd.f32 0.0, %v2307
    %v2309 = vpop.f32.mrb[0].mxu0
    %2310 = vdwg.mxu0
    %2311 = vmatprep.subr.mxu0 0.0
    %2312 = vmatpush1.msra.mxu0 %v1658
    %2313 = vmatprep.subr.mxu0 0.0
    %2314 = vmatpush1.msra.mxu0 %v1659
    %2315 = vmatprep.subr.mxu0 0.0
    %2316 = vmatpush1.msra.mxu0 %v1660
    %2317 = vmatprep.subr.mxu0 0.0
    %2318 = vmatpush1.msra.mxu0 %v1661
    %2319 = vmatprep.subr.mxu0 0.0
    %2320 = vmatpush1.msra.mxu0 %v1662
    %2321 = vmatprep.subr.mxu0 0.0
    %2322 = vmatpush1.msra.mxu0 %v1663
    %2323 = vmatprep.subr.mxu0 0.0
    %2324 = vmatpush1.msra.mxu0 %v1664
    %2325 = vmatprep.subr.mxu0 0.0
    %2326 = vmatpush1.msra.mxu0 %v1665
    %2327 = vmatprep.subr.mxu0 0.0
    %2328 = vmatpush1.msra.mxu0 %v1666
    %2329 = vmatprep.subr.mxu0 0.0
    %2330 = vmatpush1.msra.mxu0 %v1667
    %2331 = vmatprep.subr.mxu0 0.0
    %2332 = vmatpush1.msra.mxu0 %v1668
    %2333 = vmatprep.subr.mxu0 0.0
    %2334 = vmatpush1.msra.mxu0 %v1669
    %2335 = vmatprep.subr.mxu0 0.0
    %2336 = vmatpush1.msra.mxu0 %v1670
    %2337 = vmatprep.subr.mxu0 0.0
    %2338 = vmatpush1.msra.mxu0 %v1671
    %2339 = vmatprep.subr.mxu0 0.0
    %2340 = vmatpush1.msra.mxu0 %v1672
    %2341 = vmatprep.subr.mxu0 0.0
    %2342 = vmatpush1.msra.mxu0 %v1673
    %2343 = vmatprep.subr.mxu0 0.0
    %2344 = vmatpush1.msra.mxu0 %v1674
    %2345 = vmatprep.subr.mxu0 0.0
    %2346 = vmatpush1.msra.mxu0 %v1675
    %2347 = vmatprep.subr.mxu0 0.0
    %2348 = vmatpush1.msra.mxu0 %v1676
    %2349 = vmatprep.subr.mxu0 0.0
    %2350 = vmatpush1.msra.mxu0 %v1677
    %2351 = vmatprep.subr.mxu0 0.0
    %2352 = vmatpush1.msra.mxu0 %v1678
    %2353 = vmatprep.subr.mxu0 0.0
    %2354 = vmatpush1.msra.mxu0 %v1679
    %2355 = vmatprep.subr.mxu0 0.0
    %2356 = vmatpush1.msra.mxu0 %v1680
    %2357 = vmatprep.subr.mxu0 0.0
    %2358 = vmatpush1.msra.mxu0 %v1681
    %2359 = vmatprep.subr.mxu0 0.0
    %2360 = vmatpush1.msra.mxu0 %v1682
    %2361 = vmatprep.subr.mxu0 0.0
    %2362 = vmatpush1.msra.mxu0 %v1683
    %2363 = vmatprep.subr.mxu0 0.0
    %2364 = vmatpush1.msra.mxu0 %v1684
    %2365 = vmatprep.subr.mxu0 0.0
    %2366 = vmatpush1.msra.mxu0 %v1685
    %2367 = vmatprep.subr.mxu0 0.0
    %2368 = vmatpush1.msra.mxu0 %v1686
    %2369 = vmatprep.subr.mxu0 0.0
    %2370 = vmatpush1.msra.mxu0 %v1687
    %2371 = vmatprep.subr.mxu0 0.0
    %2372 = vmatpush1.msra.mxu0 %v1688
    %2373 = vmatprep.subr.mxu0 0.0
    %2374 = vmatpush1.msra.mxu0 %v1689
    %2375 = vmatprep.mubr.f32.mxu0 %v2238
    %2376 = vmatmul.mubr.f32.gmra.mrb[0].mxu0 %v2140
    %v2377 = vpop.f32.mrb[0].mxu0
    %v2378 = vadd.f32 %v2308, %v2377
    %v2379 = vpop.f32.mrb[0].mxu0
    %2380 = vdwg.mxu0
    %v2381 = vmul.f32 %v2378, 0.25
    %v2383 = vlaneseq
    %v2384 = vshrl.u32 %v2383, 7
    %v2385 = vsub.s32 0, %v2384
    %v2386 = vrot.slane %v1707, %v2385
    %v2388 = vadd.f32 %v2381, %v2386
    %v2389 = vld [vmem:[%s13] sm:$0xf]
    %v2390 = vld [vmem:[%s13 + $0x4] sm:$0xf]
    %v2391 = vld [vmem:[%s13 + $0x8] sm:$0xf]
    %v2392 = vld [vmem:[%s13 + $0xc] sm:$0xf]
    %v2393 = vld [vmem:[%s13 + $0x10] sm:$0xf]
    %v2394 = vld [vmem:[%s13 + $0x14] sm:$0xf]
    %v2395 = vld [vmem:[%s13 + $0x18] sm:$0xf]
    %v2396 = vld [vmem:[%s13 + $0x1c] sm:$0xf]
    %v2397 = vld [vmem:[%s13 + $0x20] sm:$0xf]
    %v2398 = vld [vmem:[%s13 + $0x24] sm:$0xf]
    %v2399 = vld [vmem:[%s13 + $0x28] sm:$0xf]
    %v2400 = vld [vmem:[%s13 + $0x2c] sm:$0xf]
    %v2401 = vld [vmem:[%s13 + $0x30] sm:$0xf]
    %v2402 = vld [vmem:[%s13 + $0x34] sm:$0xf]
    %v2403 = vld [vmem:[%s13 + $0x38] sm:$0xf]
    %v2404 = vld [vmem:[%s13 + $0x3c] sm:$0xf]
    %v2405 = vpack.c.bf16 %v2388, %v2388
    %v2422 = vunpack.c.l.b16 %v2389
    %v2423 = vunpack.c.l.b16 %v2390
    %v2424 = vunpack.c.l.b16 %v2391
    %v2425 = vunpack.c.l.b16 %v2392
    %v2426 = vunpack.c.l.b16 %v2393
    %v2427 = vunpack.c.l.b16 %v2394
    %v2428 = vunpack.c.l.b16 %v2395
    %v2429 = vunpack.c.l.b16 %v2396
    %v2430 = vunpack.c.l.b16 %v2397
    %v2431 = vunpack.c.l.b16 %v2398
    %v2432 = vunpack.c.l.b16 %v2399
    %v2433 = vunpack.c.l.b16 %v2400
    %v2434 = vunpack.c.l.b16 %v2401
    %v2435 = vunpack.c.l.b16 %v2402
    %v2436 = vunpack.c.l.b16 %v2403
    %v2437 = vunpack.c.l.b16 %v2404
    %v2438 = vpack.c.b16 %v2423, %v2422
    %v2439 = vpack.c.b16 %v2425, %v2424
    %v2440 = vpack.c.b16 %v2427, %v2426
    %v2441 = vpack.c.b16 %v2429, %v2428
    %v2442 = vpack.c.b16 %v2431, %v2430
    %v2443 = vpack.c.b16 %v2433, %v2432
    %v2444 = vpack.c.b16 %v2435, %v2434
    %v2445 = vpack.c.b16 %v2437, %v2436
    %v2447 = vsel %vm1862, %v2438, 0
    %v2450 = vsel %vm1862, %v2439, 0
    %v2453 = vsel %vm1862, %v2440, 0
    %v2456 = vsel %vm1862, %v2441, 0
    %v2459 = vsel %vm1862, %v2442, 0
    %v2462 = vsel %vm1862, %v2443, 0
    %v2465 = vsel %vm1862, %v2444, 0
    %v2468 = vsel %vm1862, %v2445, 0
    %vm2470 = vcmask 1043456
    %v2472 = vsel %vm2470, %v2405, 0
    %2474 = vmatprep.subr.bf16.mxu0 0
    %2475 = vmatpush1.bf16.msra.mxu0 %v2472
    %2476 = vmatprep.subr.bf16.mxu0 0
    %2477 = vmatpush1.bf16.msra.mxu0 0
    %2478 = vmatprep.subr.bf16.mxu0 0
    %2479 = vmatpush1.bf16.msra.mxu0 0
    %2480 = vmatprep.subr.bf16.mxu0 0
    %2481 = vmatpush1.bf16.msra.mxu0 0
    %2482 = vmatprep.subr.bf16.mxu0 0
    %2483 = vmatpush1.bf16.msra.mxu0 0
    %2484 = vmatprep.subr.bf16.mxu0 0
    %2485 = vmatpush1.bf16.msra.mxu0 0
    %2486 = vmatprep.subr.bf16.mxu0 0
    %2487 = vmatpush1.bf16.msra.mxu0 0
    %2488 = vmatprep.subr.bf16.mxu0 0
    %2489 = vmatpush1.bf16.msra.mxu0 0
    %2490 = vmatprep.subr.bf16.mxu0 0
    %2491 = vmatpush1.bf16.msra.mxu0 0
    %2492 = vmatprep.subr.bf16.mxu0 0
    %2493 = vmatpush1.bf16.msra.mxu0 0
    %2494 = vmatprep.subr.bf16.mxu0 0
    %2495 = vmatpush1.bf16.msra.mxu0 0
    %2496 = vmatprep.subr.bf16.mxu0 0
    %2497 = vmatpush1.bf16.msra.mxu0 0
    %2498 = vmatprep.subr.bf16.mxu0 0
    %2499 = vmatpush1.bf16.msra.mxu0 0
    %2500 = vmatprep.subr.bf16.mxu0 0
    %2501 = vmatpush1.bf16.msra.mxu0 0
    %2502 = vmatprep.subr.bf16.mxu0 0
    %2503 = vmatpush1.bf16.msra.mxu0 0
    %2504 = vmatprep.subr.bf16.mxu0 0
    %2505 = vmatpush1.bf16.msra.mxu0 0
    %2506 = vmatprep.mubr.bf16.mxu0 0
    %2507 = vmatmul.mubr.bf16.gmra.mrb[0].mxu0 %v2447
    %v2508 = vpop.f32.mrb[0].mxu0
    %v2509 = vadd.f32 0.0, %v2508
    %v2510 = vpop.f32.mrb[0].mxu0
    %v2511 = vpop.f32.mrb[0].mxu0
    %v2512 = vadd.f32 0.0, %v2511
    %v2513 = vpop.f32.mrb[0].mxu0
    %2514 = vmatprep.mubr.bf16.mxu0 0
    %2515 = vmatmul.mubr.bf16.gmra.mrb[0].mxu0 %v2450
    %v2516 = vpop.f32.mrb[0].mxu0
    %v2517 = vadd.f32 0.0, %v2516
    %v2518 = vpop.f32.mrb[0].mxu0
    %v2519 = vpop.f32.mrb[0].mxu0
    %v2520 = vadd.f32 0.0, %v2519
    %v2521 = vpop.f32.mrb[0].mxu0
    %2522 = vmatprep.mubr.bf16.mxu0 0
    %2523 = vmatmul.mubr.bf16.gmra.mrb[0].mxu0 %v2453
    %v2524 = vpop.f32.mrb[0].mxu0
    %v2525 = vadd.f32 0.0, %v2524
    %v2526 = vpop.f32.mrb[0].mxu0
    %v2527 = vpop.f32.mrb[0].mxu0
    %v2528 = vadd.f32 0.0, %v2527
    %v2529 = vpop.f32.mrb[0].mxu0
    %2530 = vmatprep.mubr.bf16.mxu0 0
    %2531 = vmatmul.mubr.bf16.gmra.mrb[0].mxu0 %v2456
    %v2532 = vpop.f32.mrb[0].mxu0
    %v2533 = vadd.f32 0.0, %v2532
    %v2534 = vpop.f32.mrb[0].mxu0
    %v2535 = vpop.f32.mrb[0].mxu0
    %v2536 = vadd.f32 0.0, %v2535
    %v2537 = vpop.f32.mrb[0].mxu0
    %2538 = vmatprep.mubr.bf16.mxu0 0
    %2539 = vmatmul.mubr.bf16.gmra.mrb[0].mxu0 %v2459
    %v2540 = vpop.f32.mrb[0].mxu0
    %v2541 = vadd.f32 0.0, %v2540
    %v2542 = vpop.f32.mrb[0].mxu0
    %v2543 = vpop.f32.mrb[0].mxu0
    %v2544 = vadd.f32 0.0, %v2543
    %v2545 = vpop.f32.mrb[0].mxu0
    %2546 = vmatprep.mubr.bf16.mxu0 0
    %2547 = vmatmul.mubr.bf16.gmra.mrb[0].mxu0 %v2462
    %v2548 = vpop.f32.mrb[0].mxu0
    %v2549 = vadd.f32 0.0, %v2548
    %v2550 = vpop.f32.mrb[0].mxu0
    %v2551 = vpop.f32.mrb[0].mxu0
    %v2552 = vadd.f32 0.0, %v2551
    %v2553 = vpop.f32.mrb[0].mxu0
    %2554 = vmatprep.mubr.bf16.mxu0 0
    %2555 = vmatmul.mubr.bf16.gmra.mrb[0].mxu0 %v2465
    %v2556 = vpop.f32.mrb[0].mxu0
    %v2557 = vadd.f32 0.0, %v2556
    %v2558 = vpop.f32.mrb[0].mxu0
    %v2559 = vpop.f32.mrb[0].mxu0
    %v2560 = vadd.f32 0.0, %v2559
    %v2561 = vpop.f32.mrb[0].mxu0
    %2562 = vmatprep.mubr.bf16.mxu0 0
    %2563 = vmatmul.mubr.bf16.gmra.mrb[0].mxu0 %v2468
    %v2564 = vpop.f32.mrb[0].mxu0
    %v2565 = vadd.f32 0.0, %v2564
    %v2566 = vpop.f32.mrb[0].mxu0
    %v2567 = vpop.f32.mrb[0].mxu0
    %v2568 = vadd.f32 0.0, %v2567
    %v2569 = vpop.f32.mrb[0].mxu0
    %2570 = vdwg.mxu0
    %v2571 = vadd.f32 %v1561, %v2509
    %v2572 = vadd.f32 %v1562, %v2512
    %v2573 = vadd.f32 %v1563, %v2517
    %v2574 = vadd.f32 %v1564, %v2520
    %v2575 = vadd.f32 %v1565, %v2525
    %v2576 = vadd.f32 %v1566, %v2528
    %v2577 = vadd.f32 %v1567, %v2533
    %v2578 = vadd.f32 %v1568, %v2536
    %v2579 = vadd.f32 %v1569, %v2541
    %v2580 = vadd.f32 %v1570, %v2544
    %v2581 = vadd.f32 %v1571, %v2549
    %v2582 = vadd.f32 %v1572, %v2552
    %v2583 = vadd.f32 %v1573, %v2557
    %v2584 = vadd.f32 %v1574, %v2560
    %v2585 = vadd.f32 %v1575, %v2565
    %v2586 = vadd.f32 %v1576, %v2568
    %s2587 = smul.u32 4, 3
    %s2588 = smul.u32 %s2587, 64
    %s2589 = smul.u32 %s2588, 1
    %s2590 = sshll.u32 %s2589, 4
    %2591 = dma.done [#allocation5], %s2590
    %s2592 = smul.u32 %s2587, 4
    %s2593 = smul.u32 %s2592, 16
    %s2594 = smul.u32 %s2593, 1
    %s2595 = sshll.u32 %s2594, 4
    %2596 = dma.done %s314, %s2595
    %v2597 = vld [vmem:[#allocation3] sm:$0xff]
    %v2598 = vld [vmem:[#allocation3 + $0x8] sm:$0xff]
    %v2599 = vld [vmem:[#allocation3 + $0x10] sm:$0xff]
    %v2600 = vld [vmem:[#allocation3 + $0x18] sm:$0xff]
    %v2601 = vld [vmem:[#allocation3 + $0x20] sm:$0xff]
    %v2602 = vld [vmem:[#allocation3 + $0x28] sm:$0xff]
    %v2603 = vld [vmem:[#allocation3 + $0x30] sm:$0xff]
    %v2604 = vld [vmem:[#allocation3 + $0x38] sm:$0xff]
    %v2605 = vld [vmem:[#allocation3 + $0x40] sm:$0xff]
    %v2606 = vld [vmem:[#allocation3 + $0x48] sm:$0xff]
    %v2607 = vld [vmem:[#allocation3 + $0x50] sm:$0xff]
    %v2608 = vld [vmem:[#allocation3 + $0x58] sm:$0xff]
    %v2609 = vld [vmem:[#allocation3 + $0x60] sm:$0xff]
    %v2610 = vld [vmem:[#allocation3 + $0x68] sm:$0xff]
    %v2611 = vld [vmem:[#allocation3 + $0x70] sm:$0xff]
    %v2612 = vld [vmem:[#allocation3 + $0x78] sm:$0xff]
    %v2613 = vld [vmem:[#allocation3 + $0x80] sm:$0xff]
    %v2614 = vld [vmem:[#allocation3 + $0x88] sm:$0xff]
    %v2615 = vld [vmem:[#allocation3 + $0x90] sm:$0xff]
    %v2616 = vld [vmem:[#allocation3 + $0x98] sm:$0xff]
    %v2617 = vld [vmem:[#allocation3 + $0xa0] sm:$0xff]
    %v2618 = vld [vmem:[#allocation3 + $0xa8] sm:$0xff]
    %v2619 = vld [vmem:[#allocation3 + $0xb0] sm:$0xff]
    %v2620 = vld [vmem:[#allocation3 + $0xb8] sm:$0xff]
    %v2621 = vld [vmem:[#allocation3 + $0xc0] sm:$0xff]
    %v2622 = vld [vmem:[#allocation3 + $0xc8] sm:$0xff]
    %v2623 = vld [vmem:[#allocation3 + $0xd0] sm:$0xff]
    %v2624 = vld [vmem:[#allocation3 + $0xd8] sm:$0xff]
    %v2625 = vld [vmem:[#allocation3 + $0xe0] sm:$0xff]
    %v2626 = vld [vmem:[#allocation3 + $0xe8] sm:$0xff]
    %v2627 = vld [vmem:[#allocation3 + $0xf0] sm:$0xff]
    %v2628 = vld [vmem:[#allocation3 + $0xf8] sm:$0xff]
    %v2629 = vld [vmem:[%s21] sm:$0x3]
    %v2630 = vld [vmem:[%s22] sm:$0xf]
    %v2631 = vld [vmem:[%s22 + $0x4] sm:$0xf]
    %v2632 = vld [vmem:[%s22 + $0x8] sm:$0xf]
    %v2633 = vld [vmem:[%s22 + $0xc] sm:$0xf]
    %v2634 = vld [vmem:[%s22 + $0x10] sm:$0xf]
    %v2635 = vld [vmem:[%s22 + $0x14] sm:$0xf]
    %v2636 = vld [vmem:[%s22 + $0x18] sm:$0xf]
    %v2637 = vld [vmem:[%s22 + $0x1c] sm:$0xf]
    %v2638 = vld [vmem:[%s22 + $0x20] sm:$0xf]
    %v2639 = vld [vmem:[%s22 + $0x24] sm:$0xf]
    %v2640 = vld [vmem:[%s22 + $0x28] sm:$0xf]
    %v2641 = vld [vmem:[%s22 + $0x2c] sm:$0xf]
    %v2642 = vld [vmem:[%s22 + $0x30] sm:$0xf]
    %v2643 = vld [vmem:[%s22 + $0x34] sm:$0xf]
    %v2644 = vld [vmem:[%s22 + $0x38] sm:$0xf]
    %v2645 = vld [vmem:[%s22 + $0x3c] sm:$0xf]
    %v2646 = vld [vmem:[#allocation26] sm:$0x1]
    %v2647 = vpack.c.bf16 %v2572, %v2571
    %v2648 = vpack.c.bf16 %v2574, %v2573
    %v2649 = vpack.c.bf16 %v2576, %v2575
    %v2650 = vpack.c.bf16 %v2578, %v2577
    %v2651 = vpack.c.bf16 %v2580, %v2579
    %v2652 = vpack.c.bf16 %v2582, %v2581
    %v2653 = vpack.c.bf16 %v2584, %v2583
    %v2654 = vpack.c.bf16 %v2586, %v2585
    %v2671 = vunpack.c.l.b16 %v2630
    %v2672 = vunpack.c.l.b16 %v2631
    %v2673 = vunpack.c.l.b16 %v2632
    %v2674 = vunpack.c.l.b16 %v2633
    %v2675 = vunpack.c.l.b16 %v2634
    %v2676 = vunpack.c.l.b16 %v2635
    %v2677 = vunpack.c.l.b16 %v2636
    %v2678 = vunpack.c.l.b16 %v2637
    %v2679 = vunpack.c.l.b16 %v2638
    %v2680 = vunpack.c.l.b16 %v2639
    %v2681 = vunpack.c.l.b16 %v2640
    %v2682 = vunpack.c.l.b16 %v2641
    %v2683 = vunpack.c.l.b16 %v2642
    %v2684 = vunpack.c.l.b16 %v2643
    %v2685 = vunpack.c.l.b16 %v2644
    %v2686 = vunpack.c.l.b16 %v2645
    %v2687 = vpack.c.b16 %v2672, %v2671
    %v2688 = vpack.c.b16 %v2674, %v2673
    %v2689 = vpack.c.b16 %v2676, %v2675
    %v2690 = vpack.c.b16 %v2678, %v2677
    %v2691 = vpack.c.b16 %v2680, %v2679
    %v2692 = vpack.c.b16 %v2682, %v2681
    %v2693 = vpack.c.b16 %v2684, %v2683
    %v2694 = vpack.c.b16 %v2686, %v2685
    %2703 = vmatprep.subr.bf16.mxu0 0
    %2704 = vmatpush1.bf16.msra.mxu0 %v2687
    %2705 = vmatprep.subr.bf16.mxu0 0
    %2706 = vmatpush1.bf16.msra.mxu0 %v2688
    %2707 = vmatprep.subr.bf16.mxu0 0
    %2708 = vmatpush1.bf16.msra.mxu0 %v2689
    %2709 = vmatprep.subr.bf16.mxu0 0
    %2710 = vmatpush1.bf16.msra.mxu0 %v2690
    %2711 = vmatprep.subr.bf16.mxu0 0
    %2712 = vmatpush1.bf16.msra.mxu0 %v2691
    %2713 = vmatprep.subr.bf16.mxu0 0
    %2714 = vmatpush1.bf16.msra.mxu0 %v2692
    %2715 = vmatprep.subr.bf16.mxu0 0
    %2716 = vmatpush1.bf16.msra.mxu0 %v2693
    %2717 = vmatprep.subr.bf16.mxu0 0
    %2718 = vmatpush1.bf16.msra.mxu0 %v2694
    %2719 = vmatprep.subr.bf16.mxu0 0
    %2720 = vmatpush1.bf16.msra.mxu0 0
    %2721 = vmatprep.subr.bf16.mxu0 0
    %2722 = vmatpush1.bf16.msra.mxu0 0
    %2723 = vmatprep.subr.bf16.mxu0 0
    %2724 = vmatpush1.bf16.msra.mxu0 0
    %2725 = vmatprep.subr.bf16.mxu0 0
    %2726 = vmatpush1.bf16.msra.mxu0 0
    %2727 = vmatprep.subr.bf16.mxu0 0
    %2728 = vmatpush1.bf16.msra.mxu0 0
    %2729 = vmatprep.subr.bf16.mxu0 0
    %2730 = vmatpush1.bf16.msra.mxu0 0
    %2731 = vmatprep.subr.bf16.mxu0 0
    %2732 = vmatpush1.bf16.msra.mxu0 0
    %2733 = vmatprep.subr.bf16.mxu0 0
    %2734 = vmatpush1.bf16.msra.mxu0 0
    %2735 = vmatprep.mubr.bf16.mxu0 0
    %2736 = vmatmul.mubr.bf16.gmra.mrb[0].mxu0 %v2647
    %v2737 = vpop.f32.mrb[0].mxu0
    %v2738 = vadd.f32 0.0, %v2737
    %v2739 = vpop.f32.mrb[0].mxu0
    %v2740 = vpop.f32.mrb[0].mxu0
    %v2741 = vadd.f32 0.0, %v2740
    %v2742 = vpop.f32.mrb[0].mxu0
    %2743 = vmatprep.mubr.bf16.mxu0 0
    %2744 = vmatmul.mubr.bf16.gmra.mrb[0].mxu0 %v2648
    %v2745 = vpop.f32.mrb[0].mxu0
    %v2746 = vadd.f32 0.0, %v2745
    %v2747 = vpop.f32.mrb[0].mxu0
    %v2748 = vpop.f32.mrb[0].mxu0
    %v2749 = vadd.f32 0.0, %v2748
    %v2750 = vpop.f32.mrb[0].mxu0
    %2751 = vmatprep.mubr.bf16.mxu0 0
    %2752 = vmatmul.mubr.bf16.gmra.mrb[0].mxu0 %v2649
    %v2753 = vpop.f32.mrb[0].mxu0
    %v2754 = vadd.f32 0.0, %v2753
    %v2755 = vpop.f32.mrb[0].mxu0
    %v2756 = vpop.f32.mrb[0].mxu0
    %v2757 = vadd.f32 0.0, %v2756
    %v2758 = vpop.f32.mrb[0].mxu0
    %2759 = vmatprep.mubr.bf16.mxu0 0
    %2760 = vmatmul.mubr.bf16.gmra.mrb[0].mxu0 %v2650
    %v2761 = vpop.f32.mrb[0].mxu0
    %v2762 = vadd.f32 0.0, %v2761
    %v2763 = vpop.f32.mrb[0].mxu0
    %v2764 = vpop.f32.mrb[0].mxu0
    %v2765 = vadd.f32 0.0, %v2764
    %v2766 = vpop.f32.mrb[0].mxu0
    %2767 = vmatprep.mubr.bf16.mxu0 0
    %2768 = vmatmul.mubr.bf16.gmra.mrb[0].mxu0 %v2651
    %v2769 = vpop.f32.mrb[0].mxu0
    %v2770 = vadd.f32 0.0, %v2769
    %v2771 = vpop.f32.mrb[0].mxu0
    %v2772 = vpop.f32.mrb[0].mxu0
    %v2773 = vadd.f32 0.0, %v2772
    %v2774 = vpop.f32.mrb[0].mxu0
    %2775 = vmatprep.mubr.bf16.mxu0 0
    %2776 = vmatmul.mubr.bf16.gmra.mrb[0].mxu0 %v2652
    %v2777 = vpop.f32.mrb[0].mxu0
    %v2778 = vadd.f32 0.0, %v2777
    %v2779 = vpop.f32.mrb[0].mxu0
    %v2780 = vpop.f32.mrb[0].mxu0
    %v2781 = vadd.f32 0.0, %v2780
    %v2782 = vpop.f32.mrb[0].mxu0
    %2783 = vmatprep.mubr.bf16.mxu0 0
    %2784 = vmatmul.mubr.bf16.gmra.mrb[0].mxu0 %v2653
    %v2785 = vpop.f32.mrb[0].mxu0
    %v2786 = vadd.f32 0.0, %v2785
    %v2787 = vpop.f32.mrb[0].mxu0
    %v2788 = vpop.f32.mrb[0].mxu0
    %v2789 = vadd.f32 0.0, %v2788
    %v2790 = vpop.f32.mrb[0].mxu0
    %2791 = vmatprep.mubr.bf16.mxu0 0
    %2792 = vmatmul.mubr.bf16.gmra.mrb[0].mxu0 %v2654
    %v2793 = vpop.f32.mrb[0].mxu0
    %v2794 = vadd.f32 0.0, %v2793
    %v2795 = vpop.f32.mrb[0].mxu0
    %v2796 = vpop.f32.mrb[0].mxu0
    %v2797 = vadd.f32 0.0, %v2796
    %v2798 = vpop.f32.mrb[0].mxu0
    %2799 = vdwg.mxu0
    %2800 = vmatprep.subr.bf16.mxu0 0
    %2801 = vmatpush1.bf16.xpose.msra.mxu0 %v2647
    %2802 = vmatprep.subr.bf16.mxu0 0
    %2803 = vmatpush1.bf16.xpose.msra.mxu0 %v2648
    %2804 = vmatprep.subr.bf16.mxu0 0
    %2805 = vmatpush1.bf16.xpose.msra.mxu0 %v2649
    %2806 = vmatprep.subr.bf16.mxu0 0
    %2807 = vmatpush1.bf16.xpose.msra.mxu0 %v2650
    %2808 = vmatprep.subr.bf16.mxu0 0
    %2809 = vmatpush1.bf16.xpose.msra.mxu0 %v2651
    %2810 = vmatprep.subr.bf16.mxu0 0
    %2811 = vmatpush1.bf16.xpose.msra.mxu0 %v2652
    %2812 = vmatprep.subr.bf16.mxu0 0
    %2813 = vmatpush1.bf16.xpose.msra.mxu0 %v2653
    %2814 = vmatprep.subr.bf16.mxu0 0
    %2815 = vmatpush1.bf16.xpose.msra.mxu0 %v2654
    %2816 = vmatprep.subr.bf16.mxu0 0
    %2817 = vmatpush1.bf16.xpose.msra.mxu0 0
    %2818 = vmatprep.subr.bf16.mxu0 0
    %2819 = vmatpush1.bf16.xpose.msra.mxu0 0
    %2820 = vmatprep.subr.bf16.mxu0 0
    %2821 = vmatpush1.bf16.xpose.msra.mxu0 0
    %2822 = vmatprep.subr.bf16.mxu0 0
    %2823 = vmatpush1.bf16.xpose.msra.mxu0 0
    %2824 = vmatprep.subr.bf16.mxu0 0
    %2825 = vmatpush1.bf16.xpose.msra.mxu0 0
    %2826 = vmatprep.subr.bf16.mxu0 0
    %2827 = vmatpush1.bf16.xpose.msra.mxu0 0
    %2828 = vmatprep.subr.bf16.mxu0 0
    %2829 = vmatpush1.bf16.xpose.msra.mxu0 0
    %2830 = vmatprep.subr.bf16.mxu0 0
    %2831 = vmatpush1.bf16.xpose.msra.mxu0 0
    %2832 = vmatprep.mubr.bf16.mxu0 0
    %2833 = vmatmul.mubr.bf16.gmra.mrb[0].mxu0 %v2629
    %v2834 = vpop.f32.mrb[0].mxu0
    %v2835 = vadd.f32 0.0, %v2834
    %v2836 = vpop.f32.mrb[0].mxu0
    %v2837 = vpop.f32.mrb[0].mxu0
    %v2838 = vpop.f32.mrb[0].mxu0
    %2839 = vdwg.mxu0
    %2841 = vset.pattern.permute.xlu0 0
    %2842 = vperm.xlu0 %2841, %v2738
    %v2843 = vpop.permute.xlu0 %2842
    %2846 = vset.pattern.permute.xlu0 0
    %2847 = vperm.xlu0 %2846, %v2741
    %v2848 = vpop.permute.xlu0 %2847
    %2851 = vset.pattern.permute.xlu0 0
    %2852 = vperm.xlu0 %2851, %v2746
    %v2853 = vpop.permute.xlu0 %2852
    %2856 = vset.pattern.permute.xlu0 0
    %2857 = vperm.xlu0 %2856, %v2749
    %v2858 = vpop.permute.xlu0 %2857
    %2861 = vset.pattern.permute.xlu0 0
    %2862 = vperm.xlu0 %2861, %v2754
    %v2863 = vpop.permute.xlu0 %2862
    %2866 = vset.pattern.permute.xlu0 0
    %2867 = vperm.xlu0 %2866, %v2757
    %v2868 = vpop.permute.xlu0 %2867
    %2871 = vset.pattern.permute.xlu0 0
    %2872 = vperm.xlu0 %2871, %v2762
    %v2873 = vpop.permute.xlu0 %2872
    %2876 = vset.pattern.permute.xlu0 0
    %2877 = vperm.xlu0 %2876, %v2765
    %v2878 = vpop.permute.xlu0 %2877
    %2881 = vset.pattern.permute.xlu0 0
    %2882 = vperm.xlu0 %2881, %v2770
    %v2883 = vpop.permute.xlu0 %2882
    %2886 = vset.pattern.permute.xlu0 0
    %2887 = vperm.xlu0 %2886, %v2773
    %v2888 = vpop.permute.xlu0 %2887
    %2891 = vset.pattern.permute.xlu0 0
    %2892 = vperm.xlu0 %2891, %v2778
    %v2893 = vpop.permute.xlu0 %2892
    %2896 = vset.pattern.permute.xlu0 0
    %2897 = vperm.xlu0 %2896, %v2781
    %v2898 = vpop.permute.xlu0 %2897
    %2901 = vset.pattern.permute.xlu0 0
    %2902 = vperm.xlu0 %2901, %v2786
    %v2903 = vpop.permute.xlu0 %2902
    %2906 = vset.pattern.permute.xlu0 0
    %2907 = vperm.xlu0 %2906, %v2789
    %v2908 = vpop.permute.xlu0 %2907
    %2911 = vset.pattern.permute.xlu0 0
    %2912 = vperm.xlu0 %2911, %v2794
    %v2913 = vpop.permute.xlu0 %2912
    %2916 = vset.pattern.permute.xlu0 0
    %2917 = vperm.xlu0 %2916, %v2797
    %v2918 = vpop.permute.xlu0 %2917
    %v2920 = vlaneseq
    %v2921 = vshrl.u32 %v2920, 7
    %v2922 = vsub.s32 0, %v2921
    %v2923 = vrot.slane %v2835, %v2922
    %v2924 = vadd.f32 %v2843, %v2923
    %v2925 = vadd.f32 %v2848, %v2923
    %v2926 = vadd.f32 %v2853, %v2923
    %v2927 = vadd.f32 %v2858, %v2923
    %v2928 = vadd.f32 %v2863, %v2923
    %v2929 = vadd.f32 %v2868, %v2923
    %v2930 = vadd.f32 %v2873, %v2923
    %v2931 = vadd.f32 %v2878, %v2923
    %v2932 = vadd.f32 %v2883, %v2923
    %v2933 = vadd.f32 %v2888, %v2923
    %v2934 = vadd.f32 %v2893, %v2923
    %v2935 = vadd.f32 %v2898, %v2923
    %v2936 = vadd.f32 %v2903, %v2923
    %v2937 = vadd.f32 %v2908, %v2923
    %v2938 = vadd.f32 %v2913, %v2923
    %v2939 = vadd.f32 %v2918, %v2923
    %v2940 = vld [vmem:[#allocation4] sm:$0xff]
    %v2941 = vld [vmem:[#allocation4 + $0x8] sm:$0xff]
    %v2942 = vld [vmem:[#allocation4 + $0x10] sm:$0xff]
    %v2943 = vld [vmem:[#allocation4 + $0x18] sm:$0xff]
    %v2944 = vld [vmem:[#allocation4 + $0x20] sm:$0xff]
    %v2945 = vld [vmem:[#allocation4 + $0x28] sm:$0xff]
    %v2946 = vld [vmem:[#allocation4 + $0x30] sm:$0xff]
    %v2947 = vld [vmem:[#allocation4 + $0x38] sm:$0xff]
    %v2948 = vunpack.c.l.bf16 %v2940
    %v2949 = vunpack.c.h.bf16 %v2940
    %v2950 = vunpack.c.l.bf16 %v2941
    %v2951 = vunpack.c.h.bf16 %v2941
    %v2952 = vunpack.c.l.bf16 %v2942
    %v2953 = vunpack.c.h.bf16 %v2942
    %v2954 = vunpack.c.l.bf16 %v2943
    %v2955 = vunpack.c.h.bf16 %v2943
    %v2956 = vunpack.c.l.bf16 %v2944
    %v2957 = vunpack.c.h.bf16 %v2944
    %v2958 = vunpack.c.l.bf16 %v2945
    %v2959 = vunpack.c.h.bf16 %v2945
    %v2960 = vunpack.c.l.bf16 %v2946
    %v2961 = vunpack.c.h.bf16 %v2946
    %v2962 = vunpack.c.l.bf16 %v2947
    %v2963 = vunpack.c.h.bf16 %v2947
    %v2964 = vadd.f32 %v2924, %v2948
    %v2965 = vadd.f32 %v2925, %v2949
    %v2966 = vadd.f32 %v2926, %v2950
    %v2967 = vadd.f32 %v2927, %v2951
    %v2968 = vadd.f32 %v2928, %v2952
    %v2969 = vadd.f32 %v2929, %v2953
    %v2970 = vadd.f32 %v2930, %v2954
    %v2971 = vadd.f32 %v2931, %v2955
    %v2972 = vadd.f32 %v2932, %v2956
    %v2973 = vadd.f32 %v2933, %v2957
    %v2974 = vadd.f32 %v2934, %v2958
    %v2975 = vadd.f32 %v2935, %v2959
    %v2976 = vadd.f32 %v2936, %v2960
    %v2977 = vadd.f32 %v2937, %v2961
    %v2978 = vadd.f32 %v2938, %v2962
    %v2979 = vadd.f32 %v2939, %v2963
    %v2980 = vmul.f32 %v2964, 0.2
    %v2981 = vmul.f32 %v2965, 0.2
    %v2982 = vmul.f32 %v2966, 0.2
    %v2983 = vmul.f32 %v2967, 0.2
    %v2984 = vmul.f32 %v2968, 0.2
    %v2985 = vmul.f32 %v2969, 0.2
    %v2986 = vmul.f32 %v2970, 0.2
    %v2987 = vmul.f32 %v2971, 0.2
    %v2988 = vmul.f32 %v2972, 0.2
    %v2989 = vmul.f32 %v2973, 0.2
    %v2990 = vmul.f32 %v2974, 0.2
    %v2991 = vmul.f32 %v2975, 0.2
    %v2992 = vmul.f32 %v2976, 0.2
    %v2993 = vmul.f32 %v2977, 0.2
    %v2994 = vmul.f32 %v2978, 0.2
    %v2995 = vmul.f32 %v2979, 0.2
    %v2996 = vmax.f32 %v2964, %v2980
    %v2997 = vmax.f32 %v2965, %v2981
    %v2998 = vmax.f32 %v2966, %v2982
    %v2999 = vmax.f32 %v2967, %v2983
    %v3000 = vmax.f32 %v2968, %v2984
    %v3001 = vmax.f32 %v2969, %v2985
    %v3002 = vmax.f32 %v2970, %v2986
    %v3003 = vmax.f32 %v2971, %v2987
    %v3004 = vmax.f32 %v2972, %v2988
    %v3005 = vmax.f32 %v2973, %v2989
    %v3006 = vmax.f32 %v2974, %v2990
    %v3007 = vmax.f32 %v2975, %v2991
    %v3008 = vmax.f32 %v2976, %v2992
    %v3009 = vmax.f32 %v2977, %v2993
    %v3010 = vmax.f32 %v2978, %v2994
    %v3011 = vmax.f32 %v2979, %v2995
    %3012 = vmax.xlane.f32.xlu0 %v2996
    %v3013 = vpop.xlane.xlu0 %3012
    %3014 = vmax.xlane.f32.xlu0 %v2997
    %v3015 = vpop.xlane.xlu0 %3014
    %3016 = vmax.xlane.f32.xlu0 %v2998
    %v3017 = vpop.xlane.xlu0 %3016
    %3018 = vmax.xlane.f32.xlu0 %v2999
    %v3019 = vpop.xlane.xlu0 %3018
    %3020 = vmax.xlane.f32.xlu0 %v3000
    %v3021 = vpop.xlane.xlu0 %3020
    %3022 = vmax.xlane.f32.xlu0 %v3001
    %v3023 = vpop.xlane.xlu0 %3022
    %3024 = vmax.xlane.f32.xlu0 %v3002
    %v3025 = vpop.xlane.xlu0 %3024
    %3026 = vmax.xlane.f32.xlu0 %v3003
    %v3027 = vpop.xlane.xlu0 %3026
    %3028 = vmax.xlane.f32.xlu0 %v3004
    %v3029 = vpop.xlane.xlu0 %3028
    %3030 = vmax.xlane.f32.xlu0 %v3005
    %v3031 = vpop.xlane.xlu0 %3030
    %3032 = vmax.xlane.f32.xlu0 %v3006
    %v3033 = vpop.xlane.xlu0 %3032
    %3034 = vmax.xlane.f32.xlu0 %v3007
    %v3035 = vpop.xlane.xlu0 %3034
    %3036 = vmax.xlane.f32.xlu0 %v3008
    %v3037 = vpop.xlane.xlu0 %3036
    %3038 = vmax.xlane.f32.xlu0 %v3009
    %v3039 = vpop.xlane.xlu0 %3038
    %3040 = vmax.xlane.f32.xlu0 %v3010
    %v3041 = vpop.xlane.xlu0 %3040
    %3042 = vmax.xlane.f32.xlu0 %v3011
    %v3043 = vpop.xlane.xlu0 %3042
    %v3044 = vsub.f32 %v2996, %v3013
    %v3045 = vsub.f32 %v2997, %v3015
    %v3046 = vsub.f32 %v2998, %v3017
    %v3047 = vsub.f32 %v2999, %v3019
    %v3048 = vsub.f32 %v3000, %v3021
    %v3049 = vsub.f32 %v3001, %v3023
    %v3050 = vsub.f32 %v3002, %v3025
    %v3051 = vsub.f32 %v3003, %v3027
    %v3052 = vsub.f32 %v3004, %v3029
    %v3053 = vsub.f32 %v3005, %v3031
    %v3054 = vsub.f32 %v3006, %v3033
    %v3055 = vsub.f32 %v3007, %v3035
    %v3056 = vsub.f32 %v3008, %v3037
    %v3057 = vsub.f32 %v3009, %v3039
    %v3058 = vsub.f32 %v3010, %v3041
    %v3059 = vsub.f32 %v3011, %v3043
    %v3060 = vmul.f32 %v3044, 1.442695
    %v3061 = vpow.pop %v3060
    %v3062 = vmul.f32 %v3045, 1.442695
    %v3063 = vpow.pop %v3062
    %v3064 = vmul.f32 %v3046, 1.442695
    %v3065 = vpow.pop %v3064
    %v3066 = vmul.f32 %v3047, 1.442695
    %v3067 = vpow.pop %v3066
    %v3068 = vmul.f32 %v3048, 1.442695
    %v3069 = vpow.pop %v3068
    %v3070 = vmul.f32 %v3049, 1.442695
    %v3071 = vpow.pop %v3070
    %v3072 = vmul.f32 %v3050, 1.442695
    %v3073 = vpow.pop %v3072
    %v3074 = vmul.f32 %v3051, 1.442695
    %v3075 = vpow.pop %v3074
    %v3076 = vmul.f32 %v3052, 1.442695
    %v3077 = vpow.pop %v3076
    %v3078 = vmul.f32 %v3053, 1.442695
    %v3079 = vpow.pop %v3078
    %v3080 = vmul.f32 %v3054, 1.442695
    %v3081 = vpow.pop %v3080
    %v3082 = vmul.f32 %v3055, 1.442695
    %v3083 = vpow.pop %v3082
    %v3084 = vmul.f32 %v3056, 1.442695
    %v3085 = vpow.pop %v3084
    %v3086 = vmul.f32 %v3057, 1.442695
    %v3087 = vpow.pop %v3086
    %v3088 = vmul.f32 %v3058, 1.442695
    %v3089 = vpow.pop %v3088
    %v3090 = vmul.f32 %v3059, 1.442695
    %v3091 = vpow.pop %v3090
    %3092 = vadd.xlane.f32.xlu0 %v3061
    %v3093 = vpop.xlane.xlu0 %3092
    %3094 = vadd.xlane.f32.xlu0 %v3063
    %v3095 = vpop.xlane.xlu0 %3094
    %3096 = vadd.xlane.f32.xlu0 %v3065
    %v3097 = vpop.xlane.xlu0 %3096
    %3098 = vadd.xlane.f32.xlu0 %v3067
    %v3099 = vpop.xlane.xlu0 %3098
    %3100 = vadd.xlane.f32.xlu0 %v3069
    %v3101 = vpop.xlane.xlu0 %3100
    %3102 = vadd.xlane.f32.xlu0 %v3071
    %v3103 = vpop.xlane.xlu0 %3102
    %3104 = vadd.xlane.f32.xlu0 %v3073
    %v3105 = vpop.xlane.xlu0 %3104
    %3106 = vadd.xlane.f32.xlu0 %v3075
    %v3107 = vpop.xlane.xlu0 %3106
    %3108 = vadd.xlane.f32.xlu0 %v3077
    %v3109 = vpop.xlane.xlu0 %3108
    %3110 = vadd.xlane.f32.xlu0 %v3079
    %v3111 = vpop.xlane.xlu0 %3110
    %3112 = vadd.xlane.f32.xlu0 %v3081
    %v3113 = vpop.xlane.xlu0 %3112
    %3114 = vadd.xlane.f32.xlu0 %v3083
    %v3115 = vpop.xlane.xlu0 %3114
    %3116 = vadd.xlane.f32.xlu0 %v3085
    %v3117 = vpop.xlane.xlu0 %3116
    %3118 = vadd.xlane.f32.xlu0 %v3087
    %v3119 = vpop.xlane.xlu0 %3118
    %3120 = vadd.xlane.f32.xlu0 %v3089
    %v3121 = vpop.xlane.xlu0 %3120
    %3122 = vadd.xlane.f32.xlu0 %v3091
    %v3123 = vpop.xlane.xlu0 %3122
    %v3124 = vrcp.pop %v3093
    %v3125 = vrcp.pop %v3095
    %v3126 = vrcp.pop %v3097
    %v3127 = vrcp.pop %v3099
    %v3128 = vrcp.pop %v3101
    %v3129 = vrcp.pop %v3103
    %v3130 = vrcp.pop %v3105
    %v3131 = vrcp.pop %v3107
    %v3132 = vrcp.pop %v3109
    %v3133 = vrcp.pop %v3111
    %v3134 = vrcp.pop %v3113
    %v3135 = vrcp.pop %v3115
    %v3136 = vrcp.pop %v3117
    %v3137 = vrcp.pop %v3119
    %v3138 = vrcp.pop %v3121
    %v3139 = vrcp.pop %v3123
    %v3140 = vmul.f32 %v3061, %v3124
    %v3141 = vmul.f32 %v3063, %v3125
    %v3142 = vmul.f32 %v3065, %v3126
    %v3143 = vmul.f32 %v3067, %v3127
    %v3144 = vmul.f32 %v3069, %v3128
    %v3145 = vmul.f32 %v3071, %v3129
    %v3146 = vmul.f32 %v3073, %v3130
    %v3147 = vmul.f32 %v3075, %v3131
    %v3148 = vmul.f32 %v3077, %v3132
    %v3149 = vmul.f32 %v3079, %v3133
    %v3150 = vmul.f32 %v3081, %v3134
    %v3151 = vmul.f32 %v3083, %v3135
    %v3152 = vmul.f32 %v3085, %v3136
    %v3153 = vmul.f32 %v3087, %v3137
    %v3154 = vmul.f32 %v3089, %v3138
    %v3155 = vmul.f32 %v3091, %v3139
    %v3156 = vpack.c.bf16 %v3141, %v3140
    %v3157 = vpack.c.bf16 %v3143, %v3142
    %v3158 = vpack.c.bf16 %v3145, %v3144
    %v3159 = vpack.c.bf16 %v3147, %v3146
    %v3160 = vpack.c.bf16 %v3149, %v3148
    %v3161 = vpack.c.bf16 %v3151, %v3150
    %v3162 = vpack.c.bf16 %v3153, %v3152
    %v3163 = vpack.c.bf16 %v3155, %v3154
    %3164 = vmatprep.subr.bf16.mxu0 0
    %3165 = vmatpush1.bf16.msra.mxu0 %v2647
    %3166 = vmatprep.subr.bf16.mxu0 0
    %3167 = vmatpush1.bf16.msra.mxu0 %v2648
    %3168 = vmatprep.subr.bf16.mxu0 0
    %3169 = vmatpush1.bf16.msra.mxu0 %v2649
    %3170 = vmatprep.subr.bf16.mxu0 0
    %3171 = vmatpush1.bf16.msra.mxu0 %v2650
    %3172 = vmatprep.subr.bf16.mxu0 0
    %3173 = vmatpush1.bf16.msra.mxu0 %v2651
    %3174 = vmatprep.subr.bf16.mxu0 0
    %3175 = vmatpush1.bf16.msra.mxu0 %v2652
    %3176 = vmatprep.subr.bf16.mxu0 0
    %3177 = vmatpush1.bf16.msra.mxu0 %v2653
    %3178 = vmatprep.subr.bf16.mxu0 0
    %3179 = vmatpush1.bf16.msra.mxu0 %v2654
    %3180 = vmatprep.subr.bf16.mxu0 0
    %3181 = vmatpush1.bf16.msra.mxu0 0
    %3182 = vmatprep.subr.bf16.mxu0 0
    %3183 = vmatpush1.bf16.msra.mxu0 0
    %3184 = vmatprep.subr.bf16.mxu0 0
    %3185 = vmatpush1.bf16.msra.mxu0 0
    %3186 = vmatprep.subr.bf16.mxu0 0
    %3187 = vmatpush1.bf16.msra.mxu0 0
    %3188 = vmatprep.subr.bf16.mxu0 0
    %3189 = vmatpush1.bf16.msra.mxu0 0
    %3190 = vmatprep.subr.bf16.mxu0 0
    %3191 = vmatpush1.bf16.msra.mxu0 0
    %3192 = vmatprep.subr.bf16.mxu0 0
    %3193 = vmatpush1.bf16.msra.mxu0 0
    %3194 = vmatprep.subr.bf16.mxu0 0
    %3195 = vmatpush1.bf16.msra.mxu0 0
    %3196 = vmatprep.mubr.bf16.mxu0 0
    %3197 = vmatmul.mubr.bf16.gmra.mrb[0].mxu0 %v3156
    %v3198 = vpop.f32.mrb[0].mxu0
    %v3199 = vadd.f32 0.0, %v3198
    %v3200 = vpop.f32.mrb[0].mxu0
    %v3201 = vpop.f32.mrb[0].mxu0
    %v3202 = vadd.f32 0.0, %v3201
    %v3203 = vpop.f32.mrb[0].mxu0
    %3204 = vmatprep.mubr.bf16.mxu0 0
    %3205 = vmatmul.mubr.bf16.gmra.mrb[0].mxu0 %v3157
    %v3206 = vpop.f32.mrb[0].mxu0
    %v3207 = vadd.f32 0.0, %v3206
    %v3208 = vpop.f32.mrb[0].mxu0
    %v3209 = vpop.f32.mrb[0].mxu0
    %v3210 = vadd.f32 0.0, %v3209
    %v3211 = vpop.f32.mrb[0].mxu0
    %3212 = vmatprep.mubr.bf16.mxu0 0
    %3213 = vmatmul.mubr.bf16.gmra.mrb[0].mxu0 %v3158
    %v3214 = vpop.f32.mrb[0].mxu0
    %v3215 = vadd.f32 0.0, %v3214
    %v3216 = vpop.f32.mrb[0].mxu0
    %v3217 = vpop.f32.mrb[0].mxu0
    %v3218 = vadd.f32 0.0, %v3217
    %v3219 = vpop.f32.mrb[0].mxu0
    %3220 = vmatprep.mubr.bf16.mxu0 0
    %3221 = vmatmul.mubr.bf16.gmra.mrb[0].mxu0 %v3159
    %v3222 = vpop.f32.mrb[0].mxu0
    %v3223 = vadd.f32 0.0, %v3222
    %v3224 = vpop.f32.mrb[0].mxu0
    %v3225 = vpop.f32.mrb[0].mxu0
    %v3226 = vadd.f32 0.0, %v3225
    %v3227 = vpop.f32.mrb[0].mxu0
    %3228 = vmatprep.mubr.bf16.mxu0 0
    %3229 = vmatmul.mubr.bf16.gmra.mrb[0].mxu0 %v3160
    %v3230 = vpop.f32.mrb[0].mxu0
    %v3231 = vadd.f32 0.0, %v3230
    %v3232 = vpop.f32.mrb[0].mxu0
    %v3233 = vpop.f32.mrb[0].mxu0
    %v3234 = vadd.f32 0.0, %v3233
    %v3235 = vpop.f32.mrb[0].mxu0
    %3236 = vmatprep.mubr.bf16.mxu0 0
    %3237 = vmatmul.mubr.bf16.gmra.mrb[0].mxu0 %v3161
    %v3238 = vpop.f32.mrb[0].mxu0
    %v3239 = vadd.f32 0.0, %v3238
    %v3240 = vpop.f32.mrb[0].mxu0
    %v3241 = vpop.f32.mrb[0].mxu0
    %v3242 = vadd.f32 0.0, %v3241
    %v3243 = vpop.f32.mrb[0].mxu0
    %3244 = vmatprep.mubr.bf16.mxu0 0
    %3245 = vmatmul.mubr.bf16.gmra.mrb[0].mxu0 %v3162
    %v3246 = vpop.f32.mrb[0].mxu0
    %v3247 = vadd.f32 0.0, %v3246
    %v3248 = vpop.f32.mrb[0].mxu0
    %v3249 = vpop.f32.mrb[0].mxu0
    %v3250 = vadd.f32 0.0, %v3249
    %v3251 = vpop.f32.mrb[0].mxu0
    %3252 = vmatprep.mubr.bf16.mxu0 0
    %3253 = vmatmul.mubr.bf16.gmra.mrb[0].mxu0 %v3163
    %v3254 = vpop.f32.mrb[0].mxu0
    %v3255 = vadd.f32 0.0, %v3254
    %v3256 = vpop.f32.mrb[0].mxu0
    %v3257 = vpop.f32.mrb[0].mxu0
    %v3258 = vadd.f32 0.0, %v3257
    %v3259 = vpop.f32.mrb[0].mxu0
    %3260 = vdwg.mxu0
    %3261 = vset.pattern.permute.xlu0 1
    %3262 = vperm.xlu0 %3261, %v2738
    %v3263 = vpop.permute.xlu0 %3262
    %3265 = vset.pattern.permute.xlu0 1
    %3266 = vperm.xlu0 %3265, %v2741
    %v3267 = vpop.permute.xlu0 %3266
    %3269 = vset.pattern.permute.xlu0 1
    %3270 = vperm.xlu0 %3269, %v2746
    %v3271 = vpop.permute.xlu0 %3270
    %3273 = vset.pattern.permute.xlu0 1
    %3274 = vperm.xlu0 %3273, %v2749
    %v3275 = vpop.permute.xlu0 %3274
    %3277 = vset.pattern.permute.xlu0 1
    %3278 = vperm.xlu0 %3277, %v2754
    %v3279 = vpop.permute.xlu0 %3278
    %3281 = vset.pattern.permute.xlu0 1
    %3282 = vperm.xlu0 %3281, %v2757
    %v3283 = vpop.permute.xlu0 %3282
    %3285 = vset.pattern.permute.xlu0 1
    %3286 = vperm.xlu0 %3285, %v2762
    %v3287 = vpop.permute.xlu0 %3286
    %3289 = vset.pattern.permute.xlu0 1
    %3290 = vperm.xlu0 %3289, %v2765
    %v3291 = vpop.permute.xlu0 %3290
    %3293 = vset.pattern.permute.xlu0 1
    %3294 = vperm.xlu0 %3293, %v2770
    %v3295 = vpop.permute.xlu0 %3294
    %3297 = vset.pattern.permute.xlu0 1
    %3298 = vperm.xlu0 %3297, %v2773
    %v3299 = vpop.permute.xlu0 %3298
    %3301 = vset.pattern.permute.xlu0 1
    %3302 = vperm.xlu0 %3301, %v2778
    %v3303 = vpop.permute.xlu0 %3302
    %3305 = vset.pattern.permute.xlu0 1
    %3306 = vperm.xlu0 %3305, %v2781
    %v3307 = vpop.permute.xlu0 %3306
    %3309 = vset.pattern.permute.xlu0 1
    %3310 = vperm.xlu0 %3309, %v2786
    %v3311 = vpop.permute.xlu0 %3310
    %3313 = vset.pattern.permute.xlu0 1
    %3314 = vperm.xlu0 %3313, %v2789
    %v3315 = vpop.permute.xlu0 %3314
    %3317 = vset.pattern.permute.xlu0 1
    %3318 = vperm.xlu0 %3317, %v2794
    %v3319 = vpop.permute.xlu0 %3318
    %3321 = vset.pattern.permute.xlu0 1
    %3322 = vperm.xlu0 %3321, %v2797
    %v3323 = vpop.permute.xlu0 %3322
    %v3325 = vlaneseq
    %v3326 = vshrl.u32 %v3325, 7
    %v3327 = vsub.s32 1, %v3326
    %v3328 = vrot.slane %v2835, %v3327
    %v3329 = vadd.f32 %v3263, %v3328
    %v3330 = vadd.f32 %v3267, %v3328
    %v3331 = vadd.f32 %v3271, %v3328
    %v3332 = vadd.f32 %v3275, %v3328
    %v3333 = vadd.f32 %v3279, %v3328
    %v3334 = vadd.f32 %v3283, %v3328
    %v3335 = vadd.f32 %v3287, %v3328
    %v3336 = vadd.f32 %v3291, %v3328
    %v3337 = vadd.f32 %v3295, %v3328
    %v3338 = vadd.f32 %v3299, %v3328
    %v3339 = vadd.f32 %v3303, %v3328
    %v3340 = vadd.f32 %v3307, %v3328
    %v3341 = vadd.f32 %v3311, %v3328
    %v3342 = vadd.f32 %v3315, %v3328
    %v3343 = vadd.f32 %v3319, %v3328
    %v3344 = vadd.f32 %v3323, %v3328
    %s3345 = scalar_lea.vmem [#allocation4], 64
    %v3346 = vld [vmem:[%s3345] sm:$0xff]
    %v3347 = vld [vmem:[%s3345 + $0x8] sm:$0xff]
    %v3348 = vld [vmem:[%s3345 + $0x10] sm:$0xff]
    %v3349 = vld [vmem:[%s3345 + $0x18] sm:$0xff]
    %v3350 = vld [vmem:[%s3345 + $0x20] sm:$0xff]
    %v3351 = vld [vmem:[%s3345 + $0x28] sm:$0xff]
    %v3352 = vld [vmem:[%s3345 + $0x30] sm:$0xff]
    %v3353 = vld [vmem:[%s3345 + $0x38] sm:$0xff]
    %v3354 = vunpack.c.l.bf16 %v3346
    %v3355 = vunpack.c.h.bf16 %v3346
    %v3356 = vunpack.c.l.bf16 %v3347
    %v3357 = vunpack.c.h.bf16 %v3347
    %v3358 = vunpack.c.l.bf16 %v3348
    %v3359 = vunpack.c.h.bf16 %v3348
    %v3360 = vunpack.c.l.bf16 %v3349
    %v3361 = vunpack.c.h.bf16 %v3349
    %v3362 = vunpack.c.l.bf16 %v3350
    %v3363 = vunpack.c.h.bf16 %v3350
    %v3364 = vunpack.c.l.bf16 %v3351
    %v3365 = vunpack.c.h.bf16 %v3351
    %v3366 = vunpack.c.l.bf16 %v3352
    %v3367 = vunpack.c.h.bf16 %v3352
    %v3368 = vunpack.c.l.bf16 %v3353
    %v3369 = vunpack.c.h.bf16 %v3353
    %v3370 = vadd.f32 %v3329, %v3354
    %v3371 = vadd.f32 %v3330, %v3355
    %v3372 = vadd.f32 %v3331, %v3356
    %v3373 = vadd.f32 %v3332, %v3357
    %v3374 = vadd.f32 %v3333, %v3358
    %v3375 = vadd.f32 %v3334, %v3359
    %v3376 = vadd.f32 %v3335, %v3360
    %v3377 = vadd.f32 %v3336, %v3361
    %v3378 = vadd.f32 %v3337, %v3362
    %v3379 = vadd.f32 %v3338, %v3363
    %v3380 = vadd.f32 %v3339, %v3364
    %v3381 = vadd.f32 %v3340, %v3365
    %v3382 = vadd.f32 %v3341, %v3366
    %v3383 = vadd.f32 %v3342, %v3367
    %v3384 = vadd.f32 %v3343, %v3368
    %v3385 = vadd.f32 %v3344, %v3369
    %v3386 = vmul.f32 %v3370, 0.2
    %v3387 = vmul.f32 %v3371, 0.2
    %v3388 = vmul.f32 %v3372, 0.2
    %v3389 = vmul.f32 %v3373, 0.2
    %v3390 = vmul.f32 %v3374, 0.2
    %v3391 = vmul.f32 %v3375, 0.2
    %v3392 = vmul.f32 %v3376, 0.2
    %v3393 = vmul.f32 %v3377, 0.2
    %v3394 = vmul.f32 %v3378, 0.2
    %v3395 = vmul.f32 %v3379, 0.2
    %v3396 = vmul.f32 %v3380, 0.2
    %v3397 = vmul.f32 %v3381, 0.2
    %v3398 = vmul.f32 %v3382, 0.2
    %v3399 = vmul.f32 %v3383, 0.2
    %v3400 = vmul.f32 %v3384, 0.2
    %v3401 = vmul.f32 %v3385, 0.2
    %v3402 = vmax.f32 %v3370, %v3386
    %v3403 = vmax.f32 %v3371, %v3387
    %v3404 = vmax.f32 %v3372, %v3388
    %v3405 = vmax.f32 %v3373, %v3389
    %v3406 = vmax.f32 %v3374, %v3390
    %v3407 = vmax.f32 %v3375, %v3391
    %v3408 = vmax.f32 %v3376, %v3392
    %v3409 = vmax.f32 %v3377, %v3393
    %v3410 = vmax.f32 %v3378, %v3394
    %v3411 = vmax.f32 %v3379, %v3395
    %v3412 = vmax.f32 %v3380, %v3396
    %v3413 = vmax.f32 %v3381, %v3397
    %v3414 = vmax.f32 %v3382, %v3398
    %v3415 = vmax.f32 %v3383, %v3399
    %v3416 = vmax.f32 %v3384, %v3400
    %v3417 = vmax.f32 %v3385, %v3401
    %3418 = vmax.xlane.f32.xlu0 %v3402
    %v3419 = vpop.xlane.xlu0 %3418
    %3420 = vmax.xlane.f32.xlu0 %v3403
    %v3421 = vpop.xlane.xlu0 %3420
    %3422 = vmax.xlane.f32.xlu0 %v3404
    %v3423 = vpop.xlane.xlu0 %3422
    %3424 = vmax.xlane.f32.xlu0 %v3405
    %v3425 = vpop.xlane.xlu0 %3424
    %3426 = vmax.xlane.f32.xlu0 %v3406
    %v3427 = vpop.xlane.xlu0 %3426
    %3428 = vmax.xlane.f32.xlu0 %v3407
    %v3429 = vpop.xlane.xlu0 %3428
    %3430 = vmax.xlane.f32.xlu0 %v3408
    %v3431 = vpop.xlane.xlu0 %3430
    %3432 = vmax.xlane.f32.xlu0 %v3409
    %v3433 = vpop.xlane.xlu0 %3432
    %3434 = vmax.xlane.f32.xlu0 %v3410
    %v3435 = vpop.xlane.xlu0 %3434
    %3436 = vmax.xlane.f32.xlu0 %v3411
    %v3437 = vpop.xlane.xlu0 %3436
    %3438 = vmax.xlane.f32.xlu0 %v3412
    %v3439 = vpop.xlane.xlu0 %3438
    %3440 = vmax.xlane.f32.xlu0 %v3413
    %v3441 = vpop.xlane.xlu0 %3440
    %3442 = vmax.xlane.f32.xlu0 %v3414
    %v3443 = vpop.xlane.xlu0 %3442
    %3444 = vmax.xlane.f32.xlu0 %v3415
    %v3445 = vpop.xlane.xlu0 %3444
    %3446 = vmax.xlane.f32.xlu0 %v3416
    %v3447 = vpop.xlane.xlu0 %3446
    %3448 = vmax.xlane.f32.xlu0 %v3417
    %v3449 = vpop.xlane.xlu0 %3448
    %v3450 = vsub.f32 %v3402, %v3419
    %v3451 = vsub.f32 %v3403, %v3421
    %v3452 = vsub.f32 %v3404, %v3423
    %v3453 = vsub.f32 %v3405, %v3425
    %v3454 = vsub.f32 %v3406, %v3427
    %v3455 = vsub.f32 %v3407, %v3429
    %v3456 = vsub.f32 %v3408, %v3431
    %v3457 = vsub.f32 %v3409, %v3433
    %v3458 = vsub.f32 %v3410, %v3435
    %v3459 = vsub.f32 %v3411, %v3437
    %v3460 = vsub.f32 %v3412, %v3439
    %v3461 = vsub.f32 %v3413, %v3441
    %v3462 = vsub.f32 %v3414, %v3443
    %v3463 = vsub.f32 %v3415, %v3445
    %v3464 = vsub.f32 %v3416, %v3447
    %v3465 = vsub.f32 %v3417, %v3449
    %v3466 = vmul.f32 %v3450, 1.442695
    %v3467 = vpow.pop %v3466
    %v3468 = vmul.f32 %v3451, 1.442695
    %v3469 = vpow.pop %v3468
    %v3470 = vmul.f32 %v3452, 1.442695
    %v3471 = vpow.pop %v3470
    %v3472 = vmul.f32 %v3453, 1.442695
    %v3473 = vpow.pop %v3472
    %v3474 = vmul.f32 %v3454, 1.442695
    %v3475 = vpow.pop %v3474
    %v3476 = vmul.f32 %v3455, 1.442695
    %v3477 = vpow.pop %v3476
    %v3478 = vmul.f32 %v3456, 1.442695
    %v3479 = vpow.pop %v3478
    %v3480 = vmul.f32 %v3457, 1.442695
    %v3481 = vpow.pop %v3480
    %v3482 = vmul.f32 %v3458, 1.442695
    %v3483 = vpow.pop %v3482
    %v3484 = vmul.f32 %v3459, 1.442695
    %v3485 = vpow.pop %v3484
    %v3486 = vmul.f32 %v3460, 1.442695
    %v3487 = vpow.pop %v3486
    %v3488 = vmul.f32 %v3461, 1.442695
    %v3489 = vpow.pop %v3488
    %v3490 = vmul.f32 %v3462, 1.442695
    %v3491 = vpow.pop %v3490
    %v3492 = vmul.f32 %v3463, 1.442695
    %v3493 = vpow.pop %v3492
    %v3494 = vmul.f32 %v3464, 1.442695
    %v3495 = vpow.pop %v3494
    %v3496 = vmul.f32 %v3465, 1.442695
    %v3497 = vpow.pop %v3496
    %3498 = vadd.xlane.f32.xlu0 %v3467
    %v3499 = vpop.xlane.xlu0 %3498
    %3500 = vadd.xlane.f32.xlu0 %v3469
    %v3501 = vpop.xlane.xlu0 %3500
    %3502 = vadd.xlane.f32.xlu0 %v3471
    %v3503 = vpop.xlane.xlu0 %3502
    %3504 = vadd.xlane.f32.xlu0 %v3473
    %v3505 = vpop.xlane.xlu0 %3504
    %3506 = vadd.xlane.f32.xlu0 %v3475
    %v3507 = vpop.xlane.xlu0 %3506
    %3508 = vadd.xlane.f32.xlu0 %v3477
    %v3509 = vpop.xlane.xlu0 %3508
    %3510 = vadd.xlane.f32.xlu0 %v3479
    %v3511 = vpop.xlane.xlu0 %3510
    %3512 = vadd.xlane.f32.xlu0 %v3481
    %v3513 = vpop.xlane.xlu0 %3512
    %3514 = vadd.xlane.f32.xlu0 %v3483
    %v3515 = vpop.xlane.xlu0 %3514
    %3516 = vadd.xlane.f32.xlu0 %v3485
    %v3517 = vpop.xlane.xlu0 %3516
    %3518 = vadd.xlane.f32.xlu0 %v3487
    %v3519 = vpop.xlane.xlu0 %3518
    %3520 = vadd.xlane.f32.xlu0 %v3489
    %v3521 = vpop.xlane.xlu0 %3520
    %3522 = vadd.xlane.f32.xlu0 %v3491
    %v3523 = vpop.xlane.xlu0 %3522
    %3524 = vadd.xlane.f32.xlu0 %v3493
    %v3525 = vpop.xlane.xlu0 %3524
    %3526 = vadd.xlane.f32.xlu0 %v3495
    %v3527 = vpop.xlane.xlu0 %3526
    %3528 = vadd.xlane.f32.xlu0 %v3497
    %v3529 = vpop.xlane.xlu0 %3528
    %v3530 = vrcp.pop %v3499
    %v3531 = vrcp.pop %v3501
    %v3532 = vrcp.pop %v3503
    %v3533 = vrcp.pop %v3505
    %v3534 = vrcp.pop %v3507
    %v3535 = vrcp.pop %v3509
    %v3536 = vrcp.pop %v3511
    %v3537 = vrcp.pop %v3513
    %v3538 = vrcp.pop %v3515
    %v3539 = vrcp.pop %v3517
    %v3540 = vrcp.pop %v3519
    %v3541 = vrcp.pop %v3521
    %v3542 = vrcp.pop %v3523
    %v3543 = vrcp.pop %v3525
    %v3544 = vrcp.pop %v3527
    %v3545 = vrcp.pop %v3529
    %v3546 = vmul.f32 %v3467, %v3530
    %v3547 = vmul.f32 %v3469, %v3531
    %v3548 = vmul.f32 %v3471, %v3532
    %v3549 = vmul.f32 %v3473, %v3533
    %v3550 = vmul.f32 %v3475, %v3534
    %v3551 = vmul.f32 %v3477, %v3535
    %v3552 = vmul.f32 %v3479, %v3536
    %v3553 = vmul.f32 %v3481, %v3537
    %v3554 = vmul.f32 %v3483, %v3538
    %v3555 = vmul.f32 %v3485, %v3539
    %v3556 = vmul.f32 %v3487, %v3540
    %v3557 = vmul.f32 %v3489, %v3541
    %v3558 = vmul.f32 %v3491, %v3542
    %v3559 = vmul.f32 %v3493, %v3543
    %v3560 = vmul.f32 %v3495, %v3544
    %v3561 = vmul.f32 %v3497, %v3545
    %v3562 = vpack.c.bf16 %v3547, %v3546
    %v3563 = vpack.c.bf16 %v3549, %v3548
    %v3564 = vpack.c.bf16 %v3551, %v3550
    %v3565 = vpack.c.bf16 %v3553, %v3552
    %v3566 = vpack.c.bf16 %v3555, %v3554
    %v3567 = vpack.c.bf16 %v3557, %v3556
    %v3568 = vpack.c.bf16 %v3559, %v3558
    %v3569 = vpack.c.bf16 %v3561, %v3560
    %3570 = vmatprep.subr.bf16.mxu0 0
    %3571 = vmatpush1.bf16.msra.mxu0 %v2647
    %3572 = vmatprep.subr.bf16.mxu0 0
    %3573 = vmatpush1.bf16.msra.mxu0 %v2648
    %3574 = vmatprep.subr.bf16.mxu0 0
    %3575 = vmatpush1.bf16.msra.mxu0 %v2649
    %3576 = vmatprep.subr.bf16.mxu0 0
    %3577 = vmatpush1.bf16.msra.mxu0 %v2650
    %3578 = vmatprep.subr.bf16.mxu0 0
    %3579 = vmatpush1.bf16.msra.mxu0 %v2651
    %3580 = vmatprep.subr.bf16.mxu0 0
    %3581 = vmatpush1.bf16.msra.mxu0 %v2652
    %3582 = vmatprep.subr.bf16.mxu0 0
    %3583 = vmatpush1.bf16.msra.mxu0 %v2653
    %3584 = vmatprep.subr.bf16.mxu0 0
    %3585 = vmatpush1.bf16.msra.mxu0 %v2654
    %3586 = vmatprep.subr.bf16.mxu0 0
    %3587 = vmatpush1.bf16.msra.mxu0 0
    %3588 = vmatprep.subr.bf16.mxu0 0
    %3589 = vmatpush1.bf16.msra.mxu0 0
    %3590 = vmatprep.subr.bf16.mxu0 0
    %3591 = vmatpush1.bf16.msra.mxu0 0
    %3592 = vmatprep.subr.bf16.mxu0 0
    %3593 = vmatpush1.bf16.msra.mxu0 0
    %3594 = vmatprep.subr.bf16.mxu0 0
    %3595 = vmatpush1.bf16.msra.mxu0 0
    %3596 = vmatprep.subr.bf16.mxu0 0
    %3597 = vmatpush1.bf16.msra.mxu0 0
    %3598 = vmatprep.subr.bf16.mxu0 0
    %3599 = vmatpush1.bf16.msra.mxu0 0
    %3600 = vmatprep.subr.bf16.mxu0 0
    %3601 = vmatpush1.bf16.msra.mxu0 0
    %3602 = vmatprep.mubr.bf16.mxu0 0
    %3603 = vmatmul.mubr.bf16.gmra.mrb[0].mxu0 %v3562
    %v3604 = vpop.f32.mrb[0].mxu0
    %v3605 = vadd.f32 0.0, %v3604
    %v3606 = vpop.f32.mrb[0].mxu0
    %v3607 = vpop.f32.mrb[0].mxu0
    %v3608 = vadd.f32 0.0, %v3607
    %v3609 = vpop.f32.mrb[0].mxu0
    %3610 = vmatprep.mubr.bf16.mxu0 0
    %3611 = vmatmul.mubr.bf16.gmra.mrb[0].mxu0 %v3563
    %v3612 = vpop.f32.mrb[0].mxu0
    %v3613 = vadd.f32 0.0, %v3612
    %v3614 = vpop.f32.mrb[0].mxu0
    %v3615 = vpop.f32.mrb[0].mxu0
    %v3616 = vadd.f32 0.0, %v3615
    %v3617 = vpop.f32.mrb[0].mxu0
    %3618 = vmatprep.mubr.bf16.mxu0 0
    %3619 = vmatmul.mubr.bf16.gmra.mrb[0].mxu0 %v3564
    %v3620 = vpop.f32.mrb[0].mxu0
    %v3621 = vadd.f32 0.0, %v3620
    %v3622 = vpop.f32.mrb[0].mxu0
    %v3623 = vpop.f32.mrb[0].mxu0
    %v3624 = vadd.f32 0.0, %v3623
    %v3625 = vpop.f32.mrb[0].mxu0
    %3626 = vmatprep.mubr.bf16.mxu0 0
    %3627 = vmatmul.mubr.bf16.gmra.mrb[0].mxu0 %v3565
    %v3628 = vpop.f32.mrb[0].mxu0
    %v3629 = vadd.f32 0.0, %v3628
    %v3630 = vpop.f32.mrb[0].mxu0
    %v3631 = vpop.f32.mrb[0].mxu0
    %v3632 = vadd.f32 0.0, %v3631
    %v3633 = vpop.f32.mrb[0].mxu0
    %3634 = vmatprep.mubr.bf16.mxu0 0
    %3635 = vmatmul.mubr.bf16.gmra.mrb[0].mxu0 %v3566
    %v3636 = vpop.f32.mrb[0].mxu0
    %v3637 = vadd.f32 0.0, %v3636
    %v3638 = vpop.f32.mrb[0].mxu0
    %v3639 = vpop.f32.mrb[0].mxu0
    %v3640 = vadd.f32 0.0, %v3639
    %v3641 = vpop.f32.mrb[0].mxu0
    %3642 = vmatprep.mubr.bf16.mxu0 0
    %3643 = vmatmul.mubr.bf16.gmra.mrb[0].mxu0 %v3567
    %v3644 = vpop.f32.mrb[0].mxu0
    %v3645 = vadd.f32 0.0, %v3644
    %v3646 = vpop.f32.mrb[0].mxu0
    %v3647 = vpop.f32.mrb[0].mxu0
    %v3648 = vadd.f32 0.0, %v3647
    %v3649 = vpop.f32.mrb[0].mxu0
    %3650 = vmatprep.mubr.bf16.mxu0 0
    %3651 = vmatmul.mubr.bf16.gmra.mrb[0].mxu0 %v3568
    %v3652 = vpop.f32.mrb[0].mxu0
    %v3653 = vadd.f32 0.0, %v3652
    %v3654 = vpop.f32.mrb[0].mxu0
    %v3655 = vpop.f32.mrb[0].mxu0
    %v3656 = vadd.f32 0.0, %v3655
    %v3657 = vpop.f32.mrb[0].mxu0
    %3658 = vmatprep.mubr.bf16.mxu0 0
    %3659 = vmatmul.mubr.bf16.gmra.mrb[0].mxu0 %v3569
    %v3660 = vpop.f32.mrb[0].mxu0
    %v3661 = vadd.f32 0.0, %v3660
    %v3662 = vpop.f32.mrb[0].mxu0
    %v3663 = vpop.f32.mrb[0].mxu0
    %v3664 = vadd.f32 0.0, %v3663
    %v3665 = vpop.f32.mrb[0].mxu0
    %3666 = vdwg.mxu0
    %3667 = vset.pattern.permute.xlu0 2
    %3668 = vperm.xlu0 %3667, %v2738
    %v3669 = vpop.permute.xlu0 %3668
    %3671 = vset.pattern.permute.xlu0 2
    %3672 = vperm.xlu0 %3671, %v2741
    %v3673 = vpop.permute.xlu0 %3672
    %3675 = vset.pattern.permute.xlu0 2
    %3676 = vperm.xlu0 %3675, %v2746
    %v3677 = vpop.permute.xlu0 %3676
    %3679 = vset.pattern.permute.xlu0 2
    %3680 = vperm.xlu0 %3679, %v2749
    %v3681 = vpop.permute.xlu0 %3680
    %3683 = vset.pattern.permute.xlu0 2
    %3684 = vperm.xlu0 %3683, %v2754
    %v3685 = vpop.permute.xlu0 %3684
    %3687 = vset.pattern.permute.xlu0 2
    %3688 = vperm.xlu0 %3687, %v2757
    %v3689 = vpop.permute.xlu0 %3688
    %3691 = vset.pattern.permute.xlu0 2
    %3692 = vperm.xlu0 %3691, %v2762
    %v3693 = vpop.permute.xlu0 %3692
    %3695 = vset.pattern.permute.xlu0 2
    %3696 = vperm.xlu0 %3695, %v2765
    %v3697 = vpop.permute.xlu0 %3696
    %3699 = vset.pattern.permute.xlu0 2
    %3700 = vperm.xlu0 %3699, %v2770
    %v3701 = vpop.permute.xlu0 %3700
    %3703 = vset.pattern.permute.xlu0 2
    %3704 = vperm.xlu0 %3703, %v2773
    %v3705 = vpop.permute.xlu0 %3704
    %3707 = vset.pattern.permute.xlu0 2
    %3708 = vperm.xlu0 %3707, %v2778
    %v3709 = vpop.permute.xlu0 %3708
    %3711 = vset.pattern.permute.xlu0 2
    %3712 = vperm.xlu0 %3711, %v2781
    %v3713 = vpop.permute.xlu0 %3712
    %3715 = vset.pattern.permute.xlu0 2
    %3716 = vperm.xlu0 %3715, %v2786
    %v3717 = vpop.permute.xlu0 %3716
    %3719 = vset.pattern.permute.xlu0 2
    %3720 = vperm.xlu0 %3719, %v2789
    %v3721 = vpop.permute.xlu0 %3720
    %3723 = vset.pattern.permute.xlu0 2
    %3724 = vperm.xlu0 %3723, %v2794
    %v3725 = vpop.permute.xlu0 %3724
    %3727 = vset.pattern.permute.xlu0 2
    %3728 = vperm.xlu0 %3727, %v2797
    %v3729 = vpop.permute.xlu0 %3728
    %v3731 = vlaneseq
    %v3732 = vshrl.u32 %v3731, 7
    %v3733 = vsub.s32 2, %v3732
    %v3734 = vrot.slane %v2835, %v3733
    %v3735 = vadd.f32 %v3669, %v3734
    %v3736 = vadd.f32 %v3673, %v3734
    %v3737 = vadd.f32 %v3677, %v3734
    %v3738 = vadd.f32 %v3681, %v3734
    %v3739 = vadd.f32 %v3685, %v3734
    %v3740 = vadd.f32 %v3689, %v3734
    %v3741 = vadd.f32 %v3693, %v3734
    %v3742 = vadd.f32 %v3697, %v3734
    %v3743 = vadd.f32 %v3701, %v3734
    %v3744 = vadd.f32 %v3705, %v3734
    %v3745 = vadd.f32 %v3709, %v3734
    %v3746 = vadd.f32 %v3713, %v3734
    %v3747 = vadd.f32 %v3717, %v3734
    %v3748 = vadd.f32 %v3721, %v3734
    %v3749 = vadd.f32 %v3725, %v3734
    %v3750 = vadd.f32 %v3729, %v3734
    %s3751 = scalar_lea.vmem [#allocation4], 128
    %v3752 = vld [vmem:[%s3751] sm:$0xff]
    %v3753 = vld [vmem:[%s3751 + $0x8] sm:$0xff]
    %v3754 = vld [vmem:[%s3751 + $0x10] sm:$0xff]
    %v3755 = vld [vmem:[%s3751 + $0x18] sm:$0xff]
    %v3756 = vld [vmem:[%s3751 + $0x20] sm:$0xff]
    %v3757 = vld [vmem:[%s3751 + $0x28] sm:$0xff]
    %v3758 = vld [vmem:[%s3751 + $0x30] sm:$0xff]
    %v3759 = vld [vmem:[%s3751 + $0x38] sm:$0xff]
    %v3760 = vunpack.c.l.bf16 %v3752
    %v3761 = vunpack.c.h.bf16 %v3752
    %v3762 = vunpack.c.l.bf16 %v3753
    %v3763 = vunpack.c.h.bf16 %v3753
    %v3764 = vunpack.c.l.bf16 %v3754
    %v3765 = vunpack.c.h.bf16 %v3754
    %v3766 = vunpack.c.l.bf16 %v3755
    %v3767 = vunpack.c.h.bf16 %v3755
    %v3768 = vunpack.c.l.bf16 %v3756
    %v3769 = vunpack.c.h.bf16 %v3756
    %v3770 = vunpack.c.l.bf16 %v3757
    %v3771 = vunpack.c.h.bf16 %v3757
    %v3772 = vunpack.c.l.bf16 %v3758
    %v3773 = vunpack.c.h.bf16 %v3758
    %v3774 = vunpack.c.l.bf16 %v3759
    %v3775 = vunpack.c.h.bf16 %v3759
    %v3776 = vadd.f32 %v3735, %v3760
    %v3777 = vadd.f32 %v3736, %v3761
    %v3778 = vadd.f32 %v3737, %v3762
    %v3779 = vadd.f32 %v3738, %v3763
    %v3780 = vadd.f32 %v3739, %v3764
    %v3781 = vadd.f32 %v3740, %v3765
    %v3782 = vadd.f32 %v3741, %v3766
    %v3783 = vadd.f32 %v3742, %v3767
    %v3784 = vadd.f32 %v3743, %v3768
    %v3785 = vadd.f32 %v3744, %v3769
    %v3786 = vadd.f32 %v3745, %v3770
    %v3787 = vadd.f32 %v3746, %v3771
    %v3788 = vadd.f32 %v3747, %v3772
    %v3789 = vadd.f32 %v3748, %v3773
    %v3790 = vadd.f32 %v3749, %v3774
    %v3791 = vadd.f32 %v3750, %v3775
    %v3792 = vmul.f32 %v3776, 0.2
    %v3793 = vmul.f32 %v3777, 0.2
    %v3794 = vmul.f32 %v3778, 0.2
    %v3795 = vmul.f32 %v3779, 0.2
    %v3796 = vmul.f32 %v3780, 0.2
    %v3797 = vmul.f32 %v3781, 0.2
    %v3798 = vmul.f32 %v3782, 0.2
    %v3799 = vmul.f32 %v3783, 0.2
    %v3800 = vmul.f32 %v3784, 0.2
    %v3801 = vmul.f32 %v3785, 0.2
    %v3802 = vmul.f32 %v3786, 0.2
    %v3803 = vmul.f32 %v3787, 0.2
    %v3804 = vmul.f32 %v3788, 0.2
    %v3805 = vmul.f32 %v3789, 0.2
    %v3806 = vmul.f32 %v3790, 0.2
    %v3807 = vmul.f32 %v3791, 0.2
    %v3808 = vmax.f32 %v3776, %v3792
    %v3809 = vmax.f32 %v3777, %v3793
    %v3810 = vmax.f32 %v3778, %v3794
    %v3811 = vmax.f32 %v3779, %v3795
    %v3812 = vmax.f32 %v3780, %v3796
    %v3813 = vmax.f32 %v3781, %v3797
    %v3814 = vmax.f32 %v3782, %v3798
    %v3815 = vmax.f32 %v3783, %v3799
    %v3816 = vmax.f32 %v3784, %v3800
    %v3817 = vmax.f32 %v3785, %v3801
    %v3818 = vmax.f32 %v3786, %v3802
    %v3819 = vmax.f32 %v3787, %v3803
    %v3820 = vmax.f32 %v3788, %v3804
    %v3821 = vmax.f32 %v3789, %v3805
    %v3822 = vmax.f32 %v3790, %v3806
    %v3823 = vmax.f32 %v3791, %v3807
    %3824 = vmax.xlane.f32.xlu0 %v3808
    %v3825 = vpop.xlane.xlu0 %3824
    %3826 = vmax.xlane.f32.xlu0 %v3809
    %v3827 = vpop.xlane.xlu0 %3826
    %3828 = vmax.xlane.f32.xlu0 %v3810
    %v3829 = vpop.xlane.xlu0 %3828
    %3830 = vmax.xlane.f32.xlu0 %v3811
    %v3831 = vpop.xlane.xlu0 %3830
    %3832 = vmax.xlane.f32.xlu0 %v3812
    %v3833 = vpop.xlane.xlu0 %3832
    %3834 = vmax.xlane.f32.xlu0 %v3813
    %v3835 = vpop.xlane.xlu0 %3834
    %3836 = vmax.xlane.f32.xlu0 %v3814
    %v3837 = vpop.xlane.xlu0 %3836
    %3838 = vmax.xlane.f32.xlu0 %v3815
    %v3839 = vpop.xlane.xlu0 %3838
    %3840 = vmax.xlane.f32.xlu0 %v3816
    %v3841 = vpop.xlane.xlu0 %3840
    %3842 = vmax.xlane.f32.xlu0 %v3817
    %v3843 = vpop.xlane.xlu0 %3842
    %3844 = vmax.xlane.f32.xlu0 %v3818
    %v3845 = vpop.xlane.xlu0 %3844
    %3846 = vmax.xlane.f32.xlu0 %v3819
    %v3847 = vpop.xlane.xlu0 %3846
    %3848 = vmax.xlane.f32.xlu0 %v3820
    %v3849 = vpop.xlane.xlu0 %3848
    %3850 = vmax.xlane.f32.xlu0 %v3821
    %v3851 = vpop.xlane.xlu0 %3850
    %3852 = vmax.xlane.f32.xlu0 %v3822
    %v3853 = vpop.xlane.xlu0 %3852
    %3854 = vmax.xlane.f32.xlu0 %v3823
    %v3855 = vpop.xlane.xlu0 %3854
    %v3856 = vsub.f32 %v3808, %v3825
    %v3857 = vsub.f32 %v3809, %v3827
    %v3858 = vsub.f32 %v3810, %v3829
    %v3859 = vsub.f32 %v3811, %v3831
    %v3860 = vsub.f32 %v3812, %v3833
    %v3861 = vsub.f32 %v3813, %v3835
    %v3862 = vsub.f32 %v3814, %v3837
    %v3863 = vsub.f32 %v3815, %v3839
    %v3864 = vsub.f32 %v3816, %v3841
    %v3865 = vsub.f32 %v3817, %v3843
    %v3866 = vsub.f32 %v3818, %v3845
    %v3867 = vsub.f32 %v3819, %v3847
    %v3868 = vsub.f32 %v3820, %v3849
    %v3869 = vsub.f32 %v3821, %v3851
    %v3870 = vsub.f32 %v3822, %v3853
    %v3871 = vsub.f32 %v3823, %v3855
    %v3872 = vmul.f32 %v3856, 1.442695
    %v3873 = vpow.pop %v3872
    %v3874 = vmul.f32 %v3857, 1.442695
    %v3875 = vpow.pop %v3874
    %v3876 = vmul.f32 %v3858, 1.442695
    %v3877 = vpow.pop %v3876
    %v3878 = vmul.f32 %v3859, 1.442695
    %v3879 = vpow.pop %v3878
    %v3880 = vmul.f32 %v3860, 1.442695
    %v3881 = vpow.pop %v3880
    %v3882 = vmul.f32 %v3861, 1.442695
    %v3883 = vpow.pop %v3882
    %v3884 = vmul.f32 %v3862, 1.442695
    %v3885 = vpow.pop %v3884
    %v3886 = vmul.f32 %v3863, 1.442695
    %v3887 = vpow.pop %v3886
    %v3888 = vmul.f32 %v3864, 1.442695
    %v3889 = vpow.pop %v3888
    %v3890 = vmul.f32 %v3865, 1.442695
    %v3891 = vpow.pop %v3890
    %v3892 = vmul.f32 %v3866, 1.442695
    %v3893 = vpow.pop %v3892
    %v3894 = vmul.f32 %v3867, 1.442695
    %v3895 = vpow.pop %v3894
    %v3896 = vmul.f32 %v3868, 1.442695
    %v3897 = vpow.pop %v3896
    %v3898 = vmul.f32 %v3869, 1.442695
    %v3899 = vpow.pop %v3898
    %v3900 = vmul.f32 %v3870, 1.442695
    %v3901 = vpow.pop %v3900
    %v3902 = vmul.f32 %v3871, 1.442695
    %v3903 = vpow.pop %v3902
    %3904 = vadd.xlane.f32.xlu0 %v3873
    %v3905 = vpop.xlane.xlu0 %3904
    %3906 = vadd.xlane.f32.xlu0 %v3875
    %v3907 = vpop.xlane.xlu0 %3906
    %3908 = vadd.xlane.f32.xlu0 %v3877
    %v3909 = vpop.xlane.xlu0 %3908
    %3910 = vadd.xlane.f32.xlu0 %v3879
    %v3911 = vpop.xlane.xlu0 %3910
    %3912 = vadd.xlane.f32.xlu0 %v3881
    %v3913 = vpop.xlane.xlu0 %3912
    %3914 = vadd.xlane.f32.xlu0 %v3883
    %v3915 = vpop.xlane.xlu0 %3914
    %3916 = vadd.xlane.f32.xlu0 %v3885
    %v3917 = vpop.xlane.xlu0 %3916
    %3918 = vadd.xlane.f32.xlu0 %v3887
    %v3919 = vpop.xlane.xlu0 %3918
    %3920 = vadd.xlane.f32.xlu0 %v3889
    %v3921 = vpop.xlane.xlu0 %3920
    %3922 = vadd.xlane.f32.xlu0 %v3891
    %v3923 = vpop.xlane.xlu0 %3922
    %3924 = vadd.xlane.f32.xlu0 %v3893
    %v3925 = vpop.xlane.xlu0 %3924
    %3926 = vadd.xlane.f32.xlu0 %v3895
    %v3927 = vpop.xlane.xlu0 %3926
    %3928 = vadd.xlane.f32.xlu0 %v3897
    %v3929 = vpop.xlane.xlu0 %3928
    %3930 = vadd.xlane.f32.xlu0 %v3899
    %v3931 = vpop.xlane.xlu0 %3930
    %3932 = vadd.xlane.f32.xlu0 %v3901
    %v3933 = vpop.xlane.xlu0 %3932
    %3934 = vadd.xlane.f32.xlu0 %v3903
    %v3935 = vpop.xlane.xlu0 %3934
    %v3936 = vrcp.pop %v3905
    %v3937 = vrcp.pop %v3907
    %v3938 = vrcp.pop %v3909
    %v3939 = vrcp.pop %v3911
    %v3940 = vrcp.pop %v3913
    %v3941 = vrcp.pop %v3915
    %v3942 = vrcp.pop %v3917
    %v3943 = vrcp.pop %v3919
    %v3944 = vrcp.pop %v3921
    %v3945 = vrcp.pop %v3923
    %v3946 = vrcp.pop %v3925
    %v3947 = vrcp.pop %v3927
    %v3948 = vrcp.pop %v3929
    %v3949 = vrcp.pop %v3931
    %v3950 = vrcp.pop %v3933
    %v3951 = vrcp.pop %v3935
    %v3952 = vmul.f32 %v3873, %v3936
    %v3953 = vmul.f32 %v3875, %v3937
    %v3954 = vmul.f32 %v3877, %v3938
    %v3955 = vmul.f32 %v3879, %v3939
    %v3956 = vmul.f32 %v3881, %v3940
    %v3957 = vmul.f32 %v3883, %v3941
    %v3958 = vmul.f32 %v3885, %v3942
    %v3959 = vmul.f32 %v3887, %v3943
    %v3960 = vmul.f32 %v3889, %v3944
    %v3961 = vmul.f32 %v3891, %v3945
    %v3962 = vmul.f32 %v3893, %v3946
    %v3963 = vmul.f32 %v3895, %v3947
    %v3964 = vmul.f32 %v3897, %v3948
    %v3965 = vmul.f32 %v3899, %v3949
    %v3966 = vmul.f32 %v3901, %v3950
    %v3967 = vmul.f32 %v3903, %v3951
    %v3968 = vpack.c.bf16 %v3953, %v3952
    %v3969 = vpack.c.bf16 %v3955, %v3954
    %v3970 = vpack.c.bf16 %v3957, %v3956
    %v3971 = vpack.c.bf16 %v3959, %v3958
    %v3972 = vpack.c.bf16 %v3961, %v3960
    %v3973 = vpack.c.bf16 %v3963, %v3962
    %v3974 = vpack.c.bf16 %v3965, %v3964
    %v3975 = vpack.c.bf16 %v3967, %v3966
    %3976 = vmatprep.subr.bf16.mxu0 0
    %3977 = vmatpush1.bf16.msra.mxu0 %v2647
    %3978 = vmatprep.subr.bf16.mxu0 0
    %3979 = vmatpush1.bf16.msra.mxu0 %v2648
    %3980 = vmatprep.subr.bf16.mxu0 0
    %3981 = vmatpush1.bf16.msra.mxu0 %v2649
    %3982 = vmatprep.subr.bf16.mxu0 0
    %3983 = vmatpush1.bf16.msra.mxu0 %v2650
    %3984 = vmatprep.subr.bf16.mxu0 0
    %3985 = vmatpush1.bf16.msra.mxu0 %v2651
    %3986 = vmatprep.subr.bf16.mxu0 0
    %3987 = vmatpush1.bf16.msra.mxu0 %v2652
    %3988 = vmatprep.subr.bf16.mxu0 0
    %3989 = vmatpush1.bf16.msra.mxu0 %v2653
    %3990 = vmatprep.subr.bf16.mxu0 0
    %3991 = vmatpush1.bf16.msra.mxu0 %v2654
    %3992 = vmatprep.subr.bf16.mxu0 0
    %3993 = vmatpush1.bf16.msra.mxu0 0
    %3994 = vmatprep.subr.bf16.mxu0 0
    %3995 = vmatpush1.bf16.msra.mxu0 0
    %3996 = vmatprep.subr.bf16.mxu0 0
    %3997 = vmatpush1.bf16.msra.mxu0 0
    %3998 = vmatprep.subr.bf16.mxu0 0
    %3999 = vmatpush1.bf16.msra.mxu0 0
    %4000 = vmatprep.subr.bf16.mxu0 0
    %4001 = vmatpush1.bf16.msra.mxu0 0
    %4002 = vmatprep.subr.bf16.mxu0 0
    %4003 = vmatpush1.bf16.msra.mxu0 0
    %4004 = vmatprep.subr.bf16.mxu0 0
    %4005 = vmatpush1.bf16.msra.mxu0 0
    %4006 = vmatprep.subr.bf16.mxu0 0
    %4007 = vmatpush1.bf16.msra.mxu0 0
    %4008 = vmatprep.mubr.bf16.mxu0 0
    %4009 = vmatmul.mubr.bf16.gmra.mrb[0].mxu0 %v3968
    %v4010 = vpop.f32.mrb[0].mxu0
    %v4011 = vadd.f32 0.0, %v4010
    %v4012 = vpop.f32.mrb[0].mxu0
    %v4013 = vpop.f32.mrb[0].mxu0
    %v4014 = vadd.f32 0.0, %v4013
    %v4015 = vpop.f32.mrb[0].mxu0
    %4016 = vmatprep.mubr.bf16.mxu0 0
    %4017 = vmatmul.mubr.bf16.gmra.mrb[0].mxu0 %v3969
    %v4018 = vpop.f32.mrb[0].mxu0
    %v4019 = vadd.f32 0.0, %v4018
    %v4020 = vpop.f32.mrb[0].mxu0
    %v4021 = vpop.f32.mrb[0].mxu0
    %v4022 = vadd.f32 0.0, %v4021
    %v4023 = vpop.f32.mrb[0].mxu0
    %4024 = vmatprep.mubr.bf16.mxu0 0
    %4025 = vmatmul.mubr.bf16.gmra.mrb[0].mxu0 %v3970
    %v4026 = vpop.f32.mrb[0].mxu0
    %v4027 = vadd.f32 0.0, %v4026
    %v4028 = vpop.f32.mrb[0].mxu0
    %v4029 = vpop.f32.mrb[0].mxu0
    %v4030 = vadd.f32 0.0, %v4029
    %v4031 = vpop.f32.mrb[0].mxu0
    %4032 = vmatprep.mubr.bf16.mxu0 0
    %4033 = vmatmul.mubr.bf16.gmra.mrb[0].mxu0 %v3971
    %v4034 = vpop.f32.mrb[0].mxu0
    %v4035 = vadd.f32 0.0, %v4034
    %v4036 = vpop.f32.mrb[0].mxu0
    %v4037 = vpop.f32.mrb[0].mxu0
    %v4038 = vadd.f32 0.0, %v4037
    %v4039 = vpop.f32.mrb[0].mxu0
    %4040 = vmatprep.mubr.bf16.mxu0 0
    %4041 = vmatmul.mubr.bf16.gmra.mrb[0].mxu0 %v3972
    %v4042 = vpop.f32.mrb[0].mxu0
    %v4043 = vadd.f32 0.0, %v4042
    %v4044 = vpop.f32.mrb[0].mxu0
    %v4045 = vpop.f32.mrb[0].mxu0
    %v4046 = vadd.f32 0.0, %v4045
    %v4047 = vpop.f32.mrb[0].mxu0
    %4048 = vmatprep.mubr.bf16.mxu0 0
    %4049 = vmatmul.mubr.bf16.gmra.mrb[0].mxu0 %v3973
    %v4050 = vpop.f32.mrb[0].mxu0
    %v4051 = vadd.f32 0.0, %v4050
    %v4052 = vpop.f32.mrb[0].mxu0
    %v4053 = vpop.f32.mrb[0].mxu0
    %v4054 = vadd.f32 0.0, %v4053
    %v4055 = vpop.f32.mrb[0].mxu0
    %4056 = vmatprep.mubr.bf16.mxu0 0
    %4057 = vmatmul.mubr.bf16.gmra.mrb[0].mxu0 %v3974
    %v4058 = vpop.f32.mrb[0].mxu0
    %v4059 = vadd.f32 0.0, %v4058
    %v4060 = vpop.f32.mrb[0].mxu0
    %v4061 = vpop.f32.mrb[0].mxu0
    %v4062 = vadd.f32 0.0, %v4061
    %v4063 = vpop.f32.mrb[0].mxu0
    %4064 = vmatprep.mubr.bf16.mxu0 0
    %4065 = vmatmul.mubr.bf16.gmra.mrb[0].mxu0 %v3975
    %v4066 = vpop.f32.mrb[0].mxu0
    %v4067 = vadd.f32 0.0, %v4066
    %v4068 = vpop.f32.mrb[0].mxu0
    %v4069 = vpop.f32.mrb[0].mxu0
    %v4070 = vadd.f32 0.0, %v4069
    %v4071 = vpop.f32.mrb[0].mxu0
    %4072 = vdwg.mxu0
    %4073 = vset.pattern.permute.xlu0 3
    %4074 = vperm.xlu0 %4073, %v2738
    %v4075 = vpop.permute.xlu0 %4074
    %4077 = vset.pattern.permute.xlu0 3
    %4078 = vperm.xlu0 %4077, %v2741
    %v4079 = vpop.permute.xlu0 %4078
    %4081 = vset.pattern.permute.xlu0 3
    %4082 = vperm.xlu0 %4081, %v2746
    %v4083 = vpop.permute.xlu0 %4082
    %4085 = vset.pattern.permute.xlu0 3
    %4086 = vperm.xlu0 %4085, %v2749
    %v4087 = vpop.permute.xlu0 %4086
    %4089 = vset.pattern.permute.xlu0 3
    %4090 = vperm.xlu0 %4089, %v2754
    %v4091 = vpop.permute.xlu0 %4090
    %4093 = vset.pattern.permute.xlu0 3
    %4094 = vperm.xlu0 %4093, %v2757
    %v4095 = vpop.permute.xlu0 %4094
    %4097 = vset.pattern.permute.xlu0 3
    %4098 = vperm.xlu0 %4097, %v2762
    %v4099 = vpop.permute.xlu0 %4098
    %4101 = vset.pattern.permute.xlu0 3
    %4102 = vperm.xlu0 %4101, %v2765
    %v4103 = vpop.permute.xlu0 %4102
    %4105 = vset.pattern.permute.xlu0 3
    %4106 = vperm.xlu0 %4105, %v2770
    %v4107 = vpop.permute.xlu0 %4106
    %4109 = vset.pattern.permute.xlu0 3
    %4110 = vperm.xlu0 %4109, %v2773
    %v4111 = vpop.permute.xlu0 %4110
    %4113 = vset.pattern.permute.xlu0 3
    %4114 = vperm.xlu0 %4113, %v2778
    %v4115 = vpop.permute.xlu0 %4114
    %4117 = vset.pattern.permute.xlu0 3
    %4118 = vperm.xlu0 %4117, %v2781
    %v4119 = vpop.permute.xlu0 %4118
    %4121 = vset.pattern.permute.xlu0 3
    %4122 = vperm.xlu0 %4121, %v2786
    %v4123 = vpop.permute.xlu0 %4122
    %4125 = vset.pattern.permute.xlu0 3
    %4126 = vperm.xlu0 %4125, %v2789
    %v4127 = vpop.permute.xlu0 %4126
    %4129 = vset.pattern.permute.xlu0 3
    %4130 = vperm.xlu0 %4129, %v2794
    %v4131 = vpop.permute.xlu0 %4130
    %4133 = vset.pattern.permute.xlu0 3
    %4134 = vperm.xlu0 %4133, %v2797
    %v4135 = vpop.permute.xlu0 %4134
    %v4137 = vlaneseq
    %v4138 = vshrl.u32 %v4137, 7
    %v4139 = vsub.s32 3, %v4138
    %v4140 = vrot.slane %v2835, %v4139
    %v4141 = vadd.f32 %v4075, %v4140
    %v4142 = vadd.f32 %v4079, %v4140
    %v4143 = vadd.f32 %v4083, %v4140
    %v4144 = vadd.f32 %v4087, %v4140
    %v4145 = vadd.f32 %v4091, %v4140
    %v4146 = vadd.f32 %v4095, %v4140
    %v4147 = vadd.f32 %v4099, %v4140
    %v4148 = vadd.f32 %v4103, %v4140
    %v4149 = vadd.f32 %v4107, %v4140
    %v4150 = vadd.f32 %v4111, %v4140
    %v4151 = vadd.f32 %v4115, %v4140
    %v4152 = vadd.f32 %v4119, %v4140
    %v4153 = vadd.f32 %v4123, %v4140
    %v4154 = vadd.f32 %v4127, %v4140
    %v4155 = vadd.f32 %v4131, %v4140
    %v4156 = vadd.f32 %v4135, %v4140
    %s4157 = scalar_lea.vmem [#allocation4], 192
    %v4158 = vld [vmem:[%s4157] sm:$0xff]
    %v4159 = vld [vmem:[%s4157 + $0x8] sm:$0xff]
    %v4160 = vld [vmem:[%s4157 + $0x10] sm:$0xff]
    %v4161 = vld [vmem:[%s4157 + $0x18] sm:$0xff]
    %v4162 = vld [vmem:[%s4157 + $0x20] sm:$0xff]
    %v4163 = vld [vmem:[%s4157 + $0x28] sm:$0xff]
    %v4164 = vld [vmem:[%s4157 + $0x30] sm:$0xff]
    %v4165 = vld [vmem:[%s4157 + $0x38] sm:$0xff]
    %v4166 = vunpack.c.l.bf16 %v4158
    %v4167 = vunpack.c.h.bf16 %v4158
    %v4168 = vunpack.c.l.bf16 %v4159
    %v4169 = vunpack.c.h.bf16 %v4159
    %v4170 = vunpack.c.l.bf16 %v4160
    %v4171 = vunpack.c.h.bf16 %v4160
    %v4172 = vunpack.c.l.bf16 %v4161
    %v4173 = vunpack.c.h.bf16 %v4161
    %v4174 = vunpack.c.l.bf16 %v4162
    %v4175 = vunpack.c.h.bf16 %v4162
    %v4176 = vunpack.c.l.bf16 %v4163
    %v4177 = vunpack.c.h.bf16 %v4163
    %v4178 = vunpack.c.l.bf16 %v4164
    %v4179 = vunpack.c.h.bf16 %v4164
    %v4180 = vunpack.c.l.bf16 %v4165
    %v4181 = vunpack.c.h.bf16 %v4165
    %v4182 = vadd.f32 %v4141, %v4166
    %v4183 = vadd.f32 %v4142, %v4167
    %v4184 = vadd.f32 %v4143, %v4168
    %v4185 = vadd.f32 %v4144, %v4169
    %v4186 = vadd.f32 %v4145, %v4170
    %v4187 = vadd.f32 %v4146, %v4171
    %v4188 = vadd.f32 %v4147, %v4172
    %v4189 = vadd.f32 %v4148, %v4173
    %v4190 = vadd.f32 %v4149, %v4174
    %v4191 = vadd.f32 %v4150, %v4175
    %v4192 = vadd.f32 %v4151, %v4176
    %v4193 = vadd.f32 %v4152, %v4177
    %v4194 = vadd.f32 %v4153, %v4178
    %v4195 = vadd.f32 %v4154, %v4179
    %v4196 = vadd.f32 %v4155, %v4180
    %v4197 = vadd.f32 %v4156, %v4181
    %v4198 = vmul.f32 %v4182, 0.2
    %v4199 = vmul.f32 %v4183, 0.2
    %v4200 = vmul.f32 %v4184, 0.2
    %v4201 = vmul.f32 %v4185, 0.2
    %v4202 = vmul.f32 %v4186, 0.2
    %v4203 = vmul.f32 %v4187, 0.2
    %v4204 = vmul.f32 %v4188, 0.2
    %v4205 = vmul.f32 %v4189, 0.2
    %v4206 = vmul.f32 %v4190, 0.2
    %v4207 = vmul.f32 %v4191, 0.2
    %v4208 = vmul.f32 %v4192, 0.2
    %v4209 = vmul.f32 %v4193, 0.2
    %v4210 = vmul.f32 %v4194, 0.2
    %v4211 = vmul.f32 %v4195, 0.2
    %v4212 = vmul.f32 %v4196, 0.2
    %v4213 = vmul.f32 %v4197, 0.2
    %v4214 = vmax.f32 %v4182, %v4198
    %v4215 = vmax.f32 %v4183, %v4199
    %v4216 = vmax.f32 %v4184, %v4200
    %v4217 = vmax.f32 %v4185, %v4201
    %v4218 = vmax.f32 %v4186, %v4202
    %v4219 = vmax.f32 %v4187, %v4203
    %v4220 = vmax.f32 %v4188, %v4204
    %v4221 = vmax.f32 %v4189, %v4205
    %v4222 = vmax.f32 %v4190, %v4206
    %v4223 = vmax.f32 %v4191, %v4207
    %v4224 = vmax.f32 %v4192, %v4208
    %v4225 = vmax.f32 %v4193, %v4209
    %v4226 = vmax.f32 %v4194, %v4210
    %v4227 = vmax.f32 %v4195, %v4211
    %v4228 = vmax.f32 %v4196, %v4212
    %v4229 = vmax.f32 %v4197, %v4213
    %4230 = vmax.xlane.f32.xlu0 %v4214
    %v4231 = vpop.xlane.xlu0 %4230
    %4232 = vmax.xlane.f32.xlu0 %v4215
    %v4233 = vpop.xlane.xlu0 %4232
    %4234 = vmax.xlane.f32.xlu0 %v4216
    %v4235 = vpop.xlane.xlu0 %4234
    %4236 = vmax.xlane.f32.xlu0 %v4217
    %v4237 = vpop.xlane.xlu0 %4236
    %4238 = vmax.xlane.f32.xlu0 %v4218
    %v4239 = vpop.xlane.xlu0 %4238
    %4240 = vmax.xlane.f32.xlu0 %v4219
    %v4241 = vpop.xlane.xlu0 %4240
    %4242 = vmax.xlane.f32.xlu0 %v4220
    %v4243 = vpop.xlane.xlu0 %4242
    %4244 = vmax.xlane.f32.xlu0 %v4221
    %v4245 = vpop.xlane.xlu0 %4244
    %4246 = vmax.xlane.f32.xlu0 %v4222
    %v4247 = vpop.xlane.xlu0 %4246
    %4248 = vmax.xlane.f32.xlu0 %v4223
    %v4249 = vpop.xlane.xlu0 %4248
    %4250 = vmax.xlane.f32.xlu0 %v4224
    %v4251 = vpop.xlane.xlu0 %4250
    %4252 = vmax.xlane.f32.xlu0 %v4225
    %v4253 = vpop.xlane.xlu0 %4252
    %4254 = vmax.xlane.f32.xlu0 %v4226
    %v4255 = vpop.xlane.xlu0 %4254
    %4256 = vmax.xlane.f32.xlu0 %v4227
    %v4257 = vpop.xlane.xlu0 %4256
    %4258 = vmax.xlane.f32.xlu0 %v4228
    %v4259 = vpop.xlane.xlu0 %4258
    %4260 = vmax.xlane.f32.xlu0 %v4229
    %v4261 = vpop.xlane.xlu0 %4260
    %v4262 = vsub.f32 %v4214, %v4231
    %v4263 = vsub.f32 %v4215, %v4233
    %v4264 = vsub.f32 %v4216, %v4235
    %v4265 = vsub.f32 %v4217, %v4237
    %v4266 = vsub.f32 %v4218, %v4239
    %v4267 = vsub.f32 %v4219, %v4241
    %v4268 = vsub.f32 %v4220, %v4243
    %v4269 = vsub.f32 %v4221, %v4245
    %v4270 = vsub.f32 %v4222, %v4247
    %v4271 = vsub.f32 %v4223, %v4249
    %v4272 = vsub.f32 %v4224, %v4251
    %v4273 = vsub.f32 %v4225, %v4253
    %v4274 = vsub.f32 %v4226, %v4255
    %v4275 = vsub.f32 %v4227, %v4257
    %v4276 = vsub.f32 %v4228, %v4259
    %v4277 = vsub.f32 %v4229, %v4261
    %v4278 = vmul.f32 %v4262, 1.442695
    %v4279 = vpow.pop %v4278
    %v4280 = vmul.f32 %v4263, 1.442695
    %v4281 = vpow.pop %v4280
    %v4282 = vmul.f32 %v4264, 1.442695
    %v4283 = vpow.pop %v4282
    %v4284 = vmul.f32 %v4265, 1.442695
    %v4285 = vpow.pop %v4284
    %v4286 = vmul.f32 %v4266, 1.442695
    %v4287 = vpow.pop %v4286
    %v4288 = vmul.f32 %v4267, 1.442695
    %v4289 = vpow.pop %v4288
    %v4290 = vmul.f32 %v4268, 1.442695
    %v4291 = vpow.pop %v4290
    %v4292 = vmul.f32 %v4269, 1.442695
    %v4293 = vpow.pop %v4292
    %v4294 = vmul.f32 %v4270, 1.442695
    %v4295 = vpow.pop %v4294
    %v4296 = vmul.f32 %v4271, 1.442695
    %v4297 = vpow.pop %v4296
    %v4298 = vmul.f32 %v4272, 1.442695
    %v4299 = vpow.pop %v4298
    %v4300 = vmul.f32 %v4273, 1.442695
    %v4301 = vpow.pop %v4300
    %v4302 = vmul.f32 %v4274, 1.442695
    %v4303 = vpow.pop %v4302
    %v4304 = vmul.f32 %v4275, 1.442695
    %v4305 = vpow.pop %v4304
    %v4306 = vmul.f32 %v4276, 1.442695
    %v4307 = vpow.pop %v4306
    %v4308 = vmul.f32 %v4277, 1.442695
    %v4309 = vpow.pop %v4308
    %4310 = vadd.xlane.f32.xlu0 %v4279
    %v4311 = vpop.xlane.xlu0 %4310
    %4312 = vadd.xlane.f32.xlu0 %v4281
    %v4313 = vpop.xlane.xlu0 %4312
    %4314 = vadd.xlane.f32.xlu0 %v4283
    %v4315 = vpop.xlane.xlu0 %4314
    %4316 = vadd.xlane.f32.xlu0 %v4285
    %v4317 = vpop.xlane.xlu0 %4316
    %4318 = vadd.xlane.f32.xlu0 %v4287
    %v4319 = vpop.xlane.xlu0 %4318
    %4320 = vadd.xlane.f32.xlu0 %v4289
    %v4321 = vpop.xlane.xlu0 %4320
    %4322 = vadd.xlane.f32.xlu0 %v4291
    %v4323 = vpop.xlane.xlu0 %4322
    %4324 = vadd.xlane.f32.xlu0 %v4293
    %v4325 = vpop.xlane.xlu0 %4324
    %4326 = vadd.xlane.f32.xlu0 %v4295
    %v4327 = vpop.xlane.xlu0 %4326
    %4328 = vadd.xlane.f32.xlu0 %v4297
    %v4329 = vpop.xlane.xlu0 %4328
    %4330 = vadd.xlane.f32.xlu0 %v4299
    %v4331 = vpop.xlane.xlu0 %4330
    %4332 = vadd.xlane.f32.xlu0 %v4301
    %v4333 = vpop.xlane.xlu0 %4332
    %4334 = vadd.xlane.f32.xlu0 %v4303
    %v4335 = vpop.xlane.xlu0 %4334
    %4336 = vadd.xlane.f32.xlu0 %v4305
    %v4337 = vpop.xlane.xlu0 %4336
    %4338 = vadd.xlane.f32.xlu0 %v4307
    %v4339 = vpop.xlane.xlu0 %4338
    %4340 = vadd.xlane.f32.xlu0 %v4309
    %v4341 = vpop.xlane.xlu0 %4340
    %v4342 = vrcp.pop %v4311
    %v4343 = vrcp.pop %v4313
    %v4344 = vrcp.pop %v4315
    %v4345 = vrcp.pop %v4317
    %v4346 = vrcp.pop %v4319
    %v4347 = vrcp.pop %v4321
    %v4348 = vrcp.pop %v4323
    %v4349 = vrcp.pop %v4325
    %v4350 = vrcp.pop %v4327
    %v4351 = vrcp.pop %v4329
    %v4352 = vrcp.pop %v4331
    %v4353 = vrcp.pop %v4333
    %v4354 = vrcp.pop %v4335
    %v4355 = vrcp.pop %v4337
    %v4356 = vrcp.pop %v4339
    %v4357 = vrcp.pop %v4341
    %v4358 = vmul.f32 %v4279, %v4342
    %v4359 = vmul.f32 %v4281, %v4343
    %v4360 = vmul.f32 %v4283, %v4344
    %v4361 = vmul.f32 %v4285, %v4345
    %v4362 = vmul.f32 %v4287, %v4346
    %v4363 = vmul.f32 %v4289, %v4347
    %v4364 = vmul.f32 %v4291, %v4348
    %v4365 = vmul.f32 %v4293, %v4349
    %v4366 = vmul.f32 %v4295, %v4350
    %v4367 = vmul.f32 %v4297, %v4351
    %v4368 = vmul.f32 %v4299, %v4352
    %v4369 = vmul.f32 %v4301, %v4353
    %v4370 = vmul.f32 %v4303, %v4354
    %v4371 = vmul.f32 %v4305, %v4355
    %v4372 = vmul.f32 %v4307, %v4356
    %v4373 = vmul.f32 %v4309, %v4357
    %v4374 = vpack.c.bf16 %v4359, %v4358
    %v4375 = vpack.c.bf16 %v4361, %v4360
    %v4376 = vpack.c.bf16 %v4363, %v4362
    %v4377 = vpack.c.bf16 %v4365, %v4364
    %v4378 = vpack.c.bf16 %v4367, %v4366
    %v4379 = vpack.c.bf16 %v4369, %v4368
    %v4380 = vpack.c.bf16 %v4371, %v4370
    %v4381 = vpack.c.bf16 %v4373, %v4372
    %4382 = vmatprep.subr.bf16.mxu0 0
    %4383 = vmatpush1.bf16.msra.mxu0 %v2647
    %4384 = vmatprep.subr.bf16.mxu0 0
    %4385 = vmatpush1.bf16.msra.mxu0 %v2648
    %4386 = vmatprep.subr.bf16.mxu0 0
    %4387 = vmatpush1.bf16.msra.mxu0 %v2649
    %4388 = vmatprep.subr.bf16.mxu0 0
    %4389 = vmatpush1.bf16.msra.mxu0 %v2650
    %4390 = vmatprep.subr.bf16.mxu0 0
    %4391 = vmatpush1.bf16.msra.mxu0 %v2651
    %4392 = vmatprep.subr.bf16.mxu0 0
    %4393 = vmatpush1.bf16.msra.mxu0 %v2652
    %4394 = vmatprep.subr.bf16.mxu0 0
    %4395 = vmatpush1.bf16.msra.mxu0 %v2653
    %4396 = vmatprep.subr.bf16.mxu0 0
    %4397 = vmatpush1.bf16.msra.mxu0 %v2654
    %4398 = vmatprep.subr.bf16.mxu0 0
    %4399 = vmatpush1.bf16.msra.mxu0 0
    %4400 = vmatprep.subr.bf16.mxu0 0
    %4401 = vmatpush1.bf16.msra.mxu0 0
    %4402 = vmatprep.subr.bf16.mxu0 0
    %4403 = vmatpush1.bf16.msra.mxu0 0
    %4404 = vmatprep.subr.bf16.mxu0 0
    %4405 = vmatpush1.bf16.msra.mxu0 0
    %4406 = vmatprep.subr.bf16.mxu0 0
    %4407 = vmatpush1.bf16.msra.mxu0 0
    %4408 = vmatprep.subr.bf16.mxu0 0
    %4409 = vmatpush1.bf16.msra.mxu0 0
    %4410 = vmatprep.subr.bf16.mxu0 0
    %4411 = vmatpush1.bf16.msra.mxu0 0
    %4412 = vmatprep.subr.bf16.mxu0 0
    %4413 = vmatpush1.bf16.msra.mxu0 0
    %4414 = vmatprep.mubr.bf16.mxu0 0
    %4415 = vmatmul.mubr.bf16.gmra.mrb[0].mxu0 %v4374
    %v4416 = vpop.f32.mrb[0].mxu0
    %v4417 = vadd.f32 0.0, %v4416
    %v4418 = vpop.f32.mrb[0].mxu0
    %v4419 = vpop.f32.mrb[0].mxu0
    %v4420 = vadd.f32 0.0, %v4419
    %v4421 = vpop.f32.mrb[0].mxu0
    %4422 = vmatprep.mubr.bf16.mxu0 0
    %4423 = vmatmul.mubr.bf16.gmra.mrb[0].mxu0 %v4375
    %v4424 = vpop.f32.mrb[0].mxu0
    %v4425 = vadd.f32 0.0, %v4424
    %v4426 = vpop.f32.mrb[0].mxu0
    %v4427 = vpop.f32.mrb[0].mxu0
    %v4428 = vadd.f32 0.0, %v4427
    %v4429 = vpop.f32.mrb[0].mxu0
    %4430 = vmatprep.mubr.bf16.mxu0 0
    %4431 = vmatmul.mubr.bf16.gmra.mrb[0].mxu0 %v4376
    %v4432 = vpop.f32.mrb[0].mxu0
    %v4433 = vadd.f32 0.0, %v4432
    %v4434 = vpop.f32.mrb[0].mxu0
    %v4435 = vpop.f32.mrb[0].mxu0
    %v4436 = vadd.f32 0.0, %v4435
    %v4437 = vpop.f32.mrb[0].mxu0
    %4438 = vmatprep.mubr.bf16.mxu0 0
    %4439 = vmatmul.mubr.bf16.gmra.mrb[0].mxu0 %v4377
    %v4440 = vpop.f32.mrb[0].mxu0
    %v4441 = vadd.f32 0.0, %v4440
    %v4442 = vpop.f32.mrb[0].mxu0
    %v4443 = vpop.f32.mrb[0].mxu0
    %v4444 = vadd.f32 0.0, %v4443
    %v4445 = vpop.f32.mrb[0].mxu0
    %4446 = vmatprep.mubr.bf16.mxu0 0
    %4447 = vmatmul.mubr.bf16.gmra.mrb[0].mxu0 %v4378
    %v4448 = vpop.f32.mrb[0].mxu0
    %v4449 = vadd.f32 0.0, %v4448
    %v4450 = vpop.f32.mrb[0].mxu0
    %v4451 = vpop.f32.mrb[0].mxu0
    %v4452 = vadd.f32 0.0, %v4451
    %v4453 = vpop.f32.mrb[0].mxu0
    %4454 = vmatprep.mubr.bf16.mxu0 0
    %4455 = vmatmul.mubr.bf16.gmra.mrb[0].mxu0 %v4379
    %v4456 = vpop.f32.mrb[0].mxu0
    %v4457 = vadd.f32 0.0, %v4456
    %v4458 = vpop.f32.mrb[0].mxu0
    %v4459 = vpop.f32.mrb[0].mxu0
    %v4460 = vadd.f32 0.0, %v4459
    %v4461 = vpop.f32.mrb[0].mxu0
    %4462 = vmatprep.mubr.bf16.mxu0 0
    %4463 = vmatmul.mubr.bf16.gmra.mrb[0].mxu0 %v4380
    %v4464 = vpop.f32.mrb[0].mxu0
    %v4465 = vadd.f32 0.0, %v4464
    %v4466 = vpop.f32.mrb[0].mxu0
    %v4467 = vpop.f32.mrb[0].mxu0
    %v4468 = vadd.f32 0.0, %v4467
    %v4469 = vpop.f32.mrb[0].mxu0
    %4470 = vmatprep.mubr.bf16.mxu0 0
    %4471 = vmatmul.mubr.bf16.gmra.mrb[0].mxu0 %v4381
    %v4472 = vpop.f32.mrb[0].mxu0
    %v4473 = vadd.f32 0.0, %v4472
    %v4474 = vpop.f32.mrb[0].mxu0
    %v4475 = vpop.f32.mrb[0].mxu0
    %v4476 = vadd.f32 0.0, %v4475
    %v4477 = vpop.f32.mrb[0].mxu0
    %4478 = vdwg.mxu0
    %v4479 = vpack.c.bf16 %v3202, %v3199
    %v4480 = vpack.c.bf16 %v3608, %v3605
    %v4481 = vpack.c.bf16 %v4014, %v4011
    %v4482 = vpack.c.bf16 %v4420, %v4417
    %v4483 = vpack.c.bf16 %v3210, %v3207
    %v4484 = vpack.c.bf16 %v3616, %v3613
    %v4485 = vpack.c.bf16 %v4022, %v4019
    %v4486 = vpack.c.bf16 %v4428, %v4425
    %v4487 = vpack.c.bf16 %v3218, %v3215
    %v4488 = vpack.c.bf16 %v3624, %v3621
    %v4489 = vpack.c.bf16 %v4030, %v4027
    %v4490 = vpack.c.bf16 %v4436, %v4433
    %v4491 = vpack.c.bf16 %v3226, %v3223
    %v4492 = vpack.c.bf16 %v3632, %v3629
    %v4493 = vpack.c.bf16 %v4038, %v4035
    %v4494 = vpack.c.bf16 %v4444, %v4441
    %v4495 = vpack.c.bf16 %v3234, %v3231
    %v4496 = vpack.c.bf16 %v3640, %v3637
    %v4497 = vpack.c.bf16 %v4046, %v4043
    %v4498 = vpack.c.bf16 %v4452, %v4449
    %v4499 = vpack.c.bf16 %v3242, %v3239
    %v4500 = vpack.c.bf16 %v3648, %v3645
    %v4501 = vpack.c.bf16 %v4054, %v4051
    %v4502 = vpack.c.bf16 %v4460, %v4457
    %v4503 = vpack.c.bf16 %v3250, %v3247
    %v4504 = vpack.c.bf16 %v3656, %v3653
    %v4505 = vpack.c.bf16 %v4062, %v4059
    %v4506 = vpack.c.bf16 %v4468, %v4465
    %v4507 = vpack.c.bf16 %v3258, %v3255
    %v4508 = vpack.c.bf16 %v3664, %v3661
    %v4509 = vpack.c.bf16 %v4070, %v4067
    %v4510 = vpack.c.bf16 %v4476, %v4473
    %4511 = vmatprep.subr.bf16.mxu0 0
    %4512 = vmatpush1.bf16.msra.mxu0 %v2597
    %4513 = vmatprep.subr.bf16.mxu0 0
    %4514 = vmatpush1.bf16.msra.mxu0 %v2598
    %4515 = vmatprep.subr.bf16.mxu0 0
    %4516 = vmatpush1.bf16.msra.mxu0 %v2599
    %4517 = vmatprep.subr.bf16.mxu0 0
    %4518 = vmatpush1.bf16.msra.mxu0 %v2600
    %4519 = vmatprep.subr.bf16.mxu0 0
    %4520 = vmatpush1.bf16.msra.mxu0 %v2601
    %4521 = vmatprep.subr.bf16.mxu0 0
    %4522 = vmatpush1.bf16.msra.mxu0 %v2602
    %4523 = vmatprep.subr.bf16.mxu0 0
    %4524 = vmatpush1.bf16.msra.mxu0 %v2603
    %4525 = vmatprep.subr.bf16.mxu0 0
    %4526 = vmatpush1.bf16.msra.mxu0 %v2604
    %4527 = vmatprep.subr.bf16.mxu0 0
    %4528 = vmatpush1.bf16.msra.mxu0 %v2605
    %4529 = vmatprep.subr.bf16.mxu0 0
    %4530 = vmatpush1.bf16.msra.mxu0 %v2606
    %4531 = vmatprep.subr.bf16.mxu0 0
    %4532 = vmatpush1.bf16.msra.mxu0 %v2607
    %4533 = vmatprep.subr.bf16.mxu0 0
    %4534 = vmatpush1.bf16.msra.mxu0 %v2608
    %4535 = vmatprep.subr.bf16.mxu0 0
    %4536 = vmatpush1.bf16.msra.mxu0 %v2609
    %4537 = vmatprep.subr.bf16.mxu0 0
    %4538 = vmatpush1.bf16.msra.mxu0 %v2610
    %4539 = vmatprep.subr.bf16.mxu0 0
    %4540 = vmatpush1.bf16.msra.mxu0 %v2611
    %4541 = vmatprep.subr.bf16.mxu0 0
    %4542 = vmatpush1.bf16.msra.mxu0 %v2612
    %4543 = vmatprep.mubr.bf16.mxu0 %v4480
    %4544 = vmatmul.mubr.bf16.gmra.mrb[0].mxu0 %v4479
    %v4545 = vpop.f32.mrb[0].mxu0
    %v4546 = vadd.f32 0.0, %v4545
    %v4547 = vpop.f32.mrb[0].mxu0
    %v4548 = vpop.f32.mrb[0].mxu0
    %v4549 = vadd.f32 0.0, %v4548
    %v4550 = vpop.f32.mrb[0].mxu0
    %4551 = vmatprep.mubr.bf16.mxu0 %v4484
    %4552 = vmatmul.mubr.bf16.gmra.mrb[0].mxu0 %v4483
    %v4553 = vpop.f32.mrb[0].mxu0
    %v4554 = vadd.f32 0.0, %v4553
    %v4555 = vpop.f32.mrb[0].mxu0
    %v4556 = vpop.f32.mrb[0].mxu0
    %v4557 = vadd.f32 0.0, %v4556
    %v4558 = vpop.f32.mrb[0].mxu0
    %4559 = vmatprep.mubr.bf16.mxu0 %v4488
    %4560 = vmatmul.mubr.bf16.gmra.mrb[0].mxu0 %v4487
    %v4561 = vpop.f32.mrb[0].mxu0
    %v4562 = vadd.f32 0.0, %v4561
    %v4563 = vpop.f32.mrb[0].mxu0
    %v4564 = vpop.f32.mrb[0].mxu0
    %v4565 = vadd.f32 0.0, %v4564
    %v4566 = vpop.f32.mrb[0].mxu0
    %4567 = vmatprep.mubr.bf16.mxu0 %v4492
    %4568 = vmatmul.mubr.bf16.gmra.mrb[0].mxu0 %v4491
    %v4569 = vpop.f32.mrb[0].mxu0
    %v4570 = vadd.f32 0.0, %v4569
    %v4571 = vpop.f32.mrb[0].mxu0
    %v4572 = vpop.f32.mrb[0].mxu0
    %v4573 = vadd.f32 0.0, %v4572
    %v4574 = vpop.f32.mrb[0].mxu0
    %4575 = vmatprep.mubr.bf16.mxu0 %v4496
    %4576 = vmatmul.mubr.bf16.gmra.mrb[0].mxu0 %v4495
    %v4577 = vpop.f32.mrb[0].mxu0
    %v4578 = vadd.f32 0.0, %v4577
    %v4579 = vpop.f32.mrb[0].mxu0
    %v4580 = vpop.f32.mrb[0].mxu0
    %v4581 = vadd.f32 0.0, %v4580
    %v4582 = vpop.f32.mrb[0].mxu0
    %4583 = vmatprep.mubr.bf16.mxu0 %v4500
    %4584 = vmatmul.mubr.bf16.gmra.mrb[0].mxu0 %v4499
    %v4585 = vpop.f32.mrb[0].mxu0
    %v4586 = vadd.f32 0.0, %v4585
    %v4587 = vpop.f32.mrb[0].mxu0
    %v4588 = vpop.f32.mrb[0].mxu0
    %v4589 = vadd.f32 0.0, %v4588
    %v4590 = vpop.f32.mrb[0].mxu0
    %4591 = vmatprep.mubr.bf16.mxu0 %v4504
    %4592 = vmatmul.mubr.bf16.gmra.mrb[0].mxu0 %v4503
    %v4593 = vpop.f32.mrb[0].mxu0
    %v4594 = vadd.f32 0.0, %v4593
    %v4595 = vpop.f32.mrb[0].mxu0
    %v4596 = vpop.f32.mrb[0].mxu0
    %v4597 = vadd.f32 0.0, %v4596
    %v4598 = vpop.f32.mrb[0].mxu0
    %4599 = vmatprep.mubr.bf16.mxu0 %v4508
    %4600 = vmatmul.mubr.bf16.gmra.mrb[0].mxu0 %v4507
    %v4601 = vpop.f32.mrb[0].mxu0
    %v4602 = vadd.f32 0.0, %v4601
    %v4603 = vpop.f32.mrb[0].mxu0
    %v4604 = vpop.f32.mrb[0].mxu0
    %v4605 = vadd.f32 0.0, %v4604
    %v4606 = vpop.f32.mrb[0].mxu0
    %4607 = vdwg.mxu0
    %4608 = vmatprep.subr.bf16.mxu0 0
    %4609 = vmatpush1.bf16.msra.mxu0 %v2613
    %4610 = vmatprep.subr.bf16.mxu0 0
    %4611 = vmatpush1.bf16.msra.mxu0 %v2614
    %4612 = vmatprep.subr.bf16.mxu0 0
    %4613 = vmatpush1.bf16.msra.mxu0 %v2615
    %4614 = vmatprep.subr.bf16.mxu0 0
    %4615 = vmatpush1.bf16.msra.mxu0 %v2616
    %4616 = vmatprep.subr.bf16.mxu0 0
    %4617 = vmatpush1.bf16.msra.mxu0 %v2617
    %4618 = vmatprep.subr.bf16.mxu0 0
    %4619 = vmatpush1.bf16.msra.mxu0 %v2618
    %4620 = vmatprep.subr.bf16.mxu0 0
    %4621 = vmatpush1.bf16.msra.mxu0 %v2619
    %4622 = vmatprep.subr.bf16.mxu0 0
    %4623 = vmatpush1.bf16.msra.mxu0 %v2620
    %4624 = vmatprep.subr.bf16.mxu0 0
    %4625 = vmatpush1.bf16.msra.mxu0 %v2621
    %4626 = vmatprep.subr.bf16.mxu0 0
    %4627 = vmatpush1.bf16.msra.mxu0 %v2622
    %4628 = vmatprep.subr.bf16.mxu0 0
    %4629 = vmatpush1.bf16.msra.mxu0 %v2623
    %4630 = vmatprep.subr.bf16.mxu0 0
    %4631 = vmatpush1.bf16.msra.mxu0 %v2624
    %4632 = vmatprep.subr.bf16.mxu0 0
    %4633 = vmatpush1.bf16.msra.mxu0 %v2625
    %4634 = vmatprep.subr.bf16.mxu0 0
    %4635 = vmatpush1.bf16.msra.mxu0 %v2626
    %4636 = vmatprep.subr.bf16.mxu0 0
    %4637 = vmatpush1.bf16.msra.mxu0 %v2627
    %4638 = vmatprep.subr.bf16.mxu0 0
    %4639 = vmatpush1.bf16.msra.mxu0 %v2628
    %4640 = vmatprep.mubr.bf16.mxu0 %v4482
    %4641 = vmatmul.mubr.bf16.gmra.mrb[0].mxu0 %v4481
    %v4642 = vpop.f32.mrb[0].mxu0
    %v4643 = vadd.f32 %v4546, %v4642
    %v4644 = vpop.f32.mrb[0].mxu0
    %v4645 = vpop.f32.mrb[0].mxu0
    %v4646 = vadd.f32 %v4549, %v4645
    %v4647 = vpop.f32.mrb[0].mxu0
    %4648 = vmatprep.mubr.bf16.mxu0 %v4486
    %4649 = vmatmul.mubr.bf16.gmra.mrb[0].mxu0 %v4485
    %v4650 = vpop.f32.mrb[0].mxu0
    %v4651 = vadd.f32 %v4554, %v4650
    %v4652 = vpop.f32.mrb[0].mxu0
    %v4653 = vpop.f32.mrb[0].mxu0
    %v4654 = vadd.f32 %v4557, %v4653
    %v4655 = vpop.f32.mrb[0].mxu0
    %4656 = vmatprep.mubr.bf16.mxu0 %v4490
    %4657 = vmatmul.mubr.bf16.gmra.mrb[0].mxu0 %v4489
    %v4658 = vpop.f32.mrb[0].mxu0
    %v4659 = vadd.f32 %v4562, %v4658
    %v4660 = vpop.f32.mrb[0].mxu0
    %v4661 = vpop.f32.mrb[0].mxu0
    %v4662 = vadd.f32 %v4565, %v4661
    %v4663 = vpop.f32.mrb[0].mxu0
    %4664 = vmatprep.mubr.bf16.mxu0 %v4494
    %4665 = vmatmul.mubr.bf16.gmra.mrb[0].mxu0 %v4493
    %v4666 = vpop.f32.mrb[0].mxu0
    %v4667 = vadd.f32 %v4570, %v4666
    %v4668 = vpop.f32.mrb[0].mxu0
    %v4669 = vpop.f32.mrb[0].mxu0
    %v4670 = vadd.f32 %v4573, %v4669
    %v4671 = vpop.f32.mrb[0].mxu0
    %4672 = vmatprep.mubr.bf16.mxu0 %v4498
    %4673 = vmatmul.mubr.bf16.gmra.mrb[0].mxu0 %v4497
    %v4674 = vpop.f32.mrb[0].mxu0
    %v4675 = vadd.f32 %v4578, %v4674
    %v4676 = vpop.f32.mrb[0].mxu0
    %v4677 = vpop.f32.mrb[0].mxu0
    %v4678 = vadd.f32 %v4581, %v4677
    %v4679 = vpop.f32.mrb[0].mxu0
    %4680 = vmatprep.mubr.bf16.mxu0 %v4502
    %4681 = vmatmul.mubr.bf16.gmra.mrb[0].mxu0 %v4501
    %v4682 = vpop.f32.mrb[0].mxu0
    %v4683 = vadd.f32 %v4586, %v4682
    %v4684 = vpop.f32.mrb[0].mxu0
    %v4685 = vpop.f32.mrb[0].mxu0
    %v4686 = vadd.f32 %v4589, %v4685
    %v4687 = vpop.f32.mrb[0].mxu0
    %4688 = vmatprep.mubr.bf16.mxu0 %v4506
    %4689 = vmatmul.mubr.bf16.gmra.mrb[0].mxu0 %v4505
    %v4690 = vpop.f32.mrb[0].mxu0
    %v4691 = vadd.f32 %v4594, %v4690
    %v4692 = vpop.f32.mrb[0].mxu0
    %v4693 = vpop.f32.mrb[0].mxu0
    %v4694 = vadd.f32 %v4597, %v4693
    %v4695 = vpop.f32.mrb[0].mxu0
    %4696 = vmatprep.mubr.bf16.mxu0 %v4510
    %4697 = vmatmul.mubr.bf16.gmra.mrb[0].mxu0 %v4509
    %v4698 = vpop.f32.mrb[0].mxu0
    %v4699 = vadd.f32 %v4602, %v4698
    %v4700 = vpop.f32.mrb[0].mxu0
    %v4701 = vpop.f32.mrb[0].mxu0
    %v4702 = vadd.f32 %v4605, %v4701
    %v4703 = vpop.f32.mrb[0].mxu0
    %4704 = vdwg.mxu0
    %v4705 = vmul.f32 %v4643, 0.25
    %v4706 = vmul.f32 %v4646, 0.25
    %v4707 = vmul.f32 %v4651, 0.25
    %v4708 = vmul.f32 %v4654, 0.25
    %v4709 = vmul.f32 %v4659, 0.25
    %v4710 = vmul.f32 %v4662, 0.25
    %v4711 = vmul.f32 %v4667, 0.25
    %v4712 = vmul.f32 %v4670, 0.25
    %v4713 = vmul.f32 %v4675, 0.25
    %v4714 = vmul.f32 %v4678, 0.25
    %v4715 = vmul.f32 %v4683, 0.25
    %v4716 = vmul.f32 %v4686, 0.25
    %v4717 = vmul.f32 %v4691, 0.25
    %v4718 = vmul.f32 %v4694, 0.25
    %v4719 = vmul.f32 %v4699, 0.25
    %v4720 = vmul.f32 %v4702, 0.25
    %v4722 = vlaneseq
    %v4723 = vshrl.u32 %v4722, 7
    %v4724 = vsub.s32 0, %v4723
    %v4725 = vrot.slane %v2646, %v4724
    %v4727 = vadd.f32 %v4705, %v4725
    %v4728 = vadd.f32 %v4706, %v4725
    %v4729 = vadd.f32 %v4707, %v4725
    %v4730 = vadd.f32 %v4708, %v4725
    %v4731 = vadd.f32 %v4709, %v4725
    %v4732 = vadd.f32 %v4710, %v4725
    %v4733 = vadd.f32 %v4711, %v4725
    %v4734 = vadd.f32 %v4712, %v4725
    %v4735 = vadd.f32 %v4713, %v4725
    %v4736 = vadd.f32 %v4714, %v4725
    %v4737 = vadd.f32 %v4715, %v4725
    %v4738 = vadd.f32 %v4716, %v4725
    %v4739 = vadd.f32 %v4717, %v4725
    %v4740 = vadd.f32 %v4718, %v4725
    %v4741 = vadd.f32 %v4719, %v4725
    %v4742 = vadd.f32 %v4720, %v4725
    %v4743 = vadd.f32 %v4727, %v4728
    %v4744 = vadd.f32 %v4743, %v4729
    %v4745 = vadd.f32 %v4744, %v4730
    %v4746 = vadd.f32 %v4745, %v4731
    %v4747 = vadd.f32 %v4746, %v4732
    %v4748 = vadd.f32 %v4747, %v4733
    %v4749 = vadd.f32 %v4748, %v4734
    %v4750 = vadd.f32 %v4749, %v4735
    %v4751 = vadd.f32 %v4750, %v4736
    %v4752 = vadd.f32 %v4751, %v4737
    %v4753 = vadd.f32 %v4752, %v4738
    %v4754 = vadd.f32 %v4753, %v4739
    %v4755 = vadd.f32 %v4754, %v4740
    %v4756 = vadd.f32 %v4755, %v4741
    %v4757 = vadd.f32 %v4756, %v4742
    %v4758 = vrot.slane %v4757, 4
    %v4759 = vadd.f32 %v4757, %v4758
    %v4760 = vrot.slane %v4759, 2
    %v4761 = vadd.f32 %v4759, %v4760
    %v4762 = vrot.slane %v4761, 1
    %v4763 = vadd.f32 %v4761, %v4762
    %v4764 = vrcp.pop 128.0
    %v4765 = vmul.f32 %v4763, %v4764
    %v4766 = vld [vmem:[#allocation31] sm:$0x1]
    %v4767 = vmul.f32 %v4766, %v4765
    %v4769 = vlaneseq
    %v4770 = vshrl.u32 %v4769, 7
    %v4771 = vsub.s32 0, %v4770
    %v4772 = vrot.slane %v4767, %v4771
    %v4774 = vsub.f32 %v4727, %v4772
    %v4775 = vsub.f32 %v4728, %v4772
    %v4776 = vsub.f32 %v4729, %v4772
    %v4777 = vsub.f32 %v4730, %v4772
    %v4778 = vsub.f32 %v4731, %v4772
    %v4779 = vsub.f32 %v4732, %v4772
    %v4780 = vsub.f32 %v4733, %v4772
    %v4781 = vsub.f32 %v4734, %v4772
    %v4782 = vsub.f32 %v4735, %v4772
    %v4783 = vsub.f32 %v4736, %v4772
    %v4784 = vsub.f32 %v4737, %v4772
    %v4785 = vsub.f32 %v4738, %v4772
    %v4786 = vsub.f32 %v4739, %v4772
    %v4787 = vsub.f32 %v4740, %v4772
    %v4788 = vsub.f32 %v4741, %v4772
    %v4789 = vsub.f32 %v4742, %v4772
    %v4790 = vmul.f32 %v4774, %v4774
    %v4791 = vmul.f32 %v4775, %v4775
    %v4792 = vmul.f32 %v4776, %v4776
    %v4793 = vmul.f32 %v4777, %v4777
    %v4794 = vmul.f32 %v4778, %v4778
    %v4795 = vmul.f32 %v4779, %v4779
    %v4796 = vmul.f32 %v4780, %v4780
    %v4797 = vmul.f32 %v4781, %v4781
    %v4798 = vmul.f32 %v4782, %v4782
    %v4799 = vmul.f32 %v4783, %v4783
    %v4800 = vmul.f32 %v4784, %v4784
    %v4801 = vmul.f32 %v4785, %v4785
    %v4802 = vmul.f32 %v4786, %v4786
    %v4803 = vmul.f32 %v4787, %v4787
    %v4804 = vmul.f32 %v4788, %v4788
    %v4805 = vmul.f32 %v4789, %v4789
    %v4806 = vadd.f32 %v4790, %v4791
    %v4807 = vadd.f32 %v4806, %v4792
    %v4808 = vadd.f32 %v4807, %v4793
    %v4809 = vadd.f32 %v4808, %v4794
    %v4810 = vadd.f32 %v4809, %v4795
    %v4811 = vadd.f32 %v4810, %v4796
    %v4812 = vadd.f32 %v4811, %v4797
    %v4813 = vadd.f32 %v4812, %v4798
    %v4814 = vadd.f32 %v4813, %v4799
    %v4815 = vadd.f32 %v4814, %v4800
    %v4816 = vadd.f32 %v4815, %v4801
    %v4817 = vadd.f32 %v4816, %v4802
    %v4818 = vadd.f32 %v4817, %v4803
    %v4819 = vadd.f32 %v4818, %v4804
    %v4820 = vadd.f32 %v4819, %v4805
    %v4821 = vrot.slane %v4820, 4
    %v4822 = vadd.f32 %v4820, %v4821
    %v4823 = vrot.slane %v4822, 2
    %v4824 = vadd.f32 %v4822, %v4823
    %v4825 = vrot.slane %v4824, 1
    %v4826 = vadd.f32 %v4824, %v4825
    %v4827 = vmul.f32 %v4826, %v4764
    %v4828 = vld [vmem:[#allocation28] sm:$0x1]
    %v4830 = vlaneseq
    %v4831 = vshrl.u32 %v4830, 7
    %v4832 = vsub.s32 0, %v4831
    %v4833 = vrot.slane %v4828, %v4832
    %v4835 = vmul.f32 %v4833, %v4774
    %v4836 = vmul.f32 %v4833, %v4775
    %v4837 = vmul.f32 %v4833, %v4776
    %v4838 = vmul.f32 %v4833, %v4777
    %v4839 = vmul.f32 %v4833, %v4778
    %v4840 = vmul.f32 %v4833, %v4779
    %v4841 = vmul.f32 %v4833, %v4780
    %v4842 = vmul.f32 %v4833, %v4781
    %v4843 = vmul.f32 %v4833, %v4782
    %v4844 = vmul.f32 %v4833, %v4783
    %v4845 = vmul.f32 %v4833, %v4784
    %v4846 = vmul.f32 %v4833, %v4785
    %v4847 = vmul.f32 %v4833, %v4786
    %v4848 = vmul.f32 %v4833, %v4787
    %v4849 = vmul.f32 %v4833, %v4788
    %v4850 = vmul.f32 %v4833, %v4789
    %v4851 = vadd.f32 %v4827, 1e-05
    %v4852 = vrsqrt.pop %v4851
    %v4853 = vmul.f32 %v4835, %v4852
    %v4854 = vmul.f32 %v4836, %v4852
    %v4855 = vmul.f32 %v4837, %v4852
    %v4856 = vmul.f32 %v4838, %v4852
    %v4857 = vmul.f32 %v4839, %v4852
    %v4858 = vmul.f32 %v4840, %v4852
    %v4859 = vmul.f32 %v4841, %v4852
    %v4860 = vmul.f32 %v4842, %v4852
    %v4861 = vmul.f32 %v4843, %v4852
    %v4862 = vmul.f32 %v4844, %v4852
    %v4863 = vmul.f32 %v4845, %v4852
    %v4864 = vmul.f32 %v4846, %v4852
    %v4865 = vmul.f32 %v4847, %v4852
    %v4866 = vmul.f32 %v4848, %v4852
    %v4867 = vmul.f32 %v4849, %v4852
    %v4868 = vmul.f32 %v4850, %v4852
    %v4869 = vld [vmem:[#allocation29] sm:$0x1]
    %v4871 = vlaneseq
    %v4872 = vshrl.u32 %v4871, 7
    %v4873 = vsub.s32 0, %v4872
    %v4874 = vrot.slane %v4869, %v4873
    %v4876 = vadd.f32 %v4853, %v4874
    %v4877 = vadd.f32 %v4854, %v4874
    %v4878 = vadd.f32 %v4855, %v4874
    %v4879 = vadd.f32 %v4856, %v4874
    %v4880 = vadd.f32 %v4857, %v4874
    %v4881 = vadd.f32 %v4858, %v4874
    %v4882 = vadd.f32 %v4859, %v4874
    %v4883 = vadd.f32 %v4860, %v4874
    %v4884 = vadd.f32 %v4861, %v4874
    %v4885 = vadd.f32 %v4862, %v4874
    %v4886 = vadd.f32 %v4863, %v4874
    %v4887 = vadd.f32 %v4864, %v4874
    %v4888 = vadd.f32 %v4865, %v4874
    %v4889 = vadd.f32 %v4866, %v4874
    %v4890 = vadd.f32 %v4867, %v4874
    %v4891 = vadd.f32 %v4868, %v4874
    %v4892 = vadd.f32 %v4876, %v2571
    %v4893 = vadd.f32 %v4877, %v2572
    %v4894 = vadd.f32 %v4878, %v2573
    %v4895 = vadd.f32 %v4879, %v2574
    %v4896 = vadd.f32 %v4880, %v2575
    %v4897 = vadd.f32 %v4881, %v2576
    %v4898 = vadd.f32 %v4882, %v2577
    %v4899 = vadd.f32 %v4883, %v2578
    %v4900 = vadd.f32 %v4884, %v2579
    %v4901 = vadd.f32 %v4885, %v2580
    %v4902 = vadd.f32 %v4886, %v2581
    %v4903 = vadd.f32 %v4887, %v2582
    %v4904 = vadd.f32 %v4888, %v2583
    %v4905 = vadd.f32 %v4889, %v2584
    %v4906 = vadd.f32 %v4890, %v2585
    %v4907 = vadd.f32 %v4891, %v2586
    %vm4908 = vcmp.gt.f32.partialorder %v4892, 0.0
    %vm4909 = vcmp.gt.f32.partialorder %v4893, 0.0
    %vm4910 = vcmp.gt.f32.partialorder %v4894, 0.0
    %vm4911 = vcmp.gt.f32.partialorder %v4895, 0.0
    %vm4912 = vcmp.gt.f32.partialorder %v4896, 0.0
    %vm4913 = vcmp.gt.f32.partialorder %v4897, 0.0
    %vm4914 = vcmp.gt.f32.partialorder %v4898, 0.0
    %vm4915 = vcmp.gt.f32.partialorder %v4899, 0.0
    %vm4916 = vcmp.gt.f32.partialorder %v4900, 0.0
    %vm4917 = vcmp.gt.f32.partialorder %v4901, 0.0
    %vm4918 = vcmp.gt.f32.partialorder %v4902, 0.0
    %vm4919 = vcmp.gt.f32.partialorder %v4903, 0.0
    %vm4920 = vcmp.gt.f32.partialorder %v4904, 0.0
    %vm4921 = vcmp.gt.f32.partialorder %v4905, 0.0
    %vm4922 = vcmp.gt.f32.partialorder %v4906, 0.0
    %vm4923 = vcmp.gt.f32.partialorder %v4907, 0.0
    %v4924 = vmul.f32 %v4892, 1.442695
    %v4925 = vpow.pop %v4924
    %v4926 = vmul.f32 %v4893, 1.442695
    %v4927 = vpow.pop %v4926
    %v4928 = vmul.f32 %v4894, 1.442695
    %v4929 = vpow.pop %v4928
    %v4930 = vmul.f32 %v4895, 1.442695
    %v4931 = vpow.pop %v4930
    %v4932 = vmul.f32 %v4896, 1.442695
    %v4933 = vpow.pop %v4932
    %v4934 = vmul.f32 %v4897, 1.442695
    %v4935 = vpow.pop %v4934
    %v4936 = vmul.f32 %v4898, 1.442695
    %v4937 = vpow.pop %v4936
    %v4938 = vmul.f32 %v4899, 1.442695
    %v4939 = vpow.pop %v4938
    %v4940 = vmul.f32 %v4900, 1.442695
    %v4941 = vpow.pop %v4940
    %v4942 = vmul.f32 %v4901, 1.442695
    %v4943 = vpow.pop %v4942
    %v4944 = vmul.f32 %v4902, 1.442695
    %v4945 = vpow.pop %v4944
    %v4946 = vmul.f32 %v4903, 1.442695
    %v4947 = vpow.pop %v4946
    %v4948 = vmul.f32 %v4904, 1.442695
    %v4949 = vpow.pop %v4948
    %v4950 = vmul.f32 %v4905, 1.442695
    %v4951 = vpow.pop %v4950
    %v4952 = vmul.f32 %v4906, 1.442695
    %v4953 = vpow.pop %v4952
    %v4954 = vmul.f32 %v4907, 1.442695
    %v4955 = vpow.pop %v4954
    %v4956 = vsub.f32 %v4925, 1.0
    %v4957 = vsub.f32 %v4927, 1.0
    %v4958 = vsub.f32 %v4929, 1.0
    %v4959 = vsub.f32 %v4931, 1.0
    %v4960 = vsub.f32 %v4933, 1.0
    %v4961 = vsub.f32 %v4935, 1.0
    %v4962 = vsub.f32 %v4937, 1.0
    %v4963 = vsub.f32 %v4939, 1.0
    %v4964 = vsub.f32 %v4941, 1.0
    %v4965 = vsub.f32 %v4943, 1.0
    %v4966 = vsub.f32 %v4945, 1.0
    %v4967 = vsub.f32 %v4947, 1.0
    %v4968 = vsub.f32 %v4949, 1.0
    %v4969 = vsub.f32 %v4951, 1.0
    %v4970 = vsub.f32 %v4953, 1.0
    %v4971 = vsub.f32 %v4955, 1.0
    %v4972 = vsel %vm4908, %v4892, %v4956
    %v4973 = vsel %vm4909, %v4893, %v4957
    %v4974 = vsel %vm4910, %v4894, %v4958
    %v4975 = vsel %vm4911, %v4895, %v4959
    %v4976 = vsel %vm4912, %v4896, %v4960
    %v4977 = vsel %vm4913, %v4897, %v4961
    %v4978 = vsel %vm4914, %v4898, %v4962
    %v4979 = vsel %vm4915, %v4899, %v4963
    %v4980 = vsel %vm4916, %v4900, %v4964
    %v4981 = vsel %vm4917, %v4901, %v4965
    %v4982 = vsel %vm4918, %v4902, %v4966
    %v4983 = vsel %vm4919, %v4903, %v4967
    %v4984 = vsel %vm4920, %v4904, %v4968
    %v4985 = vsel %vm4921, %v4905, %v4969
    %v4986 = vsel %vm4922, %v4906, %v4970
    %v4987 = vsel %vm4923, %v4907, %v4971
    %s4988 = scalar_lea.vmem [#allocation3], 256
    %v4989 = vld [vmem:[%s4988] sm:$0xff]
    %v4990 = vld [vmem:[%s4988 + $0x8] sm:$0xff]
    %v4991 = vld [vmem:[%s4988 + $0x10] sm:$0xff]
    %v4992 = vld [vmem:[%s4988 + $0x18] sm:$0xff]
    %v4993 = vld [vmem:[%s4988 + $0x20] sm:$0xff]
    %v4994 = vld [vmem:[%s4988 + $0x28] sm:$0xff]
    %v4995 = vld [vmem:[%s4988 + $0x30] sm:$0xff]
    %v4996 = vld [vmem:[%s4988 + $0x38] sm:$0xff]
    %v4997 = vld [vmem:[%s4988 + $0x40] sm:$0xff]
    %v4998 = vld [vmem:[%s4988 + $0x48] sm:$0xff]
    %v4999 = vld [vmem:[%s4988 + $0x50] sm:$0xff]
    %v5000 = vld [vmem:[%s4988 + $0x58] sm:$0xff]
    %v5001 = vld [vmem:[%s4988 + $0x60] sm:$0xff]
    %v5002 = vld [vmem:[%s4988 + $0x68] sm:$0xff]
    %v5003 = vld [vmem:[%s4988 + $0x70] sm:$0xff]
    %v5004 = vld [vmem:[%s4988 + $0x78] sm:$0xff]
    %v5005 = vld [vmem:[%s4988 + $0x80] sm:$0xff]
    %v5006 = vld [vmem:[%s4988 + $0x88] sm:$0xff]
    %v5007 = vld [vmem:[%s4988 + $0x90] sm:$0xff]
    %v5008 = vld [vmem:[%s4988 + $0x98] sm:$0xff]
    %v5009 = vld [vmem:[%s4988 + $0xa0] sm:$0xff]
    %v5010 = vld [vmem:[%s4988 + $0xa8] sm:$0xff]
    %v5011 = vld [vmem:[%s4988 + $0xb0] sm:$0xff]
    %v5012 = vld [vmem:[%s4988 + $0xb8] sm:$0xff]
    %v5013 = vld [vmem:[%s4988 + $0xc0] sm:$0xff]
    %v5014 = vld [vmem:[%s4988 + $0xc8] sm:$0xff]
    %v5015 = vld [vmem:[%s4988 + $0xd0] sm:$0xff]
    %v5016 = vld [vmem:[%s4988 + $0xd8] sm:$0xff]
    %v5017 = vld [vmem:[%s4988 + $0xe0] sm:$0xff]
    %v5018 = vld [vmem:[%s4988 + $0xe8] sm:$0xff]
    %v5019 = vld [vmem:[%s4988 + $0xf0] sm:$0xff]
    %v5020 = vld [vmem:[%s4988 + $0xf8] sm:$0xff]
    %s5021 = scalar_lea.vmem %s21, 2
    %v5022 = vld [vmem:[%s5021] sm:$0x3]
    %s5023 = scalar_lea.vmem %s22, 64
    %v5024 = vld [vmem:[%s5023] sm:$0xf]
    %v5025 = vld [vmem:[%s5023 + $0x4] sm:$0xf]
    %v5026 = vld [vmem:[%s5023 + $0x8] sm:$0xf]
    %v5027 = vld [vmem:[%s5023 + $0xc] sm:$0xf]
    %v5028 = vld [vmem:[%s5023 + $0x10] sm:$0xf]
    %v5029 = vld [vmem:[%s5023 + $0x14] sm:$0xf]
    %v5030 = vld [vmem:[%s5023 + $0x18] sm:$0xf]
    %v5031 = vld [vmem:[%s5023 + $0x1c] sm:$0xf]
    %v5032 = vld [vmem:[%s5023 + $0x20] sm:$0xf]
    %v5033 = vld [vmem:[%s5023 + $0x24] sm:$0xf]
    %v5034 = vld [vmem:[%s5023 + $0x28] sm:$0xf]
    %v5035 = vld [vmem:[%s5023 + $0x2c] sm:$0xf]
    %v5036 = vld [vmem:[%s5023 + $0x30] sm:$0xf]
    %v5037 = vld [vmem:[%s5023 + $0x34] sm:$0xf]
    %v5038 = vld [vmem:[%s5023 + $0x38] sm:$0xf]
    %v5039 = vld [vmem:[%s5023 + $0x3c] sm:$0xf]
    %s5040 = scalar_lea.vmem [#allocation26], 1
    %v5041 = vld [vmem:[%s5040] sm:$0x1]
    %v5042 = vpack.c.bf16 %v4973, %v4972
    %v5043 = vpack.c.bf16 %v4975, %v4974
    %v5044 = vpack.c.bf16 %v4977, %v4976
    %v5045 = vpack.c.bf16 %v4979, %v4978
    %v5046 = vpack.c.bf16 %v4981, %v4980
    %v5047 = vpack.c.bf16 %v4983, %v4982
    %v5048 = vpack.c.bf16 %v4985, %v4984
    %v5049 = vpack.c.bf16 %v4987, %v4986
    %v5066 = vunpack.c.l.b16 %v5024
    %v5067 = vunpack.c.l.b16 %v5025
    %v5068 = vunpack.c.l.b16 %v5026
    %v5069 = vunpack.c.l.b16 %v5027
    %v5070 = vunpack.c.l.b16 %v5028
    %v5071 = vunpack.c.l.b16 %v5029
    %v5072 = vunpack.c.l.b16 %v5030
    %v5073 = vunpack.c.l.b16 %v5031
    %v5074 = vunpack.c.l.b16 %v5032
    %v5075 = vunpack.c.l.b16 %v5033
    %v5076 = vunpack.c.l.b16 %v5034
    %v5077 = vunpack.c.l.b16 %v5035
    %v5078 = vunpack.c.l.b16 %v5036
    %v5079 = vunpack.c.l.b16 %v5037
    %v5080 = vunpack.c.l.b16 %v5038
    %v5081 = vunpack.c.l.b16 %v5039
    %v5082 = vpack.c.b16 %v5067, %v5066
    %v5083 = vpack.c.b16 %v5069, %v5068
    %v5084 = vpack.c.b16 %v5071, %v5070
    %v5085 = vpack.c.b16 %v5073, %v5072
    %v5086 = vpack.c.b16 %v5075, %v5074
    %v5087 = vpack.c.b16 %v5077, %v5076
    %v5088 = vpack.c.b16 %v5079, %v5078
    %v5089 = vpack.c.b16 %v5081, %v5080
    %5098 = vmatprep.subr.bf16.mxu0 0
    %5099 = vmatpush1.bf16.msra.mxu0 %v5082
    %5100 = vmatprep.subr.bf16.mxu0 0
    %5101 = vmatpush1.bf16.msra.mxu0 %v5083
    %5102 = vmatprep.subr.bf16.mxu0 0
    %5103 = vmatpush1.bf16.msra.mxu0 %v5084
    %5104 = vmatprep.subr.bf16.mxu0 0
    %5105 = vmatpush1.bf16.msra.mxu0 %v5085
    %5106 = vmatprep.subr.bf16.mxu0 0
    %5107 = vmatpush1.bf16.msra.mxu0 %v5086
    %5108 = vmatprep.subr.bf16.mxu0 0
    %5109 = vmatpush1.bf16.msra.mxu0 %v5087
    %5110 = vmatprep.subr.bf16.mxu0 0
    %5111 = vmatpush1.bf16.msra.mxu0 %v5088
    %5112 = vmatprep.subr.bf16.mxu0 0
    %5113 = vmatpush1.bf16.msra.mxu0 %v5089
    %5114 = vmatprep.subr.bf16.mxu0 0
    %5115 = vmatpush1.bf16.msra.mxu0 0
    %5116 = vmatprep.subr.bf16.mxu0 0
    %5117 = vmatpush1.bf16.msra.mxu0 0
    %5118 = vmatprep.subr.bf16.mxu0 0
    %5119 = vmatpush1.bf16.msra.mxu0 0
    %5120 = vmatprep.subr.bf16.mxu0 0
    %5121 = vmatpush1.bf16.msra.mxu0 0
    %5122 = vmatprep.subr.bf16.mxu0 0
    %5123 = vmatpush1.bf16.msra.mxu0 0
    %5124 = vmatprep.subr.bf16.mxu0 0
    %5125 = vmatpush1.bf16.msra.mxu0 0
    %5126 = vmatprep.subr.bf16.mxu0 0
    %5127 = vmatpush1.bf16.msra.mxu0 0
    %5128 = vmatprep.subr.bf16.mxu0 0
    %5129 = vmatpush1.bf16.msra.mxu0 0
    %5130 = vmatprep.mubr.bf16.mxu0 0
    %5131 = vmatmul.mubr.bf16.gmra.mrb[0].mxu0 %v5042
    %v5132 = vpop.f32.mrb[0].mxu0
    %v5133 = vadd.f32 0.0, %v5132
    %v5134 = vpop.f32.mrb[0].mxu0
    %v5135 = vpop.f32.mrb[0].mxu0
    %v5136 = vadd.f32 0.0, %v5135
    %v5137 = vpop.f32.mrb[0].mxu0
    %5138 = vmatprep.mubr.bf16.mxu0 0
    %5139 = vmatmul.mubr.bf16.gmra.mrb[0].mxu0 %v5043
    %v5140 = vpop.f32.mrb[0].mxu0
    %v5141 = vadd.f32 0.0, %v5140
    %v5142 = vpop.f32.mrb[0].mxu0
    %v5143 = vpop.f32.mrb[0].mxu0
    %v5144 = vadd.f32 0.0, %v5143
    %v5145 = vpop.f32.mrb[0].mxu0
    %5146 = vmatprep.mubr.bf16.mxu0 0
    %5147 = vmatmul.mubr.bf16.gmra.mrb[0].mxu0 %v5044
    %v5148 = vpop.f32.mrb[0].mxu0
    %v5149 = vadd.f32 0.0, %v5148
    %v5150 = vpop.f32.mrb[0].mxu0
    %v5151 = vpop.f32.mrb[0].mxu0
    %v5152 = vadd.f32 0.0, %v5151
    %v5153 = vpop.f32.mrb[0].mxu0
    %5154 = vmatprep.mubr.bf16.mxu0 0
    %5155 = vmatmul.mubr.bf16.gmra.mrb[0].mxu0 %v5045
    %v5156 = vpop.f32.mrb[0].mxu0
    %v5157 = vadd.f32 0.0, %v5156
    %v5158 = vpop.f32.mrb[0].mxu0
    %v5159 = vpop.f32.mrb[0].mxu0
    %v5160 = vadd.f32 0.0, %v5159
    %v5161 = vpop.f32.mrb[0].mxu0
    %5162 = vmatprep.mubr.bf16.mxu0 0
    %5163 = vmatmul.mubr.bf16.gmra.mrb[0].mxu0 %v5046
    %v5164 = vpop.f32.mrb[0].mxu0
    %v5165 = vadd.f32 0.0, %v5164
    %v5166 = vpop.f32.mrb[0].mxu0
    %v5167 = vpop.f32.mrb[0].mxu0
    %v5168 = vadd.f32 0.0, %v5167
    %v5169 = vpop.f32.mrb[0].mxu0
    %5170 = vmatprep.mubr.bf16.mxu0 0
    %5171 = vmatmul.mubr.bf16.gmra.mrb[0].mxu0 %v5047
    %v5172 = vpop.f32.mrb[0].mxu0
    %v5173 = vadd.f32 0.0, %v5172
    %v5174 = vpop.f32.mrb[0].mxu0
    %v5175 = vpop.f32.mrb[0].mxu0
    %v5176 = vadd.f32 0.0, %v5175
    %v5177 = vpop.f32.mrb[0].mxu0
    %5178 = vmatprep.mubr.bf16.mxu0 0
    %5179 = vmatmul.mubr.bf16.gmra.mrb[0].mxu0 %v5048
    %v5180 = vpop.f32.mrb[0].mxu0
    %v5181 = vadd.f32 0.0, %v5180
    %v5182 = vpop.f32.mrb[0].mxu0
    %v5183 = vpop.f32.mrb[0].mxu0
    %v5184 = vadd.f32 0.0, %v5183
    %v5185 = vpop.f32.mrb[0].mxu0
    %5186 = vmatprep.mubr.bf16.mxu0 0
    %5187 = vmatmul.mubr.bf16.gmra.mrb[0].mxu0 %v5049
    %v5188 = vpop.f32.mrb[0].mxu0
    %v5189 = vadd.f32 0.0, %v5188
    %v5190 = vpop.f32.mrb[0].mxu0
    %v5191 = vpop.f32.mrb[0].mxu0
    %v5192 = vadd.f32 0.0, %v5191
    %v5193 = vpop.f32.mrb[0].mxu0
    %5194 = vdwg.mxu0
    %5195 = vmatprep.subr.bf16.mxu0 0
    %5196 = vmatpush1.bf16.xpose.msra.mxu0 %v5042
    %5197 = vmatprep.subr.bf16.mxu0 0
    %5198 = vmatpush1.bf16.xpose.msra.mxu0 %v5043
    %5199 = vmatprep.subr.bf16.mxu0 0
    %5200 = vmatpush1.bf16.xpose.msra.mxu0 %v5044
    %5201 = vmatprep.subr.bf16.mxu0 0
    %5202 = vmatpush1.bf16.xpose.msra.mxu0 %v5045
    %5203 = vmatprep.subr.bf16.mxu0 0
    %5204 = vmatpush1.bf16.xpose.msra.mxu0 %v5046
    %5205 = vmatprep.subr.bf16.mxu0 0
    %5206 = vmatpush1.bf16.xpose.msra.mxu0 %v5047
    %5207 = vmatprep.subr.bf16.mxu0 0
    %5208 = vmatpush1.bf16.xpose.msra.mxu0 %v5048
    %5209 = vmatprep.subr.bf16.mxu0 0
    %5210 = vmatpush1.bf16.xpose.msra.mxu0 %v5049
    %5211 = vmatprep.subr.bf16.mxu0 0
    %5212 = vmatpush1.bf16.xpose.msra.mxu0 0
    %5213 = vmatprep.subr.bf16.mxu0 0
    %5214 = vmatpush1.bf16.xpose.msra.mxu0 0
    %5215 = vmatprep.subr.bf16.mxu0 0
    %5216 = vmatpush1.bf16.xpose.msra.mxu0 0
    %5217 = vmatprep.subr.bf16.mxu0 0
    %5218 = vmatpush1.bf16.xpose.msra.mxu0 0
    %5219 = vmatprep.subr.bf16.mxu0 0
    %5220 = vmatpush1.bf16.xpose.msra.mxu0 0
    %5221 = vmatprep.subr.bf16.mxu0 0
    %5222 = vmatpush1.bf16.xpose.msra.mxu0 0
    %5223 = vmatprep.subr.bf16.mxu0 0
    %5224 = vmatpush1.bf16.xpose.msra.mxu0 0
    %5225 = vmatprep.subr.bf16.mxu0 0
    %5226 = vmatpush1.bf16.xpose.msra.mxu0 0
    %5227 = vmatprep.mubr.bf16.mxu0 0
    %5228 = vmatmul.mubr.bf16.gmra.mrb[0].mxu0 %v5022
    %v5229 = vpop.f32.mrb[0].mxu0
    %v5230 = vadd.f32 0.0, %v5229
    %v5231 = vpop.f32.mrb[0].mxu0
    %v5232 = vpop.f32.mrb[0].mxu0
    %v5233 = vpop.f32.mrb[0].mxu0
    %5234 = vdwg.mxu0
    %5236 = vset.pattern.permute.xlu0 0
    %5237 = vperm.xlu0 %5236, %v5133
    %v5238 = vpop.permute.xlu0 %5237
    %5241 = vset.pattern.permute.xlu0 0
    %5242 = vperm.xlu0 %5241, %v5136
    %v5243 = vpop.permute.xlu0 %5242
    %5246 = vset.pattern.permute.xlu0 0
    %5247 = vperm.xlu0 %5246, %v5141
    %v5248 = vpop.permute.xlu0 %5247
    %5251 = vset.pattern.permute.xlu0 0
    %5252 = vperm.xlu0 %5251, %v5144
    %v5253 = vpop.permute.xlu0 %5252
    %5256 = vset.pattern.permute.xlu0 0
    %5257 = vperm.xlu0 %5256, %v5149
    %v5258 = vpop.permute.xlu0 %5257
    %5261 = vset.pattern.permute.xlu0 0
    %5262 = vperm.xlu0 %5261, %v5152
    %v5263 = vpop.permute.xlu0 %5262
    %5266 = vset.pattern.permute.xlu0 0
    %5267 = vperm.xlu0 %5266, %v5157
    %v5268 = vpop.permute.xlu0 %5267
    %5271 = vset.pattern.permute.xlu0 0
    %5272 = vperm.xlu0 %5271, %v5160
    %v5273 = vpop.permute.xlu0 %5272
    %5276 = vset.pattern.permute.xlu0 0
    %5277 = vperm.xlu0 %5276, %v5165
    %v5278 = vpop.permute.xlu0 %5277
    %5281 = vset.pattern.permute.xlu0 0
    %5282 = vperm.xlu0 %5281, %v5168
    %v5283 = vpop.permute.xlu0 %5282
    %5286 = vset.pattern.permute.xlu0 0
    %5287 = vperm.xlu0 %5286, %v5173
    %v5288 = vpop.permute.xlu0 %5287
    %5291 = vset.pattern.permute.xlu0 0
    %5292 = vperm.xlu0 %5291, %v5176
    %v5293 = vpop.permute.xlu0 %5292
    %5296 = vset.pattern.permute.xlu0 0
    %5297 = vperm.xlu0 %5296, %v5181
    %v5298 = vpop.permute.xlu0 %5297
    %5301 = vset.pattern.permute.xlu0 0
    %5302 = vperm.xlu0 %5301, %v5184
    %v5303 = vpop.permute.xlu0 %5302
    %5306 = vset.pattern.permute.xlu0 0
    %5307 = vperm.xlu0 %5306, %v5189
    %v5308 = vpop.permute.xlu0 %5307
    %5311 = vset.pattern.permute.xlu0 0
    %5312 = vperm.xlu0 %5311, %v5192
    %v5313 = vpop.permute.xlu0 %5312
    %v5315 = vlaneseq
    %v5316 = vshrl.u32 %v5315, 7
    %v5317 = vsub.s32 0, %v5316
    %v5318 = vrot.slane %v5230, %v5317
    %v5319 = vadd.f32 %v5238, %v5318
    %v5320 = vadd.f32 %v5243, %v5318
    %v5321 = vadd.f32 %v5248, %v5318
    %v5322 = vadd.f32 %v5253, %v5318
    %v5323 = vadd.f32 %v5258, %v5318
    %v5324 = vadd.f32 %v5263, %v5318
    %v5325 = vadd.f32 %v5268, %v5318
    %v5326 = vadd.f32 %v5273, %v5318
    %v5327 = vadd.f32 %v5278, %v5318
    %v5328 = vadd.f32 %v5283, %v5318
    %v5329 = vadd.f32 %v5288, %v5318
    %v5330 = vadd.f32 %v5293, %v5318
    %v5331 = vadd.f32 %v5298, %v5318
    %v5332 = vadd.f32 %v5303, %v5318
    %v5333 = vadd.f32 %v5308, %v5318
    %v5334 = vadd.f32 %v5313, %v5318
    %s5335 = scalar_lea.vmem [#allocation4], 256
    %v5336 = vld [vmem:[%s5335] sm:$0xff]
    %v5337 = vld [vmem:[%s5335 + $0x8] sm:$0xff]
    %v5338 = vld [vmem:[%s5335 + $0x10] sm:$0xff]
    %v5339 = vld [vmem:[%s5335 + $0x18] sm:$0xff]
    %v5340 = vld [vmem:[%s5335 + $0x20] sm:$0xff]
    %v5341 = vld [vmem:[%s5335 + $0x28] sm:$0xff]
    %v5342 = vld [vmem:[%s5335 + $0x30] sm:$0xff]
    %v5343 = vld [vmem:[%s5335 + $0x38] sm:$0xff]
    %v5344 = vunpack.c.l.bf16 %v5336
    %v5345 = vunpack.c.h.bf16 %v5336
    %v5346 = vunpack.c.l.bf16 %v5337
    %v5347 = vunpack.c.h.bf16 %v5337
    %v5348 = vunpack.c.l.bf16 %v5338
    %v5349 = vunpack.c.h.bf16 %v5338
    %v5350 = vunpack.c.l.bf16 %v5339
    %v5351 = vunpack.c.h.bf16 %v5339
    %v5352 = vunpack.c.l.bf16 %v5340
    %v5353 = vunpack.c.h.bf16 %v5340
    %v5354 = vunpack.c.l.bf16 %v5341
    %v5355 = vunpack.c.h.bf16 %v5341
    %v5356 = vunpack.c.l.bf16 %v5342
    %v5357 = vunpack.c.h.bf16 %v5342
    %v5358 = vunpack.c.l.bf16 %v5343
    %v5359 = vunpack.c.h.bf16 %v5343
    %v5360 = vadd.f32 %v5319, %v5344
    %v5361 = vadd.f32 %v5320, %v5345
    %v5362 = vadd.f32 %v5321, %v5346
    %v5363 = vadd.f32 %v5322, %v5347
    %v5364 = vadd.f32 %v5323, %v5348
    %v5365 = vadd.f32 %v5324, %v5349
    %v5366 = vadd.f32 %v5325, %v5350
    %v5367 = vadd.f32 %v5326, %v5351
    %v5368 = vadd.f32 %v5327, %v5352
    %v5369 = vadd.f32 %v5328, %v5353
    %v5370 = vadd.f32 %v5329, %v5354
    %v5371 = vadd.f32 %v5330, %v5355
    %v5372 = vadd.f32 %v5331, %v5356
    %v5373 = vadd.f32 %v5332, %v5357
    %v5374 = vadd.f32 %v5333, %v5358
    %v5375 = vadd.f32 %v5334, %v5359
    %v5376 = vmul.f32 %v5360, 0.2
    %v5377 = vmul.f32 %v5361, 0.2
    %v5378 = vmul.f32 %v5362, 0.2
    %v5379 = vmul.f32 %v5363, 0.2
    %v5380 = vmul.f32 %v5364, 0.2
    %v5381 = vmul.f32 %v5365, 0.2
    %v5382 = vmul.f32 %v5366, 0.2
    %v5383 = vmul.f32 %v5367, 0.2
    %v5384 = vmul.f32 %v5368, 0.2
    %v5385 = vmul.f32 %v5369, 0.2
    %v5386 = vmul.f32 %v5370, 0.2
    %v5387 = vmul.f32 %v5371, 0.2
    %v5388 = vmul.f32 %v5372, 0.2
    %v5389 = vmul.f32 %v5373, 0.2
    %v5390 = vmul.f32 %v5374, 0.2
    %v5391 = vmul.f32 %v5375, 0.2
    %v5392 = vmax.f32 %v5360, %v5376
    %v5393 = vmax.f32 %v5361, %v5377
    %v5394 = vmax.f32 %v5362, %v5378
    %v5395 = vmax.f32 %v5363, %v5379
    %v5396 = vmax.f32 %v5364, %v5380
    %v5397 = vmax.f32 %v5365, %v5381
    %v5398 = vmax.f32 %v5366, %v5382
    %v5399 = vmax.f32 %v5367, %v5383
    %v5400 = vmax.f32 %v5368, %v5384
    %v5401 = vmax.f32 %v5369, %v5385
    %v5402 = vmax.f32 %v5370, %v5386
    %v5403 = vmax.f32 %v5371, %v5387
    %v5404 = vmax.f32 %v5372, %v5388
    %v5405 = vmax.f32 %v5373, %v5389
    %v5406 = vmax.f32 %v5374, %v5390
    %v5407 = vmax.f32 %v5375, %v5391
    %5408 = vmax.xlane.f32.xlu0 %v5392
    %v5409 = vpop.xlane.xlu0 %5408
    %5410 = vmax.xlane.f32.xlu0 %v5393
    %v5411 = vpop.xlane.xlu0 %5410
    %5412 = vmax.xlane.f32.xlu0 %v5394
    %v5413 = vpop.xlane.xlu0 %5412
    %5414 = vmax.xlane.f32.xlu0 %v5395
    %v5415 = vpop.xlane.xlu0 %5414
    %5416 = vmax.xlane.f32.xlu0 %v5396
    %v5417 = vpop.xlane.xlu0 %5416
    %5418 = vmax.xlane.f32.xlu0 %v5397
    %v5419 = vpop.xlane.xlu0 %5418
    %5420 = vmax.xlane.f32.xlu0 %v5398
    %v5421 = vpop.xlane.xlu0 %5420
    %5422 = vmax.xlane.f32.xlu0 %v5399
    %v5423 = vpop.xlane.xlu0 %5422
    %5424 = vmax.xlane.f32.xlu0 %v5400
    %v5425 = vpop.xlane.xlu0 %5424
    %5426 = vmax.xlane.f32.xlu0 %v5401
    %v5427 = vpop.xlane.xlu0 %5426
    %5428 = vmax.xlane.f32.xlu0 %v5402
    %v5429 = vpop.xlane.xlu0 %5428
    %5430 = vmax.xlane.f32.xlu0 %v5403
    %v5431 = vpop.xlane.xlu0 %5430
    %5432 = vmax.xlane.f32.xlu0 %v5404
    %v5433 = vpop.xlane.xlu0 %5432
    %5434 = vmax.xlane.f32.xlu0 %v5405
    %v5435 = vpop.xlane.xlu0 %5434
    %5436 = vmax.xlane.f32.xlu0 %v5406
    %v5437 = vpop.xlane.xlu0 %5436
    %5438 = vmax.xlane.f32.xlu0 %v5407
    %v5439 = vpop.xlane.xlu0 %5438
    %v5440 = vsub.f32 %v5392, %v5409
    %v5441 = vsub.f32 %v5393, %v5411
    %v5442 = vsub.f32 %v5394, %v5413
    %v5443 = vsub.f32 %v5395, %v5415
    %v5444 = vsub.f32 %v5396, %v5417
    %v5445 = vsub.f32 %v5397, %v5419
    %v5446 = vsub.f32 %v5398, %v5421
    %v5447 = vsub.f32 %v5399, %v5423
    %v5448 = vsub.f32 %v5400, %v5425
    %v5449 = vsub.f32 %v5401, %v5427
    %v5450 = vsub.f32 %v5402, %v5429
    %v5451 = vsub.f32 %v5403, %v5431
    %v5452 = vsub.f32 %v5404, %v5433
    %v5453 = vsub.f32 %v5405, %v5435
    %v5454 = vsub.f32 %v5406, %v5437
    %v5455 = vsub.f32 %v5407, %v5439
    %v5456 = vmul.f32 %v5440, 1.442695
    %v5457 = vpow.pop %v5456
    %v5458 = vmul.f32 %v5441, 1.442695
    %v5459 = vpow.pop %v5458
    %v5460 = vmul.f32 %v5442, 1.442695
    %v5461 = vpow.pop %v5460
    %v5462 = vmul.f32 %v5443, 1.442695
    %v5463 = vpow.pop %v5462
    %v5464 = vmul.f32 %v5444, 1.442695
    %v5465 = vpow.pop %v5464
    %v5466 = vmul.f32 %v5445, 1.442695
    %v5467 = vpow.pop %v5466
    %v5468 = vmul.f32 %v5446, 1.442695
    %v5469 = vpow.pop %v5468
    %v5470 = vmul.f32 %v5447, 1.442695
    %v5471 = vpow.pop %v5470
    %v5472 = vmul.f32 %v5448, 1.442695
    %v5473 = vpow.pop %v5472
    %v5474 = vmul.f32 %v5449, 1.442695
    %v5475 = vpow.pop %v5474
    %v5476 = vmul.f32 %v5450, 1.442695
    %v5477 = vpow.pop %v5476
    %v5478 = vmul.f32 %v5451, 1.442695
    %v5479 = vpow.pop %v5478
    %v5480 = vmul.f32 %v5452, 1.442695
    %v5481 = vpow.pop %v5480
    %v5482 = vmul.f32 %v5453, 1.442695
    %v5483 = vpow.pop %v5482
    %v5484 = vmul.f32 %v5454, 1.442695
    %v5485 = vpow.pop %v5484
    %v5486 = vmul.f32 %v5455, 1.442695
    %v5487 = vpow.pop %v5486
    %5488 = vadd.xlane.f32.xlu0 %v5457
    %v5489 = vpop.xlane.xlu0 %5488
    %5490 = vadd.xlane.f32.xlu0 %v5459
    %v5491 = vpop.xlane.xlu0 %5490
    %5492 = vadd.xlane.f32.xlu0 %v5461
    %v5493 = vpop.xlane.xlu0 %5492
    %5494 = vadd.xlane.f32.xlu0 %v5463
    %v5495 = vpop.xlane.xlu0 %5494
    %5496 = vadd.xlane.f32.xlu0 %v5465
    %v5497 = vpop.xlane.xlu0 %5496
    %5498 = vadd.xlane.f32.xlu0 %v5467
    %v5499 = vpop.xlane.xlu0 %5498
    %5500 = vadd.xlane.f32.xlu0 %v5469
    %v5501 = vpop.xlane.xlu0 %5500
    %5502 = vadd.xlane.f32.xlu0 %v5471
    %v5503 = vpop.xlane.xlu0 %5502
    %5504 = vadd.xlane.f32.xlu0 %v5473
    %v5505 = vpop.xlane.xlu0 %5504
    %5506 = vadd.xlane.f32.xlu0 %v5475
    %v5507 = vpop.xlane.xlu0 %5506
    %5508 = vadd.xlane.f32.xlu0 %v5477
    %v5509 = vpop.xlane.xlu0 %5508
    %5510 = vadd.xlane.f32.xlu0 %v5479
    %v5511 = vpop.xlane.xlu0 %5510
    %5512 = vadd.xlane.f32.xlu0 %v5481
    %v5513 = vpop.xlane.xlu0 %5512
    %5514 = vadd.xlane.f32.xlu0 %v5483
    %v5515 = vpop.xlane.xlu0 %5514
    %5516 = vadd.xlane.f32.xlu0 %v5485
    %v5517 = vpop.xlane.xlu0 %5516
    %5518 = vadd.xlane.f32.xlu0 %v5487
    %v5519 = vpop.xlane.xlu0 %5518
    %v5520 = vrcp.pop %v5489
    %v5521 = vrcp.pop %v5491
    %v5522 = vrcp.pop %v5493
    %v5523 = vrcp.pop %v5495
    %v5524 = vrcp.pop %v5497
    %v5525 = vrcp.pop %v5499
    %v5526 = vrcp.pop %v5501
    %v5527 = vrcp.pop %v5503
    %v5528 = vrcp.pop %v5505
    %v5529 = vrcp.pop %v5507
    %v5530 = vrcp.pop %v5509
    %v5531 = vrcp.pop %v5511
    %v5532 = vrcp.pop %v5513
    %v5533 = vrcp.pop %v5515
    %v5534 = vrcp.pop %v5517
    %v5535 = vrcp.pop %v5519
    %v5536 = vmul.f32 %v5457, %v5520
    %v5537 = vmul.f32 %v5459, %v5521
    %v5538 = vmul.f32 %v5461, %v5522
    %v5539 = vmul.f32 %v5463, %v5523
    %v5540 = vmul.f32 %v5465, %v5524
    %v5541 = vmul.f32 %v5467, %v5525
    %v5542 = vmul.f32 %v5469, %v5526
    %v5543 = vmul.f32 %v5471, %v5527
    %v5544 = vmul.f32 %v5473, %v5528
    %v5545 = vmul.f32 %v5475, %v5529
    %v5546 = vmul.f32 %v5477, %v5530
    %v5547 = vmul.f32 %v5479, %v5531
    %v5548 = vmul.f32 %v5481, %v5532
    %v5549 = vmul.f32 %v5483, %v5533
    %v5550 = vmul.f32 %v5485, %v5534
    %v5551 = vmul.f32 %v5487, %v5535
    %v5552 = vpack.c.bf16 %v5537, %v5536
    %v5553 = vpack.c.bf16 %v5539, %v5538
    %v5554 = vpack.c.bf16 %v5541, %v5540
    %v5555 = vpack.c.bf16 %v5543, %v5542
    %v5556 = vpack.c.bf16 %v5545, %v5544
    %v5557 = vpack.c.bf16 %v5547, %v5546
    %v5558 = vpack.c.bf16 %v5549, %v5548
    %v5559 = vpack.c.bf16 %v5551, %v5550
    %5560 = vmatprep.subr.bf16.mxu0 0
    %5561 = vmatpush1.bf16.msra.mxu0 %v5042
    %5562 = vmatprep.subr.bf16.mxu0 0
    %5563 = vmatpush1.bf16.msra.mxu0 %v5043
    %5564 = vmatprep.subr.bf16.mxu0 0
    %5565 = vmatpush1.bf16.msra.mxu0 %v5044
    %5566 = vmatprep.subr.bf16.mxu0 0
    %5567 = vmatpush1.bf16.msra.mxu0 %v5045
    %5568 = vmatprep.subr.bf16.mxu0 0
    %5569 = vmatpush1.bf16.msra.mxu0 %v5046
    %5570 = vmatprep.subr.bf16.mxu0 0
    %5571 = vmatpush1.bf16.msra.mxu0 %v5047
    %5572 = vmatprep.subr.bf16.mxu0 0
    %5573 = vmatpush1.bf16.msra.mxu0 %v5048
    %5574 = vmatprep.subr.bf16.mxu0 0
    %5575 = vmatpush1.bf16.msra.mxu0 %v5049
    %5576 = vmatprep.subr.bf16.mxu0 0
    %5577 = vmatpush1.bf16.msra.mxu0 0
    %5578 = vmatprep.subr.bf16.mxu0 0
    %5579 = vmatpush1.bf16.msra.mxu0 0
    %5580 = vmatprep.subr.bf16.mxu0 0
    %5581 = vmatpush1.bf16.msra.mxu0 0
    %5582 = vmatprep.subr.bf16.mxu0 0
    %5583 = vmatpush1.bf16.msra.mxu0 0
    %5584 = vmatprep.subr.bf16.mxu0 0
    %5585 = vmatpush1.bf16.msra.mxu0 0
    %5586 = vmatprep.subr.bf16.mxu0 0
    %5587 = vmatpush1.bf16.msra.mxu0 0
    %5588 = vmatprep.subr.bf16.mxu0 0
    %5589 = vmatpush1.bf16.msra.mxu0 0
    %5590 = vmatprep.subr.bf16.mxu0 0
    %5591 = vmatpush1.bf16.msra.mxu0 0
    %5592 = vmatprep.mubr.bf16.mxu0 0
    %5593 = vmatmul.mubr.bf16.gmra.mrb[0].mxu0 %v5552
    %v5594 = vpop.f32.mrb[0].mxu0
    %v5595 = vadd.f32 0.0, %v5594
    %v5596 = vpop.f32.mrb[0].mxu0
    %v5597 = vpop.f32.mrb[0].mxu0
    %v5598 = vadd.f32 0.0, %v5597
    %v5599 = vpop.f32.mrb[0].mxu0
    %5600 = vmatprep.mubr.bf16.mxu0 0
    %5601 = vmatmul.mubr.bf16.gmra.mrb[0].mxu0 %v5553
    %v5602 = vpop.f32.mrb[0].mxu0
    %v5603 = vadd.f32 0.0, %v5602
    %v5604 = vpop.f32.mrb[0].mxu0
    %v5605 = vpop.f32.mrb[0].mxu0
    %v5606 = vadd.f32 0.0, %v5605
    %v5607 = vpop.f32.mrb[0].mxu0
    %5608 = vmatprep.mubr.bf16.mxu0 0
    %5609 = vmatmul.mubr.bf16.gmra.mrb[0].mxu0 %v5554
    %v5610 = vpop.f32.mrb[0].mxu0
    %v5611 = vadd.f32 0.0, %v5610
    %v5612 = vpop.f32.mrb[0].mxu0
    %v5613 = vpop.f32.mrb[0].mxu0
    %v5614 = vadd.f32 0.0, %v5613
    %v5615 = vpop.f32.mrb[0].mxu0
    %5616 = vmatprep.mubr.bf16.mxu0 0
    %5617 = vmatmul.mubr.bf16.gmra.mrb[0].mxu0 %v5555
    %v5618 = vpop.f32.mrb[0].mxu0
    %v5619 = vadd.f32 0.0, %v5618
    %v5620 = vpop.f32.mrb[0].mxu0
    %v5621 = vpop.f32.mrb[0].mxu0
    %v5622 = vadd.f32 0.0, %v5621
    %v5623 = vpop.f32.mrb[0].mxu0
    %5624 = vmatprep.mubr.bf16.mxu0 0
    %5625 = vmatmul.mubr.bf16.gmra.mrb[0].mxu0 %v5556
    %v5626 = vpop.f32.mrb[0].mxu0
    %v5627 = vadd.f32 0.0, %v5626
    %v5628 = vpop.f32.mrb[0].mxu0
    %v5629 = vpop.f32.mrb[0].mxu0
    %v5630 = vadd.f32 0.0, %v5629
    %v5631 = vpop.f32.mrb[0].mxu0
    %5632 = vmatprep.mubr.bf16.mxu0 0
    %5633 = vmatmul.mubr.bf16.gmra.mrb[0].mxu0 %v5557
    %v5634 = vpop.f32.mrb[0].mxu0
    %v5635 = vadd.f32 0.0, %v5634
    %v5636 = vpop.f32.mrb[0].mxu0
    %v5637 = vpop.f32.mrb[0].mxu0
    %v5638 = vadd.f32 0.0, %v5637
    %v5639 = vpop.f32.mrb[0].mxu0
    %5640 = vmatprep.mubr.bf16.mxu0 0
    %5641 = vmatmul.mubr.bf16.gmra.mrb[0].mxu0 %v5558
    %v5642 = vpop.f32.mrb[0].mxu0
    %v5643 = vadd.f32 0.0, %v5642
    %v5644 = vpop.f32.mrb[0].mxu0
    %v5645 = vpop.f32.mrb[0].mxu0
    %v5646 = vadd.f32 0.0, %v5645
    %v5647 = vpop.f32.mrb[0].mxu0
    %5648 = vmatprep.mubr.bf16.mxu0 0
    %5649 = vmatmul.mubr.bf16.gmra.mrb[0].mxu0 %v5559
    %v5650 = vpop.f32.mrb[0].mxu0
    %v5651 = vadd.f32 0.0, %v5650
    %v5652 = vpop.f32.mrb[0].mxu0
    %v5653 = vpop.f32.mrb[0].mxu0
    %v5654 = vadd.f32 0.0, %v5653
    %v5655 = vpop.f32.mrb[0].mxu0
    %5656 = vdwg.mxu0
    %5657 = vset.pattern.permute.xlu0 1
    %5658 = vperm.xlu0 %5657, %v5133
    %v5659 = vpop.permute.xlu0 %5658
    %5661 = vset.pattern.permute.xlu0 1
    %5662 = vperm.xlu0 %5661, %v5136
    %v5663 = vpop.permute.xlu0 %5662
    %5665 = vset.pattern.permute.xlu0 1
    %5666 = vperm.xlu0 %5665, %v5141
    %v5667 = vpop.permute.xlu0 %5666
    %5669 = vset.pattern.permute.xlu0 1
    %5670 = vperm.xlu0 %5669, %v5144
    %v5671 = vpop.permute.xlu0 %5670
    %5673 = vset.pattern.permute.xlu0 1
    %5674 = vperm.xlu0 %5673, %v5149
    %v5675 = vpop.permute.xlu0 %5674
    %5677 = vset.pattern.permute.xlu0 1
    %5678 = vperm.xlu0 %5677, %v5152
    %v5679 = vpop.permute.xlu0 %5678
    %5681 = vset.pattern.permute.xlu0 1
    %5682 = vperm.xlu0 %5681, %v5157
    %v5683 = vpop.permute.xlu0 %5682
    %5685 = vset.pattern.permute.xlu0 1
    %5686 = vperm.xlu0 %5685, %v5160
    %v5687 = vpop.permute.xlu0 %5686
    %5689 = vset.pattern.permute.xlu0 1
    %5690 = vperm.xlu0 %5689, %v5165
    %v5691 = vpop.permute.xlu0 %5690
    %5693 = vset.pattern.permute.xlu0 1
    %5694 = vperm.xlu0 %5693, %v5168
    %v5695 = vpop.permute.xlu0 %5694
    %5697 = vset.pattern.permute.xlu0 1
    %5698 = vperm.xlu0 %5697, %v5173
    %v5699 = vpop.permute.xlu0 %5698
    %5701 = vset.pattern.permute.xlu0 1
    %5702 = vperm.xlu0 %5701, %v5176
    %v5703 = vpop.permute.xlu0 %5702
    %5705 = vset.pattern.permute.xlu0 1
    %5706 = vperm.xlu0 %5705, %v5181
    %v5707 = vpop.permute.xlu0 %5706
    %5709 = vset.pattern.permute.xlu0 1
    %5710 = vperm.xlu0 %5709, %v5184
    %v5711 = vpop.permute.xlu0 %5710
    %5713 = vset.pattern.permute.xlu0 1
    %5714 = vperm.xlu0 %5713, %v5189
    %v5715 = vpop.permute.xlu0 %5714
    %5717 = vset.pattern.permute.xlu0 1
    %5718 = vperm.xlu0 %5717, %v5192
    %v5719 = vpop.permute.xlu0 %5718
    %v5721 = vlaneseq
    %v5722 = vshrl.u32 %v5721, 7
    %v5723 = vsub.s32 1, %v5722
    %v5724 = vrot.slane %v5230, %v5723
    %v5725 = vadd.f32 %v5659, %v5724
    %v5726 = vadd.f32 %v5663, %v5724
    %v5727 = vadd.f32 %v5667, %v5724
    %v5728 = vadd.f32 %v5671, %v5724
    %v5729 = vadd.f32 %v5675, %v5724
    %v5730 = vadd.f32 %v5679, %v5724
    %v5731 = vadd.f32 %v5683, %v5724
    %v5732 = vadd.f32 %v5687, %v5724
    %v5733 = vadd.f32 %v5691, %v5724
    %v5734 = vadd.f32 %v5695, %v5724
    %v5735 = vadd.f32 %v5699, %v5724
    %v5736 = vadd.f32 %v5703, %v5724
    %v5737 = vadd.f32 %v5707, %v5724
    %v5738 = vadd.f32 %v5711, %v5724
    %v5739 = vadd.f32 %v5715, %v5724
    %v5740 = vadd.f32 %v5719, %v5724
    %s5741 = scalar_lea.vmem %s5335, 64 [#allocation4]
    %v5742 = vld [vmem:[%s5741] sm:$0xff]
    %v5743 = vld [vmem:[%s5741 + $0x8] sm:$0xff]
    %v5744 = vld [vmem:[%s5741 + $0x10] sm:$0xff]
    %v5745 = vld [vmem:[%s5741 + $0x18] sm:$0xff]
    %v5746 = vld [vmem:[%s5741 + $0x20] sm:$0xff]
    %v5747 = vld [vmem:[%s5741 + $0x28] sm:$0xff]
    %v5748 = vld [vmem:[%s5741 + $0x30] sm:$0xff]
    %v5749 = vld [vmem:[%s5741 + $0x38] sm:$0xff]
    %v5750 = vunpack.c.l.bf16 %v5742
    %v5751 = vunpack.c.h.bf16 %v5742
    %v5752 = vunpack.c.l.bf16 %v5743
    %v5753 = vunpack.c.h.bf16 %v5743
    %v5754 = vunpack.c.l.bf16 %v5744
    %v5755 = vunpack.c.h.bf16 %v5744
    %v5756 = vunpack.c.l.bf16 %v5745
    %v5757 = vunpack.c.h.bf16 %v5745
    %v5758 = vunpack.c.l.bf16 %v5746
    %v5759 = vunpack.c.h.bf16 %v5746
    %v5760 = vunpack.c.l.bf16 %v5747
    %v5761 = vunpack.c.h.bf16 %v5747
    %v5762 = vunpack.c.l.bf16 %v5748
    %v5763 = vunpack.c.h.bf16 %v5748
    %v5764 = vunpack.c.l.bf16 %v5749
    %v5765 = vunpack.c.h.bf16 %v5749
    %v5766 = vadd.f32 %v5725, %v5750
    %v5767 = vadd.f32 %v5726, %v5751
    %v5768 = vadd.f32 %v5727, %v5752
    %v5769 = vadd.f32 %v5728, %v5753
    %v5770 = vadd.f32 %v5729, %v5754
    %v5771 = vadd.f32 %v5730, %v5755
    %v5772 = vadd.f32 %v5731, %v5756
    %v5773 = vadd.f32 %v5732, %v5757
    %v5774 = vadd.f32 %v5733, %v5758
    %v5775 = vadd.f32 %v5734, %v5759
    %v5776 = vadd.f32 %v5735, %v5760
    %v5777 = vadd.f32 %v5736, %v5761
    %v5778 = vadd.f32 %v5737, %v5762
    %v5779 = vadd.f32 %v5738, %v5763
    %v5780 = vadd.f32 %v5739, %v5764
    %v5781 = vadd.f32 %v5740, %v5765
    %v5782 = vmul.f32 %v5766, 0.2
    %v5783 = vmul.f32 %v5767, 0.2
    %v5784 = vmul.f32 %v5768, 0.2
    %v5785 = vmul.f32 %v5769, 0.2
    %v5786 = vmul.f32 %v5770, 0.2
    %v5787 = vmul.f32 %v5771, 0.2
    %v5788 = vmul.f32 %v5772, 0.2
    %v5789 = vmul.f32 %v5773, 0.2
    %v5790 = vmul.f32 %v5774, 0.2
    %v5791 = vmul.f32 %v5775, 0.2
    %v5792 = vmul.f32 %v5776, 0.2
    %v5793 = vmul.f32 %v5777, 0.2
    %v5794 = vmul.f32 %v5778, 0.2
    %v5795 = vmul.f32 %v5779, 0.2
    %v5796 = vmul.f32 %v5780, 0.2
    %v5797 = vmul.f32 %v5781, 0.2
    %v5798 = vmax.f32 %v5766, %v5782
    %v5799 = vmax.f32 %v5767, %v5783
    %v5800 = vmax.f32 %v5768, %v5784
    %v5801 = vmax.f32 %v5769, %v5785
    %v5802 = vmax.f32 %v5770, %v5786
    %v5803 = vmax.f32 %v5771, %v5787
    %v5804 = vmax.f32 %v5772, %v5788
    %v5805 = vmax.f32 %v5773, %v5789
    %v5806 = vmax.f32 %v5774, %v5790
    %v5807 = vmax.f32 %v5775, %v5791
    %v5808 = vmax.f32 %v5776, %v5792
    %v5809 = vmax.f32 %v5777, %v5793
    %v5810 = vmax.f32 %v5778, %v5794
    %v5811 = vmax.f32 %v5779, %v5795
    %v5812 = vmax.f32 %v5780, %v5796
    %v5813 = vmax.f32 %v5781, %v5797
    %5814 = vmax.xlane.f32.xlu0 %v5798
    %v5815 = vpop.xlane.xlu0 %5814
    %5816 = vmax.xlane.f32.xlu0 %v5799
    %v5817 = vpop.xlane.xlu0 %5816
    %5818 = vmax.xlane.f32.xlu0 %v5800
    %v5819 = vpop.xlane.xlu0 %5818
    %5820 = vmax.xlane.f32.xlu0 %v5801
    %v5821 = vpop.xlane.xlu0 %5820
    %5822 = vmax.xlane.f32.xlu0 %v5802
    %v5823 = vpop.xlane.xlu0 %5822
    %5824 = vmax.xlane.f32.xlu0 %v5803
    %v5825 = vpop.xlane.xlu0 %5824
    %5826 = vmax.xlane.f32.xlu0 %v5804
    %v5827 = vpop.xlane.xlu0 %5826
    %5828 = vmax.xlane.f32.xlu0 %v5805
    %v5829 = vpop.xlane.xlu0 %5828
    %5830 = vmax.xlane.f32.xlu0 %v5806
    %v5831 = vpop.xlane.xlu0 %5830
    %5832 = vmax.xlane.f32.xlu0 %v5807
    %v5833 = vpop.xlane.xlu0 %5832
    %5834 = vmax.xlane.f32.xlu0 %v5808
    %v5835 = vpop.xlane.xlu0 %5834
    %5836 = vmax.xlane.f32.xlu0 %v5809
    %v5837 = vpop.xlane.xlu0 %5836
    %5838 = vmax.xlane.f32.xlu0 %v5810
    %v5839 = vpop.xlane.xlu0 %5838
    %5840 = vmax.xlane.f32.xlu0 %v5811
    %v5841 = vpop.xlane.xlu0 %5840
    %5842 = vmax.xlane.f32.xlu0 %v5812
    %v5843 = vpop.xlane.xlu0 %5842
    %5844 = vmax.xlane.f32.xlu0 %v5813
    %v5845 = vpop.xlane.xlu0 %5844
    %v5846 = vsub.f32 %v5798, %v5815
    %v5847 = vsub.f32 %v5799, %v5817
    %v5848 = vsub.f32 %v5800, %v5819
    %v5849 = vsub.f32 %v5801, %v5821
    %v5850 = vsub.f32 %v5802, %v5823
    %v5851 = vsub.f32 %v5803, %v5825
    %v5852 = vsub.f32 %v5804, %v5827
    %v5853 = vsub.f32 %v5805, %v5829
    %v5854 = vsub.f32 %v5806, %v5831
    %v5855 = vsub.f32 %v5807, %v5833
    %v5856 = vsub.f32 %v5808, %v5835
    %v5857 = vsub.f32 %v5809, %v5837
    %v5858 = vsub.f32 %v5810, %v5839
    %v5859 = vsub.f32 %v5811, %v5841
    %v5860 = vsub.f32 %v5812, %v5843
    %v5861 = vsub.f32 %v5813, %v5845
    %v5862 = vmul.f32 %v5846, 1.442695
    %v5863 = vpow.pop %v5862
    %v5864 = vmul.f32 %v5847, 1.442695
    %v5865 = vpow.pop %v5864
    %v5866 = vmul.f32 %v5848, 1.442695
    %v5867 = vpow.pop %v5866
    %v5868 = vmul.f32 %v5849, 1.442695
    %v5869 = vpow.pop %v5868
    %v5870 = vmul.f32 %v5850, 1.442695
    %v5871 = vpow.pop %v5870
    %v5872 = vmul.f32 %v5851, 1.442695
    %v5873 = vpow.pop %v5872
    %v5874 = vmul.f32 %v5852, 1.442695
    %v5875 = vpow.pop %v5874
    %v5876 = vmul.f32 %v5853, 1.442695
    %v5877 = vpow.pop %v5876
    %v5878 = vmul.f32 %v5854, 1.442695
    %v5879 = vpow.pop %v5878
    %v5880 = vmul.f32 %v5855, 1.442695
    %v5881 = vpow.pop %v5880
    %v5882 = vmul.f32 %v5856, 1.442695
    %v5883 = vpow.pop %v5882
    %v5884 = vmul.f32 %v5857, 1.442695
    %v5885 = vpow.pop %v5884
    %v5886 = vmul.f32 %v5858, 1.442695
    %v5887 = vpow.pop %v5886
    %v5888 = vmul.f32 %v5859, 1.442695
    %v5889 = vpow.pop %v5888
    %v5890 = vmul.f32 %v5860, 1.442695
    %v5891 = vpow.pop %v5890
    %v5892 = vmul.f32 %v5861, 1.442695
    %v5893 = vpow.pop %v5892
    %5894 = vadd.xlane.f32.xlu0 %v5863
    %v5895 = vpop.xlane.xlu0 %5894
    %5896 = vadd.xlane.f32.xlu0 %v5865
    %v5897 = vpop.xlane.xlu0 %5896
    %5898 = vadd.xlane.f32.xlu0 %v5867
    %v5899 = vpop.xlane.xlu0 %5898
    %5900 = vadd.xlane.f32.xlu0 %v5869
    %v5901 = vpop.xlane.xlu0 %5900
    %5902 = vadd.xlane.f32.xlu0 %v5871
    %v5903 = vpop.xlane.xlu0 %5902
    %5904 = vadd.xlane.f32.xlu0 %v5873
    %v5905 = vpop.xlane.xlu0 %5904
    %5906 = vadd.xlane.f32.xlu0 %v5875
    %v5907 = vpop.xlane.xlu0 %5906
    %5908 = vadd.xlane.f32.xlu0 %v5877
    %v5909 = vpop.xlane.xlu0 %5908
    %5910 = vadd.xlane.f32.xlu0 %v5879
    %v5911 = vpop.xlane.xlu0 %5910
    %5912 = vadd.xlane.f32.xlu0 %v5881
    %v5913 = vpop.xlane.xlu0 %5912
    %5914 = vadd.xlane.f32.xlu0 %v5883
    %v5915 = vpop.xlane.xlu0 %5914
    %5916 = vadd.xlane.f32.xlu0 %v5885
    %v5917 = vpop.xlane.xlu0 %5916
    %5918 = vadd.xlane.f32.xlu0 %v5887
    %v5919 = vpop.xlane.xlu0 %5918
    %5920 = vadd.xlane.f32.xlu0 %v5889
    %v5921 = vpop.xlane.xlu0 %5920
    %5922 = vadd.xlane.f32.xlu0 %v5891
    %v5923 = vpop.xlane.xlu0 %5922
    %5924 = vadd.xlane.f32.xlu0 %v5893
    %v5925 = vpop.xlane.xlu0 %5924
    %v5926 = vrcp.pop %v5895
    %v5927 = vrcp.pop %v5897
    %v5928 = vrcp.pop %v5899
    %v5929 = vrcp.pop %v5901
    %v5930 = vrcp.pop %v5903
    %v5931 = vrcp.pop %v5905
    %v5932 = vrcp.pop %v5907
    %v5933 = vrcp.pop %v5909
    %v5934 = vrcp.pop %v5911
    %v5935 = vrcp.pop %v5913
    %v5936 = vrcp.pop %v5915
    %v5937 = vrcp.pop %v5917
    %v5938 = vrcp.pop %v5919
    %v5939 = vrcp.pop %v5921
    %v5940 = vrcp.pop %v5923
    %v5941 = vrcp.pop %v5925
    %v5942 = vmul.f32 %v5863, %v5926
    %v5943 = vmul.f32 %v5865, %v5927
    %v5944 = vmul.f32 %v5867, %v5928
    %v5945 = vmul.f32 %v5869, %v5929
    %v5946 = vmul.f32 %v5871, %v5930
    %v5947 = vmul.f32 %v5873, %v5931
    %v5948 = vmul.f32 %v5875, %v5932
    %v5949 = vmul.f32 %v5877, %v5933
    %v5950 = vmul.f32 %v5879, %v5934
    %v5951 = vmul.f32 %v5881, %v5935
    %v5952 = vmul.f32 %v5883, %v5936
    %v5953 = vmul.f32 %v5885, %v5937
    %v5954 = vmul.f32 %v5887, %v5938
    %v5955 = vmul.f32 %v5889, %v5939
    %v5956 = vmul.f32 %v5891, %v5940
    %v5957 = vmul.f32 %v5893, %v5941
    %v5958 = vpack.c.bf16 %v5943, %v5942
    %v5959 = vpack.c.bf16 %v5945, %v5944
    %v5960 = vpack.c.bf16 %v5947, %v5946
    %v5961 = vpack.c.bf16 %v5949, %v5948
    %v5962 = vpack.c.bf16 %v5951, %v5950
    %v5963 = vpack.c.bf16 %v5953, %v5952
    %v5964 = vpack.c.bf16 %v5955, %v5954
    %v5965 = vpack.c.bf16 %v5957, %v5956
    %5966 = vmatprep.subr.bf16.mxu0 0
    %5967 = vmatpush1.bf16.msra.mxu0 %v5042
    %5968 = vmatprep.subr.bf16.mxu0 0
    %5969 = vmatpush1.bf16.msra.mxu0 %v5043
    %5970 = vmatprep.subr.bf16.mxu0 0
    %5971 = vmatpush1.bf16.msra.mxu0 %v5044
    %5972 = vmatprep.subr.bf16.mxu0 0
    %5973 = vmatpush1.bf16.msra.mxu0 %v5045
    %5974 = vmatprep.subr.bf16.mxu0 0
    %5975 = vmatpush1.bf16.msra.mxu0 %v5046
    %5976 = vmatprep.subr.bf16.mxu0 0
    %5977 = vmatpush1.bf16.msra.mxu0 %v5047
    %5978 = vmatprep.subr.bf16.mxu0 0
    %5979 = vmatpush1.bf16.msra.mxu0 %v5048
    %5980 = vmatprep.subr.bf16.mxu0 0
    %5981 = vmatpush1.bf16.msra.mxu0 %v5049
    %5982 = vmatprep.subr.bf16.mxu0 0
    %5983 = vmatpush1.bf16.msra.mxu0 0
    %5984 = vmatprep.subr.bf16.mxu0 0
    %5985 = vmatpush1.bf16.msra.mxu0 0
    %5986 = vmatprep.subr.bf16.mxu0 0
    %5987 = vmatpush1.bf16.msra.mxu0 0
    %5988 = vmatprep.subr.bf16.mxu0 0
    %5989 = vmatpush1.bf16.msra.mxu0 0
    %5990 = vmatprep.subr.bf16.mxu0 0
    %5991 = vmatpush1.bf16.msra.mxu0 0
    %5992 = vmatprep.subr.bf16.mxu0 0
    %5993 = vmatpush1.bf16.msra.mxu0 0
    %5994 = vmatprep.subr.bf16.mxu0 0
    %5995 = vmatpush1.bf16.msra.mxu0 0
    %5996 = vmatprep.subr.bf16.mxu0 0
    %5997 = vmatpush1.bf16.msra.mxu0 0
    %5998 = vmatprep.mubr.bf16.mxu0 0
    %5999 = vmatmul.mubr.bf16.gmra.mrb[0].mxu0 %v5958
    %v6000 = vpop.f32.mrb[0].mxu0
    %v6001 = vadd.f32 0.0, %v6000
    %v6002 = vpop.f32.mrb[0].mxu0
    %v6003 = vpop.f32.mrb[0].mxu0
    %v6004 = vadd.f32 0.0, %v6003
    %v6005 = vpop.f32.mrb[0].mxu0
    %6006 = vmatprep.mubr.bf16.mxu0 0
    %6007 = vmatmul.mubr.bf16.gmra.mrb[0].mxu0 %v5959
    %v6008 = vpop.f32.mrb[0].mxu0
    %v6009 = vadd.f32 0.0, %v6008
    %v6010 = vpop.f32.mrb[0].mxu0
    %v6011 = vpop.f32.mrb[0].mxu0
    %v6012 = vadd.f32 0.0, %v6011
    %v6013 = vpop.f32.mrb[0].mxu0
    %6014 = vmatprep.mubr.bf16.mxu0 0
    %6015 = vmatmul.mubr.bf16.gmra.mrb[0].mxu0 %v5960
    %v6016 = vpop.f32.mrb[0].mxu0
    %v6017 = vadd.f32 0.0, %v6016
    %v6018 = vpop.f32.mrb[0].mxu0
    %v6019 = vpop.f32.mrb[0].mxu0
    %v6020 = vadd.f32 0.0, %v6019
    %v6021 = vpop.f32.mrb[0].mxu0
    %6022 = vmatprep.mubr.bf16.mxu0 0
    %6023 = vmatmul.mubr.bf16.gmra.mrb[0].mxu0 %v5961
    %v6024 = vpop.f32.mrb[0].mxu0
    %v6025 = vadd.f32 0.0, %v6024
    %v6026 = vpop.f32.mrb[0].mxu0
    %v6027 = vpop.f32.mrb[0].mxu0
    %v6028 = vadd.f32 0.0, %v6027
    %v6029 = vpop.f32.mrb[0].mxu0
    %6030 = vmatprep.mubr.bf16.mxu0 0
    %6031 = vmatmul.mubr.bf16.gmra.mrb[0].mxu0 %v5962
    %v6032 = vpop.f32.mrb[0].mxu0
    %v6033 = vadd.f32 0.0, %v6032
    %v6034 = vpop.f32.mrb[0].mxu0
    %v6035 = vpop.f32.mrb[0].mxu0
    %v6036 = vadd.f32 0.0, %v6035
    %v6037 = vpop.f32.mrb[0].mxu0
    %6038 = vmatprep.mubr.bf16.mxu0 0
    %6039 = vmatmul.mubr.bf16.gmra.mrb[0].mxu0 %v5963
    %v6040 = vpop.f32.mrb[0].mxu0
    %v6041 = vadd.f32 0.0, %v6040
    %v6042 = vpop.f32.mrb[0].mxu0
    %v6043 = vpop.f32.mrb[0].mxu0
    %v6044 = vadd.f32 0.0, %v6043
    %v6045 = vpop.f32.mrb[0].mxu0
    %6046 = vmatprep.mubr.bf16.mxu0 0
    %6047 = vmatmul.mubr.bf16.gmra.mrb[0].mxu0 %v5964
    %v6048 = vpop.f32.mrb[0].mxu0
    %v6049 = vadd.f32 0.0, %v6048
    %v6050 = vpop.f32.mrb[0].mxu0
    %v6051 = vpop.f32.mrb[0].mxu0
    %v6052 = vadd.f32 0.0, %v6051
    %v6053 = vpop.f32.mrb[0].mxu0
    %6054 = vmatprep.mubr.bf16.mxu0 0
    %6055 = vmatmul.mubr.bf16.gmra.mrb[0].mxu0 %v5965
    %v6056 = vpop.f32.mrb[0].mxu0
    %v6057 = vadd.f32 0.0, %v6056
    %v6058 = vpop.f32.mrb[0].mxu0
    %v6059 = vpop.f32.mrb[0].mxu0
    %v6060 = vadd.f32 0.0, %v6059
    %v6061 = vpop.f32.mrb[0].mxu0
    %6062 = vdwg.mxu0
    %6063 = vset.pattern.permute.xlu0 2
    %6064 = vperm.xlu0 %6063, %v5133
    %v6065 = vpop.permute.xlu0 %6064
    %6067 = vset.pattern.permute.xlu0 2
    %6068 = vperm.xlu0 %6067, %v5136
    %v6069 = vpop.permute.xlu0 %6068
    %6071 = vset.pattern.permute.xlu0 2
    %6072 = vperm.xlu0 %6071, %v5141
    %v6073 = vpop.permute.xlu0 %6072
    %6075 = vset.pattern.permute.xlu0 2
    %6076 = vperm.xlu0 %6075, %v5144
    %v6077 = vpop.permute.xlu0 %6076
    %6079 = vset.pattern.permute.xlu0 2
    %6080 = vperm.xlu0 %6079, %v5149
    %v6081 = vpop.permute.xlu0 %6080
    %6083 = vset.pattern.permute.xlu0 2
    %6084 = vperm.xlu0 %6083, %v5152
    %v6085 = vpop.permute.xlu0 %6084
    %6087 = vset.pattern.permute.xlu0 2
    %6088 = vperm.xlu0 %6087, %v5157
    %v6089 = vpop.permute.xlu0 %6088
    %6091 = vset.pattern.permute.xlu0 2
    %6092 = vperm.xlu0 %6091, %v5160
    %v6093 = vpop.permute.xlu0 %6092
    %6095 = vset.pattern.permute.xlu0 2
    %6096 = vperm.xlu0 %6095, %v5165
    %v6097 = vpop.permute.xlu0 %6096
    %6099 = vset.pattern.permute.xlu0 2
    %6100 = vperm.xlu0 %6099, %v5168
    %v6101 = vpop.permute.xlu0 %6100
    %6103 = vset.pattern.permute.xlu0 2
    %6104 = vperm.xlu0 %6103, %v5173
    %v6105 = vpop.permute.xlu0 %6104
    %6107 = vset.pattern.permute.xlu0 2
    %6108 = vperm.xlu0 %6107, %v5176
    %v6109 = vpop.permute.xlu0 %6108
    %6111 = vset.pattern.permute.xlu0 2
    %6112 = vperm.xlu0 %6111, %v5181
    %v6113 = vpop.permute.xlu0 %6112
    %6115 = vset.pattern.permute.xlu0 2
    %6116 = vperm.xlu0 %6115, %v5184
    %v6117 = vpop.permute.xlu0 %6116
    %6119 = vset.pattern.permute.xlu0 2
    %6120 = vperm.xlu0 %6119, %v5189
    %v6121 = vpop.permute.xlu0 %6120
    %6123 = vset.pattern.permute.xlu0 2
    %6124 = vperm.xlu0 %6123, %v5192
    %v6125 = vpop.permute.xlu0 %6124
    %v6127 = vlaneseq
    %v6128 = vshrl.u32 %v6127, 7
    %v6129 = vsub.s32 2, %v6128
    %v6130 = vrot.slane %v5230, %v6129
    %v6131 = vadd.f32 %v6065, %v6130
    %v6132 = vadd.f32 %v6069, %v6130
    %v6133 = vadd.f32 %v6073, %v6130
    %v6134 = vadd.f32 %v6077, %v6130
    %v6135 = vadd.f32 %v6081, %v6130
    %v6136 = vadd.f32 %v6085, %v6130
    %v6137 = vadd.f32 %v6089, %v6130
    %v6138 = vadd.f32 %v6093, %v6130
    %v6139 = vadd.f32 %v6097, %v6130
    %v6140 = vadd.f32 %v6101, %v6130
    %v6141 = vadd.f32 %v6105, %v6130
    %v6142 = vadd.f32 %v6109, %v6130
    %v6143 = vadd.f32 %v6113, %v6130
    %v6144 = vadd.f32 %v6117, %v6130
    %v6145 = vadd.f32 %v6121, %v6130
    %v6146 = vadd.f32 %v6125, %v6130
    %s6147 = scalar_lea.vmem %s5335, 128 [#allocation4]
    %v6148 = vld [vmem:[%s6147] sm:$0xff]
    %v6149 = vld [vmem:[%s6147 + $0x8] sm:$0xff]
    %v6150 = vld [vmem:[%s6147 + $0x10] sm:$0xff]
    %v6151 = vld [vmem:[%s6147 + $0x18] sm:$0xff]
    %v6152 = vld [vmem:[%s6147 + $0x20] sm:$0xff]
    %v6153 = vld [vmem:[%s6147 + $0x28] sm:$0xff]
    %v6154 = vld [vmem:[%s6147 + $0x30] sm:$0xff]
    %v6155 = vld [vmem:[%s6147 + $0x38] sm:$0xff]
    %v6156 = vunpack.c.l.bf16 %v6148
    %v6157 = vunpack.c.h.bf16 %v6148
    %v6158 = vunpack.c.l.bf16 %v6149
    %v6159 = vunpack.c.h.bf16 %v6149
    %v6160 = vunpack.c.l.bf16 %v6150
    %v6161 = vunpack.c.h.bf16 %v6150
    %v6162 = vunpack.c.l.bf16 %v6151
    %v6163 = vunpack.c.h.bf16 %v6151
    %v6164 = vunpack.c.l.bf16 %v6152
    %v6165 = vunpack.c.h.bf16 %v6152
    %v6166 = vunpack.c.l.bf16 %v6153
    %v6167 = vunpack.c.h.bf16 %v6153
    %v6168 = vunpack.c.l.bf16 %v6154
    %v6169 = vunpack.c.h.bf16 %v6154
    %v6170 = vunpack.c.l.bf16 %v6155
    %v6171 = vunpack.c.h.bf16 %v6155
    %v6172 = vadd.f32 %v6131, %v6156
    %v6173 = vadd.f32 %v6132, %v6157
    %v6174 = vadd.f32 %v6133, %v6158
    %v6175 = vadd.f32 %v6134, %v6159
    %v6176 = vadd.f32 %v6135, %v6160
    %v6177 = vadd.f32 %v6136, %v6161
    %v6178 = vadd.f32 %v6137, %v6162
    %v6179 = vadd.f32 %v6138, %v6163
    %v6180 = vadd.f32 %v6139, %v6164
    %v6181 = vadd.f32 %v6140, %v6165
    %v6182 = vadd.f32 %v6141, %v6166
    %v6183 = vadd.f32 %v6142, %v6167
    %v6184 = vadd.f32 %v6143, %v6168
    %v6185 = vadd.f32 %v6144, %v6169
    %v6186 = vadd.f32 %v6145, %v6170
    %v6187 = vadd.f32 %v6146, %v6171
    %v6188 = vmul.f32 %v6172, 0.2
    %v6189 = vmul.f32 %v6173, 0.2
    %v6190 = vmul.f32 %v6174, 0.2
    %v6191 = vmul.f32 %v6175, 0.2
    %v6192 = vmul.f32 %v6176, 0.2
    %v6193 = vmul.f32 %v6177, 0.2
    %v6194 = vmul.f32 %v6178, 0.2
    %v6195 = vmul.f32 %v6179, 0.2
    %v6196 = vmul.f32 %v6180, 0.2
    %v6197 = vmul.f32 %v6181, 0.2
    %v6198 = vmul.f32 %v6182, 0.2
    %v6199 = vmul.f32 %v6183, 0.2
    %v6200 = vmul.f32 %v6184, 0.2
    %v6201 = vmul.f32 %v6185, 0.2
    %v6202 = vmul.f32 %v6186, 0.2
    %v6203 = vmul.f32 %v6187, 0.2
    %v6204 = vmax.f32 %v6172, %v6188
    %v6205 = vmax.f32 %v6173, %v6189
    %v6206 = vmax.f32 %v6174, %v6190
    %v6207 = vmax.f32 %v6175, %v6191
    %v6208 = vmax.f32 %v6176, %v6192
    %v6209 = vmax.f32 %v6177, %v6193
    %v6210 = vmax.f32 %v6178, %v6194
    %v6211 = vmax.f32 %v6179, %v6195
    %v6212 = vmax.f32 %v6180, %v6196
    %v6213 = vmax.f32 %v6181, %v6197
    %v6214 = vmax.f32 %v6182, %v6198
    %v6215 = vmax.f32 %v6183, %v6199
    %v6216 = vmax.f32 %v6184, %v6200
    %v6217 = vmax.f32 %v6185, %v6201
    %v6218 = vmax.f32 %v6186, %v6202
    %v6219 = vmax.f32 %v6187, %v6203
    %6220 = vmax.xlane.f32.xlu0 %v6204
    %v6221 = vpop.xlane.xlu0 %6220
    %6222 = vmax.xlane.f32.xlu0 %v6205
    %v6223 = vpop.xlane.xlu0 %6222
    %6224 = vmax.xlane.f32.xlu0 %v6206
    %v6225 = vpop.xlane.xlu0 %6224
    %6226 = vmax.xlane.f32.xlu0 %v6207
    %v6227 = vpop.xlane.xlu0 %6226
    %6228 = vmax.xlane.f32.xlu0 %v6208
    %v6229 = vpop.xlane.xlu0 %6228
    %6230 = vmax.xlane.f32.xlu0 %v6209
    %v6231 = vpop.xlane.xlu0 %6230
    %6232 = vmax.xlane.f32.xlu0 %v6210
    %v6233 = vpop.xlane.xlu0 %6232
    %6234 = vmax.xlane.f32.xlu0 %v6211
    %v6235 = vpop.xlane.xlu0 %6234
    %6236 = vmax.xlane.f32.xlu0 %v6212
    %v6237 = vpop.xlane.xlu0 %6236
    %6238 = vmax.xlane.f32.xlu0 %v6213
    %v6239 = vpop.xlane.xlu0 %6238
    %6240 = vmax.xlane.f32.xlu0 %v6214
    %v6241 = vpop.xlane.xlu0 %6240
    %6242 = vmax.xlane.f32.xlu0 %v6215
    %v6243 = vpop.xlane.xlu0 %6242
    %6244 = vmax.xlane.f32.xlu0 %v6216
    %v6245 = vpop.xlane.xlu0 %6244
    %6246 = vmax.xlane.f32.xlu0 %v6217
    %v6247 = vpop.xlane.xlu0 %6246
    %6248 = vmax.xlane.f32.xlu0 %v6218
    %v6249 = vpop.xlane.xlu0 %6248
    %6250 = vmax.xlane.f32.xlu0 %v6219
    %v6251 = vpop.xlane.xlu0 %6250
    %v6252 = vsub.f32 %v6204, %v6221
    %v6253 = vsub.f32 %v6205, %v6223
    %v6254 = vsub.f32 %v6206, %v6225
    %v6255 = vsub.f32 %v6207, %v6227
    %v6256 = vsub.f32 %v6208, %v6229
    %v6257 = vsub.f32 %v6209, %v6231
    %v6258 = vsub.f32 %v6210, %v6233
    %v6259 = vsub.f32 %v6211, %v6235
    %v6260 = vsub.f32 %v6212, %v6237
    %v6261 = vsub.f32 %v6213, %v6239
    %v6262 = vsub.f32 %v6214, %v6241
    %v6263 = vsub.f32 %v6215, %v6243
    %v6264 = vsub.f32 %v6216, %v6245
    %v6265 = vsub.f32 %v6217, %v6247
    %v6266 = vsub.f32 %v6218, %v6249
    %v6267 = vsub.f32 %v6219, %v6251
    %v6268 = vmul.f32 %v6252, 1.442695
    %v6269 = vpow.pop %v6268
    %v6270 = vmul.f32 %v6253, 1.442695
    %v6271 = vpow.pop %v6270
    %v6272 = vmul.f32 %v6254, 1.442695
    %v6273 = vpow.pop %v6272
    %v6274 = vmul.f32 %v6255, 1.442695
    %v6275 = vpow.pop %v6274
    %v6276 = vmul.f32 %v6256, 1.442695
    %v6277 = vpow.pop %v6276
    %v6278 = vmul.f32 %v6257, 1.442695
    %v6279 = vpow.pop %v6278
    %v6280 = vmul.f32 %v6258, 1.442695
    %v6281 = vpow.pop %v6280
    %v6282 = vmul.f32 %v6259, 1.442695
    %v6283 = vpow.pop %v6282
    %v6284 = vmul.f32 %v6260, 1.442695
    %v6285 = vpow.pop %v6284
    %v6286 = vmul.f32 %v6261, 1.442695
    %v6287 = vpow.pop %v6286
    %v6288 = vmul.f32 %v6262, 1.442695
    %v6289 = vpow.pop %v6288
    %v6290 = vmul.f32 %v6263, 1.442695
    %v6291 = vpow.pop %v6290
    %v6292 = vmul.f32 %v6264, 1.442695
    %v6293 = vpow.pop %v6292
    %v6294 = vmul.f32 %v6265, 1.442695
    %v6295 = vpow.pop %v6294
    %v6296 = vmul.f32 %v6266, 1.442695
    %v6297 = vpow.pop %v6296
    %v6298 = vmul.f32 %v6267, 1.442695
    %v6299 = vpow.pop %v6298
    %6300 = vadd.xlane.f32.xlu0 %v6269
    %v6301 = vpop.xlane.xlu0 %6300
    %6302 = vadd.xlane.f32.xlu0 %v6271
    %v6303 = vpop.xlane.xlu0 %6302
    %6304 = vadd.xlane.f32.xlu0 %v6273
    %v6305 = vpop.xlane.xlu0 %6304
    %6306 = vadd.xlane.f32.xlu0 %v6275
    %v6307 = vpop.xlane.xlu0 %6306
    %6308 = vadd.xlane.f32.xlu0 %v6277
    %v6309 = vpop.xlane.xlu0 %6308
    %6310 = vadd.xlane.f32.xlu0 %v6279
    %v6311 = vpop.xlane.xlu0 %6310
    %6312 = vadd.xlane.f32.xlu0 %v6281
    %v6313 = vpop.xlane.xlu0 %6312
    %6314 = vadd.xlane.f32.xlu0 %v6283
    %v6315 = vpop.xlane.xlu0 %6314
    %6316 = vadd.xlane.f32.xlu0 %v6285
    %v6317 = vpop.xlane.xlu0 %6316
    %6318 = vadd.xlane.f32.xlu0 %v6287
    %v6319 = vpop.xlane.xlu0 %6318
    %6320 = vadd.xlane.f32.xlu0 %v6289
    %v6321 = vpop.xlane.xlu0 %6320
    %6322 = vadd.xlane.f32.xlu0 %v6291
    %v6323 = vpop.xlane.xlu0 %6322
    %6324 = vadd.xlane.f32.xlu0 %v6293
    %v6325 = vpop.xlane.xlu0 %6324
    %6326 = vadd.xlane.f32.xlu0 %v6295
    %v6327 = vpop.xlane.xlu0 %6326
    %6328 = vadd.xlane.f32.xlu0 %v6297
    %v6329 = vpop.xlane.xlu0 %6328
    %6330 = vadd.xlane.f32.xlu0 %v6299
    %v6331 = vpop.xlane.xlu0 %6330
    %v6332 = vrcp.pop %v6301
    %v6333 = vrcp.pop %v6303
    %v6334 = vrcp.pop %v6305
    %v6335 = vrcp.pop %v6307
    %v6336 = vrcp.pop %v6309
    %v6337 = vrcp.pop %v6311
    %v6338 = vrcp.pop %v6313
    %v6339 = vrcp.pop %v6315
    %v6340 = vrcp.pop %v6317
    %v6341 = vrcp.pop %v6319
    %v6342 = vrcp.pop %v6321
    %v6343 = vrcp.pop %v6323
    %v6344 = vrcp.pop %v6325
    %v6345 = vrcp.pop %v6327
    %v6346 = vrcp.pop %v6329
    %v6347 = vrcp.pop %v6331
    %v6348 = vmul.f32 %v6269, %v6332
    %v6349 = vmul.f32 %v6271, %v6333
    %v6350 = vmul.f32 %v6273, %v6334
    %v6351 = vmul.f32 %v6275, %v6335
    %v6352 = vmul.f32 %v6277, %v6336
    %v6353 = vmul.f32 %v6279, %v6337
    %v6354 = vmul.f32 %v6281, %v6338
    %v6355 = vmul.f32 %v6283, %v6339
    %v6356 = vmul.f32 %v6285, %v6340
    %v6357 = vmul.f32 %v6287, %v6341
    %v6358 = vmul.f32 %v6289, %v6342
    %v6359 = vmul.f32 %v6291, %v6343
    %v6360 = vmul.f32 %v6293, %v6344
    %v6361 = vmul.f32 %v6295, %v6345
    %v6362 = vmul.f32 %v6297, %v6346
    %v6363 = vmul.f32 %v6299, %v6347
    %v6364 = vpack.c.bf16 %v6349, %v6348
    %v6365 = vpack.c.bf16 %v6351, %v6350
    %v6366 = vpack.c.bf16 %v6353, %v6352
    %v6367 = vpack.c.bf16 %v6355, %v6354
    %v6368 = vpack.c.bf16 %v6357, %v6356
    %v6369 = vpack.c.bf16 %v6359, %v6358
    %v6370 = vpack.c.bf16 %v6361, %v6360
    %v6371 = vpack.c.bf16 %v6363, %v6362
    %6372 = vmatprep.subr.bf16.mxu0 0
    %6373 = vmatpush1.bf16.msra.mxu0 %v5042
    %6374 = vmatprep.subr.bf16.mxu0 0
    %6375 = vmatpush1.bf16.msra.mxu0 %v5043
    %6376 = vmatprep.subr.bf16.mxu0 0
    %6377 = vmatpush1.bf16.msra.mxu0 %v5044
    %6378 = vmatprep.subr.bf16.mxu0 0
    %6379 = vmatpush1.bf16.msra.mxu0 %v5045
    %6380 = vmatprep.subr.bf16.mxu0 0
    %6381 = vmatpush1.bf16.msra.mxu0 %v5046
    %6382 = vmatprep.subr.bf16.mxu0 0
    %6383 = vmatpush1.bf16.msra.mxu0 %v5047
    %6384 = vmatprep.subr.bf16.mxu0 0
    %6385 = vmatpush1.bf16.msra.mxu0 %v5048
    %6386 = vmatprep.subr.bf16.mxu0 0
    %6387 = vmatpush1.bf16.msra.mxu0 %v5049
    %6388 = vmatprep.subr.bf16.mxu0 0
    %6389 = vmatpush1.bf16.msra.mxu0 0
    %6390 = vmatprep.subr.bf16.mxu0 0
    %6391 = vmatpush1.bf16.msra.mxu0 0
    %6392 = vmatprep.subr.bf16.mxu0 0
    %6393 = vmatpush1.bf16.msra.mxu0 0
    %6394 = vmatprep.subr.bf16.mxu0 0
    %6395 = vmatpush1.bf16.msra.mxu0 0
    %6396 = vmatprep.subr.bf16.mxu0 0
    %6397 = vmatpush1.bf16.msra.mxu0 0
    %6398 = vmatprep.subr.bf16.mxu0 0
    %6399 = vmatpush1.bf16.msra.mxu0 0
    %6400 = vmatprep.subr.bf16.mxu0 0
    %6401 = vmatpush1.bf16.msra.mxu0 0
    %6402 = vmatprep.subr.bf16.mxu0 0
    %6403 = vmatpush1.bf16.msra.mxu0 0
    %6404 = vmatprep.mubr.bf16.mxu0 0
    %6405 = vmatmul.mubr.bf16.gmra.mrb[0].mxu0 %v6364
    %v6406 = vpop.f32.mrb[0].mxu0
    %v6407 = vadd.f32 0.0, %v6406
    %v6408 = vpop.f32.mrb[0].mxu0
    %v6409 = vpop.f32.mrb[0].mxu0
    %v6410 = vadd.f32 0.0, %v6409
    %v6411 = vpop.f32.mrb[0].mxu0
    %6412 = vmatprep.mubr.bf16.mxu0 0
    %6413 = vmatmul.mubr.bf16.gmra.mrb[0].mxu0 %v6365
    %v6414 = vpop.f32.mrb[0].mxu0
    %v6415 = vadd.f32 0.0, %v6414
    %v6416 = vpop.f32.mrb[0].mxu0
    %v6417 = vpop.f32.mrb[0].mxu0
    %v6418 = vadd.f32 0.0, %v6417
    %v6419 = vpop.f32.mrb[0].mxu0
    %6420 = vmatprep.mubr.bf16.mxu0 0
    %6421 = vmatmul.mubr.bf16.gmra.mrb[0].mxu0 %v6366
    %v6422 = vpop.f32.mrb[0].mxu0
    %v6423 = vadd.f32 0.0, %v6422
    %v6424 = vpop.f32.mrb[0].mxu0
    %v6425 = vpop.f32.mrb[0].mxu0
    %v6426 = vadd.f32 0.0, %v6425
    %v6427 = vpop.f32.mrb[0].mxu0
    %6428 = vmatprep.mubr.bf16.mxu0 0
    %6429 = vmatmul.mubr.bf16.gmra.mrb[0].mxu0 %v6367
    %v6430 = vpop.f32.mrb[0].mxu0
    %v6431 = vadd.f32 0.0, %v6430
    %v6432 = vpop.f32.mrb[0].mxu0
    %v6433 = vpop.f32.mrb[0].mxu0
    %v6434 = vadd.f32 0.0, %v6433
    %v6435 = vpop.f32.mrb[0].mxu0
    %6436 = vmatprep.mubr.bf16.mxu0 0
    %6437 = vmatmul.mubr.bf16.gmra.mrb[0].mxu0 %v6368
    %v6438 = vpop.f32.mrb[0].mxu0
    %v6439 = vadd.f32 0.0, %v6438
    %v6440 = vpop.f32.mrb[0].mxu0
    %v6441 = vpop.f32.mrb[0].mxu0
    %v6442 = vadd.f32 0.0, %v6441
    %v6443 = vpop.f32.mrb[0].mxu0
    %6444 = vmatprep.mubr.bf16.mxu0 0
    %6445 = vmatmul.mubr.bf16.gmra.mrb[0].mxu0 %v6369
    %v6446 = vpop.f32.mrb[0].mxu0
    %v6447 = vadd.f32 0.0, %v6446
    %v6448 = vpop.f32.mrb[0].mxu0
    %v6449 = vpop.f32.mrb[0].mxu0
    %v6450 = vadd.f32 0.0, %v6449
    %v6451 = vpop.f32.mrb[0].mxu0
    %6452 = vmatprep.mubr.bf16.mxu0 0
    %6453 = vmatmul.mubr.bf16.gmra.mrb[0].mxu0 %v6370
    %v6454 = vpop.f32.mrb[0].mxu0
    %v6455 = vadd.f32 0.0, %v6454
    %v6456 = vpop.f32.mrb[0].mxu0
    %v6457 = vpop.f32.mrb[0].mxu0
    %v6458 = vadd.f32 0.0, %v6457
    %v6459 = vpop.f32.mrb[0].mxu0
    %6460 = vmatprep.mubr.bf16.mxu0 0
    %6461 = vmatmul.mubr.bf16.gmra.mrb[0].mxu0 %v6371
    %v6462 = vpop.f32.mrb[0].mxu0
    %v6463 = vadd.f32 0.0, %v6462
    %v6464 = vpop.f32.mrb[0].mxu0
    %v6465 = vpop.f32.mrb[0].mxu0
    %v6466 = vadd.f32 0.0, %v6465
    %v6467 = vpop.f32.mrb[0].mxu0
    %6468 = vdwg.mxu0
    %6469 = vset.pattern.permute.xlu0 3
    %6470 = vperm.xlu0 %6469, %v5133
    %v6471 = vpop.permute.xlu0 %6470
    %6473 = vset.pattern.permute.xlu0 3
    %6474 = vperm.xlu0 %6473, %v5136
    %v6475 = vpop.permute.xlu0 %6474
    %6477 = vset.pattern.permute.xlu0 3
    %6478 = vperm.xlu0 %6477, %v5141
    %v6479 = vpop.permute.xlu0 %6478
    %6481 = vset.pattern.permute.xlu0 3
    %6482 = vperm.xlu0 %6481, %v5144
    %v6483 = vpop.permute.xlu0 %6482
    %6485 = vset.pattern.permute.xlu0 3
    %6486 = vperm.xlu0 %6485, %v5149
    %v6487 = vpop.permute.xlu0 %6486
    %6489 = vset.pattern.permute.xlu0 3
    %6490 = vperm.xlu0 %6489, %v5152
    %v6491 = vpop.permute.xlu0 %6490
    %6493 = vset.pattern.permute.xlu0 3
    %6494 = vperm.xlu0 %6493, %v5157
    %v6495 = vpop.permute.xlu0 %6494
    %6497 = vset.pattern.permute.xlu0 3
    %6498 = vperm.xlu0 %6497, %v5160
    %v6499 = vpop.permute.xlu0 %6498
    %6501 = vset.pattern.permute.xlu0 3
    %6502 = vperm.xlu0 %6501, %v5165
    %v6503 = vpop.permute.xlu0 %6502
    %6505 = vset.pattern.permute.xlu0 3
    %6506 = vperm.xlu0 %6505, %v5168
    %v6507 = vpop.permute.xlu0 %6506
    %6509 = vset.pattern.permute.xlu0 3
    %6510 = vperm.xlu0 %6509, %v5173
    %v6511 = vpop.permute.xlu0 %6510
    %6513 = vset.pattern.permute.xlu0 3
    %6514 = vperm.xlu0 %6513, %v5176
    %v6515 = vpop.permute.xlu0 %6514
    %6517 = vset.pattern.permute.xlu0 3
    %6518 = vperm.xlu0 %6517, %v5181
    %v6519 = vpop.permute.xlu0 %6518
    %6521 = vset.pattern.permute.xlu0 3
    %6522 = vperm.xlu0 %6521, %v5184
    %v6523 = vpop.permute.xlu0 %6522
    %6525 = vset.pattern.permute.xlu0 3
    %6526 = vperm.xlu0 %6525, %v5189
    %v6527 = vpop.permute.xlu0 %6526
    %6529 = vset.pattern.permute.xlu0 3
    %6530 = vperm.xlu0 %6529, %v5192
    %v6531 = vpop.permute.xlu0 %6530
    %v6533 = vlaneseq
    %v6534 = vshrl.u32 %v6533, 7
    %v6535 = vsub.s32 3, %v6534
    %v6536 = vrot.slane %v5230, %v6535
    %v6537 = vadd.f32 %v6471, %v6536
    %v6538 = vadd.f32 %v6475, %v6536
    %v6539 = vadd.f32 %v6479, %v6536
    %v6540 = vadd.f32 %v6483, %v6536
    %v6541 = vadd.f32 %v6487, %v6536
    %v6542 = vadd.f32 %v6491, %v6536
    %v6543 = vadd.f32 %v6495, %v6536
    %v6544 = vadd.f32 %v6499, %v6536
    %v6545 = vadd.f32 %v6503, %v6536
    %v6546 = vadd.f32 %v6507, %v6536
    %v6547 = vadd.f32 %v6511, %v6536
    %v6548 = vadd.f32 %v6515, %v6536
    %v6549 = vadd.f32 %v6519, %v6536
    %v6550 = vadd.f32 %v6523, %v6536
    %v6551 = vadd.f32 %v6527, %v6536
    %v6552 = vadd.f32 %v6531, %v6536
    %s6553 = scalar_lea.vmem %s5335, 192 [#allocation4]
    %v6554 = vld [vmem:[%s6553] sm:$0xff]
    %v6555 = vld [vmem:[%s6553 + $0x8] sm:$0xff]
    %v6556 = vld [vmem:[%s6553 + $0x10] sm:$0xff]
    %v6557 = vld [vmem:[%s6553 + $0x18] sm:$0xff]
    %v6558 = vld [vmem:[%s6553 + $0x20] sm:$0xff]
    %v6559 = vld [vmem:[%s6553 + $0x28] sm:$0xff]
    %v6560 = vld [vmem:[%s6553 + $0x30] sm:$0xff]
    %v6561 = vld [vmem:[%s6553 + $0x38] sm:$0xff]
    %v6562 = vunpack.c.l.bf16 %v6554
    %v6563 = vunpack.c.h.bf16 %v6554
    %v6564 = vunpack.c.l.bf16 %v6555
    %v6565 = vunpack.c.h.bf16 %v6555
    %v6566 = vunpack.c.l.bf16 %v6556
    %v6567 = vunpack.c.h.bf16 %v6556
    %v6568 = vunpack.c.l.bf16 %v6557
    %v6569 = vunpack.c.h.bf16 %v6557
    %v6570 = vunpack.c.l.bf16 %v6558
    %v6571 = vunpack.c.h.bf16 %v6558
    %v6572 = vunpack.c.l.bf16 %v6559
    %v6573 = vunpack.c.h.bf16 %v6559
    %v6574 = vunpack.c.l.bf16 %v6560
    %v6575 = vunpack.c.h.bf16 %v6560
    %v6576 = vunpack.c.l.bf16 %v6561
    %v6577 = vunpack.c.h.bf16 %v6561
    %v6578 = vadd.f32 %v6537, %v6562
    %v6579 = vadd.f32 %v6538, %v6563
    %v6580 = vadd.f32 %v6539, %v6564
    %v6581 = vadd.f32 %v6540, %v6565
    %v6582 = vadd.f32 %v6541, %v6566
    %v6583 = vadd.f32 %v6542, %v6567
    %v6584 = vadd.f32 %v6543, %v6568
    %v6585 = vadd.f32 %v6544, %v6569
    %v6586 = vadd.f32 %v6545, %v6570
    %v6587 = vadd.f32 %v6546, %v6571
    %v6588 = vadd.f32 %v6547, %v6572
    %v6589 = vadd.f32 %v6548, %v6573
    %v6590 = vadd.f32 %v6549, %v6574
    %v6591 = vadd.f32 %v6550, %v6575
    %v6592 = vadd.f32 %v6551, %v6576
    %v6593 = vadd.f32 %v6552, %v6577
    %v6594 = vmul.f32 %v6578, 0.2
    %v6595 = vmul.f32 %v6579, 0.2
    %v6596 = vmul.f32 %v6580, 0.2
    %v6597 = vmul.f32 %v6581, 0.2
    %v6598 = vmul.f32 %v6582, 0.2
    %v6599 = vmul.f32 %v6583, 0.2
    %v6600 = vmul.f32 %v6584, 0.2
    %v6601 = vmul.f32 %v6585, 0.2
    %v6602 = vmul.f32 %v6586, 0.2
    %v6603 = vmul.f32 %v6587, 0.2
    %v6604 = vmul.f32 %v6588, 0.2
    %v6605 = vmul.f32 %v6589, 0.2
    %v6606 = vmul.f32 %v6590, 0.2
    %v6607 = vmul.f32 %v6591, 0.2
    %v6608 = vmul.f32 %v6592, 0.2
    %v6609 = vmul.f32 %v6593, 0.2
    %v6610 = vmax.f32 %v6578, %v6594
    %v6611 = vmax.f32 %v6579, %v6595
    %v6612 = vmax.f32 %v6580, %v6596
    %v6613 = vmax.f32 %v6581, %v6597
    %v6614 = vmax.f32 %v6582, %v6598
    %v6615 = vmax.f32 %v6583, %v6599
    %v6616 = vmax.f32 %v6584, %v6600
    %v6617 = vmax.f32 %v6585, %v6601
    %v6618 = vmax.f32 %v6586, %v6602
    %v6619 = vmax.f32 %v6587, %v6603
    %v6620 = vmax.f32 %v6588, %v6604
    %v6621 = vmax.f32 %v6589, %v6605
    %v6622 = vmax.f32 %v6590, %v6606
    %v6623 = vmax.f32 %v6591, %v6607
    %v6624 = vmax.f32 %v6592, %v6608
    %v6625 = vmax.f32 %v6593, %v6609
    %6626 = vmax.xlane.f32.xlu0 %v6610
    %v6627 = vpop.xlane.xlu0 %6626
    %6628 = vmax.xlane.f32.xlu0 %v6611
    %v6629 = vpop.xlane.xlu0 %6628
    %6630 = vmax.xlane.f32.xlu0 %v6612
    %v6631 = vpop.xlane.xlu0 %6630
    %6632 = vmax.xlane.f32.xlu0 %v6613
    %v6633 = vpop.xlane.xlu0 %6632
    %6634 = vmax.xlane.f32.xlu0 %v6614
    %v6635 = vpop.xlane.xlu0 %6634
    %6636 = vmax.xlane.f32.xlu0 %v6615
    %v6637 = vpop.xlane.xlu0 %6636
    %6638 = vmax.xlane.f32.xlu0 %v6616
    %v6639 = vpop.xlane.xlu0 %6638
    %6640 = vmax.xlane.f32.xlu0 %v6617
    %v6641 = vpop.xlane.xlu0 %6640
    %6642 = vmax.xlane.f32.xlu0 %v6618
    %v6643 = vpop.xlane.xlu0 %6642
    %6644 = vmax.xlane.f32.xlu0 %v6619
    %v6645 = vpop.xlane.xlu0 %6644
    %6646 = vmax.xlane.f32.xlu0 %v6620
    %v6647 = vpop.xlane.xlu0 %6646
    %6648 = vmax.xlane.f32.xlu0 %v6621
    %v6649 = vpop.xlane.xlu0 %6648
    %6650 = vmax.xlane.f32.xlu0 %v6622
    %v6651 = vpop.xlane.xlu0 %6650
    %6652 = vmax.xlane.f32.xlu0 %v6623
    %v6653 = vpop.xlane.xlu0 %6652
    %6654 = vmax.xlane.f32.xlu0 %v6624
    %v6655 = vpop.xlane.xlu0 %6654
    %6656 = vmax.xlane.f32.xlu0 %v6625
    %v6657 = vpop.xlane.xlu0 %6656
    %v6658 = vsub.f32 %v6610, %v6627
    %v6659 = vsub.f32 %v6611, %v6629
    %v6660 = vsub.f32 %v6612, %v6631
    %v6661 = vsub.f32 %v6613, %v6633
    %v6662 = vsub.f32 %v6614, %v6635
    %v6663 = vsub.f32 %v6615, %v6637
    %v6664 = vsub.f32 %v6616, %v6639
    %v6665 = vsub.f32 %v6617, %v6641
    %v6666 = vsub.f32 %v6618, %v6643
    %v6667 = vsub.f32 %v6619, %v6645
    %v6668 = vsub.f32 %v6620, %v6647
    %v6669 = vsub.f32 %v6621, %v6649
    %v6670 = vsub.f32 %v6622, %v6651
    %v6671 = vsub.f32 %v6623, %v6653
    %v6672 = vsub.f32 %v6624, %v6655
    %v6673 = vsub.f32 %v6625, %v6657
    %v6674 = vmul.f32 %v6658, 1.442695
    %v6675 = vpow.pop %v6674
    %v6676 = vmul.f32 %v6659, 1.442695
    %v6677 = vpow.pop %v6676
    %v6678 = vmul.f32 %v6660, 1.442695
    %v6679 = vpow.pop %v6678
    %v6680 = vmul.f32 %v6661, 1.442695
    %v6681 = vpow.pop %v6680
    %v6682 = vmul.f32 %v6662, 1.442695
    %v6683 = vpow.pop %v6682
    %v6684 = vmul.f32 %v6663, 1.442695
    %v6685 = vpow.pop %v6684
    %v6686 = vmul.f32 %v6664, 1.442695
    %v6687 = vpow.pop %v6686
    %v6688 = vmul.f32 %v6665, 1.442695
    %v6689 = vpow.pop %v6688
    %v6690 = vmul.f32 %v6666, 1.442695
    %v6691 = vpow.pop %v6690
    %v6692 = vmul.f32 %v6667, 1.442695
    %v6693 = vpow.pop %v6692
    %v6694 = vmul.f32 %v6668, 1.442695
    %v6695 = vpow.pop %v6694
    %v6696 = vmul.f32 %v6669, 1.442695
    %v6697 = vpow.pop %v6696
    %v6698 = vmul.f32 %v6670, 1.442695
    %v6699 = vpow.pop %v6698
    %v6700 = vmul.f32 %v6671, 1.442695
    %v6701 = vpow.pop %v6700
    %v6702 = vmul.f32 %v6672, 1.442695
    %v6703 = vpow.pop %v6702
    %v6704 = vmul.f32 %v6673, 1.442695
    %v6705 = vpow.pop %v6704
    %6706 = vadd.xlane.f32.xlu0 %v6675
    %v6707 = vpop.xlane.xlu0 %6706
    %6708 = vadd.xlane.f32.xlu0 %v6677
    %v6709 = vpop.xlane.xlu0 %6708
    %6710 = vadd.xlane.f32.xlu0 %v6679
    %v6711 = vpop.xlane.xlu0 %6710
    %6712 = vadd.xlane.f32.xlu0 %v6681
    %v6713 = vpop.xlane.xlu0 %6712
    %6714 = vadd.xlane.f32.xlu0 %v6683
    %v6715 = vpop.xlane.xlu0 %6714
    %6716 = vadd.xlane.f32.xlu0 %v6685
    %v6717 = vpop.xlane.xlu0 %6716
    %6718 = vadd.xlane.f32.xlu0 %v6687
    %v6719 = vpop.xlane.xlu0 %6718
    %6720 = vadd.xlane.f32.xlu0 %v6689
    %v6721 = vpop.xlane.xlu0 %6720
    %6722 = vadd.xlane.f32.xlu0 %v6691
    %v6723 = vpop.xlane.xlu0 %6722
    %6724 = vadd.xlane.f32.xlu0 %v6693
    %v6725 = vpop.xlane.xlu0 %6724
    %6726 = vadd.xlane.f32.xlu0 %v6695
    %v6727 = vpop.xlane.xlu0 %6726
    %6728 = vadd.xlane.f32.xlu0 %v6697
    %v6729 = vpop.xlane.xlu0 %6728
    %6730 = vadd.xlane.f32.xlu0 %v6699
    %v6731 = vpop.xlane.xlu0 %6730
    %6732 = vadd.xlane.f32.xlu0 %v6701
    %v6733 = vpop.xlane.xlu0 %6732
    %6734 = vadd.xlane.f32.xlu0 %v6703
    %v6735 = vpop.xlane.xlu0 %6734
    %6736 = vadd.xlane.f32.xlu0 %v6705
    %v6737 = vpop.xlane.xlu0 %6736
    %v6738 = vrcp.pop %v6707
    %v6739 = vrcp.pop %v6709
    %v6740 = vrcp.pop %v6711
    %v6741 = vrcp.pop %v6713
    %v6742 = vrcp.pop %v6715
    %v6743 = vrcp.pop %v6717
    %v6744 = vrcp.pop %v6719
    %v6745 = vrcp.pop %v6721
    %v6746 = vrcp.pop %v6723
    %v6747 = vrcp.pop %v6725
    %v6748 = vrcp.pop %v6727
    %v6749 = vrcp.pop %v6729
    %v6750 = vrcp.pop %v6731
    %v6751 = vrcp.pop %v6733
    %v6752 = vrcp.pop %v6735
    %v6753 = vrcp.pop %v6737
    %v6754 = vmul.f32 %v6675, %v6738
    %v6755 = vmul.f32 %v6677, %v6739
    %v6756 = vmul.f32 %v6679, %v6740
    %v6757 = vmul.f32 %v6681, %v6741
    %v6758 = vmul.f32 %v6683, %v6742
    %v6759 = vmul.f32 %v6685, %v6743
    %v6760 = vmul.f32 %v6687, %v6744
    %v6761 = vmul.f32 %v6689, %v6745
    %v6762 = vmul.f32 %v6691, %v6746
    %v6763 = vmul.f32 %v6693, %v6747
    %v6764 = vmul.f32 %v6695, %v6748
    %v6765 = vmul.f32 %v6697, %v6749
    %v6766 = vmul.f32 %v6699, %v6750
    %v6767 = vmul.f32 %v6701, %v6751
    %v6768 = vmul.f32 %v6703, %v6752
    %v6769 = vmul.f32 %v6705, %v6753
    %v6770 = vpack.c.bf16 %v6755, %v6754
    %v6771 = vpack.c.bf16 %v6757, %v6756
    %v6772 = vpack.c.bf16 %v6759, %v6758
    %v6773 = vpack.c.bf16 %v6761, %v6760
    %v6774 = vpack.c.bf16 %v6763, %v6762
    %v6775 = vpack.c.bf16 %v6765, %v6764
    %v6776 = vpack.c.bf16 %v6767, %v6766
    %v6777 = vpack.c.bf16 %v6769, %v6768
    %6778 = vmatprep.subr.bf16.mxu0 0
    %6779 = vmatpush1.bf16.msra.mxu0 %v5042
    %6780 = vmatprep.subr.bf16.mxu0 0
    %6781 = vmatpush1.bf16.msra.mxu0 %v5043
    %6782 = vmatprep.subr.bf16.mxu0 0
    %6783 = vmatpush1.bf16.msra.mxu0 %v5044
    %6784 = vmatprep.subr.bf16.mxu0 0
    %6785 = vmatpush1.bf16.msra.mxu0 %v5045
    %6786 = vmatprep.subr.bf16.mxu0 0
    %6787 = vmatpush1.bf16.msra.mxu0 %v5046
    %6788 = vmatprep.subr.bf16.mxu0 0
    %6789 = vmatpush1.bf16.msra.mxu0 %v5047
    %6790 = vmatprep.subr.bf16.mxu0 0
    %6791 = vmatpush1.bf16.msra.mxu0 %v5048
    %6792 = vmatprep.subr.bf16.mxu0 0
    %6793 = vmatpush1.bf16.msra.mxu0 %v5049
    %6794 = vmatprep.subr.bf16.mxu0 0
    %6795 = vmatpush1.bf16.msra.mxu0 0
    %6796 = vmatprep.subr.bf16.mxu0 0
    %6797 = vmatpush1.bf16.msra.mxu0 0
    %6798 = vmatprep.subr.bf16.mxu0 0
    %6799 = vmatpush1.bf16.msra.mxu0 0
    %6800 = vmatprep.subr.bf16.mxu0 0
    %6801 = vmatpush1.bf16.msra.mxu0 0
    %6802 = vmatprep.subr.bf16.mxu0 0
    %6803 = vmatpush1.bf16.msra.mxu0 0
    %6804 = vmatprep.subr.bf16.mxu0 0
    %6805 = vmatpush1.bf16.msra.mxu0 0
    %6806 = vmatprep.subr.bf16.mxu0 0
    %6807 = vmatpush1.bf16.msra.mxu0 0
    %6808 = vmatprep.subr.bf16.mxu0 0
    %6809 = vmatpush1.bf16.msra.mxu0 0
    %6810 = vmatprep.mubr.bf16.mxu0 0
    %6811 = vmatmul.mubr.bf16.gmra.mrb[0].mxu0 %v6770
    %v6812 = vpop.f32.mrb[0].mxu0
    %v6813 = vadd.f32 0.0, %v6812
    %v6814 = vpop.f32.mrb[0].mxu0
    %v6815 = vpop.f32.mrb[0].mxu0
    %v6816 = vadd.f32 0.0, %v6815
    %v6817 = vpop.f32.mrb[0].mxu0
    %6818 = vmatprep.mubr.bf16.mxu0 0
    %6819 = vmatmul.mubr.bf16.gmra.mrb[0].mxu0 %v6771
    %v6820 = vpop.f32.mrb[0].mxu0
    %v6821 = vadd.f32 0.0, %v6820
    %v6822 = vpop.f32.mrb[0].mxu0
    %v6823 = vpop.f32.mrb[0].mxu0
    %v6824 = vadd.f32 0.0, %v6823
    %v6825 = vpop.f32.mrb[0].mxu0
    %6826 = vmatprep.mubr.bf16.mxu0 0
    %6827 = vmatmul.mubr.bf16.gmra.mrb[0].mxu0 %v6772
    %v6828 = vpop.f32.mrb[0].mxu0
    %v6829 = vadd.f32 0.0, %v6828
    %v6830 = vpop.f32.mrb[0].mxu0
    %v6831 = vpop.f32.mrb[0].mxu0
    %v6832 = vadd.f32 0.0, %v6831
    %v6833 = vpop.f32.mrb[0].mxu0
    %6834 = vmatprep.mubr.bf16.mxu0 0
    %6835 = vmatmul.mubr.bf16.gmra.mrb[0].mxu0 %v6773
    %v6836 = vpop.f32.mrb[0].mxu0
    %v6837 = vadd.f32 0.0, %v6836
    %v6838 = vpop.f32.mrb[0].mxu0
    %v6839 = vpop.f32.mrb[0].mxu0
    %v6840 = vadd.f32 0.0, %v6839
    %v6841 = vpop.f32.mrb[0].mxu0
    %6842 = vmatprep.mubr.bf16.mxu0 0
    %6843 = vmatmul.mubr.bf16.gmra.mrb[0].mxu0 %v6774
    %v6844 = vpop.f32.mrb[0].mxu0
    %v6845 = vadd.f32 0.0, %v6844
    %v6846 = vpop.f32.mrb[0].mxu0
    %v6847 = vpop.f32.mrb[0].mxu0
    %v6848 = vadd.f32 0.0, %v6847
    %v6849 = vpop.f32.mrb[0].mxu0
    %6850 = vmatprep.mubr.bf16.mxu0 0
    %6851 = vmatmul.mubr.bf16.gmra.mrb[0].mxu0 %v6775
    %v6852 = vpop.f32.mrb[0].mxu0
    %v6853 = vadd.f32 0.0, %v6852
    %v6854 = vpop.f32.mrb[0].mxu0
    %v6855 = vpop.f32.mrb[0].mxu0
    %v6856 = vadd.f32 0.0, %v6855
    %v6857 = vpop.f32.mrb[0].mxu0
    %6858 = vmatprep.mubr.bf16.mxu0 0
    %6859 = vmatmul.mubr.bf16.gmra.mrb[0].mxu0 %v6776
    %v6860 = vpop.f32.mrb[0].mxu0
    %v6861 = vadd.f32 0.0, %v6860
    %v6862 = vpop.f32.mrb[0].mxu0
    %v6863 = vpop.f32.mrb[0].mxu0
    %v6864 = vadd.f32 0.0, %v6863
    %v6865 = vpop.f32.mrb[0].mxu0
    %6866 = vmatprep.mubr.bf16.mxu0 0
    %6867 = vmatmul.mubr.bf16.gmra.mrb[0].mxu0 %v6777
    %v6868 = vpop.f32.mrb[0].mxu0
    %v6869 = vadd.f32 0.0, %v6868
    %v6870 = vpop.f32.mrb[0].mxu0
    %v6871 = vpop.f32.mrb[0].mxu0
    %v6872 = vadd.f32 0.0, %v6871
    %v6873 = vpop.f32.mrb[0].mxu0
    %6874 = vdwg.mxu0
    %v6875 = vpack.c.bf16 %v5598, %v5595
    %v6876 = vpack.c.bf16 %v6004, %v6001
    %v6877 = vpack.c.bf16 %v6410, %v6407
    %v6878 = vpack.c.bf16 %v6816, %v6813
    %v6879 = vpack.c.bf16 %v5606, %v5603
    %v6880 = vpack.c.bf16 %v6012, %v6009
    %v6881 = vpack.c.bf16 %v6418, %v6415
    %v6882 = vpack.c.bf16 %v6824, %v6821
    %v6883 = vpack.c.bf16 %v5614, %v5611
    %v6884 = vpack.c.bf16 %v6020, %v6017
    %v6885 = vpack.c.bf16 %v6426, %v6423
    %v6886 = vpack.c.bf16 %v6832, %v6829
    %v6887 = vpack.c.bf16 %v5622, %v5619
    %v6888 = vpack.c.bf16 %v6028, %v6025
    %v6889 = vpack.c.bf16 %v6434, %v6431
    %v6890 = vpack.c.bf16 %v6840, %v6837
    %v6891 = vpack.c.bf16 %v5630, %v5627
    %v6892 = vpack.c.bf16 %v6036, %v6033
    %v6893 = vpack.c.bf16 %v6442, %v6439
    %v6894 = vpack.c.bf16 %v6848, %v6845
    %v6895 = vpack.c.bf16 %v5638, %v5635
    %v6896 = vpack.c.bf16 %v6044, %v6041
    %v6897 = vpack.c.bf16 %v6450, %v6447
    %v6898 = vpack.c.bf16 %v6856, %v6853
    %v6899 = vpack.c.bf16 %v5646, %v5643
    %v6900 = vpack.c.bf16 %v6052, %v6049
    %v6901 = vpack.c.bf16 %v6458, %v6455
    %v6902 = vpack.c.bf16 %v6864, %v6861
    %v6903 = vpack.c.bf16 %v5654, %v5651
    %v6904 = vpack.c.bf16 %v6060, %v6057
    %v6905 = vpack.c.bf16 %v6466, %v6463
    %v6906 = vpack.c.bf16 %v6872, %v6869
    %6907 = vmatprep.subr.bf16.mxu0 0
    %6908 = vmatpush1.bf16.msra.mxu0 %v4989
    %6909 = vmatprep.subr.bf16.mxu0 0
    %6910 = vmatpush1.bf16.msra.mxu0 %v4990
    %6911 = vmatprep.subr.bf16.mxu0 0
    %6912 = vmatpush1.bf16.msra.mxu0 %v4991
    %6913 = vmatprep.subr.bf16.mxu0 0
    %6914 = vmatpush1.bf16.msra.mxu0 %v4992
    %6915 = vmatprep.subr.bf16.mxu0 0
    %6916 = vmatpush1.bf16.msra.mxu0 %v4993
    %6917 = vmatprep.subr.bf16.mxu0 0
    %6918 = vmatpush1.bf16.msra.mxu0 %v4994
    %6919 = vmatprep.subr.bf16.mxu0 0
    %6920 = vmatpush1.bf16.msra.mxu0 %v4995
    %6921 = vmatprep.subr.bf16.mxu0 0
    %6922 = vmatpush1.bf16.msra.mxu0 %v4996
    %6923 = vmatprep.subr.bf16.mxu0 0
    %6924 = vmatpush1.bf16.msra.mxu0 %v4997
    %6925 = vmatprep.subr.bf16.mxu0 0
    %6926 = vmatpush1.bf16.msra.mxu0 %v4998
    %6927 = vmatprep.subr.bf16.mxu0 0
    %6928 = vmatpush1.bf16.msra.mxu0 %v4999
    %6929 = vmatprep.subr.bf16.mxu0 0
    %6930 = vmatpush1.bf16.msra.mxu0 %v5000
    %6931 = vmatprep.subr.bf16.mxu0 0
    %6932 = vmatpush1.bf16.msra.mxu0 %v5001
    %6933 = vmatprep.subr.bf16.mxu0 0
    %6934 = vmatpush1.bf16.msra.mxu0 %v5002
    %6935 = vmatprep.subr.bf16.mxu0 0
    %6936 = vmatpush1.bf16.msra.mxu0 %v5003
    %6937 = vmatprep.subr.bf16.mxu0 0
    %6938 = vmatpush1.bf16.msra.mxu0 %v5004
    %6939 = vmatprep.mubr.bf16.mxu0 %v6876
    %6940 = vmatmul.mubr.bf16.gmra.mrb[0].mxu0 %v6875
    %v6941 = vpop.f32.mrb[0].mxu0
    %v6942 = vadd.f32 0.0, %v6941
    %v6943 = vpop.f32.mrb[0].mxu0
    %v6944 = vpop.f32.mrb[0].mxu0
    %v6945 = vadd.f32 0.0, %v6944
    %v6946 = vpop.f32.mrb[0].mxu0
    %6947 = vmatprep.mubr.bf16.mxu0 %v6880
    %6948 = vmatmul.mubr.bf16.gmra.mrb[0].mxu0 %v6879
    %v6949 = vpop.f32.mrb[0].mxu0
    %v6950 = vadd.f32 0.0, %v6949
    %v6951 = vpop.f32.mrb[0].mxu0
    %v6952 = vpop.f32.mrb[0].mxu0
    %v6953 = vadd.f32 0.0, %v6952
    %v6954 = vpop.f32.mrb[0].mxu0
    %6955 = vmatprep.mubr.bf16.mxu0 %v6884
    %6956 = vmatmul.mubr.bf16.gmra.mrb[0].mxu0 %v6883
    %v6957 = vpop.f32.mrb[0].mxu0
    %v6958 = vadd.f32 0.0, %v6957
    %v6959 = vpop.f32.mrb[0].mxu0
    %v6960 = vpop.f32.mrb[0].mxu0
    %v6961 = vadd.f32 0.0, %v6960
    %v6962 = vpop.f32.mrb[0].mxu0
    %6963 = vmatprep.mubr.bf16.mxu0 %v6888
    %6964 = vmatmul.mubr.bf16.gmra.mrb[0].mxu0 %v6887
    %v6965 = vpop.f32.mrb[0].mxu0
    %v6966 = vadd.f32 0.0, %v6965
    %v6967 = vpop.f32.mrb[0].mxu0
    %v6968 = vpop.f32.mrb[0].mxu0
    %v6969 = vadd.f32 0.0, %v6968
    %v6970 = vpop.f32.mrb[0].mxu0
    %6971 = vmatprep.mubr.bf16.mxu0 %v6892
    %6972 = vmatmul.mubr.bf16.gmra.mrb[0].mxu0 %v6891
    %v6973 = vpop.f32.mrb[0].mxu0
    %v6974 = vadd.f32 0.0, %v6973
    %v6975 = vpop.f32.mrb[0].mxu0
    %v6976 = vpop.f32.mrb[0].mxu0
    %v6977 = vadd.f32 0.0, %v6976
    %v6978 = vpop.f32.mrb[0].mxu0
    %6979 = vmatprep.mubr.bf16.mxu0 %v6896
    %6980 = vmatmul.mubr.bf16.gmra.mrb[0].mxu0 %v6895
    %v6981 = vpop.f32.mrb[0].mxu0
    %v6982 = vadd.f32 0.0, %v6981
    %v6983 = vpop.f32.mrb[0].mxu0
    %v6984 = vpop.f32.mrb[0].mxu0
    %v6985 = vadd.f32 0.0, %v6984
    %v6986 = vpop.f32.mrb[0].mxu0
    %6987 = vmatprep.mubr.bf16.mxu0 %v6900
    %6988 = vmatmul.mubr.bf16.gmra.mrb[0].mxu0 %v6899
    %v6989 = vpop.f32.mrb[0].mxu0
    %v6990 = vadd.f32 0.0, %v6989
    %v6991 = vpop.f32.mrb[0].mxu0
    %v6992 = vpop.f32.mrb[0].mxu0
    %v6993 = vadd.f32 0.0, %v6992
    %v6994 = vpop.f32.mrb[0].mxu0
    %6995 = vmatprep.mubr.bf16.mxu0 %v6904
    %6996 = vmatmul.mubr.bf16.gmra.mrb[0].mxu0 %v6903
    %v6997 = vpop.f32.mrb[0].mxu0
    %v6998 = vadd.f32 0.0, %v6997
    %v6999 = vpop.f32.mrb[0].mxu0
    %v7000 = vpop.f32.mrb[0].mxu0
    %v7001 = vadd.f32 0.0, %v7000
    %v7002 = vpop.f32.mrb[0].mxu0
    %7003 = vdwg.mxu0
    %7004 = vmatprep.subr.bf16.mxu0 0
    %7005 = vmatpush1.bf16.msra.mxu0 %v5005
    %7006 = vmatprep.subr.bf16.mxu0 0
    %7007 = vmatpush1.bf16.msra.mxu0 %v5006
    %7008 = vmatprep.subr.bf16.mxu0 0
    %7009 = vmatpush1.bf16.msra.mxu0 %v5007
    %7010 = vmatprep.subr.bf16.mxu0 0
    %7011 = vmatpush1.bf16.msra.mxu0 %v5008
    %7012 = vmatprep.subr.bf16.mxu0 0
    %7013 = vmatpush1.bf16.msra.mxu0 %v5009
    %7014 = vmatprep.subr.bf16.mxu0 0
    %7015 = vmatpush1.bf16.msra.mxu0 %v5010
    %7016 = vmatprep.subr.bf16.mxu0 0
    %7017 = vmatpush1.bf16.msra.mxu0 %v5011
    %7018 = vmatprep.subr.bf16.mxu0 0
    %7019 = vmatpush1.bf16.msra.mxu0 %v5012
    %7020 = vmatprep.subr.bf16.mxu0 0
    %7021 = vmatpush1.bf16.msra.mxu0 %v5013
    %7022 = vmatprep.subr.bf16.mxu0 0
    %7023 = vmatpush1.bf16.msra.mxu0 %v5014
    %7024 = vmatprep.subr.bf16.mxu0 0
    %7025 = vmatpush1.bf16.msra.mxu0 %v5015
    %7026 = vmatprep.subr.bf16.mxu0 0
    %7027 = vmatpush1.bf16.msra.mxu0 %v5016
    %7028 = vmatprep.subr.bf16.mxu0 0
    %7029 = vmatpush1.bf16.msra.mxu0 %v5017
    %7030 = vmatprep.subr.bf16.mxu0 0
    %7031 = vmatpush1.bf16.msra.mxu0 %v5018
    %7032 = vmatprep.subr.bf16.mxu0 0
    %7033 = vmatpush1.bf16.msra.mxu0 %v5019
    %7034 = vmatprep.subr.bf16.mxu0 0
    %7035 = vmatpush1.bf16.msra.mxu0 %v5020
    %7036 = vmatprep.mubr.bf16.mxu0 %v6878
    %7037 = vmatmul.mubr.bf16.gmra.mrb[0].mxu0 %v6877
    %v7038 = vpop.f32.mrb[0].mxu0
    %v7039 = vadd.f32 %v6942, %v7038
    %v7040 = vpop.f32.mrb[0].mxu0
    %v7041 = vpop.f32.mrb[0].mxu0
    %v7042 = vadd.f32 %v6945, %v7041
    %v7043 = vpop.f32.mrb[0].mxu0
    %7044 = vmatprep.mubr.bf16.mxu0 %v6882
    %7045 = vmatmul.mubr.bf16.gmra.mrb[0].mxu0 %v6881
    %v7046 = vpop.f32.mrb[0].mxu0
    %v7047 = vadd.f32 %v6950, %v7046
    %v7048 = vpop.f32.mrb[0].mxu0
    %v7049 = vpop.f32.mrb[0].mxu0
    %v7050 = vadd.f32 %v6953, %v7049
    %v7051 = vpop.f32.mrb[0].mxu0
    %7052 = vmatprep.mubr.bf16.mxu0 %v6886
    %7053 = vmatmul.mubr.bf16.gmra.mrb[0].mxu0 %v6885
    %v7054 = vpop.f32.mrb[0].mxu0
    %v7055 = vadd.f32 %v6958, %v7054
    %v7056 = vpop.f32.mrb[0].mxu0
    %v7057 = vpop.f32.mrb[0].mxu0
    %v7058 = vadd.f32 %v6961, %v7057
    %v7059 = vpop.f32.mrb[0].mxu0
    %7060 = vmatprep.mubr.bf16.mxu0 %v6890
    %7061 = vmatmul.mubr.bf16.gmra.mrb[0].mxu0 %v6889
    %v7062 = vpop.f32.mrb[0].mxu0
    %v7063 = vadd.f32 %v6966, %v7062
    %v7064 = vpop.f32.mrb[0].mxu0
    %v7065 = vpop.f32.mrb[0].mxu0
    %v7066 = vadd.f32 %v6969, %v7065
    %v7067 = vpop.f32.mrb[0].mxu0
    %7068 = vmatprep.mubr.bf16.mxu0 %v6894
    %7069 = vmatmul.mubr.bf16.gmra.mrb[0].mxu0 %v6893
    %v7070 = vpop.f32.mrb[0].mxu0
    %v7071 = vadd.f32 %v6974, %v7070
    %v7072 = vpop.f32.mrb[0].mxu0
    %v7073 = vpop.f32.mrb[0].mxu0
    %v7074 = vadd.f32 %v6977, %v7073
    %v7075 = vpop.f32.mrb[0].mxu0
    %7076 = vmatprep.mubr.bf16.mxu0 %v6898
    %7077 = vmatmul.mubr.bf16.gmra.mrb[0].mxu0 %v6897
    %v7078 = vpop.f32.mrb[0].mxu0
    %v7079 = vadd.f32 %v6982, %v7078
    %v7080 = vpop.f32.mrb[0].mxu0
    %v7081 = vpop.f32.mrb[0].mxu0
    %v7082 = vadd.f32 %v6985, %v7081
    %v7083 = vpop.f32.mrb[0].mxu0
    %7084 = vmatprep.mubr.bf16.mxu0 %v6902
    %7085 = vmatmul.mubr.bf16.gmra.mrb[0].mxu0 %v6901
    %v7086 = vpop.f32.mrb[0].mxu0
    %v7087 = vadd.f32 %v6990, %v7086
    %v7088 = vpop.f32.mrb[0].mxu0
    %v7089 = vpop.f32.mrb[0].mxu0
    %v7090 = vadd.f32 %v6993, %v7089
    %v7091 = vpop.f32.mrb[0].mxu0
    %7092 = vmatprep.mubr.bf16.mxu0 %v6906
    %7093 = vmatmul.mubr.bf16.gmra.mrb[0].mxu0 %v6905
    %v7094 = vpop.f32.mrb[0].mxu0
    %v7095 = vadd.f32 %v6998, %v7094
    %v7096 = vpop.f32.mrb[0].mxu0
    %v7097 = vpop.f32.mrb[0].mxu0
    %v7098 = vadd.f32 %v7001, %v7097
    %v7099 = vpop.f32.mrb[0].mxu0
    %7100 = vdwg.mxu0
    %v7101 = vmul.f32 %v7039, 0.25
    %v7102 = vmul.f32 %v7042, 0.25
    %v7103 = vmul.f32 %v7047, 0.25
    %v7104 = vmul.f32 %v7050, 0.25
    %v7105 = vmul.f32 %v7055, 0.25
    %v7106 = vmul.f32 %v7058, 0.25
    %v7107 = vmul.f32 %v7063, 0.25
    %v7108 = vmul.f32 %v7066, 0.25
    %v7109 = vmul.f32 %v7071, 0.25
    %v7110 = vmul.f32 %v7074, 0.25
    %v7111 = vmul.f32 %v7079, 0.25
    %v7112 = vmul.f32 %v7082, 0.25
    %v7113 = vmul.f32 %v7087, 0.25
    %v7114 = vmul.f32 %v7090, 0.25
    %v7115 = vmul.f32 %v7095, 0.25
    %v7116 = vmul.f32 %v7098, 0.25
    %v7118 = vlaneseq
    %v7119 = vshrl.u32 %v7118, 7
    %v7120 = vsub.s32 0, %v7119
    %v7121 = vrot.slane %v5041, %v7120
    %v7123 = vadd.f32 %v7101, %v7121
    %v7124 = vadd.f32 %v7102, %v7121
    %v7125 = vadd.f32 %v7103, %v7121
    %v7126 = vadd.f32 %v7104, %v7121
    %v7127 = vadd.f32 %v7105, %v7121
    %v7128 = vadd.f32 %v7106, %v7121
    %v7129 = vadd.f32 %v7107, %v7121
    %v7130 = vadd.f32 %v7108, %v7121
    %v7131 = vadd.f32 %v7109, %v7121
    %v7132 = vadd.f32 %v7110, %v7121
    %v7133 = vadd.f32 %v7111, %v7121
    %v7134 = vadd.f32 %v7112, %v7121
    %v7135 = vadd.f32 %v7113, %v7121
    %v7136 = vadd.f32 %v7114, %v7121
    %v7137 = vadd.f32 %v7115, %v7121
    %v7138 = vadd.f32 %v7116, %v7121
    %v7139 = vadd.f32 %v7123, %v7124
    %v7140 = vadd.f32 %v7139, %v7125
    %v7141 = vadd.f32 %v7140, %v7126
    %v7142 = vadd.f32 %v7141, %v7127
    %v7143 = vadd.f32 %v7142, %v7128
    %v7144 = vadd.f32 %v7143, %v7129
    %v7145 = vadd.f32 %v7144, %v7130
    %v7146 = vadd.f32 %v7145, %v7131
    %v7147 = vadd.f32 %v7146, %v7132
    %v7148 = vadd.f32 %v7147, %v7133
    %v7149 = vadd.f32 %v7148, %v7134
    %v7150 = vadd.f32 %v7149, %v7135
    %v7151 = vadd.f32 %v7150, %v7136
    %v7152 = vadd.f32 %v7151, %v7137
    %v7153 = vadd.f32 %v7152, %v7138
    %v7154 = vrot.slane %v7153, 4
    %v7155 = vadd.f32 %v7153, %v7154
    %v7156 = vrot.slane %v7155, 2
    %v7157 = vadd.f32 %v7155, %v7156
    %v7158 = vrot.slane %v7157, 1
    %v7159 = vadd.f32 %v7157, %v7158
    %v7160 = vmul.f32 %v7159, %v4764
    %s7161 = scalar_lea.vmem [#allocation31], 1
    %v7162 = vld [vmem:[%s7161] sm:$0x1]
    %v7163 = vmul.f32 %v7162, %v7160
    %v7165 = vlaneseq
    %v7166 = vshrl.u32 %v7165, 7
    %v7167 = vsub.s32 0, %v7166
    %v7168 = vrot.slane %v7163, %v7167
    %v7170 = vsub.f32 %v7123, %v7168
    %v7171 = vsub.f32 %v7124, %v7168
    %v7172 = vsub.f32 %v7125, %v7168
    %v7173 = vsub.f32 %v7126, %v7168
    %v7174 = vsub.f32 %v7127, %v7168
    %v7175 = vsub.f32 %v7128, %v7168
    %v7176 = vsub.f32 %v7129, %v7168
    %v7177 = vsub.f32 %v7130, %v7168
    %v7178 = vsub.f32 %v7131, %v7168
    %v7179 = vsub.f32 %v7132, %v7168
    %v7180 = vsub.f32 %v7133, %v7168
    %v7181 = vsub.f32 %v7134, %v7168
    %v7182 = vsub.f32 %v7135, %v7168
    %v7183 = vsub.f32 %v7136, %v7168
    %v7184 = vsub.f32 %v7137, %v7168
    %v7185 = vsub.f32 %v7138, %v7168
    %v7186 = vmul.f32 %v7170, %v7170
    %v7187 = vmul.f32 %v7171, %v7171
    %v7188 = vmul.f32 %v7172, %v7172
    %v7189 = vmul.f32 %v7173, %v7173
    %v7190 = vmul.f32 %v7174, %v7174
    %v7191 = vmul.f32 %v7175, %v7175
    %v7192 = vmul.f32 %v7176, %v7176
    %v7193 = vmul.f32 %v7177, %v7177
    %v7194 = vmul.f32 %v7178, %v7178
    %v7195 = vmul.f32 %v7179, %v7179
    %v7196 = vmul.f32 %v7180, %v7180
    %v7197 = vmul.f32 %v7181, %v7181
    %v7198 = vmul.f32 %v7182, %v7182
    %v7199 = vmul.f32 %v7183, %v7183
    %v7200 = vmul.f32 %v7184, %v7184
    %v7201 = vmul.f32 %v7185, %v7185
    %v7202 = vadd.f32 %v7186, %v7187
    %v7203 = vadd.f32 %v7202, %v7188
    %v7204 = vadd.f32 %v7203, %v7189
    %v7205 = vadd.f32 %v7204, %v7190
    %v7206 = vadd.f32 %v7205, %v7191
    %v7207 = vadd.f32 %v7206, %v7192
    %v7208 = vadd.f32 %v7207, %v7193
    %v7209 = vadd.f32 %v7208, %v7194
    %v7210 = vadd.f32 %v7209, %v7195
    %v7211 = vadd.f32 %v7210, %v7196
    %v7212 = vadd.f32 %v7211, %v7197
    %v7213 = vadd.f32 %v7212, %v7198
    %v7214 = vadd.f32 %v7213, %v7199
    %v7215 = vadd.f32 %v7214, %v7200
    %v7216 = vadd.f32 %v7215, %v7201
    %v7217 = vrot.slane %v7216, 4
    %v7218 = vadd.f32 %v7216, %v7217
    %v7219 = vrot.slane %v7218, 2
    %v7220 = vadd.f32 %v7218, %v7219
    %v7221 = vrot.slane %v7220, 1
    %v7222 = vadd.f32 %v7220, %v7221
    %v7223 = vmul.f32 %v7222, %v4764
    %s7224 = scalar_lea.vmem [#allocation28], 1
    %v7225 = vld [vmem:[%s7224] sm:$0x1]
    %v7227 = vlaneseq
    %v7228 = vshrl.u32 %v7227, 7
    %v7229 = vsub.s32 0, %v7228
    %v7230 = vrot.slane %v7225, %v7229
    %v7232 = vmul.f32 %v7230, %v7170
    %v7233 = vmul.f32 %v7230, %v7171
    %v7234 = vmul.f32 %v7230, %v7172
    %v7235 = vmul.f32 %v7230, %v7173
    %v7236 = vmul.f32 %v7230, %v7174
    %v7237 = vmul.f32 %v7230, %v7175
    %v7238 = vmul.f32 %v7230, %v7176
    %v7239 = vmul.f32 %v7230, %v7177
    %v7240 = vmul.f32 %v7230, %v7178
    %v7241 = vmul.f32 %v7230, %v7179
    %v7242 = vmul.f32 %v7230, %v7180
    %v7243 = vmul.f32 %v7230, %v7181
    %v7244 = vmul.f32 %v7230, %v7182
    %v7245 = vmul.f32 %v7230, %v7183
    %v7246 = vmul.f32 %v7230, %v7184
    %v7247 = vmul.f32 %v7230, %v7185
    %v7248 = vadd.f32 %v7223, 1e-05
    %v7249 = vrsqrt.pop %v7248
    %v7250 = vmul.f32 %v7232, %v7249
    %v7251 = vmul.f32 %v7233, %v7249
    %v7252 = vmul.f32 %v7234, %v7249
    %v7253 = vmul.f32 %v7235, %v7249
    %v7254 = vmul.f32 %v7236, %v7249
    %v7255 = vmul.f32 %v7237, %v7249
    %v7256 = vmul.f32 %v7238, %v7249
    %v7257 = vmul.f32 %v7239, %v7249
    %v7258 = vmul.f32 %v7240, %v7249
    %v7259 = vmul.f32 %v7241, %v7249
    %v7260 = vmul.f32 %v7242, %v7249
    %v7261 = vmul.f32 %v7243, %v7249
    %v7262 = vmul.f32 %v7244, %v7249
    %v7263 = vmul.f32 %v7245, %v7249
    %v7264 = vmul.f32 %v7246, %v7249
    %v7265 = vmul.f32 %v7247, %v7249
    %s7266 = scalar_lea.vmem [#allocation29], 1
    %v7267 = vld [vmem:[%s7266] sm:$0x1]
    %v7269 = vlaneseq
    %v7270 = vshrl.u32 %v7269, 7
    %v7271 = vsub.s32 0, %v7270
    %v7272 = vrot.slane %v7267, %v7271
    %v7274 = vadd.f32 %v7250, %v7272
    %v7275 = vadd.f32 %v7251, %v7272
    %v7276 = vadd.f32 %v7252, %v7272
    %v7277 = vadd.f32 %v7253, %v7272
    %v7278 = vadd.f32 %v7254, %v7272
    %v7279 = vadd.f32 %v7255, %v7272
    %v7280 = vadd.f32 %v7256, %v7272
    %v7281 = vadd.f32 %v7257, %v7272
    %v7282 = vadd.f32 %v7258, %v7272
    %v7283 = vadd.f32 %v7259, %v7272
    %v7284 = vadd.f32 %v7260, %v7272
    %v7285 = vadd.f32 %v7261, %v7272
    %v7286 = vadd.f32 %v7262, %v7272
    %v7287 = vadd.f32 %v7263, %v7272
    %v7288 = vadd.f32 %v7264, %v7272
    %v7289 = vadd.f32 %v7265, %v7272
    %v7290 = vadd.f32 %v7274, %v4972
    %v7291 = vadd.f32 %v7275, %v4973
    %v7292 = vadd.f32 %v7276, %v4974
    %v7293 = vadd.f32 %v7277, %v4975
    %v7294 = vadd.f32 %v7278, %v4976
    %v7295 = vadd.f32 %v7279, %v4977
    %v7296 = vadd.f32 %v7280, %v4978
    %v7297 = vadd.f32 %v7281, %v4979
    %v7298 = vadd.f32 %v7282, %v4980
    %v7299 = vadd.f32 %v7283, %v4981
    %v7300 = vadd.f32 %v7284, %v4982
    %v7301 = vadd.f32 %v7285, %v4983
    %v7302 = vadd.f32 %v7286, %v4984
    %v7303 = vadd.f32 %v7287, %v4985
    %v7304 = vadd.f32 %v7288, %v4986
    %v7305 = vadd.f32 %v7289, %v4987
    %vm7306 = vcmp.gt.f32.partialorder %v7290, 0.0
    %vm7307 = vcmp.gt.f32.partialorder %v7291, 0.0
    %vm7308 = vcmp.gt.f32.partialorder %v7292, 0.0
    %vm7309 = vcmp.gt.f32.partialorder %v7293, 0.0
    %vm7310 = vcmp.gt.f32.partialorder %v7294, 0.0
    %vm7311 = vcmp.gt.f32.partialorder %v7295, 0.0
    %vm7312 = vcmp.gt.f32.partialorder %v7296, 0.0
    %vm7313 = vcmp.gt.f32.partialorder %v7297, 0.0
    %vm7314 = vcmp.gt.f32.partialorder %v7298, 0.0
    %vm7315 = vcmp.gt.f32.partialorder %v7299, 0.0
    %vm7316 = vcmp.gt.f32.partialorder %v7300, 0.0
    %vm7317 = vcmp.gt.f32.partialorder %v7301, 0.0
    %vm7318 = vcmp.gt.f32.partialorder %v7302, 0.0
    %vm7319 = vcmp.gt.f32.partialorder %v7303, 0.0
    %vm7320 = vcmp.gt.f32.partialorder %v7304, 0.0
    %vm7321 = vcmp.gt.f32.partialorder %v7305, 0.0
    %v7322 = vmul.f32 %v7290, 1.442695
    %v7323 = vpow.pop %v7322
    %v7324 = vmul.f32 %v7291, 1.442695
    %v7325 = vpow.pop %v7324
    %v7326 = vmul.f32 %v7292, 1.442695
    %v7327 = vpow.pop %v7326
    %v7328 = vmul.f32 %v7293, 1.442695
    %v7329 = vpow.pop %v7328
    %v7330 = vmul.f32 %v7294, 1.442695
    %v7331 = vpow.pop %v7330
    %v7332 = vmul.f32 %v7295, 1.442695
    %v7333 = vpow.pop %v7332
    %v7334 = vmul.f32 %v7296, 1.442695
    %v7335 = vpow.pop %v7334
    %v7336 = vmul.f32 %v7297, 1.442695
    %v7337 = vpow.pop %v7336
    %v7338 = vmul.f32 %v7298, 1.442695
    %v7339 = vpow.pop %v7338
    %v7340 = vmul.f32 %v7299, 1.442695
    %v7341 = vpow.pop %v7340
    %v7342 = vmul.f32 %v7300, 1.442695
    %v7343 = vpow.pop %v7342
    %v7344 = vmul.f32 %v7301, 1.442695
    %v7345 = vpow.pop %v7344
    %v7346 = vmul.f32 %v7302, 1.442695
    %v7347 = vpow.pop %v7346
    %v7348 = vmul.f32 %v7303, 1.442695
    %v7349 = vpow.pop %v7348
    %v7350 = vmul.f32 %v7304, 1.442695
    %v7351 = vpow.pop %v7350
    %v7352 = vmul.f32 %v7305, 1.442695
    %v7353 = vpow.pop %v7352
    %v7354 = vsub.f32 %v7323, 1.0
    %v7355 = vsub.f32 %v7325, 1.0
    %v7356 = vsub.f32 %v7327, 1.0
    %v7357 = vsub.f32 %v7329, 1.0
    %v7358 = vsub.f32 %v7331, 1.0
    %v7359 = vsub.f32 %v7333, 1.0
    %v7360 = vsub.f32 %v7335, 1.0
    %v7361 = vsub.f32 %v7337, 1.0
    %v7362 = vsub.f32 %v7339, 1.0
    %v7363 = vsub.f32 %v7341, 1.0
    %v7364 = vsub.f32 %v7343, 1.0
    %v7365 = vsub.f32 %v7345, 1.0
    %v7366 = vsub.f32 %v7347, 1.0
    %v7367 = vsub.f32 %v7349, 1.0
    %v7368 = vsub.f32 %v7351, 1.0
    %v7369 = vsub.f32 %v7353, 1.0
    %v7370 = vsel %vm7306, %v7290, %v7354
    %v7371 = vsel %vm7307, %v7291, %v7355
    %v7372 = vsel %vm7308, %v7292, %v7356
    %v7373 = vsel %vm7309, %v7293, %v7357
    %v7374 = vsel %vm7310, %v7294, %v7358
    %v7375 = vsel %vm7311, %v7295, %v7359
    %v7376 = vsel %vm7312, %v7296, %v7360
    %v7377 = vsel %vm7313, %v7297, %v7361
    %v7378 = vsel %vm7314, %v7298, %v7362
    %v7379 = vsel %vm7315, %v7299, %v7363
    %v7380 = vsel %vm7316, %v7300, %v7364
    %v7381 = vsel %vm7317, %v7301, %v7365
    %v7382 = vsel %vm7318, %v7302, %v7366
    %v7383 = vsel %vm7319, %v7303, %v7367
    %v7384 = vsel %vm7320, %v7304, %v7368
    %v7385 = vsel %vm7321, %v7305, %v7369
    %s7386 = scalar_lea.vmem [#allocation3], 512
    %v7387 = vld [vmem:[%s7386] sm:$0xff]
    %v7388 = vld [vmem:[%s7386 + $0x8] sm:$0xff]
    %v7389 = vld [vmem:[%s7386 + $0x10] sm:$0xff]
    %v7390 = vld [vmem:[%s7386 + $0x18] sm:$0xff]
    %v7391 = vld [vmem:[%s7386 + $0x20] sm:$0xff]
    %v7392 = vld [vmem:[%s7386 + $0x28] sm:$0xff]
    %v7393 = vld [vmem:[%s7386 + $0x30] sm:$0xff]
    %v7394 = vld [vmem:[%s7386 + $0x38] sm:$0xff]
    %v7395 = vld [vmem:[%s7386 + $0x40] sm:$0xff]
    %v7396 = vld [vmem:[%s7386 + $0x48] sm:$0xff]
    %v7397 = vld [vmem:[%s7386 + $0x50] sm:$0xff]
    %v7398 = vld [vmem:[%s7386 + $0x58] sm:$0xff]
    %v7399 = vld [vmem:[%s7386 + $0x60] sm:$0xff]
    %v7400 = vld [vmem:[%s7386 + $0x68] sm:$0xff]
    %v7401 = vld [vmem:[%s7386 + $0x70] sm:$0xff]
    %v7402 = vld [vmem:[%s7386 + $0x78] sm:$0xff]
    %v7403 = vld [vmem:[%s7386 + $0x80] sm:$0xff]
    %v7404 = vld [vmem:[%s7386 + $0x88] sm:$0xff]
    %v7405 = vld [vmem:[%s7386 + $0x90] sm:$0xff]
    %v7406 = vld [vmem:[%s7386 + $0x98] sm:$0xff]
    %v7407 = vld [vmem:[%s7386 + $0xa0] sm:$0xff]
    %v7408 = vld [vmem:[%s7386 + $0xa8] sm:$0xff]
    %v7409 = vld [vmem:[%s7386 + $0xb0] sm:$0xff]
    %v7410 = vld [vmem:[%s7386 + $0xb8] sm:$0xff]
    %v7411 = vld [vmem:[%s7386 + $0xc0] sm:$0xff]
    %v7412 = vld [vmem:[%s7386 + $0xc8] sm:$0xff]
    %v7413 = vld [vmem:[%s7386 + $0xd0] sm:$0xff]
    %v7414 = vld [vmem:[%s7386 + $0xd8] sm:$0xff]
    %v7415 = vld [vmem:[%s7386 + $0xe0] sm:$0xff]
    %v7416 = vld [vmem:[%s7386 + $0xe8] sm:$0xff]
    %v7417 = vld [vmem:[%s7386 + $0xf0] sm:$0xff]
    %v7418 = vld [vmem:[%s7386 + $0xf8] sm:$0xff]
    %s7419 = scalar_lea.vmem %s21, 4
    %v7420 = vld [vmem:[%s7419] sm:$0x3]
    %s7421 = scalar_lea.vmem %s22, 128
    %v7422 = vld [vmem:[%s7421] sm:$0xf]
    %v7423 = vld [vmem:[%s7421 + $0x4] sm:$0xf]
    %v7424 = vld [vmem:[%s7421 + $0x8] sm:$0xf]
    %v7425 = vld [vmem:[%s7421 + $0xc] sm:$0xf]
    %v7426 = vld [vmem:[%s7421 + $0x10] sm:$0xf]
    %v7427 = vld [vmem:[%s7421 + $0x14] sm:$0xf]
    %v7428 = vld [vmem:[%s7421 + $0x18] sm:$0xf]
    %v7429 = vld [vmem:[%s7421 + $0x1c] sm:$0xf]
    %v7430 = vld [vmem:[%s7421 + $0x20] sm:$0xf]
    %v7431 = vld [vmem:[%s7421 + $0x24] sm:$0xf]
    %v7432 = vld [vmem:[%s7421 + $0x28] sm:$0xf]
    %v7433 = vld [vmem:[%s7421 + $0x2c] sm:$0xf]
    %v7434 = vld [vmem:[%s7421 + $0x30] sm:$0xf]
    %v7435 = vld [vmem:[%s7421 + $0x34] sm:$0xf]
    %v7436 = vld [vmem:[%s7421 + $0x38] sm:$0xf]
    %v7437 = vld [vmem:[%s7421 + $0x3c] sm:$0xf]
    %s7438 = scalar_lea.vmem [#allocation26], 2
    %v7439 = vld [vmem:[%s7438] sm:$0x1]
    %v7440 = vpack.c.bf16 %v7371, %v7370
    %v7441 = vpack.c.bf16 %v7373, %v7372
    %v7442 = vpack.c.bf16 %v7375, %v7374
    %v7443 = vpack.c.bf16 %v7377, %v7376
    %v7444 = vpack.c.bf16 %v7379, %v7378
    %v7445 = vpack.c.bf16 %v7381, %v7380
    %v7446 = vpack.c.bf16 %v7383, %v7382
    %v7447 = vpack.c.bf16 %v7385, %v7384
    %v7464 = vunpack.c.l.b16 %v7422
    %v7465 = vunpack.c.l.b16 %v7423
    %v7466 = vunpack.c.l.b16 %v7424
    %v7467 = vunpack.c.l.b16 %v7425
    %v7468 = vunpack.c.l.b16 %v7426
    %v7469 = vunpack.c.l.b16 %v7427
    %v7470 = vunpack.c.l.b16 %v7428
    %v7471 = vunpack.c.l.b16 %v7429
    %v7472 = vunpack.c.l.b16 %v7430
    %v7473 = vunpack.c.l.b16 %v7431
    %v7474 = vunpack.c.l.b16 %v7432
    %v7475 = vunpack.c.l.b16 %v7433
    %v7476 = vunpack.c.l.b16 %v7434
    %v7477 = vunpack.c.l.b16 %v7435
    %v7478 = vunpack.c.l.b16 %v7436
    %v7479 = vunpack.c.l.b16 %v7437
    %v7480 = vpack.c.b16 %v7465, %v7464
    %v7481 = vpack.c.b16 %v7467, %v7466
    %v7482 = vpack.c.b16 %v7469, %v7468
    %v7483 = vpack.c.b16 %v7471, %v7470
    %v7484 = vpack.c.b16 %v7473, %v7472
    %v7485 = vpack.c.b16 %v7475, %v7474
    %v7486 = vpack.c.b16 %v7477, %v7476
    %v7487 = vpack.c.b16 %v7479, %v7478
    %7496 = vmatprep.subr.bf16.mxu0 0
    %7497 = vmatpush1.bf16.msra.mxu0 %v7480
    %7498 = vmatprep.subr.bf16.mxu0 0
    %7499 = vmatpush1.bf16.msra.mxu0 %v7481
    %7500 = vmatprep.subr.bf16.mxu0 0
    %7501 = vmatpush1.bf16.msra.mxu0 %v7482
    %7502 = vmatprep.subr.bf16.mxu0 0
    %7503 = vmatpush1.bf16.msra.mxu0 %v7483
    %7504 = vmatprep.subr.bf16.mxu0 0
    %7505 = vmatpush1.bf16.msra.mxu0 %v7484
    %7506 = vmatprep.subr.bf16.mxu0 0
    %7507 = vmatpush1.bf16.msra.mxu0 %v7485
    %7508 = vmatprep.subr.bf16.mxu0 0
    %7509 = vmatpush1.bf16.msra.mxu0 %v7486
    %7510 = vmatprep.subr.bf16.mxu0 0
    %7511 = vmatpush1.bf16.msra.mxu0 %v7487
    %7512 = vmatprep.subr.bf16.mxu0 0
    %7513 = vmatpush1.bf16.msra.mxu0 0
    %7514 = vmatprep.subr.bf16.mxu0 0
    %7515 = vmatpush1.bf16.msra.mxu0 0
    %7516 = vmatprep.subr.bf16.mxu0 0
    %7517 = vmatpush1.bf16.msra.mxu0 0
    %7518 = vmatprep.subr.bf16.mxu0 0
    %7519 = vmatpush1.bf16.msra.mxu0 0
    %7520 = vmatprep.subr.bf16.mxu0 0
    %7521 = vmatpush1.bf16.msra.mxu0 0
    %7522 = vmatprep.subr.bf16.mxu0 0
    %7523 = vmatpush1.bf16.msra.mxu0 0
    %7524 = vmatprep.subr.bf16.mxu0 0
    %7525 = vmatpush1.bf16.msra.mxu0 0
    %7526 = vmatprep.subr.bf16.mxu0 0
    %7527 = vmatpush1.bf16.msra.mxu0 0
    %7528 = vmatprep.mubr.bf16.mxu0 0
    %7529 = vmatmul.mubr.bf16.gmra.mrb[0].mxu0 %v7440
    %v7530 = vpop.f32.mrb[0].mxu0
    %v7531 = vadd.f32 0.0, %v7530
    %v7532 = vpop.f32.mrb[0].mxu0
    %v7533 = vpop.f32.mrb[0].mxu0
    %v7534 = vadd.f32 0.0, %v7533
    %v7535 = vpop.f32.mrb[0].mxu0
    %7536 = vmatprep.mubr.bf16.mxu0 0
    %7537 = vmatmul.mubr.bf16.gmra.mrb[0].mxu0 %v7441
    %v7538 = vpop.f32.mrb[0].mxu0
    %v7539 = vadd.f32 0.0, %v7538
    %v7540 = vpop.f32.mrb[0].mxu0
    %v7541 = vpop.f32.mrb[0].mxu0
    %v7542 = vadd.f32 0.0, %v7541
    %v7543 = vpop.f32.mrb[0].mxu0
    %7544 = vmatprep.mubr.bf16.mxu0 0
    %7545 = vmatmul.mubr.bf16.gmra.mrb[0].mxu0 %v7442
    %v7546 = vpop.f32.mrb[0].mxu0
    %v7547 = vadd.f32 0.0, %v7546
    %v7548 = vpop.f32.mrb[0].mxu0
    %v7549 = vpop.f32.mrb[0].mxu0
    %v7550 = vadd.f32 0.0, %v7549
    %v7551 = vpop.f32.mrb[0].mxu0
    %7552 = vmatprep.mubr.bf16.mxu0 0
    %7553 = vmatmul.mubr.bf16.gmra.mrb[0].mxu0 %v7443
    %v7554 = vpop.f32.mrb[0].mxu0
    %v7555 = vadd.f32 0.0, %v7554
    %v7556 = vpop.f32.mrb[0].mxu0
    %v7557 = vpop.f32.mrb[0].mxu0
    %v7558 = vadd.f32 0.0, %v7557
    %v7559 = vpop.f32.mrb[0].mxu0
    %7560 = vmatprep.mubr.bf16.mxu0 0
    %7561 = vmatmul.mubr.bf16.gmra.mrb[0].mxu0 %v7444
    %v7562 = vpop.f32.mrb[0].mxu0
    %v7563 = vadd.f32 0.0, %v7562
    %v7564 = vpop.f32.mrb[0].mxu0
    %v7565 = vpop.f32.mrb[0].mxu0
    %v7566 = vadd.f32 0.0, %v7565
    %v7567 = vpop.f32.mrb[0].mxu0
    %7568 = vmatprep.mubr.bf16.mxu0 0
    %7569 = vmatmul.mubr.bf16.gmra.mrb[0].mxu0 %v7445
    %v7570 = vpop.f32.mrb[0].mxu0
    %v7571 = vadd.f32 0.0, %v7570
    %v7572 = vpop.f32.mrb[0].mxu0
    %v7573 = vpop.f32.mrb[0].mxu0
    %v7574 = vadd.f32 0.0, %v7573
    %v7575 = vpop.f32.mrb[0].mxu0
    %7576 = vmatprep.mubr.bf16.mxu0 0
    %7577 = vmatmul.mubr.bf16.gmra.mrb[0].mxu0 %v7446
    %v7578 = vpop.f32.mrb[0].mxu0
    %v7579 = vadd.f32 0.0, %v7578
    %v7580 = vpop.f32.mrb[0].mxu0
    %v7581 = vpop.f32.mrb[0].mxu0
    %v7582 = vadd.f32 0.0, %v7581
    %v7583 = vpop.f32.mrb[0].mxu0
    %7584 = vmatprep.mubr.bf16.mxu0 0
    %7585 = vmatmul.mubr.bf16.gmra.mrb[0].mxu0 %v7447
    %v7586 = vpop.f32.mrb[0].mxu0
    %v7587 = vadd.f32 0.0, %v7586
    %v7588 = vpop.f32.mrb[0].mxu0
    %v7589 = vpop.f32.mrb[0].mxu0
    %v7590 = vadd.f32 0.0, %v7589
    %v7591 = vpop.f32.mrb[0].mxu0
    %7592 = vdwg.mxu0
    %7593 = vmatprep.subr.bf16.mxu0 0
    %7594 = vmatpush1.bf16.xpose.msra.mxu0 %v7440
    %7595 = vmatprep.subr.bf16.mxu0 0
    %7596 = vmatpush1.bf16.xpose.msra.mxu0 %v7441
    %7597 = vmatprep.subr.bf16.mxu0 0
    %7598 = vmatpush1.bf16.xpose.msra.mxu0 %v7442
    %7599 = vmatprep.subr.bf16.mxu0 0
    %7600 = vmatpush1.bf16.xpose.msra.mxu0 %v7443
    %7601 = vmatprep.subr.bf16.mxu0 0
    %7602 = vmatpush1.bf16.xpose.msra.mxu0 %v7444
    %7603 = vmatprep.subr.bf16.mxu0 0
    %7604 = vmatpush1.bf16.xpose.msra.mxu0 %v7445
    %7605 = vmatprep.subr.bf16.mxu0 0
    %7606 = vmatpush1.bf16.xpose.msra.mxu0 %v7446
    %7607 = vmatprep.subr.bf16.mxu0 0
    %7608 = vmatpush1.bf16.xpose.msra.mxu0 %v7447
    %7609 = vmatprep.subr.bf16.mxu0 0
    %7610 = vmatpush1.bf16.xpose.msra.mxu0 0
    %7611 = vmatprep.subr.bf16.mxu0 0
    %7612 = vmatpush1.bf16.xpose.msra.mxu0 0
    %7613 = vmatprep.subr.bf16.mxu0 0
    %7614 = vmatpush1.bf16.xpose.msra.mxu0 0
    %7615 = vmatprep.subr.bf16.mxu0 0
    %7616 = vmatpush1.bf16.xpose.msra.mxu0 0
    %7617 = vmatprep.subr.bf16.mxu0 0
    %7618 = vmatpush1.bf16.xpose.msra.mxu0 0
    %7619 = vmatprep.subr.bf16.mxu0 0
    %7620 = vmatpush1.bf16.xpose.msra.mxu0 0
    %7621 = vmatprep.subr.bf16.mxu0 0
    %7622 = vmatpush1.bf16.xpose.msra.mxu0 0
    %7623 = vmatprep.subr.bf16.mxu0 0
    %7624 = vmatpush1.bf16.xpose.msra.mxu0 0
    %7625 = vmatprep.mubr.bf16.mxu0 0
    %7626 = vmatmul.mubr.bf16.gmra.mrb[0].mxu0 %v7420
    %v7627 = vpop.f32.mrb[0].mxu0
    %v7628 = vadd.f32 0.0, %v7627
    %v7629 = vpop.f32.mrb[0].mxu0
    %v7630 = vpop.f32.mrb[0].mxu0
    %v7631 = vpop.f32.mrb[0].mxu0
    %7632 = vdwg.mxu0
    %7634 = vset.pattern.permute.xlu0 0
    %7635 = vperm.xlu0 %7634, %v7531
    %v7636 = vpop.permute.xlu0 %7635
    %7639 = vset.pattern.permute.xlu0 0
    %7640 = vperm.xlu0 %7639, %v7534
    %v7641 = vpop.permute.xlu0 %7640
    %7644 = vset.pattern.permute.xlu0 0
    %7645 = vperm.xlu0 %7644, %v7539
    %v7646 = vpop.permute.xlu0 %7645
    %7649 = vset.pattern.permute.xlu0 0
    %7650 = vperm.xlu0 %7649, %v7542
    %v7651 = vpop.permute.xlu0 %7650
    %7654 = vset.pattern.permute.xlu0 0
    %7655 = vperm.xlu0 %7654, %v7547
    %v7656 = vpop.permute.xlu0 %7655
    %7659 = vset.pattern.permute.xlu0 0
    %7660 = vperm.xlu0 %7659, %v7550
    %v7661 = vpop.permute.xlu0 %7660
    %7664 = vset.pattern.permute.xlu0 0
    %7665 = vperm.xlu0 %7664, %v7555
    %v7666 = vpop.permute.xlu0 %7665
    %7669 = vset.pattern.permute.xlu0 0
    %7670 = vperm.xlu0 %7669, %v7558
    %v7671 = vpop.permute.xlu0 %7670
    %7674 = vset.pattern.permute.xlu0 0
    %7675 = vperm.xlu0 %7674, %v7563
    %v7676 = vpop.permute.xlu0 %7675
    %7679 = vset.pattern.permute.xlu0 0
    %7680 = vperm.xlu0 %7679, %v7566
    %v7681 = vpop.permute.xlu0 %7680
    %7684 = vset.pattern.permute.xlu0 0
    %7685 = vperm.xlu0 %7684, %v7571
    %v7686 = vpop.permute.xlu0 %7685
    %7689 = vset.pattern.permute.xlu0 0
    %7690 = vperm.xlu0 %7689, %v7574
    %v7691 = vpop.permute.xlu0 %7690
    %7694 = vset.pattern.permute.xlu0 0
    %7695 = vperm.xlu0 %7694, %v7579
    %v7696 = vpop.permute.xlu0 %7695
    %7699 = vset.pattern.permute.xlu0 0
    %7700 = vperm.xlu0 %7699, %v7582
    %v7701 = vpop.permute.xlu0 %7700
    %7704 = vset.pattern.permute.xlu0 0
    %7705 = vperm.xlu0 %7704, %v7587
    %v7706 = vpop.permute.xlu0 %7705
    %7709 = vset.pattern.permute.xlu0 0
    %7710 = vperm.xlu0 %7709, %v7590
    %v7711 = vpop.permute.xlu0 %7710
    %v7713 = vlaneseq
    %v7714 = vshrl.u32 %v7713, 7
    %v7715 = vsub.s32 0, %v7714
    %v7716 = vrot.slane %v7628, %v7715
    %v7717 = vadd.f32 %v7636, %v7716
    %v7718 = vadd.f32 %v7641, %v7716
    %v7719 = vadd.f32 %v7646, %v7716
    %v7720 = vadd.f32 %v7651, %v7716
    %v7721 = vadd.f32 %v7656, %v7716
    %v7722 = vadd.f32 %v7661, %v7716
    %v7723 = vadd.f32 %v7666, %v7716
    %v7724 = vadd.f32 %v7671, %v7716
    %v7725 = vadd.f32 %v7676, %v7716
    %v7726 = vadd.f32 %v7681, %v7716
    %v7727 = vadd.f32 %v7686, %v7716
    %v7728 = vadd.f32 %v7691, %v7716
    %v7729 = vadd.f32 %v7696, %v7716
    %v7730 = vadd.f32 %v7701, %v7716
    %v7731 = vadd.f32 %v7706, %v7716
    %v7732 = vadd.f32 %v7711, %v7716
    %s7733 = scalar_lea.vmem [#allocation4], 512
    %v7734 = vld [vmem:[%s7733] sm:$0xff]
    %v7735 = vld [vmem:[%s7733 + $0x8] sm:$0xff]
    %v7736 = vld [vmem:[%s7733 + $0x10] sm:$0xff]
    %v7737 = vld [vmem:[%s7733 + $0x18] sm:$0xff]
    %v7738 = vld [vmem:[%s7733 + $0x20] sm:$0xff]
    %v7739 = vld [vmem:[%s7733 + $0x28] sm:$0xff]
    %v7740 = vld [vmem:[%s7733 + $0x30] sm:$0xff]
    %v7741 = vld [vmem:[%s7733 + $0x38] sm:$0xff]
    %v7742 = vunpack.c.l.bf16 %v7734
    %v7743 = vunpack.c.h.bf16 %v7734
    %v7744 = vunpack.c.l.bf16 %v7735
    %v7745 = vunpack.c.h.bf16 %v7735
    %v7746 = vunpack.c.l.bf16 %v7736
    %v7747 = vunpack.c.h.bf16 %v7736
    %v7748 = vunpack.c.l.bf16 %v7737
    %v7749 = vunpack.c.h.bf16 %v7737
    %v7750 = vunpack.c.l.bf16 %v7738
    %v7751 = vunpack.c.h.bf16 %v7738
    %v7752 = vunpack.c.l.bf16 %v7739
    %v7753 = vunpack.c.h.bf16 %v7739
    %v7754 = vunpack.c.l.bf16 %v7740
    %v7755 = vunpack.c.h.bf16 %v7740
    %v7756 = vunpack.c.l.bf16 %v7741
    %v7757 = vunpack.c.h.bf16 %v7741
    %v7758 = vadd.f32 %v7717, %v7742
    %v7759 = vadd.f32 %v7718, %v7743
    %v7760 = vadd.f32 %v7719, %v7744
    %v7761 = vadd.f32 %v7720, %v7745
    %v7762 = vadd.f32 %v7721, %v7746
    %v7763 = vadd.f32 %v7722, %v7747
    %v7764 = vadd.f32 %v7723, %v7748
    %v7765 = vadd.f32 %v7724, %v7749
    %v7766 = vadd.f32 %v7725, %v7750
    %v7767 = vadd.f32 %v7726, %v7751
    %v7768 = vadd.f32 %v7727, %v7752
    %v7769 = vadd.f32 %v7728, %v7753
    %v7770 = vadd.f32 %v7729, %v7754
    %v7771 = vadd.f32 %v7730, %v7755
    %v7772 = vadd.f32 %v7731, %v7756
    %v7773 = vadd.f32 %v7732, %v7757
    %v7774 = vmul.f32 %v7758, 0.2
    %v7775 = vmul.f32 %v7759, 0.2
    %v7776 = vmul.f32 %v7760, 0.2
    %v7777 = vmul.f32 %v7761, 0.2
    %v7778 = vmul.f32 %v7762, 0.2
    %v7779 = vmul.f32 %v7763, 0.2
    %v7780 = vmul.f32 %v7764, 0.2
    %v7781 = vmul.f32 %v7765, 0.2
    %v7782 = vmul.f32 %v7766, 0.2
    %v7783 = vmul.f32 %v7767, 0.2
    %v7784 = vmul.f32 %v7768, 0.2
    %v7785 = vmul.f32 %v7769, 0.2
    %v7786 = vmul.f32 %v7770, 0.2
    %v7787 = vmul.f32 %v7771, 0.2
    %v7788 = vmul.f32 %v7772, 0.2
    %v7789 = vmul.f32 %v7773, 0.2
    %v7790 = vmax.f32 %v7758, %v7774
    %v7791 = vmax.f32 %v7759, %v7775
    %v7792 = vmax.f32 %v7760, %v7776
    %v7793 = vmax.f32 %v7761, %v7777
    %v7794 = vmax.f32 %v7762, %v7778
    %v7795 = vmax.f32 %v7763, %v7779
    %v7796 = vmax.f32 %v7764, %v7780
    %v7797 = vmax.f32 %v7765, %v7781
    %v7798 = vmax.f32 %v7766, %v7782
    %v7799 = vmax.f32 %v7767, %v7783
    %v7800 = vmax.f32 %v7768, %v7784
    %v7801 = vmax.f32 %v7769, %v7785
    %v7802 = vmax.f32 %v7770, %v7786
    %v7803 = vmax.f32 %v7771, %v7787
    %v7804 = vmax.f32 %v7772, %v7788
    %v7805 = vmax.f32 %v7773, %v7789
    %7806 = vmax.xlane.f32.xlu0 %v7790
    %v7807 = vpop.xlane.xlu0 %7806
    %7808 = vmax.xlane.f32.xlu0 %v7791
    %v7809 = vpop.xlane.xlu0 %7808
    %7810 = vmax.xlane.f32.xlu0 %v7792
    %v7811 = vpop.xlane.xlu0 %7810
    %7812 = vmax.xlane.f32.xlu0 %v7793
    %v7813 = vpop.xlane.xlu0 %7812
    %7814 = vmax.xlane.f32.xlu0 %v7794
    %v7815 = vpop.xlane.xlu0 %7814
    %7816 = vmax.xlane.f32.xlu0 %v7795
    %v7817 = vpop.xlane.xlu0 %7816
    %7818 = vmax.xlane.f32.xlu0 %v7796
    %v7819 = vpop.xlane.xlu0 %7818
    %7820 = vmax.xlane.f32.xlu0 %v7797
    %v7821 = vpop.xlane.xlu0 %7820
    %7822 = vmax.xlane.f32.xlu0 %v7798
    %v7823 = vpop.xlane.xlu0 %7822
    %7824 = vmax.xlane.f32.xlu0 %v7799
    %v7825 = vpop.xlane.xlu0 %7824
    %7826 = vmax.xlane.f32.xlu0 %v7800
    %v7827 = vpop.xlane.xlu0 %7826
    %7828 = vmax.xlane.f32.xlu0 %v7801
    %v7829 = vpop.xlane.xlu0 %7828
    %7830 = vmax.xlane.f32.xlu0 %v7802
    %v7831 = vpop.xlane.xlu0 %7830
    %7832 = vmax.xlane.f32.xlu0 %v7803
    %v7833 = vpop.xlane.xlu0 %7832
    %7834 = vmax.xlane.f32.xlu0 %v7804
    %v7835 = vpop.xlane.xlu0 %7834
    %7836 = vmax.xlane.f32.xlu0 %v7805
    %v7837 = vpop.xlane.xlu0 %7836
    %v7838 = vsub.f32 %v7790, %v7807
    %v7839 = vsub.f32 %v7791, %v7809
    %v7840 = vsub.f32 %v7792, %v7811
    %v7841 = vsub.f32 %v7793, %v7813
    %v7842 = vsub.f32 %v7794, %v7815
    %v7843 = vsub.f32 %v7795, %v7817
    %v7844 = vsub.f32 %v7796, %v7819
    %v7845 = vsub.f32 %v7797, %v7821
    %v7846 = vsub.f32 %v7798, %v7823
    %v7847 = vsub.f32 %v7799, %v7825
    %v7848 = vsub.f32 %v7800, %v7827
    %v7849 = vsub.f32 %v7801, %v7829
    %v7850 = vsub.f32 %v7802, %v7831
    %v7851 = vsub.f32 %v7803, %v7833
    %v7852 = vsub.f32 %v7804, %v7835
    %v7853 = vsub.f32 %v7805, %v7837
    %v7854 = vmul.f32 %v7838, 1.442695
    %v7855 = vpow.pop %v7854
    %v7856 = vmul.f32 %v7839, 1.442695
    %v7857 = vpow.pop %v7856
    %v7858 = vmul.f32 %v7840, 1.442695
    %v7859 = vpow.pop %v7858
    %v7860 = vmul.f32 %v7841, 1.442695
    %v7861 = vpow.pop %v7860
    %v7862 = vmul.f32 %v7842, 1.442695
    %v7863 = vpow.pop %v7862
    %v7864 = vmul.f32 %v7843, 1.442695
    %v7865 = vpow.pop %v7864
    %v7866 = vmul.f32 %v7844, 1.442695
    %v7867 = vpow.pop %v7866
    %v7868 = vmul.f32 %v7845, 1.442695
    %v7869 = vpow.pop %v7868
    %v7870 = vmul.f32 %v7846, 1.442695
    %v7871 = vpow.pop %v7870
    %v7872 = vmul.f32 %v7847, 1.442695
    %v7873 = vpow.pop %v7872
    %v7874 = vmul.f32 %v7848, 1.442695
    %v7875 = vpow.pop %v7874
    %v7876 = vmul.f32 %v7849, 1.442695
    %v7877 = vpow.pop %v7876
    %v7878 = vmul.f32 %v7850, 1.442695
    %v7879 = vpow.pop %v7878
    %v7880 = vmul.f32 %v7851, 1.442695
    %v7881 = vpow.pop %v7880
    %v7882 = vmul.f32 %v7852, 1.442695
    %v7883 = vpow.pop %v7882
    %v7884 = vmul.f32 %v7853, 1.442695
    %v7885 = vpow.pop %v7884
    %7886 = vadd.xlane.f32.xlu0 %v7855
    %v7887 = vpop.xlane.xlu0 %7886
    %7888 = vadd.xlane.f32.xlu0 %v7857
    %v7889 = vpop.xlane.xlu0 %7888
    %7890 = vadd.xlane.f32.xlu0 %v7859
    %v7891 = vpop.xlane.xlu0 %7890
    %7892 = vadd.xlane.f32.xlu0 %v7861
    %v7893 = vpop.xlane.xlu0 %7892
    %7894 = vadd.xlane.f32.xlu0 %v7863
    %v7895 = vpop.xlane.xlu0 %7894
    %7896 = vadd.xlane.f32.xlu0 %v7865
    %v7897 = vpop.xlane.xlu0 %7896
    %7898 = vadd.xlane.f32.xlu0 %v7867
    %v7899 = vpop.xlane.xlu0 %7898
    %7900 = vadd.xlane.f32.xlu0 %v7869
    %v7901 = vpop.xlane.xlu0 %7900
    %7902 = vadd.xlane.f32.xlu0 %v7871
    %v7903 = vpop.xlane.xlu0 %7902
    %7904 = vadd.xlane.f32.xlu0 %v7873
    %v7905 = vpop.xlane.xlu0 %7904
    %7906 = vadd.xlane.f32.xlu0 %v7875
    %v7907 = vpop.xlane.xlu0 %7906
    %7908 = vadd.xlane.f32.xlu0 %v7877
    %v7909 = vpop.xlane.xlu0 %7908
    %7910 = vadd.xlane.f32.xlu0 %v7879
    %v7911 = vpop.xlane.xlu0 %7910
    %7912 = vadd.xlane.f32.xlu0 %v7881
    %v7913 = vpop.xlane.xlu0 %7912
    %7914 = vadd.xlane.f32.xlu0 %v7883
    %v7915 = vpop.xlane.xlu0 %7914
    %7916 = vadd.xlane.f32.xlu0 %v7885
    %v7917 = vpop.xlane.xlu0 %7916
    %v7918 = vrcp.pop %v7887
    %v7919 = vrcp.pop %v7889
    %v7920 = vrcp.pop %v7891
    %v7921 = vrcp.pop %v7893
    %v7922 = vrcp.pop %v7895
    %v7923 = vrcp.pop %v7897
    %v7924 = vrcp.pop %v7899
    %v7925 = vrcp.pop %v7901
    %v7926 = vrcp.pop %v7903
    %v7927 = vrcp.pop %v7905
    %v7928 = vrcp.pop %v7907
    %v7929 = vrcp.pop %v7909
    %v7930 = vrcp.pop %v7911
    %v7931 = vrcp.pop %v7913
    %v7932 = vrcp.pop %v7915
    %v7933 = vrcp.pop %v7917
    %v7934 = vmul.f32 %v7855, %v7918
    %v7935 = vmul.f32 %v7857, %v7919
    %v7936 = vmul.f32 %v7859, %v7920
    %v7937 = vmul.f32 %v7861, %v7921
    %v7938 = vmul.f32 %v7863, %v7922
    %v7939 = vmul.f32 %v7865, %v7923
    %v7940 = vmul.f32 %v7867, %v7924
    %v7941 = vmul.f32 %v7869, %v7925
    %v7942 = vmul.f32 %v7871, %v7926
    %v7943 = vmul.f32 %v7873, %v7927
    %v7944 = vmul.f32 %v7875, %v7928
    %v7945 = vmul.f32 %v7877, %v7929
    %v7946 = vmul.f32 %v7879, %v7930
    %v7947 = vmul.f32 %v7881, %v7931
    %v7948 = vmul.f32 %v7883, %v7932
    %v7949 = vmul.f32 %v7885, %v7933
    %v7950 = vpack.c.bf16 %v7935, %v7934
    %v7951 = vpack.c.bf16 %v7937, %v7936
    %v7952 = vpack.c.bf16 %v7939, %v7938
    %v7953 = vpack.c.bf16 %v7941, %v7940
    %v7954 = vpack.c.bf16 %v7943, %v7942
    %v7955 = vpack.c.bf16 %v7945, %v7944
    %v7956 = vpack.c.bf16 %v7947, %v7946
    %v7957 = vpack.c.bf16 %v7949, %v7948
    %7958 = vmatprep.subr.bf16.mxu0 0
    %7959 = vmatpush1.bf16.msra.mxu0 %v7440
    %7960 = vmatprep.subr.bf16.mxu0 0
    %7961 = vmatpush1.bf16.msra.mxu0 %v7441
    %7962 = vmatprep.subr.bf16.mxu0 0
    %7963 = vmatpush1.bf16.msra.mxu0 %v7442
    %7964 = vmatprep.subr.bf16.mxu0 0
    %7965 = vmatpush1.bf16.msra.mxu0 %v7443
    %7966 = vmatprep.subr.bf16.mxu0 0
    %7967 = vmatpush1.bf16.msra.mxu0 %v7444
    %7968 = vmatprep.subr.bf16.mxu0 0
    %7969 = vmatpush1.bf16.msra.mxu0 %v7445
    %7970 = vmatprep.subr.bf16.mxu0 0
    %7971 = vmatpush1.bf16.msra.mxu0 %v7446
    %7972 = vmatprep.subr.bf16.mxu0 0
    %7973 = vmatpush1.bf16.msra.mxu0 %v7447
    %7974 = vmatprep.subr.bf16.mxu0 0
    %7975 = vmatpush1.bf16.msra.mxu0 0
    %7976 = vmatprep.subr.bf16.mxu0 0
    %7977 = vmatpush1.bf16.msra.mxu0 0
    %7978 = vmatprep.subr.bf16.mxu0 0
    %7979 = vmatpush1.bf16.msra.mxu0 0
    %7980 = vmatprep.subr.bf16.mxu0 0
    %7981 = vmatpush1.bf16.msra.mxu0 0
    %7982 = vmatprep.subr.bf16.mxu0 0
    %7983 = vmatpush1.bf16.msra.mxu0 0
    %7984 = vmatprep.subr.bf16.mxu0 0
    %7985 = vmatpush1.bf16.msra.mxu0 0
    %7986 = vmatprep.subr.bf16.mxu0 0
    %7987 = vmatpush1.bf16.msra.mxu0 0
    %7988 = vmatprep.subr.bf16.mxu0 0
    %7989 = vmatpush1.bf16.msra.mxu0 0
    %7990 = vmatprep.mubr.bf16.mxu0 0
    %7991 = vmatmul.mubr.bf16.gmra.mrb[0].mxu0 %v7950
    %v7992 = vpop.f32.mrb[0].mxu0
    %v7993 = vadd.f32 0.0, %v7992
    %v7994 = vpop.f32.mrb[0].mxu0
    %v7995 = vpop.f32.mrb[0].mxu0
    %v7996 = vadd.f32 0.0, %v7995
    %v7997 = vpop.f32.mrb[0].mxu0
    %7998 = vmatprep.mubr.bf16.mxu0 0
    %7999 = vmatmul.mubr.bf16.gmra.mrb[0].mxu0 %v7951
    %v8000 = vpop.f32.mrb[0].mxu0
    %v8001 = vadd.f32 0.0, %v8000
    %v8002 = vpop.f32.mrb[0].mxu0
    %v8003 = vpop.f32.mrb[0].mxu0
    %v8004 = vadd.f32 0.0, %v8003
    %v8005 = vpop.f32.mrb[0].mxu0
    %8006 = vmatprep.mubr.bf16.mxu0 0
    %8007 = vmatmul.mubr.bf16.gmra.mrb[0].mxu0 %v7952
    %v8008 = vpop.f32.mrb[0].mxu0
    %v8009 = vadd.f32 0.0, %v8008
    %v8010 = vpop.f32.mrb[0].mxu0
    %v8011 = vpop.f32.mrb[0].mxu0
    %v8012 = vadd.f32 0.0, %v8011
    %v8013 = vpop.f32.mrb[0].mxu0
    %8014 = vmatprep.mubr.bf16.mxu0 0
    %8015 = vmatmul.mubr.bf16.gmra.mrb[0].mxu0 %v7953
    %v8016 = vpop.f32.mrb[0].mxu0
    %v8017 = vadd.f32 0.0, %v8016
    %v8018 = vpop.f32.mrb[0].mxu0
    %v8019 = vpop.f32.mrb[0].mxu0
    %v8020 = vadd.f32 0.0, %v8019
    %v8021 = vpop.f32.mrb[0].mxu0
    %8022 = vmatprep.mubr.bf16.mxu0 0
    %8023 = vmatmul.mubr.bf16.gmra.mrb[0].mxu0 %v7954
    %v8024 = vpop.f32.mrb[0].mxu0
    %v8025 = vadd.f32 0.0, %v8024
    %v8026 = vpop.f32.mrb[0].mxu0
    %v8027 = vpop.f32.mrb[0].mxu0
    %v8028 = vadd.f32 0.0, %v8027
    %v8029 = vpop.f32.mrb[0].mxu0
    %8030 = vmatprep.mubr.bf16.mxu0 0
    %8031 = vmatmul.mubr.bf16.gmra.mrb[0].mxu0 %v7955
    %v8032 = vpop.f32.mrb[0].mxu0
    %v8033 = vadd.f32 0.0, %v8032
    %v8034 = vpop.f32.mrb[0].mxu0
    %v8035 = vpop.f32.mrb[0].mxu0
    %v8036 = vadd.f32 0.0, %v8035
    %v8037 = vpop.f32.mrb[0].mxu0
    %8038 = vmatprep.mubr.bf16.mxu0 0
    %8039 = vmatmul.mubr.bf16.gmra.mrb[0].mxu0 %v7956
    %v8040 = vpop.f32.mrb[0].mxu0
    %v8041 = vadd.f32 0.0, %v8040
    %v8042 = vpop.f32.mrb[0].mxu0
    %v8043 = vpop.f32.mrb[0].mxu0
    %v8044 = vadd.f32 0.0, %v8043
    %v8045 = vpop.f32.mrb[0].mxu0
    %8046 = vmatprep.mubr.bf16.mxu0 0
    %8047 = vmatmul.mubr.bf16.gmra.mrb[0].mxu0 %v7957
    %v8048 = vpop.f32.mrb[0].mxu0
    %v8049 = vadd.f32 0.0, %v8048
    %v8050 = vpop.f32.mrb[0].mxu0
    %v8051 = vpop.f32.mrb[0].mxu0
    %v8052 = vadd.f32 0.0, %v8051
    %v8053 = vpop.f32.mrb[0].mxu0
    %8054 = vdwg.mxu0
    %8055 = vset.pattern.permute.xlu0 1
    %8056 = vperm.xlu0 %8055, %v7531
    %v8057 = vpop.permute.xlu0 %8056
    %8059 = vset.pattern.permute.xlu0 1
    %8060 = vperm.xlu0 %8059, %v7534
    %v8061 = vpop.permute.xlu0 %8060
    %8063 = vset.pattern.permute.xlu0 1
    %8064 = vperm.xlu0 %8063, %v7539
    %v8065 = vpop.permute.xlu0 %8064
    %8067 = vset.pattern.permute.xlu0 1
    %8068 = vperm.xlu0 %8067, %v7542
    %v8069 = vpop.permute.xlu0 %8068
    %8071 = vset.pattern.permute.xlu0 1
    %8072 = vperm.xlu0 %8071, %v7547
    %v8073 = vpop.permute.xlu0 %8072
    %8075 = vset.pattern.permute.xlu0 1
    %8076 = vperm.xlu0 %8075, %v7550
    %v8077 = vpop.permute.xlu0 %8076
    %8079 = vset.pattern.permute.xlu0 1
    %8080 = vperm.xlu0 %8079, %v7555
    %v8081 = vpop.permute.xlu0 %8080
    %8083 = vset.pattern.permute.xlu0 1
    %8084 = vperm.xlu0 %8083, %v7558
    %v8085 = vpop.permute.xlu0 %8084
    %8087 = vset.pattern.permute.xlu0 1
    %8088 = vperm.xlu0 %8087, %v7563
    %v8089 = vpop.permute.xlu0 %8088
    %8091 = vset.pattern.permute.xlu0 1
    %8092 = vperm.xlu0 %8091, %v7566
    %v8093 = vpop.permute.xlu0 %8092
    %8095 = vset.pattern.permute.xlu0 1
    %8096 = vperm.xlu0 %8095, %v7571
    %v8097 = vpop.permute.xlu0 %8096
    %8099 = vset.pattern.permute.xlu0 1
    %8100 = vperm.xlu0 %8099, %v7574
    %v8101 = vpop.permute.xlu0 %8100
    %8103 = vset.pattern.permute.xlu0 1
    %8104 = vperm.xlu0 %8103, %v7579
    %v8105 = vpop.permute.xlu0 %8104
    %8107 = vset.pattern.permute.xlu0 1
    %8108 = vperm.xlu0 %8107, %v7582
    %v8109 = vpop.permute.xlu0 %8108
    %8111 = vset.pattern.permute.xlu0 1
    %8112 = vperm.xlu0 %8111, %v7587
    %v8113 = vpop.permute.xlu0 %8112
    %8115 = vset.pattern.permute.xlu0 1
    %8116 = vperm.xlu0 %8115, %v7590
    %v8117 = vpop.permute.xlu0 %8116
    %v8119 = vlaneseq
    %v8120 = vshrl.u32 %v8119, 7
    %v8121 = vsub.s32 1, %v8120
    %v8122 = vrot.slane %v7628, %v8121
    %v8123 = vadd.f32 %v8057, %v8122
    %v8124 = vadd.f32 %v8061, %v8122
    %v8125 = vadd.f32 %v8065, %v8122
    %v8126 = vadd.f32 %v8069, %v8122
    %v8127 = vadd.f32 %v8073, %v8122
    %v8128 = vadd.f32 %v8077, %v8122
    %v8129 = vadd.f32 %v8081, %v8122
    %v8130 = vadd.f32 %v8085, %v8122
    %v8131 = vadd.f32 %v8089, %v8122
    %v8132 = vadd.f32 %v8093, %v8122
    %v8133 = vadd.f32 %v8097, %v8122
    %v8134 = vadd.f32 %v8101, %v8122
    %v8135 = vadd.f32 %v8105, %v8122
    %v8136 = vadd.f32 %v8109, %v8122
    %v8137 = vadd.f32 %v8113, %v8122
    %v8138 = vadd.f32 %v8117, %v8122
    %s8139 = scalar_lea.vmem %s7733, 64 [#allocation4]
    %v8140 = vld [vmem:[%s8139] sm:$0xff]
    %v8141 = vld [vmem:[%s8139 + $0x8] sm:$0xff]
    %v8142 = vld [vmem:[%s8139 + $0x10] sm:$0xff]
    %v8143 = vld [vmem:[%s8139 + $0x18] sm:$0xff]
    %v8144 = vld [vmem:[%s8139 + $0x20] sm:$0xff]
    %v8145 = vld [vmem:[%s8139 + $0x28] sm:$0xff]
    %v8146 = vld [vmem:[%s8139 + $0x30] sm:$0xff]
    %v8147 = vld [vmem:[%s8139 + $0x38] sm:$0xff]
    %v8148 = vunpack.c.l.bf16 %v8140
    %v8149 = vunpack.c.h.bf16 %v8140
    %v8150 = vunpack.c.l.bf16 %v8141
    %v8151 = vunpack.c.h.bf16 %v8141
    %v8152 = vunpack.c.l.bf16 %v8142
    %v8153 = vunpack.c.h.bf16 %v8142
    %v8154 = vunpack.c.l.bf16 %v8143
    %v8155 = vunpack.c.h.bf16 %v8143
    %v8156 = vunpack.c.l.bf16 %v8144
    %v8157 = vunpack.c.h.bf16 %v8144
    %v8158 = vunpack.c.l.bf16 %v8145
    %v8159 = vunpack.c.h.bf16 %v8145
    %v8160 = vunpack.c.l.bf16 %v8146
    %v8161 = vunpack.c.h.bf16 %v8146
    %v8162 = vunpack.c.l.bf16 %v8147
    %v8163 = vunpack.c.h.bf16 %v8147
    %v8164 = vadd.f32 %v8123, %v8148
    %v8165 = vadd.f32 %v8124, %v8149
    %v8166 = vadd.f32 %v8125, %v8150
    %v8167 = vadd.f32 %v8126, %v8151
    %v8168 = vadd.f32 %v8127, %v8152
    %v8169 = vadd.f32 %v8128, %v8153
    %v8170 = vadd.f32 %v8129, %v8154
    %v8171 = vadd.f32 %v8130, %v8155
    %v8172 = vadd.f32 %v8131, %v8156
    %v8173 = vadd.f32 %v8132, %v8157
    %v8174 = vadd.f32 %v8133, %v8158
    %v8175 = vadd.f32 %v8134, %v8159
    %v8176 = vadd.f32 %v8135, %v8160
    %v8177 = vadd.f32 %v8136, %v8161
    %v8178 = vadd.f32 %v8137, %v8162
    %v8179 = vadd.f32 %v8138, %v8163
    %v8180 = vmul.f32 %v8164, 0.2
    %v8181 = vmul.f32 %v8165, 0.2
    %v8182 = vmul.f32 %v8166, 0.2
    %v8183 = vmul.f32 %v8167, 0.2
    %v8184 = vmul.f32 %v8168, 0.2
    %v8185 = vmul.f32 %v8169, 0.2
    %v8186 = vmul.f32 %v8170, 0.2
    %v8187 = vmul.f32 %v8171, 0.2
    %v8188 = vmul.f32 %v8172, 0.2
    %v8189 = vmul.f32 %v8173, 0.2
    %v8190 = vmul.f32 %v8174, 0.2
    %v8191 = vmul.f32 %v8175, 0.2
    %v8192 = vmul.f32 %v8176, 0.2
    %v8193 = vmul.f32 %v8177, 0.2
    %v8194 = vmul.f32 %v8178, 0.2
    %v8195 = vmul.f32 %v8179, 0.2
    %v8196 = vmax.f32 %v8164, %v8180
    %v8197 = vmax.f32 %v8165, %v8181
    %v8198 = vmax.f32 %v8166, %v8182
    %v8199 = vmax.f32 %v8167, %v8183
    %v8200 = vmax.f32 %v8168, %v8184
    %v8201 = vmax.f32 %v8169, %v8185
    %v8202 = vmax.f32 %v8170, %v8186
    %v8203 = vmax.f32 %v8171, %v8187
    %v8204 = vmax.f32 %v8172, %v8188
    %v8205 = vmax.f32 %v8173, %v8189
    %v8206 = vmax.f32 %v8174, %v8190
    %v8207 = vmax.f32 %v8175, %v8191
    %v8208 = vmax.f32 %v8176, %v8192
    %v8209 = vmax.f32 %v8177, %v8193
    %v8210 = vmax.f32 %v8178, %v8194
    %v8211 = vmax.f32 %v8179, %v8195
    %8212 = vmax.xlane.f32.xlu0 %v8196
    %v8213 = vpop.xlane.xlu0 %8212
    %8214 = vmax.xlane.f32.xlu0 %v8197
    %v8215 = vpop.xlane.xlu0 %8214
    %8216 = vmax.xlane.f32.xlu0 %v8198
    %v8217 = vpop.xlane.xlu0 %8216
    %8218 = vmax.xlane.f32.xlu0 %v8199
    %v8219 = vpop.xlane.xlu0 %8218
    %8220 = vmax.xlane.f32.xlu0 %v8200
    %v8221 = vpop.xlane.xlu0 %8220
    %8222 = vmax.xlane.f32.xlu0 %v8201
    %v8223 = vpop.xlane.xlu0 %8222
    %8224 = vmax.xlane.f32.xlu0 %v8202
    %v8225 = vpop.xlane.xlu0 %8224
    %8226 = vmax.xlane.f32.xlu0 %v8203
    %v8227 = vpop.xlane.xlu0 %8226
    %8228 = vmax.xlane.f32.xlu0 %v8204
    %v8229 = vpop.xlane.xlu0 %8228
    %8230 = vmax.xlane.f32.xlu0 %v8205
    %v8231 = vpop.xlane.xlu0 %8230
    %8232 = vmax.xlane.f32.xlu0 %v8206
    %v8233 = vpop.xlane.xlu0 %8232
    %8234 = vmax.xlane.f32.xlu0 %v8207
    %v8235 = vpop.xlane.xlu0 %8234
    %8236 = vmax.xlane.f32.xlu0 %v8208
    %v8237 = vpop.xlane.xlu0 %8236
    %8238 = vmax.xlane.f32.xlu0 %v8209
    %v8239 = vpop.xlane.xlu0 %8238
    %8240 = vmax.xlane.f32.xlu0 %v8210
    %v8241 = vpop.xlane.xlu0 %8240
    %8242 = vmax.xlane.f32.xlu0 %v8211
    %v8243 = vpop.xlane.xlu0 %8242
    %v8244 = vsub.f32 %v8196, %v8213
    %v8245 = vsub.f32 %v8197, %v8215
    %v8246 = vsub.f32 %v8198, %v8217
    %v8247 = vsub.f32 %v8199, %v8219
    %v8248 = vsub.f32 %v8200, %v8221
    %v8249 = vsub.f32 %v8201, %v8223
    %v8250 = vsub.f32 %v8202, %v8225
    %v8251 = vsub.f32 %v8203, %v8227
    %v8252 = vsub.f32 %v8204, %v8229
    %v8253 = vsub.f32 %v8205, %v8231
    %v8254 = vsub.f32 %v8206, %v8233
    %v8255 = vsub.f32 %v8207, %v8235
    %v8256 = vsub.f32 %v8208, %v8237
    %v8257 = vsub.f32 %v8209, %v8239
    %v8258 = vsub.f32 %v8210, %v8241
    %v8259 = vsub.f32 %v8211, %v8243
    %v8260 = vmul.f32 %v8244, 1.442695
    %v8261 = vpow.pop %v8260
    %v8262 = vmul.f32 %v8245, 1.442695
    %v8263 = vpow.pop %v8262
    %v8264 = vmul.f32 %v8246, 1.442695
    %v8265 = vpow.pop %v8264
    %v8266 = vmul.f32 %v8247, 1.442695
    %v8267 = vpow.pop %v8266
    %v8268 = vmul.f32 %v8248, 1.442695
    %v8269 = vpow.pop %v8268
    %v8270 = vmul.f32 %v8249, 1.442695
    %v8271 = vpow.pop %v8270
    %v8272 = vmul.f32 %v8250, 1.442695
    %v8273 = vpow.pop %v8272
    %v8274 = vmul.f32 %v8251, 1.442695
    %v8275 = vpow.pop %v8274
    %v8276 = vmul.f32 %v8252, 1.442695
    %v8277 = vpow.pop %v8276
    %v8278 = vmul.f32 %v8253, 1.442695
    %v8279 = vpow.pop %v8278
    %v8280 = vmul.f32 %v8254, 1.442695
    %v8281 = vpow.pop %v8280
    %v8282 = vmul.f32 %v8255, 1.442695
    %v8283 = vpow.pop %v8282
    %v8284 = vmul.f32 %v8256, 1.442695
    %v8285 = vpow.pop %v8284
    %v8286 = vmul.f32 %v8257, 1.442695
    %v8287 = vpow.pop %v8286
    %v8288 = vmul.f32 %v8258, 1.442695
    %v8289 = vpow.pop %v8288
    %v8290 = vmul.f32 %v8259, 1.442695
    %v8291 = vpow.pop %v8290
    %8292 = vadd.xlane.f32.xlu0 %v8261
    %v8293 = vpop.xlane.xlu0 %8292
    %8294 = vadd.xlane.f32.xlu0 %v8263
    %v8295 = vpop.xlane.xlu0 %8294
    %8296 = vadd.xlane.f32.xlu0 %v8265
    %v8297 = vpop.xlane.xlu0 %8296
    %8298 = vadd.xlane.f32.xlu0 %v8267
    %v8299 = vpop.xlane.xlu0 %8298
    %8300 = vadd.xlane.f32.xlu0 %v8269
    %v8301 = vpop.xlane.xlu0 %8300
    %8302 = vadd.xlane.f32.xlu0 %v8271
    %v8303 = vpop.xlane.xlu0 %8302
    %8304 = vadd.xlane.f32.xlu0 %v8273
    %v8305 = vpop.xlane.xlu0 %8304
    %8306 = vadd.xlane.f32.xlu0 %v8275
    %v8307 = vpop.xlane.xlu0 %8306
    %8308 = vadd.xlane.f32.xlu0 %v8277
    %v8309 = vpop.xlane.xlu0 %8308
    %8310 = vadd.xlane.f32.xlu0 %v8279
    %v8311 = vpop.xlane.xlu0 %8310
    %8312 = vadd.xlane.f32.xlu0 %v8281
    %v8313 = vpop.xlane.xlu0 %8312
    %8314 = vadd.xlane.f32.xlu0 %v8283
    %v8315 = vpop.xlane.xlu0 %8314
    %8316 = vadd.xlane.f32.xlu0 %v8285
    %v8317 = vpop.xlane.xlu0 %8316
    %8318 = vadd.xlane.f32.xlu0 %v8287
    %v8319 = vpop.xlane.xlu0 %8318
    %8320 = vadd.xlane.f32.xlu0 %v8289
    %v8321 = vpop.xlane.xlu0 %8320
    %8322 = vadd.xlane.f32.xlu0 %v8291
    %v8323 = vpop.xlane.xlu0 %8322
    %v8324 = vrcp.pop %v8293
    %v8325 = vrcp.pop %v8295
    %v8326 = vrcp.pop %v8297
    %v8327 = vrcp.pop %v8299
    %v8328 = vrcp.pop %v8301
    %v8329 = vrcp.pop %v8303
    %v8330 = vrcp.pop %v8305
    %v8331 = vrcp.pop %v8307
    %v8332 = vrcp.pop %v8309
    %v8333 = vrcp.pop %v8311
    %v8334 = vrcp.pop %v8313
    %v8335 = vrcp.pop %v8315
    %v8336 = vrcp.pop %v8317
    %v8337 = vrcp.pop %v8319
    %v8338 = vrcp.pop %v8321
    %v8339 = vrcp.pop %v8323
    %v8340 = vmul.f32 %v8261, %v8324
    %v8341 = vmul.f32 %v8263, %v8325
    %v8342 = vmul.f32 %v8265, %v8326
    %v8343 = vmul.f32 %v8267, %v8327
    %v8344 = vmul.f32 %v8269, %v8328
    %v8345 = vmul.f32 %v8271, %v8329
    %v8346 = vmul.f32 %v8273, %v8330
    %v8347 = vmul.f32 %v8275, %v8331
    %v8348 = vmul.f32 %v8277, %v8332
    %v8349 = vmul.f32 %v8279, %v8333
    %v8350 = vmul.f32 %v8281, %v8334
    %v8351 = vmul.f32 %v8283, %v8335
    %v8352 = vmul.f32 %v8285, %v8336
    %v8353 = vmul.f32 %v8287, %v8337
    %v8354 = vmul.f32 %v8289, %v8338
    %v8355 = vmul.f32 %v8291, %v8339
    %v8356 = vpack.c.bf16 %v8341, %v8340
    %v8357 = vpack.c.bf16 %v8343, %v8342
    %v8358 = vpack.c.bf16 %v8345, %v8344
    %v8359 = vpack.c.bf16 %v8347, %v8346
    %v8360 = vpack.c.bf16 %v8349, %v8348
    %v8361 = vpack.c.bf16 %v8351, %v8350
    %v8362 = vpack.c.bf16 %v8353, %v8352
    %v8363 = vpack.c.bf16 %v8355, %v8354
    %8364 = vmatprep.subr.bf16.mxu0 0
    %8365 = vmatpush1.bf16.msra.mxu0 %v7440
    %8366 = vmatprep.subr.bf16.mxu0 0
    %8367 = vmatpush1.bf16.msra.mxu0 %v7441
    %8368 = vmatprep.subr.bf16.mxu0 0
    %8369 = vmatpush1.bf16.msra.mxu0 %v7442
    %8370 = vmatprep.subr.bf16.mxu0 0
    %8371 = vmatpush1.bf16.msra.mxu0 %v7443
    %8372 = vmatprep.subr.bf16.mxu0 0
    %8373 = vmatpush1.bf16.msra.mxu0 %v7444
    %8374 = vmatprep.subr.bf16.mxu0 0
    %8375 = vmatpush1.bf16.msra.mxu0 %v7445
    %8376 = vmatprep.subr.bf16.mxu0 0
    %8377 = vmatpush1.bf16.msra.mxu0 %v7446
    %8378 = vmatprep.subr.bf16.mxu0 0
    %8379 = vmatpush1.bf16.msra.mxu0 %v7447
    %8380 = vmatprep.subr.bf16.mxu0 0
    %8381 = vmatpush1.bf16.msra.mxu0 0
    %8382 = vmatprep.subr.bf16.mxu0 0
    %8383 = vmatpush1.bf16.msra.mxu0 0
    %8384 = vmatprep.subr.bf16.mxu0 0
    %8385 = vmatpush1.bf16.msra.mxu0 0
    %8386 = vmatprep.subr.bf16.mxu0 0
    %8387 = vmatpush1.bf16.msra.mxu0 0
    %8388 = vmatprep.subr.bf16.mxu0 0
    %8389 = vmatpush1.bf16.msra.mxu0 0
    %8390 = vmatprep.subr.bf16.mxu0 0
    %8391 = vmatpush1.bf16.msra.mxu0 0
    %8392 = vmatprep.subr.bf16.mxu0 0
    %8393 = vmatpush1.bf16.msra.mxu0 0
    %8394 = vmatprep.subr.bf16.mxu0 0
    %8395 = vmatpush1.bf16.msra.mxu0 0
    %8396 = vmatprep.mubr.bf16.mxu0 0
    %8397 = vmatmul.mubr.bf16.gmra.mrb[0].mxu0 %v8356
    %v8398 = vpop.f32.mrb[0].mxu0
    %v8399 = vadd.f32 0.0, %v8398
    %v8400 = vpop.f32.mrb[0].mxu0
    %v8401 = vpop.f32.mrb[0].mxu0
    %v8402 = vadd.f32 0.0, %v8401
    %v8403 = vpop.f32.mrb[0].mxu0
    %8404 = vmatprep.mubr.bf16.mxu0 0
    %8405 = vmatmul.mubr.bf16.gmra.mrb[0].mxu0 %v8357
    %v8406 = vpop.f32.mrb[0].mxu0
    %v8407 = vadd.f32 0.0, %v8406
    %v8408 = vpop.f32.mrb[0].mxu0
    %v8409 = vpop.f32.mrb[0].mxu0
    %v8410 = vadd.f32 0.0, %v8409
    %v8411 = vpop.f32.mrb[0].mxu0
    %8412 = vmatprep.mubr.bf16.mxu0 0
    %8413 = vmatmul.mubr.bf16.gmra.mrb[0].mxu0 %v8358
    %v8414 = vpop.f32.mrb[0].mxu0
    %v8415 = vadd.f32 0.0, %v8414
    %v8416 = vpop.f32.mrb[0].mxu0
    %v8417 = vpop.f32.mrb[0].mxu0
    %v8418 = vadd.f32 0.0, %v8417
    %v8419 = vpop.f32.mrb[0].mxu0
    %8420 = vmatprep.mubr.bf16.mxu0 0
    %8421 = vmatmul.mubr.bf16.gmra.mrb[0].mxu0 %v8359
    %v8422 = vpop.f32.mrb[0].mxu0
    %v8423 = vadd.f32 0.0, %v8422
    %v8424 = vpop.f32.mrb[0].mxu0
    %v8425 = vpop.f32.mrb[0].mxu0
    %v8426 = vadd.f32 0.0, %v8425
    %v8427 = vpop.f32.mrb[0].mxu0
    %8428 = vmatprep.mubr.bf16.mxu0 0
    %8429 = vmatmul.mubr.bf16.gmra.mrb[0].mxu0 %v8360
    %v8430 = vpop.f32.mrb[0].mxu0
    %v8431 = vadd.f32 0.0, %v8430
    %v8432 = vpop.f32.mrb[0].mxu0
    %v8433 = vpop.f32.mrb[0].mxu0
    %v8434 = vadd.f32 0.0, %v8433
    %v8435 = vpop.f32.mrb[0].mxu0
    %8436 = vmatprep.mubr.bf16.mxu0 0
    %8437 = vmatmul.mubr.bf16.gmra.mrb[0].mxu0 %v8361
    %v8438 = vpop.f32.mrb[0].mxu0
    %v8439 = vadd.f32 0.0, %v8438
    %v8440 = vpop.f32.mrb[0].mxu0
    %v8441 = vpop.f32.mrb[0].mxu0
    %v8442 = vadd.f32 0.0, %v8441
    %v8443 = vpop.f32.mrb[0].mxu0
    %8444 = vmatprep.mubr.bf16.mxu0 0
    %8445 = vmatmul.mubr.bf16.gmra.mrb[0].mxu0 %v8362
    %v8446 = vpop.f32.mrb[0].mxu0
    %v8447 = vadd.f32 0.0, %v8446
    %v8448 = vpop.f32.mrb[0].mxu0
    %v8449 = vpop.f32.mrb[0].mxu0
    %v8450 = vadd.f32 0.0, %v8449
    %v8451 = vpop.f32.mrb[0].mxu0
    %8452 = vmatprep.mubr.bf16.mxu0 0
    %8453 = vmatmul.mubr.bf16.gmra.mrb[0].mxu0 %v8363
    %v8454 = vpop.f32.mrb[0].mxu0
    %v8455 = vadd.f32 0.0, %v8454
    %v8456 = vpop.f32.mrb[0].mxu0
    %v8457 = vpop.f32.mrb[0].mxu0
    %v8458 = vadd.f32 0.0, %v8457
    %v8459 = vpop.f32.mrb[0].mxu0
    %8460 = vdwg.mxu0
    %8461 = vset.pattern.permute.xlu0 2
    %8462 = vperm.xlu0 %8461, %v7531
    %v8463 = vpop.permute.xlu0 %8462
    %8465 = vset.pattern.permute.xlu0 2
    %8466 = vperm.xlu0 %8465, %v7534
    %v8467 = vpop.permute.xlu0 %8466
    %8469 = vset.pattern.permute.xlu0 2
    %8470 = vperm.xlu0 %8469, %v7539
    %v8471 = vpop.permute.xlu0 %8470
    %8473 = vset.pattern.permute.xlu0 2
    %8474 = vperm.xlu0 %8473, %v7542
    %v8475 = vpop.permute.xlu0 %8474
    %8477 = vset.pattern.permute.xlu0 2
    %8478 = vperm.xlu0 %8477, %v7547
    %v8479 = vpop.permute.xlu0 %8478
    %8481 = vset.pattern.permute.xlu0 2
    %8482 = vperm.xlu0 %8481, %v7550
    %v8483 = vpop.permute.xlu0 %8482
    %8485 = vset.pattern.permute.xlu0 2
    %8486 = vperm.xlu0 %8485, %v7555
    %v8487 = vpop.permute.xlu0 %8486
    %8489 = vset.pattern.permute.xlu0 2
    %8490 = vperm.xlu0 %8489, %v7558
    %v8491 = vpop.permute.xlu0 %8490
    %8493 = vset.pattern.permute.xlu0 2
    %8494 = vperm.xlu0 %8493, %v7563
    %v8495 = vpop.permute.xlu0 %8494
    %8497 = vset.pattern.permute.xlu0 2
    %8498 = vperm.xlu0 %8497, %v7566
    %v8499 = vpop.permute.xlu0 %8498
    %8501 = vset.pattern.permute.xlu0 2
    %8502 = vperm.xlu0 %8501, %v7571
    %v8503 = vpop.permute.xlu0 %8502
    %8505 = vset.pattern.permute.xlu0 2
    %8506 = vperm.xlu0 %8505, %v7574
    %v8507 = vpop.permute.xlu0 %8506
    %8509 = vset.pattern.permute.xlu0 2
    %8510 = vperm.xlu0 %8509, %v7579
    %v8511 = vpop.permute.xlu0 %8510
    %8513 = vset.pattern.permute.xlu0 2
    %8514 = vperm.xlu0 %8513, %v7582
    %v8515 = vpop.permute.xlu0 %8514
    %8517 = vset.pattern.permute.xlu0 2
    %8518 = vperm.xlu0 %8517, %v7587
    %v8519 = vpop.permute.xlu0 %8518
    %8521 = vset.pattern.permute.xlu0 2
    %8522 = vperm.xlu0 %8521, %v7590
    %v8523 = vpop.permute.xlu0 %8522
    %v8525 = vlaneseq
    %v8526 = vshrl.u32 %v8525, 7
    %v8527 = vsub.s32 2, %v8526
    %v8528 = vrot.slane %v7628, %v8527
    %v8529 = vadd.f32 %v8463, %v8528
    %v8530 = vadd.f32 %v8467, %v8528
    %v8531 = vadd.f32 %v8471, %v8528
    %v8532 = vadd.f32 %v8475, %v8528
    %v8533 = vadd.f32 %v8479, %v8528
    %v8534 = vadd.f32 %v8483, %v8528
    %v8535 = vadd.f32 %v8487, %v8528
    %v8536 = vadd.f32 %v8491, %v8528
    %v8537 = vadd.f32 %v8495, %v8528
    %v8538 = vadd.f32 %v8499, %v8528
    %v8539 = vadd.f32 %v8503, %v8528
    %v8540 = vadd.f32 %v8507, %v8528
    %v8541 = vadd.f32 %v8511, %v8528
    %v8542 = vadd.f32 %v8515, %v8528
    %v8543 = vadd.f32 %v8519, %v8528
    %v8544 = vadd.f32 %v8523, %v8528
    %s8545 = scalar_lea.vmem %s7733, 128 [#allocation4]
    %v8546 = vld [vmem:[%s8545] sm:$0xff]
    %v8547 = vld [vmem:[%s8545 + $0x8] sm:$0xff]
    %v8548 = vld [vmem:[%s8545 + $0x10] sm:$0xff]
    %v8549 = vld [vmem:[%s8545 + $0x18] sm:$0xff]
    %v8550 = vld [vmem:[%s8545 + $0x20] sm:$0xff]
    %v8551 = vld [vmem:[%s8545 + $0x28] sm:$0xff]
    %v8552 = vld [vmem:[%s8545 + $0x30] sm:$0xff]
    %v8553 = vld [vmem:[%s8545 + $0x38] sm:$0xff]
    %v8554 = vunpack.c.l.bf16 %v8546
    %v8555 = vunpack.c.h.bf16 %v8546
    %v8556 = vunpack.c.l.bf16 %v8547
    %v8557 = vunpack.c.h.bf16 %v8547
    %v8558 = vunpack.c.l.bf16 %v8548
    %v8559 = vunpack.c.h.bf16 %v8548
    %v8560 = vunpack.c.l.bf16 %v8549
    %v8561 = vunpack.c.h.bf16 %v8549
    %v8562 = vunpack.c.l.bf16 %v8550
    %v8563 = vunpack.c.h.bf16 %v8550
    %v8564 = vunpack.c.l.bf16 %v8551
    %v8565 = vunpack.c.h.bf16 %v8551
    %v8566 = vunpack.c.l.bf16 %v8552
    %v8567 = vunpack.c.h.bf16 %v8552
    %v8568 = vunpack.c.l.bf16 %v8553
    %v8569 = vunpack.c.h.bf16 %v8553
    %v8570 = vadd.f32 %v8529, %v8554
    %v8571 = vadd.f32 %v8530, %v8555
    %v8572 = vadd.f32 %v8531, %v8556
    %v8573 = vadd.f32 %v8532, %v8557
    %v8574 = vadd.f32 %v8533, %v8558
    %v8575 = vadd.f32 %v8534, %v8559
    %v8576 = vadd.f32 %v8535, %v8560
    %v8577 = vadd.f32 %v8536, %v8561
    %v8578 = vadd.f32 %v8537, %v8562
    %v8579 = vadd.f32 %v8538, %v8563
    %v8580 = vadd.f32 %v8539, %v8564
    %v8581 = vadd.f32 %v8540, %v8565
    %v8582 = vadd.f32 %v8541, %v8566
    %v8583 = vadd.f32 %v8542, %v8567
    %v8584 = vadd.f32 %v8543, %v8568
    %v8585 = vadd.f32 %v8544, %v8569
    %v8586 = vmul.f32 %v8570, 0.2
    %v8587 = vmul.f32 %v8571, 0.2
    %v8588 = vmul.f32 %v8572, 0.2
    %v8589 = vmul.f32 %v8573, 0.2
    %v8590 = vmul.f32 %v8574, 0.2
    %v8591 = vmul.f32 %v8575, 0.2
    %v8592 = vmul.f32 %v8576, 0.2
    %v8593 = vmul.f32 %v8577, 0.2
    %v8594 = vmul.f32 %v8578, 0.2
    %v8595 = vmul.f32 %v8579, 0.2
    %v8596 = vmul.f32 %v8580, 0.2
    %v8597 = vmul.f32 %v8581, 0.2
    %v8598 = vmul.f32 %v8582, 0.2
    %v8599 = vmul.f32 %v8583, 0.2
    %v8600 = vmul.f32 %v8584, 0.2
    %v8601 = vmul.f32 %v8585, 0.2
    %v8602 = vmax.f32 %v8570, %v8586
    %v8603 = vmax.f32 %v8571, %v8587
    %v8604 = vmax.f32 %v8572, %v8588
    %v8605 = vmax.f32 %v8573, %v8589
    %v8606 = vmax.f32 %v8574, %v8590
    %v8607 = vmax.f32 %v8575, %v8591
    %v8608 = vmax.f32 %v8576, %v8592
    %v8609 = vmax.f32 %v8577, %v8593
    %v8610 = vmax.f32 %v8578, %v8594
    %v8611 = vmax.f32 %v8579, %v8595
    %v8612 = vmax.f32 %v8580, %v8596
    %v8613 = vmax.f32 %v8581, %v8597
    %v8614 = vmax.f32 %v8582, %v8598
    %v8615 = vmax.f32 %v8583, %v8599
    %v8616 = vmax.f32 %v8584, %v8600
    %v8617 = vmax.f32 %v8585, %v8601
    %8618 = vmax.xlane.f32.xlu0 %v8602
    %v8619 = vpop.xlane.xlu0 %8618
    %8620 = vmax.xlane.f32.xlu0 %v8603
    %v8621 = vpop.xlane.xlu0 %8620
    %8622 = vmax.xlane.f32.xlu0 %v8604
    %v8623 = vpop.xlane.xlu0 %8622
    %8624 = vmax.xlane.f32.xlu0 %v8605
    %v8625 = vpop.xlane.xlu0 %8624
    %8626 = vmax.xlane.f32.xlu0 %v8606
    %v8627 = vpop.xlane.xlu0 %8626
    %8628 = vmax.xlane.f32.xlu0 %v8607
    %v8629 = vpop.xlane.xlu0 %8628
    %8630 = vmax.xlane.f32.xlu0 %v8608
    %v8631 = vpop.xlane.xlu0 %8630
    %8632 = vmax.xlane.f32.xlu0 %v8609
    %v8633 = vpop.xlane.xlu0 %8632
    %8634 = vmax.xlane.f32.xlu0 %v8610
    %v8635 = vpop.xlane.xlu0 %8634
    %8636 = vmax.xlane.f32.xlu0 %v8611
    %v8637 = vpop.xlane.xlu0 %8636
    %8638 = vmax.xlane.f32.xlu0 %v8612
    %v8639 = vpop.xlane.xlu0 %8638
    %8640 = vmax.xlane.f32.xlu0 %v8613
    %v8641 = vpop.xlane.xlu0 %8640
    %8642 = vmax.xlane.f32.xlu0 %v8614
    %v8643 = vpop.xlane.xlu0 %8642
    %8644 = vmax.xlane.f32.xlu0 %v8615
    %v8645 = vpop.xlane.xlu0 %8644
    %8646 = vmax.xlane.f32.xlu0 %v8616
    %v8647 = vpop.xlane.xlu0 %8646
    %8648 = vmax.xlane.f32.xlu0 %v8617
    %v8649 = vpop.xlane.xlu0 %8648
    %v8650 = vsub.f32 %v8602, %v8619
    %v8651 = vsub.f32 %v8603, %v8621
    %v8652 = vsub.f32 %v8604, %v8623
    %v8653 = vsub.f32 %v8605, %v8625
    %v8654 = vsub.f32 %v8606, %v8627
    %v8655 = vsub.f32 %v8607, %v8629
    %v8656 = vsub.f32 %v8608, %v8631
    %v8657 = vsub.f32 %v8609, %v8633
    %v8658 = vsub.f32 %v8610, %v8635
    %v8659 = vsub.f32 %v8611, %v8637
    %v8660 = vsub.f32 %v8612, %v8639
    %v8661 = vsub.f32 %v8613, %v8641
    %v8662 = vsub.f32 %v8614, %v8643
    %v8663 = vsub.f32 %v8615, %v8645
    %v8664 = vsub.f32 %v8616, %v8647
    %v8665 = vsub.f32 %v8617, %v8649
    %v8666 = vmul.f32 %v8650, 1.442695
    %v8667 = vpow.pop %v8666
    %v8668 = vmul.f32 %v8651, 1.442695
    %v8669 = vpow.pop %v8668
    %v8670 = vmul.f32 %v8652, 1.442695
    %v8671 = vpow.pop %v8670
    %v8672 = vmul.f32 %v8653, 1.442695
    %v8673 = vpow.pop %v8672
    %v8674 = vmul.f32 %v8654, 1.442695
    %v8675 = vpow.pop %v8674
    %v8676 = vmul.f32 %v8655, 1.442695
    %v8677 = vpow.pop %v8676
    %v8678 = vmul.f32 %v8656, 1.442695
    %v8679 = vpow.pop %v8678
    %v8680 = vmul.f32 %v8657, 1.442695
    %v8681 = vpow.pop %v8680
    %v8682 = vmul.f32 %v8658, 1.442695
    %v8683 = vpow.pop %v8682
    %v8684 = vmul.f32 %v8659, 1.442695
    %v8685 = vpow.pop %v8684
    %v8686 = vmul.f32 %v8660, 1.442695
    %v8687 = vpow.pop %v8686
    %v8688 = vmul.f32 %v8661, 1.442695
    %v8689 = vpow.pop %v8688
    %v8690 = vmul.f32 %v8662, 1.442695
    %v8691 = vpow.pop %v8690
    %v8692 = vmul.f32 %v8663, 1.442695
    %v8693 = vpow.pop %v8692
    %v8694 = vmul.f32 %v8664, 1.442695
    %v8695 = vpow.pop %v8694
    %v8696 = vmul.f32 %v8665, 1.442695
    %v8697 = vpow.pop %v8696
    %8698 = vadd.xlane.f32.xlu0 %v8667
    %v8699 = vpop.xlane.xlu0 %8698
    %8700 = vadd.xlane.f32.xlu0 %v8669
    %v8701 = vpop.xlane.xlu0 %8700
    %8702 = vadd.xlane.f32.xlu0 %v8671
    %v8703 = vpop.xlane.xlu0 %8702
    %8704 = vadd.xlane.f32.xlu0 %v8673
    %v8705 = vpop.xlane.xlu0 %8704
    %8706 = vadd.xlane.f32.xlu0 %v8675
    %v8707 = vpop.xlane.xlu0 %8706
    %8708 = vadd.xlane.f32.xlu0 %v8677
    %v8709 = vpop.xlane.xlu0 %8708
    %8710 = vadd.xlane.f32.xlu0 %v8679
    %v8711 = vpop.xlane.xlu0 %8710
    %8712 = vadd.xlane.f32.xlu0 %v8681
    %v8713 = vpop.xlane.xlu0 %8712
    %8714 = vadd.xlane.f32.xlu0 %v8683
    %v8715 = vpop.xlane.xlu0 %8714
    %8716 = vadd.xlane.f32.xlu0 %v8685
    %v8717 = vpop.xlane.xlu0 %8716
    %8718 = vadd.xlane.f32.xlu0 %v8687
    %v8719 = vpop.xlane.xlu0 %8718
    %8720 = vadd.xlane.f32.xlu0 %v8689
    %v8721 = vpop.xlane.xlu0 %8720
    %8722 = vadd.xlane.f32.xlu0 %v8691
    %v8723 = vpop.xlane.xlu0 %8722
    %8724 = vadd.xlane.f32.xlu0 %v8693
    %v8725 = vpop.xlane.xlu0 %8724
    %8726 = vadd.xlane.f32.xlu0 %v8695
    %v8727 = vpop.xlane.xlu0 %8726
    %8728 = vadd.xlane.f32.xlu0 %v8697
    %v8729 = vpop.xlane.xlu0 %8728
    %v8730 = vrcp.pop %v8699
    %v8731 = vrcp.pop %v8701
    %v8732 = vrcp.pop %v8703
    %v8733 = vrcp.pop %v8705
    %v8734 = vrcp.pop %v8707
    %v8735 = vrcp.pop %v8709
    %v8736 = vrcp.pop %v8711
    %v8737 = vrcp.pop %v8713
    %v8738 = vrcp.pop %v8715
    %v8739 = vrcp.pop %v8717
    %v8740 = vrcp.pop %v8719
    %v8741 = vrcp.pop %v8721
    %v8742 = vrcp.pop %v8723
    %v8743 = vrcp.pop %v8725
    %v8744 = vrcp.pop %v8727
    %v8745 = vrcp.pop %v8729
    %v8746 = vmul.f32 %v8667, %v8730
    %v8747 = vmul.f32 %v8669, %v8731
    %v8748 = vmul.f32 %v8671, %v8732
    %v8749 = vmul.f32 %v8673, %v8733
    %v8750 = vmul.f32 %v8675, %v8734
    %v8751 = vmul.f32 %v8677, %v8735
    %v8752 = vmul.f32 %v8679, %v8736
    %v8753 = vmul.f32 %v8681, %v8737
    %v8754 = vmul.f32 %v8683, %v8738
    %v8755 = vmul.f32 %v8685, %v8739
    %v8756 = vmul.f32 %v8687, %v8740
    %v8757 = vmul.f32 %v8689, %v8741
    %v8758 = vmul.f32 %v8691, %v8742
    %v8759 = vmul.f32 %v8693, %v8743
    %v8760 = vmul.f32 %v8695, %v8744
    %v8761 = vmul.f32 %v8697, %v8745
    %v8762 = vpack.c.bf16 %v8747, %v8746
    %v8763 = vpack.c.bf16 %v8749, %v8748
    %v8764 = vpack.c.bf16 %v8751, %v8750
    %v8765 = vpack.c.bf16 %v8753, %v8752
    %v8766 = vpack.c.bf16 %v8755, %v8754
    %v8767 = vpack.c.bf16 %v8757, %v8756
    %v8768 = vpack.c.bf16 %v8759, %v8758
    %v8769 = vpack.c.bf16 %v8761, %v8760
    %8770 = vmatprep.subr.bf16.mxu0 0
    %8771 = vmatpush1.bf16.msra.mxu0 %v7440
    %8772 = vmatprep.subr.bf16.mxu0 0
    %8773 = vmatpush1.bf16.msra.mxu0 %v7441
    %8774 = vmatprep.subr.bf16.mxu0 0
    %8775 = vmatpush1.bf16.msra.mxu0 %v7442
    %8776 = vmatprep.subr.bf16.mxu0 0
    %8777 = vmatpush1.bf16.msra.mxu0 %v7443
    %8778 = vmatprep.subr.bf16.mxu0 0
    %8779 = vmatpush1.bf16.msra.mxu0 %v7444
    %8780 = vmatprep.subr.bf16.mxu0 0
    %8781 = vmatpush1.bf16.msra.mxu0 %v7445
    %8782 = vmatprep.subr.bf16.mxu0 0
    %8783 = vmatpush1.bf16.msra.mxu0 %v7446
    %8784 = vmatprep.subr.bf16.mxu0 0
    %8785 = vmatpush1.bf16.msra.mxu0 %v7447
    %8786 = vmatprep.subr.bf16.mxu0 0
    %8787 = vmatpush1.bf16.msra.mxu0 0
    %8788 = vmatprep.subr.bf16.mxu0 0
    %8789 = vmatpush1.bf16.msra.mxu0 0
    %8790 = vmatprep.subr.bf16.mxu0 0
    %8791 = vmatpush1.bf16.msra.mxu0 0
    %8792 = vmatprep.subr.bf16.mxu0 0
    %8793 = vmatpush1.bf16.msra.mxu0 0
    %8794 = vmatprep.subr.bf16.mxu0 0
    %8795 = vmatpush1.bf16.msra.mxu0 0
    %8796 = vmatprep.subr.bf16.mxu0 0
    %8797 = vmatpush1.bf16.msra.mxu0 0
    %8798 = vmatprep.subr.bf16.mxu0 0
    %8799 = vmatpush1.bf16.msra.mxu0 0
    %8800 = vmatprep.subr.bf16.mxu0 0
    %8801 = vmatpush1.bf16.msra.mxu0 0
    %8802 = vmatprep.mubr.bf16.mxu0 0
    %8803 = vmatmul.mubr.bf16.gmra.mrb[0].mxu0 %v8762
    %v8804 = vpop.f32.mrb[0].mxu0
    %v8805 = vadd.f32 0.0, %v8804
    %v8806 = vpop.f32.mrb[0].mxu0
    %v8807 = vpop.f32.mrb[0].mxu0
    %v8808 = vadd.f32 0.0, %v8807
    %v8809 = vpop.f32.mrb[0].mxu0
    %8810 = vmatprep.mubr.bf16.mxu0 0
    %8811 = vmatmul.mubr.bf16.gmra.mrb[0].mxu0 %v8763
    %v8812 = vpop.f32.mrb[0].mxu0
    %v8813 = vadd.f32 0.0, %v8812
    %v8814 = vpop.f32.mrb[0].mxu0
    %v8815 = vpop.f32.mrb[0].mxu0
    %v8816 = vadd.f32 0.0, %v8815
    %v8817 = vpop.f32.mrb[0].mxu0
    %8818 = vmatprep.mubr.bf16.mxu0 0
    %8819 = vmatmul.mubr.bf16.gmra.mrb[0].mxu0 %v8764
    %v8820 = vpop.f32.mrb[0].mxu0
    %v8821 = vadd.f32 0.0, %v8820
    %v8822 = vpop.f32.mrb[0].mxu0
    %v8823 = vpop.f32.mrb[0].mxu0
    %v8824 = vadd.f32 0.0, %v8823
    %v8825 = vpop.f32.mrb[0].mxu0
    %8826 = vmatprep.mubr.bf16.mxu0 0
    %8827 = vmatmul.mubr.bf16.gmra.mrb[0].mxu0 %v8765
    %v8828 = vpop.f32.mrb[0].mxu0
    %v8829 = vadd.f32 0.0, %v8828
    %v8830 = vpop.f32.mrb[0].mxu0
    %v8831 = vpop.f32.mrb[0].mxu0
    %v8832 = vadd.f32 0.0, %v8831
    %v8833 = vpop.f32.mrb[0].mxu0
    %8834 = vmatprep.mubr.bf16.mxu0 0
    %8835 = vmatmul.mubr.bf16.gmra.mrb[0].mxu0 %v8766
    %v8836 = vpop.f32.mrb[0].mxu0
    %v8837 = vadd.f32 0.0, %v8836
    %v8838 = vpop.f32.mrb[0].mxu0
    %v8839 = vpop.f32.mrb[0].mxu0
    %v8840 = vadd.f32 0.0, %v8839
    %v8841 = vpop.f32.mrb[0].mxu0
    %8842 = vmatprep.mubr.bf16.mxu0 0
    %8843 = vmatmul.mubr.bf16.gmra.mrb[0].mxu0 %v8767
    %v8844 = vpop.f32.mrb[0].mxu0
    %v8845 = vadd.f32 0.0, %v8844
    %v8846 = vpop.f32.mrb[0].mxu0
    %v8847 = vpop.f32.mrb[0].mxu0
    %v8848 = vadd.f32 0.0, %v8847
    %v8849 = vpop.f32.mrb[0].mxu0
    %8850 = vmatprep.mubr.bf16.mxu0 0
    %8851 = vmatmul.mubr.bf16.gmra.mrb[0].mxu0 %v8768
    %v8852 = vpop.f32.mrb[0].mxu0
    %v8853 = vadd.f32 0.0, %v8852
    %v8854 = vpop.f32.mrb[0].mxu0
    %v8855 = vpop.f32.mrb[0].mxu0
    %v8856 = vadd.f32 0.0, %v8855
    %v8857 = vpop.f32.mrb[0].mxu0
    %8858 = vmatprep.mubr.bf16.mxu0 0
    %8859 = vmatmul.mubr.bf16.gmra.mrb[0].mxu0 %v8769
    %v8860 = vpop.f32.mrb[0].mxu0
    %v8861 = vadd.f32 0.0, %v8860
    %v8862 = vpop.f32.mrb[0].mxu0
    %v8863 = vpop.f32.mrb[0].mxu0
    %v8864 = vadd.f32 0.0, %v8863
    %v8865 = vpop.f32.mrb[0].mxu0
    %8866 = vdwg.mxu0
    %8867 = vset.pattern.permute.xlu0 3
    %8868 = vperm.xlu0 %8867, %v7531
    %v8869 = vpop.permute.xlu0 %8868
    %8871 = vset.pattern.permute.xlu0 3
    %8872 = vperm.xlu0 %8871, %v7534
    %v8873 = vpop.permute.xlu0 %8872
    %8875 = vset.pattern.permute.xlu0 3
    %8876 = vperm.xlu0 %8875, %v7539
    %v8877 = vpop.permute.xlu0 %8876
    %8879 = vset.pattern.permute.xlu0 3
    %8880 = vperm.xlu0 %8879, %v7542
    %v8881 = vpop.permute.xlu0 %8880
    %8883 = vset.pattern.permute.xlu0 3
    %8884 = vperm.xlu0 %8883, %v7547
    %v8885 = vpop.permute.xlu0 %8884
    %8887 = vset.pattern.permute.xlu0 3
    %8888 = vperm.xlu0 %8887, %v7550
    %v8889 = vpop.permute.xlu0 %8888
    %8891 = vset.pattern.permute.xlu0 3
    %8892 = vperm.xlu0 %8891, %v7555
    %v8893 = vpop.permute.xlu0 %8892
    %8895 = vset.pattern.permute.xlu0 3
    %8896 = vperm.xlu0 %8895, %v7558
    %v8897 = vpop.permute.xlu0 %8896
    %8899 = vset.pattern.permute.xlu0 3
    %8900 = vperm.xlu0 %8899, %v7563
    %v8901 = vpop.permute.xlu0 %8900
    %8903 = vset.pattern.permute.xlu0 3
    %8904 = vperm.xlu0 %8903, %v7566
    %v8905 = vpop.permute.xlu0 %8904
    %8907 = vset.pattern.permute.xlu0 3
    %8908 = vperm.xlu0 %8907, %v7571
    %v8909 = vpop.permute.xlu0 %8908
    %8911 = vset.pattern.permute.xlu0 3
    %8912 = vperm.xlu0 %8911, %v7574
    %v8913 = vpop.permute.xlu0 %8912
    %8915 = vset.pattern.permute.xlu0 3
    %8916 = vperm.xlu0 %8915, %v7579
    %v8917 = vpop.permute.xlu0 %8916
    %8919 = vset.pattern.permute.xlu0 3
    %8920 = vperm.xlu0 %8919, %v7582
    %v8921 = vpop.permute.xlu0 %8920
    %8923 = vset.pattern.permute.xlu0 3
    %8924 = vperm.xlu0 %8923, %v7587
    %v8925 = vpop.permute.xlu0 %8924
    %8927 = vset.pattern.permute.xlu0 3
    %8928 = vperm.xlu0 %8927, %v7590
    %v8929 = vpop.permute.xlu0 %8928
    %v8931 = vlaneseq
    %v8932 = vshrl.u32 %v8931, 7
    %v8933 = vsub.s32 3, %v8932
    %v8934 = vrot.slane %v7628, %v8933
    %v8935 = vadd.f32 %v8869, %v8934
    %v8936 = vadd.f32 %v8873, %v8934
    %v8937 = vadd.f32 %v8877, %v8934
    %v8938 = vadd.f32 %v8881, %v8934
    %v8939 = vadd.f32 %v8885, %v8934
    %v8940 = vadd.f32 %v8889, %v8934
    %v8941 = vadd.f32 %v8893, %v8934
    %v8942 = vadd.f32 %v8897, %v8934
    %v8943 = vadd.f32 %v8901, %v8934
    %v8944 = vadd.f32 %v8905, %v8934
    %v8945 = vadd.f32 %v8909, %v8934
    %v8946 = vadd.f32 %v8913, %v8934
    %v8947 = vadd.f32 %v8917, %v8934
    %v8948 = vadd.f32 %v8921, %v8934
    %v8949 = vadd.f32 %v8925, %v8934
    %v8950 = vadd.f32 %v8929, %v8934
    %s8951 = scalar_lea.vmem %s7733, 192 [#allocation4]
    %v8952 = vld [vmem:[%s8951] sm:$0xff]
    %v8953 = vld [vmem:[%s8951 + $0x8] sm:$0xff]
    %v8954 = vld [vmem:[%s8951 + $0x10] sm:$0xff]
    %v8955 = vld [vmem:[%s8951 + $0x18] sm:$0xff]
    %v8956 = vld [vmem:[%s8951 + $0x20] sm:$0xff]
    %v8957 = vld [vmem:[%s8951 + $0x28] sm:$0xff]
    %v8958 = vld [vmem:[%s8951 + $0x30] sm:$0xff]
    %v8959 = vld [vmem:[%s8951 + $0x38] sm:$0xff]
    %v8960 = vunpack.c.l.bf16 %v8952
    %v8961 = vunpack.c.h.bf16 %v8952
    %v8962 = vunpack.c.l.bf16 %v8953
    %v8963 = vunpack.c.h.bf16 %v8953
    %v8964 = vunpack.c.l.bf16 %v8954
    %v8965 = vunpack.c.h.bf16 %v8954
    %v8966 = vunpack.c.l.bf16 %v8955
    %v8967 = vunpack.c.h.bf16 %v8955
    %v8968 = vunpack.c.l.bf16 %v8956
    %v8969 = vunpack.c.h.bf16 %v8956
    %v8970 = vunpack.c.l.bf16 %v8957
    %v8971 = vunpack.c.h.bf16 %v8957
    %v8972 = vunpack.c.l.bf16 %v8958
    %v8973 = vunpack.c.h.bf16 %v8958
    %v8974 = vunpack.c.l.bf16 %v8959
    %v8975 = vunpack.c.h.bf16 %v8959
    %v8976 = vadd.f32 %v8935, %v8960
    %v8977 = vadd.f32 %v8936, %v8961
    %v8978 = vadd.f32 %v8937, %v8962
    %v8979 = vadd.f32 %v8938, %v8963
    %v8980 = vadd.f32 %v8939, %v8964
    %v8981 = vadd.f32 %v8940, %v8965
    %v8982 = vadd.f32 %v8941, %v8966
    %v8983 = vadd.f32 %v8942, %v8967
    %v8984 = vadd.f32 %v8943, %v8968
    %v8985 = vadd.f32 %v8944, %v8969
    %v8986 = vadd.f32 %v8945, %v8970
    %v8987 = vadd.f32 %v8946, %v8971
    %v8988 = vadd.f32 %v8947, %v8972
    %v8989 = vadd.f32 %v8948, %v8973
    %v8990 = vadd.f32 %v8949, %v8974
    %v8991 = vadd.f32 %v8950, %v8975
    %v8992 = vmul.f32 %v8976, 0.2
    %v8993 = vmul.f32 %v8977, 0.2
    %v8994 = vmul.f32 %v8978, 0.2
    %v8995 = vmul.f32 %v8979, 0.2
    %v8996 = vmul.f32 %v8980, 0.2
    %v8997 = vmul.f32 %v8981, 0.2
    %v8998 = vmul.f32 %v8982, 0.2
    %v8999 = vmul.f32 %v8983, 0.2
    %v9000 = vmul.f32 %v8984, 0.2
    %v9001 = vmul.f32 %v8985, 0.2
    %v9002 = vmul.f32 %v8986, 0.2
    %v9003 = vmul.f32 %v8987, 0.2
    %v9004 = vmul.f32 %v8988, 0.2
    %v9005 = vmul.f32 %v8989, 0.2
    %v9006 = vmul.f32 %v8990, 0.2
    %v9007 = vmul.f32 %v8991, 0.2
    %v9008 = vmax.f32 %v8976, %v8992
    %v9009 = vmax.f32 %v8977, %v8993
    %v9010 = vmax.f32 %v8978, %v8994
    %v9011 = vmax.f32 %v8979, %v8995
    %v9012 = vmax.f32 %v8980, %v8996
    %v9013 = vmax.f32 %v8981, %v8997
    %v9014 = vmax.f32 %v8982, %v8998
    %v9015 = vmax.f32 %v8983, %v8999
    %v9016 = vmax.f32 %v8984, %v9000
    %v9017 = vmax.f32 %v8985, %v9001
    %v9018 = vmax.f32 %v8986, %v9002
    %v9019 = vmax.f32 %v8987, %v9003
    %v9020 = vmax.f32 %v8988, %v9004
    %v9021 = vmax.f32 %v8989, %v9005
    %v9022 = vmax.f32 %v8990, %v9006
    %v9023 = vmax.f32 %v8991, %v9007
    %9024 = vmax.xlane.f32.xlu0 %v9008
    %v9025 = vpop.xlane.xlu0 %9024
    %9026 = vmax.xlane.f32.xlu0 %v9009
    %v9027 = vpop.xlane.xlu0 %9026
    %9028 = vmax.xlane.f32.xlu0 %v9010
    %v9029 = vpop.xlane.xlu0 %9028
    %9030 = vmax.xlane.f32.xlu0 %v9011
    %v9031 = vpop.xlane.xlu0 %9030
    %9032 = vmax.xlane.f32.xlu0 %v9012
    %v9033 = vpop.xlane.xlu0 %9032
    %9034 = vmax.xlane.f32.xlu0 %v9013
    %v9035 = vpop.xlane.xlu0 %9034
    %9036 = vmax.xlane.f32.xlu0 %v9014
    %v9037 = vpop.xlane.xlu0 %9036
    %9038 = vmax.xlane.f32.xlu0 %v9015
    %v9039 = vpop.xlane.xlu0 %9038
    %9040 = vmax.xlane.f32.xlu0 %v9016
    %v9041 = vpop.xlane.xlu0 %9040
    %9042 = vmax.xlane.f32.xlu0 %v9017
    %v9043 = vpop.xlane.xlu0 %9042
    %9044 = vmax.xlane.f32.xlu0 %v9018
    %v9045 = vpop.xlane.xlu0 %9044
    %9046 = vmax.xlane.f32.xlu0 %v9019
    %v9047 = vpop.xlane.xlu0 %9046
    %9048 = vmax.xlane.f32.xlu0 %v9020
    %v9049 = vpop.xlane.xlu0 %9048
    %9050 = vmax.xlane.f32.xlu0 %v9021
    %v9051 = vpop.xlane.xlu0 %9050
    %9052 = vmax.xlane.f32.xlu0 %v9022
    %v9053 = vpop.xlane.xlu0 %9052
    %9054 = vmax.xlane.f32.xlu0 %v9023
    %v9055 = vpop.xlane.xlu0 %9054
    %v9056 = vsub.f32 %v9008, %v9025
    %v9057 = vsub.f32 %v9009, %v9027
    %v9058 = vsub.f32 %v9010, %v9029
    %v9059 = vsub.f32 %v9011, %v9031
    %v9060 = vsub.f32 %v9012, %v9033
    %v9061 = vsub.f32 %v9013, %v9035
    %v9062 = vsub.f32 %v9014, %v9037
    %v9063 = vsub.f32 %v9015, %v9039
    %v9064 = vsub.f32 %v9016, %v9041
    %v9065 = vsub.f32 %v9017, %v9043
    %v9066 = vsub.f32 %v9018, %v9045
    %v9067 = vsub.f32 %v9019, %v9047
    %v9068 = vsub.f32 %v9020, %v9049
    %v9069 = vsub.f32 %v9021, %v9051
    %v9070 = vsub.f32 %v9022, %v9053
    %v9071 = vsub.f32 %v9023, %v9055
    %v9072 = vmul.f32 %v9056, 1.442695
    %v9073 = vpow.pop %v9072
    %v9074 = vmul.f32 %v9057, 1.442695
    %v9075 = vpow.pop %v9074
    %v9076 = vmul.f32 %v9058, 1.442695
    %v9077 = vpow.pop %v9076
    %v9078 = vmul.f32 %v9059, 1.442695
    %v9079 = vpow.pop %v9078
    %v9080 = vmul.f32 %v9060, 1.442695
    %v9081 = vpow.pop %v9080
    %v9082 = vmul.f32 %v9061, 1.442695
    %v9083 = vpow.pop %v9082
    %v9084 = vmul.f32 %v9062, 1.442695
    %v9085 = vpow.pop %v9084
    %v9086 = vmul.f32 %v9063, 1.442695
    %v9087 = vpow.pop %v9086
    %v9088 = vmul.f32 %v9064, 1.442695
    %v9089 = vpow.pop %v9088
    %v9090 = vmul.f32 %v9065, 1.442695
    %v9091 = vpow.pop %v9090
    %v9092 = vmul.f32 %v9066, 1.442695
    %v9093 = vpow.pop %v9092
    %v9094 = vmul.f32 %v9067, 1.442695
    %v9095 = vpow.pop %v9094
    %v9096 = vmul.f32 %v9068, 1.442695
    %v9097 = vpow.pop %v9096
    %v9098 = vmul.f32 %v9069, 1.442695
    %v9099 = vpow.pop %v9098
    %v9100 = vmul.f32 %v9070, 1.442695
    %v9101 = vpow.pop %v9100
    %v9102 = vmul.f32 %v9071, 1.442695
    %v9103 = vpow.pop %v9102
    %9104 = vadd.xlane.f32.xlu0 %v9073
    %v9105 = vpop.xlane.xlu0 %9104
    %9106 = vadd.xlane.f32.xlu0 %v9075
    %v9107 = vpop.xlane.xlu0 %9106
    %9108 = vadd.xlane.f32.xlu0 %v9077
    %v9109 = vpop.xlane.xlu0 %9108
    %9110 = vadd.xlane.f32.xlu0 %v9079
    %v9111 = vpop.xlane.xlu0 %9110
    %9112 = vadd.xlane.f32.xlu0 %v9081
    %v9113 = vpop.xlane.xlu0 %9112
    %9114 = vadd.xlane.f32.xlu0 %v9083
    %v9115 = vpop.xlane.xlu0 %9114
    %9116 = vadd.xlane.f32.xlu0 %v9085
    %v9117 = vpop.xlane.xlu0 %9116
    %9118 = vadd.xlane.f32.xlu0 %v9087
    %v9119 = vpop.xlane.xlu0 %9118
    %9120 = vadd.xlane.f32.xlu0 %v9089
    %v9121 = vpop.xlane.xlu0 %9120
    %9122 = vadd.xlane.f32.xlu0 %v9091
    %v9123 = vpop.xlane.xlu0 %9122
    %9124 = vadd.xlane.f32.xlu0 %v9093
    %v9125 = vpop.xlane.xlu0 %9124
    %9126 = vadd.xlane.f32.xlu0 %v9095
    %v9127 = vpop.xlane.xlu0 %9126
    %9128 = vadd.xlane.f32.xlu0 %v9097
    %v9129 = vpop.xlane.xlu0 %9128
    %9130 = vadd.xlane.f32.xlu0 %v9099
    %v9131 = vpop.xlane.xlu0 %9130
    %9132 = vadd.xlane.f32.xlu0 %v9101
    %v9133 = vpop.xlane.xlu0 %9132
    %9134 = vadd.xlane.f32.xlu0 %v9103
    %v9135 = vpop.xlane.xlu0 %9134
    %v9136 = vrcp.pop %v9105
    %v9137 = vrcp.pop %v9107
    %v9138 = vrcp.pop %v9109
    %v9139 = vrcp.pop %v9111
    %v9140 = vrcp.pop %v9113
    %v9141 = vrcp.pop %v9115
    %v9142 = vrcp.pop %v9117
    %v9143 = vrcp.pop %v9119
    %v9144 = vrcp.pop %v9121
    %v9145 = vrcp.pop %v9123
    %v9146 = vrcp.pop %v9125
    %v9147 = vrcp.pop %v9127
    %v9148 = vrcp.pop %v9129
    %v9149 = vrcp.pop %v9131
    %v9150 = vrcp.pop %v9133
    %v9151 = vrcp.pop %v9135
    %v9152 = vmul.f32 %v9073, %v9136
    %v9153 = vmul.f32 %v9075, %v9137
    %v9154 = vmul.f32 %v9077, %v9138
    %v9155 = vmul.f32 %v9079, %v9139
    %v9156 = vmul.f32 %v9081, %v9140
    %v9157 = vmul.f32 %v9083, %v9141
    %v9158 = vmul.f32 %v9085, %v9142
    %v9159 = vmul.f32 %v9087, %v9143
    %v9160 = vmul.f32 %v9089, %v9144
    %v9161 = vmul.f32 %v9091, %v9145
    %v9162 = vmul.f32 %v9093, %v9146
    %v9163 = vmul.f32 %v9095, %v9147
    %v9164 = vmul.f32 %v9097, %v9148
    %v9165 = vmul.f32 %v9099, %v9149
    %v9166 = vmul.f32 %v9101, %v9150
    %v9167 = vmul.f32 %v9103, %v9151
    %v9168 = vpack.c.bf16 %v9153, %v9152
    %v9169 = vpack.c.bf16 %v9155, %v9154
    %v9170 = vpack.c.bf16 %v9157, %v9156
    %v9171 = vpack.c.bf16 %v9159, %v9158
    %v9172 = vpack.c.bf16 %v9161, %v9160
    %v9173 = vpack.c.bf16 %v9163, %v9162
    %v9174 = vpack.c.bf16 %v9165, %v9164
    %v9175 = vpack.c.bf16 %v9167, %v9166
    %9176 = vmatprep.subr.bf16.mxu0 0
    %9177 = vmatpush1.bf16.msra.mxu0 %v7440
    %9178 = vmatprep.subr.bf16.mxu0 0
    %9179 = vmatpush1.bf16.msra.mxu0 %v7441
    %9180 = vmatprep.subr.bf16.mxu0 0
    %9181 = vmatpush1.bf16.msra.mxu0 %v7442
    %9182 = vmatprep.subr.bf16.mxu0 0
    %9183 = vmatpush1.bf16.msra.mxu0 %v7443
    %9184 = vmatprep.subr.bf16.mxu0 0
    %9185 = vmatpush1.bf16.msra.mxu0 %v7444
    %9186 = vmatprep.subr.bf16.mxu0 0
    %9187 = vmatpush1.bf16.msra.mxu0 %v7445
    %9188 = vmatprep.subr.bf16.mxu0 0
    %9189 = vmatpush1.bf16.msra.mxu0 %v7446
    %9190 = vmatprep.subr.bf16.mxu0 0
    %9191 = vmatpush1.bf16.msra.mxu0 %v7447
    %9192 = vmatprep.subr.bf16.mxu0 0
    %9193 = vmatpush1.bf16.msra.mxu0 0
    %9194 = vmatprep.subr.bf16.mxu0 0
    %9195 = vmatpush1.bf16.msra.mxu0 0
    %9196 = vmatprep.subr.bf16.mxu0 0
    %9197 = vmatpush1.bf16.msra.mxu0 0
    %9198 = vmatprep.subr.bf16.mxu0 0
    %9199 = vmatpush1.bf16.msra.mxu0 0
    %9200 = vmatprep.subr.bf16.mxu0 0
    %9201 = vmatpush1.bf16.msra.mxu0 0
    %9202 = vmatprep.subr.bf16.mxu0 0
    %9203 = vmatpush1.bf16.msra.mxu0 0
    %9204 = vmatprep.subr.bf16.mxu0 0
    %9205 = vmatpush1.bf16.msra.mxu0 0
    %9206 = vmatprep.subr.bf16.mxu0 0
    %9207 = vmatpush1.bf16.msra.mxu0 0
    %9208 = vmatprep.mubr.bf16.mxu0 0
    %9209 = vmatmul.mubr.bf16.gmra.mrb[0].mxu0 %v9168
    %v9210 = vpop.f32.mrb[0].mxu0
    %v9211 = vadd.f32 0.0, %v9210
    %v9212 = vpop.f32.mrb[0].mxu0
    %v9213 = vpop.f32.mrb[0].mxu0
    %v9214 = vadd.f32 0.0, %v9213
    %v9215 = vpop.f32.mrb[0].mxu0
    %9216 = vmatprep.mubr.bf16.mxu0 0
    %9217 = vmatmul.mubr.bf16.gmra.mrb[0].mxu0 %v9169
    %v9218 = vpop.f32.mrb[0].mxu0
    %v9219 = vadd.f32 0.0, %v9218
    %v9220 = vpop.f32.mrb[0].mxu0
    %v9221 = vpop.f32.mrb[0].mxu0
    %v9222 = vadd.f32 0.0, %v9221
    %v9223 = vpop.f32.mrb[0].mxu0
    %9224 = vmatprep.mubr.bf16.mxu0 0
    %9225 = vmatmul.mubr.bf16.gmra.mrb[0].mxu0 %v9170
    %v9226 = vpop.f32.mrb[0].mxu0
    %v9227 = vadd.f32 0.0, %v9226
    %v9228 = vpop.f32.mrb[0].mxu0
    %v9229 = vpop.f32.mrb[0].mxu0
    %v9230 = vadd.f32 0.0, %v9229
    %v9231 = vpop.f32.mrb[0].mxu0
    %9232 = vmatprep.mubr.bf16.mxu0 0
    %9233 = vmatmul.mubr.bf16.gmra.mrb[0].mxu0 %v9171
    %v9234 = vpop.f32.mrb[0].mxu0
    %v9235 = vadd.f32 0.0, %v9234
    %v9236 = vpop.f32.mrb[0].mxu0
    %v9237 = vpop.f32.mrb[0].mxu0
    %v9238 = vadd.f32 0.0, %v9237
    %v9239 = vpop.f32.mrb[0].mxu0
    %9240 = vmatprep.mubr.bf16.mxu0 0
    %9241 = vmatmul.mubr.bf16.gmra.mrb[0].mxu0 %v9172
    %v9242 = vpop.f32.mrb[0].mxu0
    %v9243 = vadd.f32 0.0, %v9242
    %v9244 = vpop.f32.mrb[0].mxu0
    %v9245 = vpop.f32.mrb[0].mxu0
    %v9246 = vadd.f32 0.0, %v9245
    %v9247 = vpop.f32.mrb[0].mxu0
    %9248 = vmatprep.mubr.bf16.mxu0 0
    %9249 = vmatmul.mubr.bf16.gmra.mrb[0].mxu0 %v9173
    %v9250 = vpop.f32.mrb[0].mxu0
    %v9251 = vadd.f32 0.0, %v9250
    %v9252 = vpop.f32.mrb[0].mxu0
    %v9253 = vpop.f32.mrb[0].mxu0
    %v9254 = vadd.f32 0.0, %v9253
    %v9255 = vpop.f32.mrb[0].mxu0
    %9256 = vmatprep.mubr.bf16.mxu0 0
    %9257 = vmatmul.mubr.bf16.gmra.mrb[0].mxu0 %v9174
    %v9258 = vpop.f32.mrb[0].mxu0
    %v9259 = vadd.f32 0.0, %v9258
    %v9260 = vpop.f32.mrb[0].mxu0
    %v9261 = vpop.f32.mrb[0].mxu0
    %v9262 = vadd.f32 0.0, %v9261
    %v9263 = vpop.f32.mrb[0].mxu0
    %9264 = vmatprep.mubr.bf16.mxu0 0
    %9265 = vmatmul.mubr.bf16.gmra.mrb[0].mxu0 %v9175
    %v9266 = vpop.f32.mrb[0].mxu0
    %v9267 = vadd.f32 0.0, %v9266
    %v9268 = vpop.f32.mrb[0].mxu0
    %v9269 = vpop.f32.mrb[0].mxu0
    %v9270 = vadd.f32 0.0, %v9269
    %v9271 = vpop.f32.mrb[0].mxu0
    %9272 = vdwg.mxu0
    %v9273 = vpack.c.bf16 %v7996, %v7993
    %v9274 = vpack.c.bf16 %v8402, %v8399
    %v9275 = vpack.c.bf16 %v8808, %v8805
    %v9276 = vpack.c.bf16 %v9214, %v9211
    %v9277 = vpack.c.bf16 %v8004, %v8001
    %v9278 = vpack.c.bf16 %v8410, %v8407
    %v9279 = vpack.c.bf16 %v8816, %v8813
    %v9280 = vpack.c.bf16 %v9222, %v9219
    %v9281 = vpack.c.bf16 %v8012, %v8009
    %v9282 = vpack.c.bf16 %v8418, %v8415
    %v9283 = vpack.c.bf16 %v8824, %v8821
    %v9284 = vpack.c.bf16 %v9230, %v9227
    %v9285 = vpack.c.bf16 %v8020, %v8017
    %v9286 = vpack.c.bf16 %v8426, %v8423
    %v9287 = vpack.c.bf16 %v8832, %v8829
    %v9288 = vpack.c.bf16 %v9238, %v9235
    %v9289 = vpack.c.bf16 %v8028, %v8025
    %v9290 = vpack.c.bf16 %v8434, %v8431
    %v9291 = vpack.c.bf16 %v8840, %v8837
    %v9292 = vpack.c.bf16 %v9246, %v9243
    %v9293 = vpack.c.bf16 %v8036, %v8033
    %v9294 = vpack.c.bf16 %v8442, %v8439
    %v9295 = vpack.c.bf16 %v8848, %v8845
    %v9296 = vpack.c.bf16 %v9254, %v9251
    %v9297 = vpack.c.bf16 %v8044, %v8041
    %v9298 = vpack.c.bf16 %v8450, %v8447
    %v9299 = vpack.c.bf16 %v8856, %v8853
    %v9300 = vpack.c.bf16 %v9262, %v9259
    %v9301 = vpack.c.bf16 %v8052, %v8049
    %v9302 = vpack.c.bf16 %v8458, %v8455
    %v9303 = vpack.c.bf16 %v8864, %v8861
    %v9304 = vpack.c.bf16 %v9270, %v9267
    %9305 = vmatprep.subr.bf16.mxu0 0
    %9306 = vmatpush1.bf16.msra.mxu0 %v7387
    %9307 = vmatprep.subr.bf16.mxu0 0
    %9308 = vmatpush1.bf16.msra.mxu0 %v7388
    %9309 = vmatprep.subr.bf16.mxu0 0
    %9310 = vmatpush1.bf16.msra.mxu0 %v7389
    %9311 = vmatprep.subr.bf16.mxu0 0
    %9312 = vmatpush1.bf16.msra.mxu0 %v7390
    %9313 = vmatprep.subr.bf16.mxu0 0
    %9314 = vmatpush1.bf16.msra.mxu0 %v7391
    %9315 = vmatprep.subr.bf16.mxu0 0
    %9316 = vmatpush1.bf16.msra.mxu0 %v7392
    %9317 = vmatprep.subr.bf16.mxu0 0
    %9318 = vmatpush1.bf16.msra.mxu0 %v7393
    %9319 = vmatprep.subr.bf16.mxu0 0
    %9320 = vmatpush1.bf16.msra.mxu0 %v7394
    %9321 = vmatprep.subr.bf16.mxu0 0
    %9322 = vmatpush1.bf16.msra.mxu0 %v7395
    %9323 = vmatprep.subr.bf16.mxu0 0
    %9324 = vmatpush1.bf16.msra.mxu0 %v7396
    %9325 = vmatprep.subr.bf16.mxu0 0
    %9326 = vmatpush1.bf16.msra.mxu0 %v7397
    %9327 = vmatprep.subr.bf16.mxu0 0
    %9328 = vmatpush1.bf16.msra.mxu0 %v7398
    %9329 = vmatprep.subr.bf16.mxu0 0
    %9330 = vmatpush1.bf16.msra.mxu0 %v7399
    %9331 = vmatprep.subr.bf16.mxu0 0
    %9332 = vmatpush1.bf16.msra.mxu0 %v7400
    %9333 = vmatprep.subr.bf16.mxu0 0
    %9334 = vmatpush1.bf16.msra.mxu0 %v7401
    %9335 = vmatprep.subr.bf16.mxu0 0
    %9336 = vmatpush1.bf16.msra.mxu0 %v7402
    %9337 = vmatprep.mubr.bf16.mxu0 %v9274
    %9338 = vmatmul.mubr.bf16.gmra.mrb[0].mxu0 %v9273
    %v9339 = vpop.f32.mrb[0].mxu0
    %v9340 = vadd.f32 0.0, %v9339
    %v9341 = vpop.f32.mrb[0].mxu0
    %v9342 = vpop.f32.mrb[0].mxu0
    %v9343 = vadd.f32 0.0, %v9342
    %v9344 = vpop.f32.mrb[0].mxu0
    %9345 = vmatprep.mubr.bf16.mxu0 %v9278
    %9346 = vmatmul.mubr.bf16.gmra.mrb[0].mxu0 %v9277
    %v9347 = vpop.f32.mrb[0].mxu0
    %v9348 = vadd.f32 0.0, %v9347
    %v9349 = vpop.f32.mrb[0].mxu0
    %v9350 = vpop.f32.mrb[0].mxu0
    %v9351 = vadd.f32 0.0, %v9350
    %v9352 = vpop.f32.mrb[0].mxu0
    %9353 = vmatprep.mubr.bf16.mxu0 %v9282
    %9354 = vmatmul.mubr.bf16.gmra.mrb[0].mxu0 %v9281
    %v9355 = vpop.f32.mrb[0].mxu0
    %v9356 = vadd.f32 0.0, %v9355
    %v9357 = vpop.f32.mrb[0].mxu0
    %v9358 = vpop.f32.mrb[0].mxu0
    %v9359 = vadd.f32 0.0, %v9358
    %v9360 = vpop.f32.mrb[0].mxu0
    %9361 = vmatprep.mubr.bf16.mxu0 %v9286
    %9362 = vmatmul.mubr.bf16.gmra.mrb[0].mxu0 %v9285
    %v9363 = vpop.f32.mrb[0].mxu0
    %v9364 = vadd.f32 0.0, %v9363
    %v9365 = vpop.f32.mrb[0].mxu0
    %v9366 = vpop.f32.mrb[0].mxu0
    %v9367 = vadd.f32 0.0, %v9366
    %v9368 = vpop.f32.mrb[0].mxu0
    %9369 = vmatprep.mubr.bf16.mxu0 %v9290
    %9370 = vmatmul.mubr.bf16.gmra.mrb[0].mxu0 %v9289
    %v9371 = vpop.f32.mrb[0].mxu0
    %v9372 = vadd.f32 0.0, %v9371
    %v9373 = vpop.f32.mrb[0].mxu0
    %v9374 = vpop.f32.mrb[0].mxu0
    %v9375 = vadd.f32 0.0, %v9374
    %v9376 = vpop.f32.mrb[0].mxu0
    %9377 = vmatprep.mubr.bf16.mxu0 %v9294
    %9378 = vmatmul.mubr.bf16.gmra.mrb[0].mxu0 %v9293
    %v9379 = vpop.f32.mrb[0].mxu0
    %v9380 = vadd.f32 0.0, %v9379
    %v9381 = vpop.f32.mrb[0].mxu0
    %v9382 = vpop.f32.mrb[0].mxu0
    %v9383 = vadd.f32 0.0, %v9382
    %v9384 = vpop.f32.mrb[0].mxu0
    %9385 = vmatprep.mubr.bf16.mxu0 %v9298
    %9386 = vmatmul.mubr.bf16.gmra.mrb[0].mxu0 %v9297
    %v9387 = vpop.f32.mrb[0].mxu0
    %v9388 = vadd.f32 0.0, %v9387
    %v9389 = vpop.f32.mrb[0].mxu0
    %v9390 = vpop.f32.mrb[0].mxu0
    %v9391 = vadd.f32 0.0, %v9390
    %v9392 = vpop.f32.mrb[0].mxu0
    %9393 = vmatprep.mubr.bf16.mxu0 %v9302
    %9394 = vmatmul.mubr.bf16.gmra.mrb[0].mxu0 %v9301
    %v9395 = vpop.f32.mrb[0].mxu0
    %v9396 = vadd.f32 0.0, %v9395
    %v9397 = vpop.f32.mrb[0].mxu0
    %v9398 = vpop.f32.mrb[0].mxu0
    %v9399 = vadd.f32 0.0, %v9398
    %v9400 = vpop.f32.mrb[0].mxu0
    %9401 = vdwg.mxu0
    %9402 = vmatprep.subr.bf16.mxu0 0
    %9403 = vmatpush1.bf16.msra.mxu0 %v7403
    %9404 = vmatprep.subr.bf16.mxu0 0
    %9405 = vmatpush1.bf16.msra.mxu0 %v7404
    %9406 = vmatprep.subr.bf16.mxu0 0
    %9407 = vmatpush1.bf16.msra.mxu0 %v7405
    %9408 = vmatprep.subr.bf16.mxu0 0
    %9409 = vmatpush1.bf16.msra.mxu0 %v7406
    %9410 = vmatprep.subr.bf16.mxu0 0
    %9411 = vmatpush1.bf16.msra.mxu0 %v7407
    %9412 = vmatprep.subr.bf16.mxu0 0
    %9413 = vmatpush1.bf16.msra.mxu0 %v7408
    %9414 = vmatprep.subr.bf16.mxu0 0
    %9415 = vmatpush1.bf16.msra.mxu0 %v7409
    %9416 = vmatprep.subr.bf16.mxu0 0
    %9417 = vmatpush1.bf16.msra.mxu0 %v7410
    %9418 = vmatprep.subr.bf16.mxu0 0
    %9419 = vmatpush1.bf16.msra.mxu0 %v7411
    %9420 = vmatprep.subr.bf16.mxu0 0
    %9421 = vmatpush1.bf16.msra.mxu0 %v7412
    %9422 = vmatprep.subr.bf16.mxu0 0
    %9423 = vmatpush1.bf16.msra.mxu0 %v7413
    %9424 = vmatprep.subr.bf16.mxu0 0
    %9425 = vmatpush1.bf16.msra.mxu0 %v7414
    %9426 = vmatprep.subr.bf16.mxu0 0
    %9427 = vmatpush1.bf16.msra.mxu0 %v7415
    %9428 = vmatprep.subr.bf16.mxu0 0
    %9429 = vmatpush1.bf16.msra.mxu0 %v7416
    %9430 = vmatprep.subr.bf16.mxu0 0
    %9431 = vmatpush1.bf16.msra.mxu0 %v7417
    %9432 = vmatprep.subr.bf16.mxu0 0
    %9433 = vmatpush1.bf16.msra.mxu0 %v7418
    %9434 = vmatprep.mubr.bf16.mxu0 %v9276
    %9435 = vmatmul.mubr.bf16.gmra.mrb[0].mxu0 %v9275
    %v9436 = vpop.f32.mrb[0].mxu0
    %v9437 = vadd.f32 %v9340, %v9436
    %v9438 = vpop.f32.mrb[0].mxu0
    %v9439 = vpop.f32.mrb[0].mxu0
    %v9440 = vadd.f32 %v9343, %v9439
    %v9441 = vpop.f32.mrb[0].mxu0
    %9442 = vmatprep.mubr.bf16.mxu0 %v9280
    %9443 = vmatmul.mubr.bf16.gmra.mrb[0].mxu0 %v9279
    %v9444 = vpop.f32.mrb[0].mxu0
    %v9445 = vadd.f32 %v9348, %v9444
    %v9446 = vpop.f32.mrb[0].mxu0
    %v9447 = vpop.f32.mrb[0].mxu0
    %v9448 = vadd.f32 %v9351, %v9447
    %v9449 = vpop.f32.mrb[0].mxu0
    %9450 = vmatprep.mubr.bf16.mxu0 %v9284
    %9451 = vmatmul.mubr.bf16.gmra.mrb[0].mxu0 %v9283
    %v9452 = vpop.f32.mrb[0].mxu0
    %v9453 = vadd.f32 %v9356, %v9452
    %v9454 = vpop.f32.mrb[0].mxu0
    %v9455 = vpop.f32.mrb[0].mxu0
    %v9456 = vadd.f32 %v9359, %v9455
    %v9457 = vpop.f32.mrb[0].mxu0
    %9458 = vmatprep.mubr.bf16.mxu0 %v9288
    %9459 = vmatmul.mubr.bf16.gmra.mrb[0].mxu0 %v9287
    %v9460 = vpop.f32.mrb[0].mxu0
    %v9461 = vadd.f32 %v9364, %v9460
    %v9462 = vpop.f32.mrb[0].mxu0
    %v9463 = vpop.f32.mrb[0].mxu0
    %v9464 = vadd.f32 %v9367, %v9463
    %v9465 = vpop.f32.mrb[0].mxu0
    %9466 = vmatprep.mubr.bf16.mxu0 %v9292
    %9467 = vmatmul.mubr.bf16.gmra.mrb[0].mxu0 %v9291
    %v9468 = vpop.f32.mrb[0].mxu0
    %v9469 = vadd.f32 %v9372, %v9468
    %v9470 = vpop.f32.mrb[0].mxu0
    %v9471 = vpop.f32.mrb[0].mxu0
    %v9472 = vadd.f32 %v9375, %v9471
    %v9473 = vpop.f32.mrb[0].mxu0
    %9474 = vmatprep.mubr.bf16.mxu0 %v9296
    %9475 = vmatmul.mubr.bf16.gmra.mrb[0].mxu0 %v9295
    %v9476 = vpop.f32.mrb[0].mxu0
    %v9477 = vadd.f32 %v9380, %v9476
    %v9478 = vpop.f32.mrb[0].mxu0
    %v9479 = vpop.f32.mrb[0].mxu0
    %v9480 = vadd.f32 %v9383, %v9479
    %v9481 = vpop.f32.mrb[0].mxu0
    %9482 = vmatprep.mubr.bf16.mxu0 %v9300
    %9483 = vmatmul.mubr.bf16.gmra.mrb[0].mxu0 %v9299
    %v9484 = vpop.f32.mrb[0].mxu0
    %v9485 = vadd.f32 %v9388, %v9484
    %v9486 = vpop.f32.mrb[0].mxu0
    %v9487 = vpop.f32.mrb[0].mxu0
    %v9488 = vadd.f32 %v9391, %v9487
    %v9489 = vpop.f32.mrb[0].mxu0
    %9490 = vmatprep.mubr.bf16.mxu0 %v9304
    %9491 = vmatmul.mubr.bf16.gmra.mrb[0].mxu0 %v9303
    %v9492 = vpop.f32.mrb[0].mxu0
    %v9493 = vadd.f32 %v9396, %v9492
    %v9494 = vpop.f32.mrb[0].mxu0
    %v9495 = vpop.f32.mrb[0].mxu0
    %v9496 = vadd.f32 %v9399, %v9495
    %v9497 = vpop.f32.mrb[0].mxu0
    %9498 = vdwg.mxu0
    %v9499 = vmul.f32 %v9437, 0.25
    %v9500 = vmul.f32 %v9440, 0.25
    %v9501 = vmul.f32 %v9445, 0.25
    %v9502 = vmul.f32 %v9448, 0.25
    %v9503 = vmul.f32 %v9453, 0.25
    %v9504 = vmul.f32 %v9456, 0.25
    %v9505 = vmul.f32 %v9461, 0.25
    %v9506 = vmul.f32 %v9464, 0.25
    %v9507 = vmul.f32 %v9469, 0.25
    %v9508 = vmul.f32 %v9472, 0.25
    %v9509 = vmul.f32 %v9477, 0.25
    %v9510 = vmul.f32 %v9480, 0.25
    %v9511 = vmul.f32 %v9485, 0.25
    %v9512 = vmul.f32 %v9488, 0.25
    %v9513 = vmul.f32 %v9493, 0.25
    %v9514 = vmul.f32 %v9496, 0.25
    %v9516 = vlaneseq
    %v9517 = vshrl.u32 %v9516, 7
    %v9518 = vsub.s32 0, %v9517
    %v9519 = vrot.slane %v7439, %v9518
    %v9521 = vadd.f32 %v9499, %v9519
    %v9522 = vadd.f32 %v9500, %v9519
    %v9523 = vadd.f32 %v9501, %v9519
    %v9524 = vadd.f32 %v9502, %v9519
    %v9525 = vadd.f32 %v9503, %v9519
    %v9526 = vadd.f32 %v9504, %v9519
    %v9527 = vadd.f32 %v9505, %v9519
    %v9528 = vadd.f32 %v9506, %v9519
    %v9529 = vadd.f32 %v9507, %v9519
    %v9530 = vadd.f32 %v9508, %v9519
    %v9531 = vadd.f32 %v9509, %v9519
    %v9532 = vadd.f32 %v9510, %v9519
    %v9533 = vadd.f32 %v9511, %v9519
    %v9534 = vadd.f32 %v9512, %v9519
    %v9535 = vadd.f32 %v9513, %v9519
    %v9536 = vadd.f32 %v9514, %v9519
    %v9537 = vadd.f32 %v9521, %v9522
    %v9538 = vadd.f32 %v9537, %v9523
    %v9539 = vadd.f32 %v9538, %v9524
    %v9540 = vadd.f32 %v9539, %v9525
    %v9541 = vadd.f32 %v9540, %v9526
    %v9542 = vadd.f32 %v9541, %v9527
    %v9543 = vadd.f32 %v9542, %v9528
    %v9544 = vadd.f32 %v9543, %v9529
    %v9545 = vadd.f32 %v9544, %v9530
    %v9546 = vadd.f32 %v9545, %v9531
    %v9547 = vadd.f32 %v9546, %v9532
    %v9548 = vadd.f32 %v9547, %v9533
    %v9549 = vadd.f32 %v9548, %v9534
    %v9550 = vadd.f32 %v9549, %v9535
    %v9551 = vadd.f32 %v9550, %v9536
    %v9552 = vrot.slane %v9551, 4
    %v9553 = vadd.f32 %v9551, %v9552
    %v9554 = vrot.slane %v9553, 2
    %v9555 = vadd.f32 %v9553, %v9554
    %v9556 = vrot.slane %v9555, 1
    %v9557 = vadd.f32 %v9555, %v9556
    %v9558 = vmul.f32 %v9557, %v4764
    %s9559 = scalar_lea.vmem [#allocation31], 2
    %v9560 = vld [vmem:[%s9559] sm:$0x1]
    %v9561 = vmul.f32 %v9560, %v9558
    %v9563 = vlaneseq
    %v9564 = vshrl.u32 %v9563, 7
    %v9565 = vsub.s32 0, %v9564
    %v9566 = vrot.slane %v9561, %v9565
    %v9568 = vsub.f32 %v9521, %v9566
    %v9569 = vsub.f32 %v9522, %v9566
    %v9570 = vsub.f32 %v9523, %v9566
    %v9571 = vsub.f32 %v9524, %v9566
    %v9572 = vsub.f32 %v9525, %v9566
    %v9573 = vsub.f32 %v9526, %v9566
    %v9574 = vsub.f32 %v9527, %v9566
    %v9575 = vsub.f32 %v9528, %v9566
    %v9576 = vsub.f32 %v9529, %v9566
    %v9577 = vsub.f32 %v9530, %v9566
    %v9578 = vsub.f32 %v9531, %v9566
    %v9579 = vsub.f32 %v9532, %v9566
    %v9580 = vsub.f32 %v9533, %v9566
    %v9581 = vsub.f32 %v9534, %v9566
    %v9582 = vsub.f32 %v9535, %v9566
    %v9583 = vsub.f32 %v9536, %v9566
    %v9584 = vmul.f32 %v9568, %v9568
    %v9585 = vmul.f32 %v9569, %v9569
    %v9586 = vmul.f32 %v9570, %v9570
    %v9587 = vmul.f32 %v9571, %v9571
    %v9588 = vmul.f32 %v9572, %v9572
    %v9589 = vmul.f32 %v9573, %v9573
    %v9590 = vmul.f32 %v9574, %v9574
    %v9591 = vmul.f32 %v9575, %v9575
    %v9592 = vmul.f32 %v9576, %v9576
    %v9593 = vmul.f32 %v9577, %v9577
    %v9594 = vmul.f32 %v9578, %v9578
    %v9595 = vmul.f32 %v9579, %v9579
    %v9596 = vmul.f32 %v9580, %v9580
    %v9597 = vmul.f32 %v9581, %v9581
    %v9598 = vmul.f32 %v9582, %v9582
    %v9599 = vmul.f32 %v9583, %v9583
    %v9600 = vadd.f32 %v9584, %v9585
    %v9601 = vadd.f32 %v9600, %v9586
    %v9602 = vadd.f32 %v9601, %v9587
    %v9603 = vadd.f32 %v9602, %v9588
    %v9604 = vadd.f32 %v9603, %v9589
    %v9605 = vadd.f32 %v9604, %v9590
    %v9606 = vadd.f32 %v9605, %v9591
    %v9607 = vadd.f32 %v9606, %v9592
    %v9608 = vadd.f32 %v9607, %v9593
    %v9609 = vadd.f32 %v9608, %v9594
    %v9610 = vadd.f32 %v9609, %v9595
    %v9611 = vadd.f32 %v9610, %v9596
    %v9612 = vadd.f32 %v9611, %v9597
    %v9613 = vadd.f32 %v9612, %v9598
    %v9614 = vadd.f32 %v9613, %v9599
    %v9615 = vrot.slane %v9614, 4
    %v9616 = vadd.f32 %v9614, %v9615
    %v9617 = vrot.slane %v9616, 2
    %v9618 = vadd.f32 %v9616, %v9617
    %v9619 = vrot.slane %v9618, 1
    %v9620 = vadd.f32 %v9618, %v9619
    %v9621 = vmul.f32 %v9620, %v4764
    %s9622 = scalar_lea.vmem [#allocation28], 2
    %v9623 = vld [vmem:[%s9622] sm:$0x1]
    %v9625 = vlaneseq
    %v9626 = vshrl.u32 %v9625, 7
    %v9627 = vsub.s32 0, %v9626
    %v9628 = vrot.slane %v9623, %v9627
    %v9630 = vmul.f32 %v9628, %v9568
    %v9631 = vmul.f32 %v9628, %v9569
    %v9632 = vmul.f32 %v9628, %v9570
    %v9633 = vmul.f32 %v9628, %v9571
    %v9634 = vmul.f32 %v9628, %v9572
    %v9635 = vmul.f32 %v9628, %v9573
    %v9636 = vmul.f32 %v9628, %v9574
    %v9637 = vmul.f32 %v9628, %v9575
    %v9638 = vmul.f32 %v9628, %v9576
    %v9639 = vmul.f32 %v9628, %v9577
    %v9640 = vmul.f32 %v9628, %v9578
    %v9641 = vmul.f32 %v9628, %v9579
    %v9642 = vmul.f32 %v9628, %v9580
    %v9643 = vmul.f32 %v9628, %v9581
    %v9644 = vmul.f32 %v9628, %v9582
    %v9645 = vmul.f32 %v9628, %v9583
    %v9646 = vadd.f32 %v9621, 1e-05
    %v9647 = vrsqrt.pop %v9646
    %v9648 = vmul.f32 %v9630, %v9647
    %v9649 = vmul.f32 %v9631, %v9647
    %v9650 = vmul.f32 %v9632, %v9647
    %v9651 = vmul.f32 %v9633, %v9647
    %v9652 = vmul.f32 %v9634, %v9647
    %v9653 = vmul.f32 %v9635, %v9647
    %v9654 = vmul.f32 %v9636, %v9647
    %v9655 = vmul.f32 %v9637, %v9647
    %v9656 = vmul.f32 %v9638, %v9647
    %v9657 = vmul.f32 %v9639, %v9647
    %v9658 = vmul.f32 %v9640, %v9647
    %v9659 = vmul.f32 %v9641, %v9647
    %v9660 = vmul.f32 %v9642, %v9647
    %v9661 = vmul.f32 %v9643, %v9647
    %v9662 = vmul.f32 %v9644, %v9647
    %v9663 = vmul.f32 %v9645, %v9647
    %s9664 = scalar_lea.vmem [#allocation29], 2
    %v9665 = vld [vmem:[%s9664] sm:$0x1]
    %v9667 = vlaneseq
    %v9668 = vshrl.u32 %v9667, 7
    %v9669 = vsub.s32 0, %v9668
    %v9670 = vrot.slane %v9665, %v9669
    %v9672 = vadd.f32 %v9648, %v9670
    %v9673 = vadd.f32 %v9649, %v9670
    %v9674 = vadd.f32 %v9650, %v9670
    %v9675 = vadd.f32 %v9651, %v9670
    %v9676 = vadd.f32 %v9652, %v9670
    %v9677 = vadd.f32 %v9653, %v9670
    %v9678 = vadd.f32 %v9654, %v9670
    %v9679 = vadd.f32 %v9655, %v9670
    %v9680 = vadd.f32 %v9656, %v9670
    %v9681 = vadd.f32 %v9657, %v9670
    %v9682 = vadd.f32 %v9658, %v9670
    %v9683 = vadd.f32 %v9659, %v9670
    %v9684 = vadd.f32 %v9660, %v9670
    %v9685 = vadd.f32 %v9661, %v9670
    %v9686 = vadd.f32 %v9662, %v9670
    %v9687 = vadd.f32 %v9663, %v9670
    %v9688 = vadd.f32 %v9672, %v7370
    %v9689 = vadd.f32 %v9673, %v7371
    %v9690 = vadd.f32 %v9674, %v7372
    %v9691 = vadd.f32 %v9675, %v7373
    %v9692 = vadd.f32 %v9676, %v7374
    %v9693 = vadd.f32 %v9677, %v7375
    %v9694 = vadd.f32 %v9678, %v7376
    %v9695 = vadd.f32 %v9679, %v7377
    %v9696 = vadd.f32 %v9680, %v7378
    %v9697 = vadd.f32 %v9681, %v7379
    %v9698 = vadd.f32 %v9682, %v7380
    %v9699 = vadd.f32 %v9683, %v7381
    %v9700 = vadd.f32 %v9684, %v7382
    %v9701 = vadd.f32 %v9685, %v7383
    %v9702 = vadd.f32 %v9686, %v7384
    %v9703 = vadd.f32 %v9687, %v7385
    %vm9704 = vcmp.gt.f32.partialorder %v9688, 0.0
    %vm9705 = vcmp.gt.f32.partialorder %v9689, 0.0
    %vm9706 = vcmp.gt.f32.partialorder %v9690, 0.0
    %vm9707 = vcmp.gt.f32.partialorder %v9691, 0.0
    %vm9708 = vcmp.gt.f32.partialorder %v9692, 0.0
    %vm9709 = vcmp.gt.f32.partialorder %v9693, 0.0
    %vm9710 = vcmp.gt.f32.partialorder %v9694, 0.0
    %vm9711 = vcmp.gt.f32.partialorder %v9695, 0.0
    %vm9712 = vcmp.gt.f32.partialorder %v9696, 0.0
    %vm9713 = vcmp.gt.f32.partialorder %v9697, 0.0
    %vm9714 = vcmp.gt.f32.partialorder %v9698, 0.0
    %vm9715 = vcmp.gt.f32.partialorder %v9699, 0.0
    %vm9716 = vcmp.gt.f32.partialorder %v9700, 0.0
    %vm9717 = vcmp.gt.f32.partialorder %v9701, 0.0
    %vm9718 = vcmp.gt.f32.partialorder %v9702, 0.0
    %vm9719 = vcmp.gt.f32.partialorder %v9703, 0.0
    %v9720 = vmul.f32 %v9688, 1.442695
    %v9721 = vpow.pop %v9720
    %v9722 = vmul.f32 %v9689, 1.442695
    %v9723 = vpow.pop %v9722
    %v9724 = vmul.f32 %v9690, 1.442695
    %v9725 = vpow.pop %v9724
    %v9726 = vmul.f32 %v9691, 1.442695
    %v9727 = vpow.pop %v9726
    %v9728 = vmul.f32 %v9692, 1.442695
    %v9729 = vpow.pop %v9728
    %v9730 = vmul.f32 %v9693, 1.442695
    %v9731 = vpow.pop %v9730
    %v9732 = vmul.f32 %v9694, 1.442695
    %v9733 = vpow.pop %v9732
    %v9734 = vmul.f32 %v9695, 1.442695
    %v9735 = vpow.pop %v9734
    %v9736 = vmul.f32 %v9696, 1.442695
    %v9737 = vpow.pop %v9736
    %v9738 = vmul.f32 %v9697, 1.442695
    %v9739 = vpow.pop %v9738
    %v9740 = vmul.f32 %v9698, 1.442695
    %v9741 = vpow.pop %v9740
    %v9742 = vmul.f32 %v9699, 1.442695
    %v9743 = vpow.pop %v9742
    %v9744 = vmul.f32 %v9700, 1.442695
    %v9745 = vpow.pop %v9744
    %v9746 = vmul.f32 %v9701, 1.442695
    %v9747 = vpow.pop %v9746
    %v9748 = vmul.f32 %v9702, 1.442695
    %v9749 = vpow.pop %v9748
    %v9750 = vmul.f32 %v9703, 1.442695
    %v9751 = vpow.pop %v9750
    %v9752 = vsub.f32 %v9721, 1.0
    %v9753 = vsub.f32 %v9723, 1.0
    %v9754 = vsub.f32 %v9725, 1.0
    %v9755 = vsub.f32 %v9727, 1.0
    %v9756 = vsub.f32 %v9729, 1.0
    %v9757 = vsub.f32 %v9731, 1.0
    %v9758 = vsub.f32 %v9733, 1.0
    %v9759 = vsub.f32 %v9735, 1.0
    %v9760 = vsub.f32 %v9737, 1.0
    %v9761 = vsub.f32 %v9739, 1.0
    %v9762 = vsub.f32 %v9741, 1.0
    %v9763 = vsub.f32 %v9743, 1.0
    %v9764 = vsub.f32 %v9745, 1.0
    %v9765 = vsub.f32 %v9747, 1.0
    %v9766 = vsub.f32 %v9749, 1.0
    %v9767 = vsub.f32 %v9751, 1.0
    %v9768 = vsel %vm9704, %v9688, %v9752
    %v9769 = vsel %vm9705, %v9689, %v9753
    %v9770 = vsel %vm9706, %v9690, %v9754
    %v9771 = vsel %vm9707, %v9691, %v9755
    %v9772 = vsel %vm9708, %v9692, %v9756
    %v9773 = vsel %vm9709, %v9693, %v9757
    %v9774 = vsel %vm9710, %v9694, %v9758
    %v9775 = vsel %vm9711, %v9695, %v9759
    %v9776 = vsel %vm9712, %v9696, %v9760
    %v9777 = vsel %vm9713, %v9697, %v9761
    %v9778 = vsel %vm9714, %v9698, %v9762
    %v9779 = vsel %vm9715, %v9699, %v9763
    %v9780 = vsel %vm9716, %v9700, %v9764
    %v9781 = vsel %vm9717, %v9701, %v9765
    %v9782 = vsel %vm9718, %v9702, %v9766
    %v9783 = vsel %vm9719, %v9703, %v9767
    %9784 = vst [vmem:[%s27] sm:$0xff] %v9768
    %9785 = vst [vmem:[%s27 + $0x8] sm:$0xff] %v9769
    %9786 = vst [vmem:[%s27 + $0x10] sm:$0xff] %v9770
    %9787 = vst [vmem:[%s27 + $0x18] sm:$0xff] %v9771
    %9788 = vst [vmem:[%s27 + $0x20] sm:$0xff] %v9772
    %9789 = vst [vmem:[%s27 + $0x28] sm:$0xff] %v9773
    %9790 = vst [vmem:[%s27 + $0x30] sm:$0xff] %v9774
    %9791 = vst [vmem:[%s27 + $0x38] sm:$0xff] %v9775
    %9792 = vst [vmem:[%s27 + $0x40] sm:$0xff] %v9776
    %9793 = vst [vmem:[%s27 + $0x48] sm:$0xff] %v9777
    %9794 = vst [vmem:[%s27 + $0x50] sm:$0xff] %v9778
    %9795 = vst [vmem:[%s27 + $0x58] sm:$0xff] %v9779
    %9796 = vst [vmem:[%s27 + $0x60] sm:$0xff] %v9780
    %9797 = vst [vmem:[%s27 + $0x68] sm:$0xff] %v9781
    %9798 = vst [vmem:[%s27 + $0x70] sm:$0xff] %v9782
    %9799 = vst [vmem:[%s27 + $0x78] sm:$0xff] %v9783
    // Predicated region
    $region178: #{enriched_gat_forward.1} parent=1 // pred_check
      _
    $region179: #{enriched_gat_forward.1} parent=1 // pred_check_branch
      %9801 = sbr.rel (0) target = $region181
    $region180: #{enriched_gat_forward.1} parent=1 // pred_region
      _
    $region181: #{enriched_gat_forward.1} parent=1 // pred_fallthru
      _
    // Predicated region
    $region182: #{enriched_gat_forward.1} parent=1 // pred_check
      _
    $region183: #{enriched_gat_forward.1} parent=1 // pred_check_branch
      %9803 = sbr.rel (0) target = $region185
    $region184: #{enriched_gat_forward.1} parent=1 // pred_region
      _
    $region185: #{enriched_gat_forward.1} parent=1 // pred_fallthru
      _
    %9804 = vsyncpa [#allocation7], 1
    %9805 = vsyncpa [#allocation9], 1
    %9806 = vsyncpa [#allocation12], 1
    %9807 = vsyncpa [#allocation15], 1
    %9808 = vsyncpa [#allocation18], 1
    %9809 = vsyncpa [#allocation21], 1
    %9810 = vsyncpa [#allocation24], 1
    %9811 = vsyncpa [#allocation27], 1
    %9812 = vsyncpa [#allocation30], 1
  %9813 = vsyncmov [#allocation5]
  %s9814 = vpop.sfrf %9813
  %p9815 = scmp.eq.s32.totalorder %s9814, 0
  %p9816 = pneg %p9815
  %9818 = shalt.err (%p9816)
  %s9819 = scalar_lea.sflag [#allocation5], 1
  %9820 = vsyncmov %s9819
  %s9821 = vpop.sfrf %9820
  %p9822 = scmp.eq.s32.totalorder %s9821, 0
  %p9823 = pneg %p9822
  %9825 = shalt.err (%p9823)

</llo_original>
